<compile_context>
chip_gen: v7x
topology: tpu7x:2x2x1
jax: 0.10.0
libtpu: 0.0.40
codegen_flags: <defaults>
</compile_context>

<pallas_src>
import math

import jax
import jax.numpy as jnp
from jax.experimental import pallas as pl
from jax.experimental.pallas import tpu as pltpu

# ---------------- config (small, forward-consistent shapes) ----------------
VOCAB = 64
HIDDEN = 32
NUM_HEADS = 4
HEAD_DIM = HIDDEN // NUM_HEADS
FFN = 64
SEQ = 8
BATCH = 2
PAD_ID = 0
START_ID = 1
END_ID = 2
NEG_INF = -1e9
LN_EPS = 1e-5          # match PyTorch LayerNorm default
STATS_W = 128          # lane-dense stats slab: [loss_sum, correct, denom, 0...]

# Row indices into the stacked (8, HIDDEN) LayerNorm gamma/beta tables.
LN_SRC_EMB, LN_TGT_EMB, LN_ENC1, LN_ENC2, LN_KEY, LN_DEC1, LN_DEC2, LN_DEC3 = range(8)


# ---------------- the fused forward kernel (one grid step per batch item) ----------------
def _pegasus_forward_kernel(
    # per-batch data
    x_enc_ref,        # (1, 2S, H)  [article ; titles] embedding sums (pre-LN)
    x_tgt_ref,        # (1, S, H)   shifted-target embedding sums (pre-LN)
    enc_kv_bias_ref,  # (1, 1, 2S)  [article pad bias | titles pad bias]
    tgt_lab_ref,      # (1, S, 1)   int32 target labels
    # shared weights (constant index_map -> VMEM-resident across the grid)
    ln_g_ref, ln_b_ref,
    enc_wqkv_ref, enc_bqkv_ref, enc_wo_ref, enc_bo_ref,
    enc_w1_ref, enc_b1_ref, enc_w2_ref, enc_b2_ref,
    key_wq_ref, key_bq_ref, key_wkv_ref, key_bkv_ref, key_wo_ref, key_bo_ref,
    dsa_wqkv_ref, dsa_bqkv_ref, dsa_wo_ref, dsa_bo_ref,
    dca_wq_ref, dca_bq_ref, dca_wkv_ref, dca_bkv_ref, dca_wo_ref, dca_bo_ref,
    dec_w1_ref, dec_b1_ref, dec_w2_ref, dec_b2_ref,
    out_w_ref, out_b_ref,
    # output
    stats_ref,        # (1, 1, STATS_W)
):
    H = HIDDEN
    ln_g = ln_g_ref[...]
    ln_b = ln_b_ref[...]

    def layer_norm(x, idx):
        mu = jnp.mean(x, axis=-1, keepdims=True)
        xc = x - mu
        var = jnp.mean(xc * xc, axis=-1, keepdims=True)
        return xc * jax.lax.rsqrt(var + LN_EPS) * ln_g[idx:idx + 1] + ln_b[idx:idx + 1]

    def dense(x, w, b):
        return jax.lax.dot_general(
            x, w, (((1,), (0,)), ((), ())),
            preferred_element_type=jnp.float32) + b

    def mha(q, k, v, bias, wo, bo):
        # q: (Mq, H), k/v: (Mk, H), bias broadcastable to (Mq, Mk).
        # Heads are split with static lane slices; the output projection is
        # folded per head (sum_h ctx_h @ wo[h*D:(h+1)*D]) -> no lane concat.
        scale = 1.0 / math.sqrt(HEAD_DIM)
        out = jnp.zeros((q.shape[0], H), jnp.float32)
        for h in range(NUM_HEADS):
            sl = slice(h * HEAD_DIM, (h + 1) * HEAD_DIM)
            s = jax.lax.dot_general(          # contract last axes; no k.T
                q[:, sl], k[:, sl], (((1,), (1,)), ((), ())),
                preferred_element_type=jnp.float32) * scale
            s = s + bias
            s = s - jnp.max(s, axis=-1, keepdims=True)
            p = jnp.exp(s)
            p = p / jnp.sum(p, axis=-1, keepdims=True)
            ctx = jax.lax.dot_general(
                p, v[:, sl], (((1,), (0,)), ((), ())),
                preferred_element_type=jnp.float32)
            out = out + jax.lax.dot_general(
                ctx, wo[sl, :], (((1,), (0,)), ((), ())),
                preferred_element_type=jnp.float32)
        return out + bo

    # ---- shared encoder over stacked [article ; titles] (M = 2S) ----
    kv_bias = enc_kv_bias_ref[0]                                   # (1, 2S)
    row_seg = jax.lax.broadcasted_iota(jnp.int32, (2 * SEQ, 2 * SEQ), 0) >= SEQ
    col_seg = jax.lax.broadcasted_iota(jnp.int32, (2 * SEQ, 2 * SEQ), 1) >= SEQ
    enc_bias = jnp.where(row_seg != col_seg, NEG_INF, 0.0) + kv_bias  # block-diag + key pad

    x = layer_norm(x_enc_ref[0], LN_SRC_EMB)                       # (2S, H)
    qkv = dense(x, enc_wqkv_ref[...], enc_bqkv_ref[...])           # fused QKV (2S, 3H)
    att = mha(qkv[:, :H], qkv[:, H:2 * H], qkv[:, 2 * H:], enc_bias,
              enc_wo_ref[...], enc_bo_ref[...])
    x = layer_norm(x + att, LN_ENC1)
    hid = jnp.maximum(dense(x, enc_w1_ref[...], enc_b1_ref[...]), 0.0)
    x = layer_norm(x + dense(hid, enc_w2_ref[...], enc_b2_ref[...]), LN_ENC2)

    art_out = x[:SEQ]                                              # (S, H)
    tit_out = x[SEQ:]                                              # (S, H)
    art_bias = kv_bias[:, :SEQ]                                    # (1, S)
    tit_bias = kv_bias[:, SEQ:]                                    # (1, S)

    # ---- KeywordAttn "AddFuse": article cross-attends titles, add + LayerNorm ----
    q = dense(art_out, key_wq_ref[...], key_bq_ref[...])
    kv = dense(tit_out, key_wkv_ref[...], key_bkv_ref[...])        # fused K|V (S, 2H)
    att = mha(q, kv[:, :H], kv[:, H:], tit_bias, key_wo_ref[...], key_bo_ref[...])
    enc_fused = layer_norm(art_out + att, LN_KEY)                  # (S, H)

    # ---- decoder: causal self-attn, cross-attn over fused encoder, FFN ----
    d = layer_norm(x_tgt_ref[0], LN_TGT_EMB)                       # (S, H)
    rows = jax.lax.broadcasted_iota(jnp.int32, (SEQ, SEQ), 0)
    cols = jax.lax.broadcasted_iota(jnp.int32, (SEQ, SEQ), 1)
    causal = jnp.where(cols > rows, NEG_INF, 0.0)

    qkv = dense(d, dsa_wqkv_ref[...], dsa_bqkv_ref[...])
    att = mha(qkv[:, :H], qkv[:, H:2 * H], qkv[:, 2 * H:], causal,
              dsa_wo_ref[...], dsa_bo_ref[...])
    d = layer_norm(d + att, LN_DEC1)

    q = dense(d, dca_wq_ref[...], dca_bq_ref[...])
    kv = dense(enc_fused, dca_wkv_ref[...], dca_bkv_ref[...])
    catt = mha(q, kv[:, :H], kv[:, H:], art_bias, dca_wo_ref[...], dca_bo_ref[...])
    d = layer_norm(d + catt, LN_DEC2)

    hid = jnp.maximum(dense(d, dec_w1_ref[...], dec_b1_ref[...]), 0.0)
    d = layer_norm(d + dense(hid, dec_w2_ref[...], dec_b2_ref[...]), LN_DEC3)

    # ---- LM target: log-softmax NLL via iota==label select (no dense one-hot) ----
    logits = dense(d, out_w_ref[...], out_b_ref[...])              # (S, V)
    labels = tgt_lab_ref[0]                                        # (S, 1) int32
    vocab_iota = jax.lax.broadcasted_iota(jnp.int32, (SEQ, VOCAB), 1)
    label_logit = jnp.sum(jnp.where(vocab_iota == labels, logits, 0.0),
                          axis=-1, keepdims=True)                  # (S, 1)
    mx = jnp.max(logits, axis=-1, keepdims=True)
    lse = mx + jnp.log(jnp.sum(jnp.exp(logits - mx), axis=-1, keepdims=True))
    nll = lse - label_logit                                        # (S, 1)
    mask = (labels != PAD_ID).astype(jnp.float32)                  # ignore_index = PAD

    loss_sum = jnp.sum(nll * mask, keepdims=True)                  # (1, 1)
    correct = jnp.sum(jnp.where(label_logit >= mx, 1.0, 0.0) * mask, keepdims=True)
    denom = jnp.sum(mask, keepdims=True)

    lane = jax.lax.broadcasted_iota(jnp.int32, (1, STATS_W), 1)
    stats_ref[0] = (jnp.where(lane == 0, loss_sum, 0.0)
                    + jnp.where(lane == 1, correct, 0.0)
                    + jnp.where(lane == 2, denom, 0.0))


# ---------------- weight packing (QKV / KV fusion, stacked LayerNorm params) ----------------
def pack_weights(p):
    r = lambda v: v.reshape(1, -1)
    cat1 = lambda *vs: jnp.concatenate(vs, axis=1)
    ln_g = jnp.stack([p["src_emb_ln_g"], p["tgt_emb_ln_g"],
                      p["enc_ln1_g"], p["enc_ln2_g"], p["key_ln_g"],
                      p["dec_ln1_g"], p["dec_ln2_g"], p["dec_ln3_g"]])
    ln_b = jnp.stack([p["src_emb_ln_b"], p["tgt_emb_ln_b"],
                      p["enc_ln1_b"], p["enc_ln2_b"], p["key_ln_b"],
                      p["dec_ln1_b"], p["dec_ln2_b"], p["dec_ln3_b"]])
    return [
        ln_g, ln_b,
        # shared encoder self-attention (fused QKV) + FFN
        cat1(p["enc_att_wq"], p["enc_att_wk"], p["enc_att_wv"]),
        r(jnp.concatenate([p["enc_att_bq"], p["enc_att_bk"], p["enc_att_bv"]])),
        p["enc_att_wo"], r(p["enc_att_bo"]),
        p["enc_ff_w1"], r(p["enc_ff_b1"]), p["enc_ff_w2"], r(p["enc_ff_b2"]),
        # KeywordAttn cross-attention: Q separate, fused K|V
        p["key_att_wq"], r(p["key_att_bq"]),
        cat1(p["key_att_wk"], p["key_att_wv"]),
        r(jnp.concatenate([p["key_att_bk"], p["key_att_bv"]])),
        p["key_att_wo"], r(p["key_att_bo"]),
        # decoder self-attention (fused QKV)
        cat1(p["dec_self_wq"], p["dec_self_wk"], p["dec_self_wv"]),
        r(jnp.concatenate([p["dec_self_bq"], p["dec_self_bk"], p["dec_self_bv"]])),
        p["dec_self_wo"], r(p["dec_self_bo"]),
        # decoder cross-attention
        p["dec_cross_wq"], r(p["dec_cross_bq"]),
        cat1(p["dec_cross_wk"], p["dec_cross_wv"]),
        r(jnp.concatenate([p["dec_cross_bk"], p["dec_cross_bv"]])),
        p["dec_cross_wo"], r(p["dec_cross_bo"]),
        # decoder FFN
        p["dec_ff_w1"], r(p["dec_ff_b1"]), p["dec_ff_w2"], r(p["dec_ff_b2"]),
        # LM output projection
        p["out_w"], r(p["out_b"]),
    ]


# ---------------- forward wrapper (token-level XLA glue + one pallas_call) ----------------
def pegasus_forward(p, article, titles, tgt):
    B, S = article.shape
    H = HIDDEN

    # Embedding gathers (word + position + seg=1), target shift, padding biases.
    pos = p["src_emb_pos"][:S][None]                       # (1, S, H)
    seg1_src = p["src_emb_seg"][1][None, None]             # seg = ones_like(src)
    art_emb = p["src_emb_word"][article] + pos + seg1_src
    tit_emb = p["src_emb_word"][titles] + pos + seg1_src
    x_enc = jnp.concatenate([art_emb, tit_emb], axis=1)    # (B, 2S, H)

    tgt_input = jnp.concatenate(
        [jnp.full((B, 1), START_ID, dtype=tgt.dtype), tgt[:, :-1]], axis=1)
    x_tgt = (p["tgt_emb_word"][tgt_input] + p["tgt_emb_pos"][:S][None]
             + p["tgt_emb_seg"][1][None, None])            # (B, S, H)

    pad_bias = lambda t: jnp.where(t == PAD_ID, NEG_INF, 0.0).astype(jnp.float32)
    enc_kv_bias = jnp.concatenate([pad_bias(article), pad_bias(titles)],
                                  axis=1)[:, None, :]      # (B, 1, 2S)
    tgt_labels = tgt.astype(jnp.int32)[:, :, None]         # (B, S, 1)

    data = [x_enc, x_tgt, enc_kv_bias, tgt_labels]
    weights = pack_weights(p)

    data_specs = [
        pl.BlockSpec((1, 2 * S, H), lambda b: (b, 0, 0)),
        pl.BlockSpec((1, S, H), lambda b: (b, 0, 0)),
        pl.BlockSpec((1, 1, 2 * S), lambda b: (b, 0, 0)),
        pl.BlockSpec((1, S, 1), lambda b: (b, 0, 0)),
    ]
    # Weights: full-array blocks, constant index_map -> fetched once, VMEM-resident.
    weight_specs = [pl.BlockSpec(w.shape, lambda b: (0, 0)) for w in weights]

    stats = pl.pallas_call(
        _pegasus_forward_kernel,
        grid=(B,),
        in_specs=data_specs + weight_specs,
        out_specs=pl.BlockSpec((1, 1, STATS_W), lambda b: (b, 0, 0)),
        out_shape=jax.ShapeDtypeStruct((B, 1, STATS_W), jnp.float32),
        compiler_params=pltpu.CompilerParams(
            dimension_semantics=("parallel",)),
    )(*data, *weights)

    loss_sum = jnp.sum(stats[:, 0, 0])
    correct = jnp.sum(stats[:, 0, 1])
    denominator = jnp.sum(stats[:, 0, 2])
    loss = loss_sum / jnp.maximum(denominator, 1.0)
    return loss, correct, denominator


# ---------------- deterministic parameter init ----------------
def init_params(key):
    keys = iter(jax.random.split(key, 64))
    p = {}

    def dense(shape):
        return 0.02 * jax.random.normal(next(keys), shape, dtype=jnp.float32)

    def zeros(shape):
        return jnp.zeros(shape, jnp.float32)

    def ones(shape):
        return jnp.ones(shape, jnp.float32)

    for pre in ("src_emb_", "tgt_emb_"):
        p[pre + "word"] = dense((VOCAB, HIDDEN))
        p[pre + "pos"] = dense((SEQ, HIDDEN))
        p[pre + "seg"] = dense((3, HIDDEN))
        p[pre + "ln_g"] = ones((HIDDEN,))
        p[pre + "ln_b"] = zeros((HIDDEN,))

    def attn_block(pre):
        for n in ("wq", "wk", "wv", "wo"):
            p[pre + n] = dense((HIDDEN, HIDDEN))
        for n in ("bq", "bk", "bv", "bo"):
            p[pre + n] = zeros((HIDDEN,))

    attn_block("enc_att_")
    p["enc_ln1_g"] = ones((HIDDEN,)); p["enc_ln1_b"] = zeros((HIDDEN,))
    p["enc_ff_w1"] = dense((HIDDEN, FFN)); p["enc_ff_b1"] = zeros((FFN,))
    p["enc_ff_w2"] = dense((FFN, HIDDEN)); p["enc_ff_b2"] = zeros((HIDDEN,))
    p["enc_ln2_g"] = ones((HIDDEN,)); p["enc_ln2_b"] = zeros((HIDDEN,))

    attn_block("key_att_")
    p["key_ln_g"] = ones((HIDDEN,)); p["key_ln_b"] = zeros((HIDDEN,))

    attn_block("dec_self_")
    attn_block("dec_cross_")
    p["dec_ln1_g"] = ones((HIDDEN,)); p["dec_ln1_b"] = zeros((HIDDEN,))
    p["dec_ln2_g"] = ones((HIDDEN,)); p["dec_ln2_b"] = zeros((HIDDEN,))
    p["dec_ff_w1"] = dense((HIDDEN, FFN)); p["dec_ff_b1"] = zeros((FFN,))
    p["dec_ff_w2"] = dense((FFN, HIDDEN)); p["dec_ff_b2"] = zeros((HIDDEN,))
    p["dec_ln3_g"] = ones((HIDDEN,)); p["dec_ln3_b"] = zeros((HIDDEN,))

    p["out_w"] = dense((HIDDEN, VOCAB))
    p["out_b"] = zeros((VOCAB,))
    return p


if __name__ == "__main__":
    key = jax.random.PRNGKey(0)
    k1, k2, k3, kp = jax.random.split(key, 4)
    article = jax.random.randint(k1, (BATCH, SEQ), 3, VOCAB, dtype=jnp.int32)
    article = article.at[:, -2:].set(PAD_ID)          # some padding on article
    titles = jax.random.randint(k2, (BATCH, SEQ), 3, VOCAB, dtype=jnp.int32)
    titles = titles.at[:, -3:].set(PAD_ID)            # some padding on titles
    tgt = jax.random.randint(k3, (BATCH, SEQ), 3, VOCAB, dtype=jnp.int32)

    params = init_params(kp)

    loss, correct, denom = jax.jit(pegasus_forward)(params, article, titles, tgt)
    jax.block_until_ready(loss)
    assert jnp.isfinite(loss)
    print("KERNEL_OK")
</pallas_src>

<mosaic_0001>
module attributes {stable_mosaic.version = 11 : i64} {
  func.func @_pegasus_forward_kernel(%arg0: i32, %arg1: memref<1x16x32xf32, #tpu.memory_space<vmem>>, %arg2: memref<1x8x32xf32, #tpu.memory_space<vmem>>, %arg3: memref<1x1x16xf32, #tpu.memory_space<vmem>>, %arg4: memref<1x8x1xi32, #tpu.memory_space<vmem>>, %arg5: memref<8x32xf32, #tpu.memory_space<vmem>>, %arg6: memref<8x32xf32, #tpu.memory_space<vmem>>, %arg7: memref<32x96xf32, #tpu.memory_space<vmem>>, %arg8: memref<1x96xf32, #tpu.memory_space<vmem>>, %arg9: memref<32x32xf32, #tpu.memory_space<vmem>>, %arg10: memref<1x32xf32, #tpu.memory_space<vmem>>, %arg11: memref<32x64xf32, #tpu.memory_space<vmem>>, %arg12: memref<1x64xf32, #tpu.memory_space<vmem>>, %arg13: memref<64x32xf32, #tpu.memory_space<vmem>>, %arg14: memref<1x32xf32, #tpu.memory_space<vmem>>, %arg15: memref<32x32xf32, #tpu.memory_space<vmem>>, %arg16: memref<1x32xf32, #tpu.memory_space<vmem>>, %arg17: memref<32x64xf32, #tpu.memory_space<vmem>>, %arg18: memref<1x64xf32, #tpu.memory_space<vmem>>, %arg19: memref<32x32xf32, #tpu.memory_space<vmem>>, %arg20: memref<1x32xf32, #tpu.memory_space<vmem>>, %arg21: memref<32x96xf32, #tpu.memory_space<vmem>>, %arg22: memref<1x96xf32, #tpu.memory_space<vmem>>, %arg23: memref<32x32xf32, #tpu.memory_space<vmem>>, %arg24: memref<1x32xf32, #tpu.memory_space<vmem>>, %arg25: memref<32x32xf32, #tpu.memory_space<vmem>>, %arg26: memref<1x32xf32, #tpu.memory_space<vmem>>, %arg27: memref<32x64xf32, #tpu.memory_space<vmem>>, %arg28: memref<1x64xf32, #tpu.memory_space<vmem>>, %arg29: memref<32x32xf32, #tpu.memory_space<vmem>>, %arg30: memref<1x32xf32, #tpu.memory_space<vmem>>, %arg31: memref<32x64xf32, #tpu.memory_space<vmem>>, %arg32: memref<1x64xf32, #tpu.memory_space<vmem>>, %arg33: memref<64x32xf32, #tpu.memory_space<vmem>>, %arg34: memref<1x32xf32, #tpu.memory_space<vmem>>, %arg35: memref<32x64xf32, #tpu.memory_space<vmem>>, %arg36: memref<1x64xf32, #tpu.memory_space<vmem>>, %arg37: memref<1x1x128xf32, #tpu.memory_space<vmem>>) attributes {dimension_semantics = [#tpu.dimension_semantics<parallel>], iteration_bounds = array<i64: 2>, scalar_prefetch = 0 : i64, scratch_operands = 0 : i64, tpu.core_type = #tpu.core_type<tc>, window_params = [{transform_indices = @transform_0, window_bounds = array<i64: 1, 16, 32>}, {transform_indices = @transform_1, window_bounds = array<i64: 1, 8, 32>}, {transform_indices = @transform_2, window_bounds = array<i64: 1, 1, 16>}, {transform_indices = @transform_3, window_bounds = array<i64: 1, 8, 1>}, {pipeline_mode = #tpu.pipeline_mode<synchronous>, transform_indices = @transform_4, window_bounds = array<i64: 8, 32>}, {pipeline_mode = #tpu.pipeline_mode<synchronous>, transform_indices = @transform_5, window_bounds = array<i64: 8, 32>}, {pipeline_mode = #tpu.pipeline_mode<synchronous>, transform_indices = @transform_6, window_bounds = array<i64: 32, 96>}, {pipeline_mode = #tpu.pipeline_mode<synchronous>, transform_indices = @transform_7, window_bounds = array<i64: 1, 96>}, {pipeline_mode = #tpu.pipeline_mode<synchronous>, transform_indices = @transform_8, window_bounds = array<i64: 32, 32>}, {pipeline_mode = #tpu.pipeline_mode<synchronous>, transform_indices = @transform_9, window_bounds = array<i64: 1, 32>}, {pipeline_mode = #tpu.pipeline_mode<synchronous>, transform_indices = @transform_10, window_bounds = array<i64: 32, 64>}, {pipeline_mode = #tpu.pipeline_mode<synchronous>, transform_indices = @transform_11, window_bounds = array<i64: 1, 64>}, {pipeline_mode = #tpu.pipeline_mode<synchronous>, transform_indices = @transform_12, window_bounds = array<i64: 64, 32>}, {pipeline_mode = #tpu.pipeline_mode<synchronous>, transform_indices = @transform_13, window_bounds = array<i64: 1, 32>}, {pipeline_mode = #tpu.pipeline_mode<synchronous>, transform_indices = @transform_14, window_bounds = array<i64: 32, 32>}, {pipeline_mode = #tpu.pipeline_mode<synchronous>, transform_indices = @transform_15, window_bounds = array<i64: 1, 32>}, {pipeline_mode = #tpu.pipeline_mode<synchronous>, transform_indices = @transform_16, window_bounds = array<i64: 32, 64>}, {pipeline_mode = #tpu.pipeline_mode<synchronous>, transform_indices = @transform_17, window_bounds = array<i64: 1, 64>}, {pipeline_mode = #tpu.pipeline_mode<synchronous>, transform_indices = @transform_18, window_bounds = array<i64: 32, 32>}, {pipeline_mode = #tpu.pipeline_mode<synchronous>, transform_indices = @transform_19, window_bounds = array<i64: 1, 32>}, {pipeline_mode = #tpu.pipeline_mode<synchronous>, transform_indices = @transform_20, window_bounds = array<i64: 32, 96>}, {pipeline_mode = #tpu.pipeline_mode<synchronous>, transform_indices = @transform_21, window_bounds = array<i64: 1, 96>}, {pipeline_mode = #tpu.pipeline_mode<synchronous>, transform_indices = @transform_22, window_bounds = array<i64: 32, 32>}, {pipeline_mode = #tpu.pipeline_mode<synchronous>, transform_indices = @transform_23, window_bounds = array<i64: 1, 32>}, {pipeline_mode = #tpu.pipeline_mode<synchronous>, transform_indices = @transform_24, window_bounds = array<i64: 32, 32>}, {pipeline_mode = #tpu.pipeline_mode<synchronous>, transform_indices = @transform_25, window_bounds = array<i64: 1, 32>}, {pipeline_mode = #tpu.pipeline_mode<synchronous>, transform_indices = @transform_26, window_bounds = array<i64: 32, 64>}, {pipeline_mode = #tpu.pipeline_mode<synchronous>, transform_indices = @transform_27, window_bounds = array<i64: 1, 64>}, {pipeline_mode = #tpu.pipeline_mode<synchronous>, transform_indices = @transform_28, window_bounds = array<i64: 32, 32>}, {pipeline_mode = #tpu.pipeline_mode<synchronous>, transform_indices = @transform_29, window_bounds = array<i64: 1, 32>}, {pipeline_mode = #tpu.pipeline_mode<synchronous>, transform_indices = @transform_30, window_bounds = array<i64: 32, 64>}, {pipeline_mode = #tpu.pipeline_mode<synchronous>, transform_indices = @transform_31, window_bounds = array<i64: 1, 64>}, {pipeline_mode = #tpu.pipeline_mode<synchronous>, transform_indices = @transform_32, window_bounds = array<i64: 64, 32>}, {pipeline_mode = #tpu.pipeline_mode<synchronous>, transform_indices = @transform_33, window_bounds = array<i64: 1, 32>}, {pipeline_mode = #tpu.pipeline_mode<synchronous>, transform_indices = @transform_34, window_bounds = array<i64: 32, 64>}, {pipeline_mode = #tpu.pipeline_mode<synchronous>, transform_indices = @transform_35, window_bounds = array<i64: 1, 64>}, {transform_indices = @transform_36, window_bounds = array<i64: 1, 1, 128>}]} {
    %c0 = arith.constant 0 : index
    %c0_0 = arith.constant 0 : index
    %0 = vector.load %arg5[%c0, %c0_0] : memref<8x32xf32, #tpu.memory_space<vmem>>, vector<8x32xf32>
    %c0_1 = arith.constant 0 : index
    %c0_2 = arith.constant 0 : index
    %1 = vector.load %arg6[%c0_1, %c0_2] : memref<8x32xf32, #tpu.memory_space<vmem>>, vector<8x32xf32>
    %c0_3 = arith.constant 0 : index
    %c0_4 = arith.constant 0 : index
    %c0_5 = arith.constant 0 : index
    %2 = vector.load %arg3[%c0_3, %c0_4, %c0_5] : memref<1x1x16xf32, #tpu.memory_space<vmem>>, vector<1x1x16xf32>
    %3 = vector.shape_cast %2 : vector<1x1x16xf32> to vector<1x16xf32>
    %4 = tpu.iota {dimensions = array<i32: 0>} : vector<16x16xi32>
    %c8_i32 = arith.constant 8 : i32
    %5 = vector.broadcast %c8_i32 : i32 to vector<16x16xi32>
    %6 = arith.cmpi sge, %4, %5 : vector<16x16xi32>
    %7 = tpu.iota {dimensions = array<i32: 1>} : vector<16x16xi32>
    %c8_i32_6 = arith.constant 8 : i32
    %8 = vector.broadcast %c8_i32_6 : i32 to vector<16x16xi32>
    %9 = arith.cmpi sge, %7, %8 : vector<16x16xi32>
    %10 = arith.xori %6, %9 : vector<16x16xi1>
    %cst = arith.constant -1.000000e+09 : f32
    %cst_7 = arith.constant 0.000000e+00 : f32
    %11 = vector.broadcast %cst : f32 to vector<16x16xf32>
    %12 = vector.broadcast %cst_7 : f32 to vector<16x16xf32>
    %13 = arith.select %10, %11, %12 : vector<16x16xi1>, vector<16x16xf32>
    %14 = vector.broadcast %3 : vector<1x16xf32> to vector<16x16xf32>
    %15 = arith.addf %13, %14 : vector<16x16xf32>
    %c0_8 = arith.constant 0 : index
    %c0_9 = arith.constant 0 : index
    %c0_10 = arith.constant 0 : index
    %16 = vector.load %arg1[%c0_8, %c0_9, %c0_10] : memref<1x16x32xf32, #tpu.memory_space<vmem>>, vector<1x16x32xf32>
    %17 = vector.shape_cast %16 : vector<1x16x32xf32> to vector<16x32xf32>
    %cst_11 = arith.constant dense<0.000000e+00> : vector<16xf32>
    %18 = vector.multi_reduction <add>, %17, %cst_11 [1] : vector<16x32xf32> to vector<16xf32>
    %19 = vector.shape_cast %18 : vector<16xf32> to vector<16x1xf32>
    %cst_12 = arith.constant 3.200000e+01 : f32
    %20 = vector.broadcast %cst_12 : f32 to vector<16x1xf32>
    %21 = arith.divf %19, %20 : vector<16x1xf32>
    %22 = vector.broadcast %21 : vector<16x1xf32> to vector<16x32xf32>
    %23 = arith.subf %17, %22 : vector<16x32xf32>
    %24 = arith.mulf %23, %23 : vector<16x32xf32>
    %cst_13 = arith.constant dense<0.000000e+00> : vector<16xf32>
    %25 = vector.multi_reduction <add>, %24, %cst_13 [1] : vector<16x32xf32> to vector<16xf32>
    %26 = vector.shape_cast %25 : vector<16xf32> to vector<16x1xf32>
    %cst_14 = arith.constant 3.200000e+01 : f32
    %27 = vector.broadcast %cst_14 : f32 to vector<16x1xf32>
    %28 = arith.divf %26, %27 : vector<16x1xf32>
    %cst_15 = arith.constant 9.99999974E-6 : f32
    %29 = vector.broadcast %cst_15 : f32 to vector<16x1xf32>
    %30 = arith.addf %28, %29 : vector<16x1xf32>
    %31 = math.rsqrt %30 : vector<16x1xf32>
    %32 = vector.broadcast %31 : vector<16x1xf32> to vector<16x32xf32>
    %33 = arith.mulf %23, %32 : vector<16x32xf32>
    %34 = vector.extract_strided_slice %0 {offsets = [0, 0], sizes = [1, 32], strides = [1, 1]} : vector<8x32xf32> to vector<1x32xf32>
    %35 = vector.broadcast %34 : vector<1x32xf32> to vector<16x32xf32>
    %36 = arith.mulf %33, %35 : vector<16x32xf32>
    %37 = vector.extract_strided_slice %1 {offsets = [0, 0], sizes = [1, 32], strides = [1, 1]} : vector<8x32xf32> to vector<1x32xf32>
    %38 = vector.broadcast %37 : vector<1x32xf32> to vector<16x32xf32>
    %39 = arith.addf %36, %38 : vector<16x32xf32>
    %c0_16 = arith.constant 0 : index
    %c0_17 = arith.constant 0 : index
    %40 = vector.load %arg7[%c0_16, %c0_17] : memref<32x96xf32, #tpu.memory_space<vmem>>, vector<32x96xf32>
    %c0_18 = arith.constant 0 : index
    %c0_19 = arith.constant 0 : index
    %41 = vector.load %arg8[%c0_18, %c0_19] : memref<1x96xf32, #tpu.memory_space<vmem>>, vector<1x96xf32>
    %cst_20 = arith.constant dense<0.000000e+00> : vector<16x96xf32>
    %42 = tpu.matmul %39, %40, %cst_20 {dimension_numbers = #tpu.dot_dimension_numbers<[1], [0], [0], [1], [0, 0, 1, 1], [], []>} : vector<16x32xf32>, vector<32x96xf32>, vector<16x96xf32> -> vector<16x96xf32>
    %43 = vector.broadcast %41 : vector<1x96xf32> to vector<16x96xf32>
    %44 = arith.addf %42, %43 : vector<16x96xf32>
    %45 = vector.extract_strided_slice %44 {offsets = [0, 0], sizes = [16, 32], strides = [1, 1]} : vector<16x96xf32> to vector<16x32xf32>
    %46 = vector.extract_strided_slice %44 {offsets = [0, 32], sizes = [16, 32], strides = [1, 1]} : vector<16x96xf32> to vector<16x32xf32>
    %47 = vector.extract_strided_slice %44 {offsets = [0, 64], sizes = [16, 32], strides = [1, 1]} : vector<16x96xf32> to vector<16x32xf32>
    %c0_21 = arith.constant 0 : index
    %c0_22 = arith.constant 0 : index
    %48 = vector.load %arg9[%c0_21, %c0_22] : memref<32x32xf32, #tpu.memory_space<vmem>>, vector<32x32xf32>
    %c0_23 = arith.constant 0 : index
    %c0_24 = arith.constant 0 : index
    %49 = vector.load %arg10[%c0_23, %c0_24] : memref<1x32xf32, #tpu.memory_space<vmem>>, vector<1x32xf32>
    %cst_25 = arith.constant 0.000000e+00 : f32
    %50 = vector.broadcast %cst_25 : f32 to vector<16x32xf32>
    %51 = vector.extract_strided_slice %45 {offsets = [0, 0], sizes = [16, 8], strides = [1, 1]} : vector<16x32xf32> to vector<16x8xf32>
    %52 = vector.extract_strided_slice %46 {offsets = [0, 0], sizes = [16, 8], strides = [1, 1]} : vector<16x32xf32> to vector<16x8xf32>
    %cst_26 = arith.constant dense<0.000000e+00> : vector<16x16xf32>
    %53 = tpu.matmul %51, %52, %cst_26 {dimension_numbers = #tpu.dot_dimension_numbers<[1], [1], [0], [0], [0, 0, 1, 0], [], []>} : vector<16x8xf32>, vector<16x8xf32>, vector<16x16xf32> -> vector<16x16xf32>
    %cst_27 = arith.constant 0.353553385 : f32
    %54 = vector.broadcast %cst_27 : f32 to vector<16x16xf32>
    %55 = arith.mulf %53, %54 : vector<16x16xf32>
    %56 = arith.addf %55, %15 : vector<16x16xf32>
    %cst_28 = arith.constant dense<0xFF800000> : vector<16xf32>
    %57 = vector.multi_reduction <maximumf>, %56, %cst_28 [1] : vector<16x16xf32> to vector<16xf32>
    %58 = vector.shape_cast %57 : vector<16xf32> to vector<16x1xf32>
    %59 = vector.broadcast %58 : vector<16x1xf32> to vector<16x16xf32>
    %60 = arith.subf %56, %59 : vector<16x16xf32>
    %61 = math.exp %60 : vector<16x16xf32>
    %cst_29 = arith.constant dense<0.000000e+00> : vector<16xf32>
    %62 = vector.multi_reduction <add>, %61, %cst_29 [1] : vector<16x16xf32> to vector<16xf32>
    %63 = vector.shape_cast %62 : vector<16xf32> to vector<16x1xf32>
    %64 = vector.broadcast %63 : vector<16x1xf32> to vector<16x16xf32>
    %65 = arith.divf %61, %64 : vector<16x16xf32>
    %66 = vector.extract_strided_slice %47 {offsets = [0, 0], sizes = [16, 8], strides = [1, 1]} : vector<16x32xf32> to vector<16x8xf32>
    %cst_30 = arith.constant dense<0.000000e+00> : vector<16x8xf32>
    %67 = tpu.matmul %65, %66, %cst_30 {dimension_numbers = #tpu.dot_dimension_numbers<[1], [0], [0], [1], [0, 0, 1, 1], [], []>} : vector<16x16xf32>, vector<16x8xf32>, vector<16x8xf32> -> vector<16x8xf32>
    %68 = vector.extract_strided_slice %48 {offsets = [0, 0], sizes = [8, 32], strides = [1, 1]} : vector<32x32xf32> to vector<8x32xf32>
    %cst_31 = arith.constant dense<0.000000e+00> : vector<16x32xf32>
    %69 = tpu.matmul %67, %68, %cst_31 {dimension_numbers = #tpu.dot_dimension_numbers<[1], [0], [0], [1], [0, 0, 1, 1], [], []>} : vector<16x8xf32>, vector<8x32xf32>, vector<16x32xf32> -> vector<16x32xf32>
    %70 = arith.addf %50, %69 : vector<16x32xf32>
    %71 = vector.extract_strided_slice %45 {offsets = [0, 8], sizes = [16, 8], strides = [1, 1]} : vector<16x32xf32> to vector<16x8xf32>
    %72 = vector.extract_strided_slice %46 {offsets = [0, 8], sizes = [16, 8], strides = [1, 1]} : vector<16x32xf32> to vector<16x8xf32>
    %cst_32 = arith.constant dense<0.000000e+00> : vector<16x16xf32>
    %73 = tpu.matmul %71, %72, %cst_32 {dimension_numbers = #tpu.dot_dimension_numbers<[1], [1], [0], [0], [0, 0, 1, 0], [], []>} : vector<16x8xf32>, vector<16x8xf32>, vector<16x16xf32> -> vector<16x16xf32>
    %cst_33 = arith.constant 0.353553385 : f32
    %74 = vector.broadcast %cst_33 : f32 to vector<16x16xf32>
    %75 = arith.mulf %73, %74 : vector<16x16xf32>
    %76 = arith.addf %75, %15 : vector<16x16xf32>
    %cst_34 = arith.constant dense<0xFF800000> : vector<16xf32>
    %77 = vector.multi_reduction <maximumf>, %76, %cst_34 [1] : vector<16x16xf32> to vector<16xf32>
    %78 = vector.shape_cast %77 : vector<16xf32> to vector<16x1xf32>
    %79 = vector.broadcast %78 : vector<16x1xf32> to vector<16x16xf32>
    %80 = arith.subf %76, %79 : vector<16x16xf32>
    %81 = math.exp %80 : vector<16x16xf32>
    %cst_35 = arith.constant dense<0.000000e+00> : vector<16xf32>
    %82 = vector.multi_reduction <add>, %81, %cst_35 [1] : vector<16x16xf32> to vector<16xf32>
    %83 = vector.shape_cast %82 : vector<16xf32> to vector<16x1xf32>
    %84 = vector.broadcast %83 : vector<16x1xf32> to vector<16x16xf32>
    %85 = arith.divf %81, %84 : vector<16x16xf32>
    %86 = vector.extract_strided_slice %47 {offsets = [0, 8], sizes = [16, 8], strides = [1, 1]} : vector<16x32xf32> to vector<16x8xf32>
    %cst_36 = arith.constant dense<0.000000e+00> : vector<16x8xf32>
    %87 = tpu.matmul %85, %86, %cst_36 {dimension_numbers = #tpu.dot_dimension_numbers<[1], [0], [0], [1], [0, 0, 1, 1], [], []>} : vector<16x16xf32>, vector<16x8xf32>, vector<16x8xf32> -> vector<16x8xf32>
    %88 = vector.extract_strided_slice %48 {offsets = [8, 0], sizes = [8, 32], strides = [1, 1]} : vector<32x32xf32> to vector<8x32xf32>
    %cst_37 = arith.constant dense<0.000000e+00> : vector<16x32xf32>
    %89 = tpu.matmul %87, %88, %cst_37 {dimension_numbers = #tpu.dot_dimension_numbers<[1], [0], [0], [1], [0, 0, 1, 1], [], []>} : vector<16x8xf32>, vector<8x32xf32>, vector<16x32xf32> -> vector<16x32xf32>
    %90 = arith.addf %70, %89 : vector<16x32xf32>
    %91 = vector.extract_strided_slice %45 {offsets = [0, 16], sizes = [16, 8], strides = [1, 1]} : vector<16x32xf32> to vector<16x8xf32>
    %92 = vector.extract_strided_slice %46 {offsets = [0, 16], sizes = [16, 8], strides = [1, 1]} : vector<16x32xf32> to vector<16x8xf32>
    %cst_38 = arith.constant dense<0.000000e+00> : vector<16x16xf32>
    %93 = tpu.matmul %91, %92, %cst_38 {dimension_numbers = #tpu.dot_dimension_numbers<[1], [1], [0], [0], [0, 0, 1, 0], [], []>} : vector<16x8xf32>, vector<16x8xf32>, vector<16x16xf32> -> vector<16x16xf32>
    %cst_39 = arith.constant 0.353553385 : f32
    %94 = vector.broadcast %cst_39 : f32 to vector<16x16xf32>
    %95 = arith.mulf %93, %94 : vector<16x16xf32>
    %96 = arith.addf %95, %15 : vector<16x16xf32>
    %cst_40 = arith.constant dense<0xFF800000> : vector<16xf32>
    %97 = vector.multi_reduction <maximumf>, %96, %cst_40 [1] : vector<16x16xf32> to vector<16xf32>
    %98 = vector.shape_cast %97 : vector<16xf32> to vector<16x1xf32>
    %99 = vector.broadcast %98 : vector<16x1xf32> to vector<16x16xf32>
    %100 = arith.subf %96, %99 : vector<16x16xf32>
    %101 = math.exp %100 : vector<16x16xf32>
    %cst_41 = arith.constant dense<0.000000e+00> : vector<16xf32>
    %102 = vector.multi_reduction <add>, %101, %cst_41 [1] : vector<16x16xf32> to vector<16xf32>
    %103 = vector.shape_cast %102 : vector<16xf32> to vector<16x1xf32>
    %104 = vector.broadcast %103 : vector<16x1xf32> to vector<16x16xf32>
    %105 = arith.divf %101, %104 : vector<16x16xf32>
    %106 = vector.extract_strided_slice %47 {offsets = [0, 16], sizes = [16, 8], strides = [1, 1]} : vector<16x32xf32> to vector<16x8xf32>
    %cst_42 = arith.constant dense<0.000000e+00> : vector<16x8xf32>
    %107 = tpu.matmul %105, %106, %cst_42 {dimension_numbers = #tpu.dot_dimension_numbers<[1], [0], [0], [1], [0, 0, 1, 1], [], []>} : vector<16x16xf32>, vector<16x8xf32>, vector<16x8xf32> -> vector<16x8xf32>
    %108 = vector.extract_strided_slice %48 {offsets = [16, 0], sizes = [8, 32], strides = [1, 1]} : vector<32x32xf32> to vector<8x32xf32>
    %cst_43 = arith.constant dense<0.000000e+00> : vector<16x32xf32>
    %109 = tpu.matmul %107, %108, %cst_43 {dimension_numbers = #tpu.dot_dimension_numbers<[1], [0], [0], [1], [0, 0, 1, 1], [], []>} : vector<16x8xf32>, vector<8x32xf32>, vector<16x32xf32> -> vector<16x32xf32>
    %110 = arith.addf %90, %109 : vector<16x32xf32>
    %111 = vector.extract_strided_slice %45 {offsets = [0, 24], sizes = [16, 8], strides = [1, 1]} : vector<16x32xf32> to vector<16x8xf32>
    %112 = vector.extract_strided_slice %46 {offsets = [0, 24], sizes = [16, 8], strides = [1, 1]} : vector<16x32xf32> to vector<16x8xf32>
    %cst_44 = arith.constant dense<0.000000e+00> : vector<16x16xf32>
    %113 = tpu.matmul %111, %112, %cst_44 {dimension_numbers = #tpu.dot_dimension_numbers<[1], [1], [0], [0], [0, 0, 1, 0], [], []>} : vector<16x8xf32>, vector<16x8xf32>, vector<16x16xf32> -> vector<16x16xf32>
    %cst_45 = arith.constant 0.353553385 : f32
    %114 = vector.broadcast %cst_45 : f32 to vector<16x16xf32>
    %115 = arith.mulf %113, %114 : vector<16x16xf32>
    %116 = arith.addf %115, %15 : vector<16x16xf32>
    %cst_46 = arith.constant dense<0xFF800000> : vector<16xf32>
    %117 = vector.multi_reduction <maximumf>, %116, %cst_46 [1] : vector<16x16xf32> to vector<16xf32>
    %118 = vector.shape_cast %117 : vector<16xf32> to vector<16x1xf32>
    %119 = vector.broadcast %118 : vector<16x1xf32> to vector<16x16xf32>
    %120 = arith.subf %116, %119 : vector<16x16xf32>
    %121 = math.exp %120 : vector<16x16xf32>
    %cst_47 = arith.constant dense<0.000000e+00> : vector<16xf32>
    %122 = vector.multi_reduction <add>, %121, %cst_47 [1] : vector<16x16xf32> to vector<16xf32>
    %123 = vector.shape_cast %122 : vector<16xf32> to vector<16x1xf32>
    %124 = vector.broadcast %123 : vector<16x1xf32> to vector<16x16xf32>
    %125 = arith.divf %121, %124 : vector<16x16xf32>
    %126 = vector.extract_strided_slice %47 {offsets = [0, 24], sizes = [16, 8], strides = [1, 1]} : vector<16x32xf32> to vector<16x8xf32>
    %cst_48 = arith.constant dense<0.000000e+00> : vector<16x8xf32>
    %127 = tpu.matmul %125, %126, %cst_48 {dimension_numbers = #tpu.dot_dimension_numbers<[1], [0], [0], [1], [0, 0, 1, 1], [], []>} : vector<16x16xf32>, vector<16x8xf32>, vector<16x8xf32> -> vector<16x8xf32>
    %128 = vector.extract_strided_slice %48 {offsets = [24, 0], sizes = [8, 32], strides = [1, 1]} : vector<32x32xf32> to vector<8x32xf32>
    %cst_49 = arith.constant dense<0.000000e+00> : vector<16x32xf32>
    %129 = tpu.matmul %127, %128, %cst_49 {dimension_numbers = #tpu.dot_dimension_numbers<[1], [0], [0], [1], [0, 0, 1, 1], [], []>} : vector<16x8xf32>, vector<8x32xf32>, vector<16x32xf32> -> vector<16x32xf32>
    %130 = arith.addf %110, %129 : vector<16x32xf32>
    %131 = vector.broadcast %49 : vector<1x32xf32> to vector<16x32xf32>
    %132 = arith.addf %130, %131 : vector<16x32xf32>
    %133 = arith.addf %39, %132 : vector<16x32xf32>
    %cst_50 = arith.constant dense<0.000000e+00> : vector<16xf32>
    %134 = vector.multi_reduction <add>, %133, %cst_50 [1] : vector<16x32xf32> to vector<16xf32>
    %135 = vector.shape_cast %134 : vector<16xf32> to vector<16x1xf32>
    %cst_51 = arith.constant 3.200000e+01 : f32
    %136 = vector.broadcast %cst_51 : f32 to vector<16x1xf32>
    %137 = arith.divf %135, %136 : vector<16x1xf32>
    %138 = vector.broadcast %137 : vector<16x1xf32> to vector<16x32xf32>
    %139 = arith.subf %133, %138 : vector<16x32xf32>
    %140 = arith.mulf %139, %139 : vector<16x32xf32>
    %cst_52 = arith.constant dense<0.000000e+00> : vector<16xf32>
    %141 = vector.multi_reduction <add>, %140, %cst_52 [1] : vector<16x32xf32> to vector<16xf32>
    %142 = vector.shape_cast %141 : vector<16xf32> to vector<16x1xf32>
    %cst_53 = arith.constant 3.200000e+01 : f32
    %143 = vector.broadcast %cst_53 : f32 to vector<16x1xf32>
    %144 = arith.divf %142, %143 : vector<16x1xf32>
    %cst_54 = arith.constant 9.99999974E-6 : f32
    %145 = vector.broadcast %cst_54 : f32 to vector<16x1xf32>
    %146 = arith.addf %144, %145 : vector<16x1xf32>
    %147 = math.rsqrt %146 : vector<16x1xf32>
    %148 = vector.broadcast %147 : vector<16x1xf32> to vector<16x32xf32>
    %149 = arith.mulf %139, %148 : vector<16x32xf32>
    %150 = vector.extract_strided_slice %0 {offsets = [2, 0], sizes = [1, 32], strides = [1, 1]} : vector<8x32xf32> to vector<1x32xf32>
    %151 = vector.broadcast %150 : vector<1x32xf32> to vector<16x32xf32>
    %152 = arith.mulf %149, %151 : vector<16x32xf32>
    %153 = vector.extract_strided_slice %1 {offsets = [2, 0], sizes = [1, 32], strides = [1, 1]} : vector<8x32xf32> to vector<1x32xf32>
    %154 = vector.broadcast %153 : vector<1x32xf32> to vector<16x32xf32>
    %155 = arith.addf %152, %154 : vector<16x32xf32>
    %c0_55 = arith.constant 0 : index
    %c0_56 = arith.constant 0 : index
    %156 = vector.load %arg11[%c0_55, %c0_56] : memref<32x64xf32, #tpu.memory_space<vmem>>, vector<32x64xf32>
    %c0_57 = arith.constant 0 : index
    %c0_58 = arith.constant 0 : index
    %157 = vector.load %arg12[%c0_57, %c0_58] : memref<1x64xf32, #tpu.memory_space<vmem>>, vector<1x64xf32>
    %cst_59 = arith.constant dense<0.000000e+00> : vector<16x64xf32>
    %158 = tpu.matmul %155, %156, %cst_59 {dimension_numbers = #tpu.dot_dimension_numbers<[1], [0], [0], [1], [0, 0, 1, 1], [], []>} : vector<16x32xf32>, vector<32x64xf32>, vector<16x64xf32> -> vector<16x64xf32>
    %159 = vector.broadcast %157 : vector<1x64xf32> to vector<16x64xf32>
    %160 = arith.addf %158, %159 : vector<16x64xf32>
    %cst_60 = arith.constant 0.000000e+00 : f32
    %161 = vector.broadcast %cst_60 : f32 to vector<16x64xf32>
    %162 = arith.maximumf %160, %161 : vector<16x64xf32>
    %c0_61 = arith.constant 0 : index
    %c0_62 = arith.constant 0 : index
    %163 = vector.load %arg13[%c0_61, %c0_62] : memref<64x32xf32, #tpu.memory_space<vmem>>, vector<64x32xf32>
    %c0_63 = arith.constant 0 : index
    %c0_64 = arith.constant 0 : index
    %164 = vector.load %arg14[%c0_63, %c0_64] : memref<1x32xf32, #tpu.memory_space<vmem>>, vector<1x32xf32>
    %cst_65 = arith.constant dense<0.000000e+00> : vector<16x32xf32>
    %165 = tpu.matmul %162, %163, %cst_65 {dimension_numbers = #tpu.dot_dimension_numbers<[1], [0], [0], [1], [0, 0, 1, 1], [], []>} : vector<16x64xf32>, vector<64x32xf32>, vector<16x32xf32> -> vector<16x32xf32>
    %166 = vector.broadcast %164 : vector<1x32xf32> to vector<16x32xf32>
    %167 = arith.addf %165, %166 : vector<16x32xf32>
    %168 = arith.addf %155, %167 : vector<16x32xf32>
    %cst_66 = arith.constant dense<0.000000e+00> : vector<16xf32>
    %169 = vector.multi_reduction <add>, %168, %cst_66 [1] : vector<16x32xf32> to vector<16xf32>
    %170 = vector.shape_cast %169 : vector<16xf32> to vector<16x1xf32>
    %cst_67 = arith.constant 3.200000e+01 : f32
    %171 = vector.broadcast %cst_67 : f32 to vector<16x1xf32>
    %172 = arith.divf %170, %171 : vector<16x1xf32>
    %173 = vector.broadcast %172 : vector<16x1xf32> to vector<16x32xf32>
    %174 = arith.subf %168, %173 : vector<16x32xf32>
    %175 = arith.mulf %174, %174 : vector<16x32xf32>
    %cst_68 = arith.constant dense<0.000000e+00> : vector<16xf32>
    %176 = vector.multi_reduction <add>, %175, %cst_68 [1] : vector<16x32xf32> to vector<16xf32>
    %177 = vector.shape_cast %176 : vector<16xf32> to vector<16x1xf32>
    %cst_69 = arith.constant 3.200000e+01 : f32
    %178 = vector.broadcast %cst_69 : f32 to vector<16x1xf32>
    %179 = arith.divf %177, %178 : vector<16x1xf32>
    %cst_70 = arith.constant 9.99999974E-6 : f32
    %180 = vector.broadcast %cst_70 : f32 to vector<16x1xf32>
    %181 = arith.addf %179, %180 : vector<16x1xf32>
    %182 = math.rsqrt %181 : vector<16x1xf32>
    %183 = vector.broadcast %182 : vector<16x1xf32> to vector<16x32xf32>
    %184 = arith.mulf %174, %183 : vector<16x32xf32>
    %185 = vector.extract_strided_slice %0 {offsets = [3, 0], sizes = [1, 32], strides = [1, 1]} : vector<8x32xf32> to vector<1x32xf32>
    %186 = vector.broadcast %185 : vector<1x32xf32> to vector<16x32xf32>
    %187 = arith.mulf %184, %186 : vector<16x32xf32>
    %188 = vector.extract_strided_slice %1 {offsets = [3, 0], sizes = [1, 32], strides = [1, 1]} : vector<8x32xf32> to vector<1x32xf32>
    %189 = vector.broadcast %188 : vector<1x32xf32> to vector<16x32xf32>
    %190 = arith.addf %187, %189 : vector<16x32xf32>
    %191 = vector.extract_strided_slice %190 {offsets = [0, 0], sizes = [8, 32], strides = [1, 1]} : vector<16x32xf32> to vector<8x32xf32>
    %192 = vector.extract_strided_slice %190 {offsets = [8, 0], sizes = [8, 32], strides = [1, 1]} : vector<16x32xf32> to vector<8x32xf32>
    %193 = vector.extract_strided_slice %3 {offsets = [0, 0], sizes = [1, 8], strides = [1, 1]} : vector<1x16xf32> to vector<1x8xf32>
    %194 = vector.extract_strided_slice %3 {offsets = [0, 8], sizes = [1, 8], strides = [1, 1]} : vector<1x16xf32> to vector<1x8xf32>
    %c0_71 = arith.constant 0 : index
    %c0_72 = arith.constant 0 : index
    %195 = vector.load %arg15[%c0_71, %c0_72] : memref<32x32xf32, #tpu.memory_space<vmem>>, vector<32x32xf32>
    %c0_73 = arith.constant 0 : index
    %c0_74 = arith.constant 0 : index
    %196 = vector.load %arg16[%c0_73, %c0_74] : memref<1x32xf32, #tpu.memory_space<vmem>>, vector<1x32xf32>
    %cst_75 = arith.constant dense<0.000000e+00> : vector<8x32xf32>
    %197 = tpu.matmul %191, %195, %cst_75 {dimension_numbers = #tpu.dot_dimension_numbers<[1], [0], [0], [1], [0, 0, 1, 1], [], []>} : vector<8x32xf32>, vector<32x32xf32>, vector<8x32xf32> -> vector<8x32xf32>
    %198 = vector.broadcast %196 : vector<1x32xf32> to vector<8x32xf32>
    %199 = arith.addf %197, %198 : vector<8x32xf32>
    %c0_76 = arith.constant 0 : index
    %c0_77 = arith.constant 0 : index
    %200 = vector.load %arg17[%c0_76, %c0_77] : memref<32x64xf32, #tpu.memory_space<vmem>>, vector<32x64xf32>
    %c0_78 = arith.constant 0 : index
    %c0_79 = arith.constant 0 : index
    %201 = vector.load %arg18[%c0_78, %c0_79] : memref<1x64xf32, #tpu.memory_space<vmem>>, vector<1x64xf32>
    %cst_80 = arith.constant dense<0.000000e+00> : vector<8x64xf32>
    %202 = tpu.matmul %192, %200, %cst_80 {dimension_numbers = #tpu.dot_dimension_numbers<[1], [0], [0], [1], [0, 0, 1, 1], [], []>} : vector<8x32xf32>, vector<32x64xf32>, vector<8x64xf32> -> vector<8x64xf32>
    %203 = vector.broadcast %201 : vector<1x64xf32> to vector<8x64xf32>
    %204 = arith.addf %202, %203 : vector<8x64xf32>
    %205 = vector.extract_strided_slice %204 {offsets = [0, 0], sizes = [8, 32], strides = [1, 1]} : vector<8x64xf32> to vector<8x32xf32>
    %206 = vector.extract_strided_slice %204 {offsets = [0, 32], sizes = [8, 32], strides = [1, 1]} : vector<8x64xf32> to vector<8x32xf32>
    %c0_81 = arith.constant 0 : index
    %c0_82 = arith.constant 0 : index
    %207 = vector.load %arg19[%c0_81, %c0_82] : memref<32x32xf32, #tpu.memory_space<vmem>>, vector<32x32xf32>
    %c0_83 = arith.constant 0 : index
    %c0_84 = arith.constant 0 : index
    %208 = vector.load %arg20[%c0_83, %c0_84] : memref<1x32xf32, #tpu.memory_space<vmem>>, vector<1x32xf32>
    %cst_85 = arith.constant 0.000000e+00 : f32
    %209 = vector.broadcast %cst_85 : f32 to vector<8x32xf32>
    %210 = vector.extract_strided_slice %199 {offsets = [0, 0], sizes = [8, 8], strides = [1, 1]} : vector<8x32xf32> to vector<8x8xf32>
    %211 = vector.extract_strided_slice %205 {offsets = [0, 0], sizes = [8, 8], strides = [1, 1]} : vector<8x32xf32> to vector<8x8xf32>
    %cst_86 = arith.constant dense<0.000000e+00> : vector<8x8xf32>
    %212 = tpu.matmul %210, %211, %cst_86 {dimension_numbers = #tpu.dot_dimension_numbers<[1], [1], [0], [0], [0, 0, 1, 0], [], []>} : vector<8x8xf32>, vector<8x8xf32>, vector<8x8xf32> -> vector<8x8xf32>
    %cst_87 = arith.constant 0.353553385 : f32
    %213 = vector.broadcast %cst_87 : f32 to vector<8x8xf32>
    %214 = arith.mulf %212, %213 : vector<8x8xf32>
    %215 = vector.broadcast %194 : vector<1x8xf32> to vector<8x8xf32>
    %216 = arith.addf %214, %215 : vector<8x8xf32>
    %cst_88 = arith.constant dense<0xFF800000> : vector<8xf32>
    %217 = vector.multi_reduction <maximumf>, %216, %cst_88 [1] : vector<8x8xf32> to vector<8xf32>
    %218 = vector.shape_cast %217 : vector<8xf32> to vector<8x1xf32>
    %219 = vector.broadcast %218 : vector<8x1xf32> to vector<8x8xf32>
    %220 = arith.subf %216, %219 : vector<8x8xf32>
    %221 = math.exp %220 : vector<8x8xf32>
    %cst_89 = arith.constant dense<0.000000e+00> : vector<8xf32>
    %222 = vector.multi_reduction <add>, %221, %cst_89 [1] : vector<8x8xf32> to vector<8xf32>
    %223 = vector.shape_cast %222 : vector<8xf32> to vector<8x1xf32>
    %224 = vector.broadcast %223 : vector<8x1xf32> to vector<8x8xf32>
    %225 = arith.divf %221, %224 : vector<8x8xf32>
    %226 = vector.extract_strided_slice %206 {offsets = [0, 0], sizes = [8, 8], strides = [1, 1]} : vector<8x32xf32> to vector<8x8xf32>
    %cst_90 = arith.constant dense<0.000000e+00> : vector<8x8xf32>
    %227 = tpu.matmul %225, %226, %cst_90 {dimension_numbers = #tpu.dot_dimension_numbers<[1], [0], [0], [1], [0, 0, 1, 1], [], []>} : vector<8x8xf32>, vector<8x8xf32>, vector<8x8xf32> -> vector<8x8xf32>
    %228 = vector.extract_strided_slice %207 {offsets = [0, 0], sizes = [8, 32], strides = [1, 1]} : vector<32x32xf32> to vector<8x32xf32>
    %cst_91 = arith.constant dense<0.000000e+00> : vector<8x32xf32>
    %229 = tpu.matmul %227, %228, %cst_91 {dimension_numbers = #tpu.dot_dimension_numbers<[1], [0], [0], [1], [0, 0, 1, 1], [], []>} : vector<8x8xf32>, vector<8x32xf32>, vector<8x32xf32> -> vector<8x32xf32>
    %230 = arith.addf %209, %229 : vector<8x32xf32>
    %231 = vector.extract_strided_slice %199 {offsets = [0, 8], sizes = [8, 8], strides = [1, 1]} : vector<8x32xf32> to vector<8x8xf32>
    %232 = vector.extract_strided_slice %205 {offsets = [0, 8], sizes = [8, 8], strides = [1, 1]} : vector<8x32xf32> to vector<8x8xf32>
    %cst_92 = arith.constant dense<0.000000e+00> : vector<8x8xf32>
    %233 = tpu.matmul %231, %232, %cst_92 {dimension_numbers = #tpu.dot_dimension_numbers<[1], [1], [0], [0], [0, 0, 1, 0], [], []>} : vector<8x8xf32>, vector<8x8xf32>, vector<8x8xf32> -> vector<8x8xf32>
    %cst_93 = arith.constant 0.353553385 : f32
    %234 = vector.broadcast %cst_93 : f32 to vector<8x8xf32>
    %235 = arith.mulf %233, %234 : vector<8x8xf32>
    %236 = vector.broadcast %194 : vector<1x8xf32> to vector<8x8xf32>
    %237 = arith.addf %235, %236 : vector<8x8xf32>
    %cst_94 = arith.constant dense<0xFF800000> : vector<8xf32>
    %238 = vector.multi_reduction <maximumf>, %237, %cst_94 [1] : vector<8x8xf32> to vector<8xf32>
    %239 = vector.shape_cast %238 : vector<8xf32> to vector<8x1xf32>
    %240 = vector.broadcast %239 : vector<8x1xf32> to vector<8x8xf32>
    %241 = arith.subf %237, %240 : vector<8x8xf32>
    %242 = math.exp %241 : vector<8x8xf32>
    %cst_95 = arith.constant dense<0.000000e+00> : vector<8xf32>
    %243 = vector.multi_reduction <add>, %242, %cst_95 [1] : vector<8x8xf32> to vector<8xf32>
    %244 = vector.shape_cast %243 : vector<8xf32> to vector<8x1xf32>
    %245 = vector.broadcast %244 : vector<8x1xf32> to vector<8x8xf32>
    %246 = arith.divf %242, %245 : vector<8x8xf32>
    %247 = vector.extract_strided_slice %206 {offsets = [0, 8], sizes = [8, 8], strides = [1, 1]} : vector<8x32xf32> to vector<8x8xf32>
    %cst_96 = arith.constant dense<0.000000e+00> : vector<8x8xf32>
    %248 = tpu.matmul %246, %247, %cst_96 {dimension_numbers = #tpu.dot_dimension_numbers<[1], [0], [0], [1], [0, 0, 1, 1], [], []>} : vector<8x8xf32>, vector<8x8xf32>, vector<8x8xf32> -> vector<8x8xf32>
    %249 = vector.extract_strided_slice %207 {offsets = [8, 0], sizes = [8, 32], strides = [1, 1]} : vector<32x32xf32> to vector<8x32xf32>
    %cst_97 = arith.constant dense<0.000000e+00> : vector<8x32xf32>
    %250 = tpu.matmul %248, %249, %cst_97 {dimension_numbers = #tpu.dot_dimension_numbers<[1], [0], [0], [1], [0, 0, 1, 1], [], []>} : vector<8x8xf32>, vector<8x32xf32>, vector<8x32xf32> -> vector<8x32xf32>
    %251 = arith.addf %230, %250 : vector<8x32xf32>
    %252 = vector.extract_strided_slice %199 {offsets = [0, 16], sizes = [8, 8], strides = [1, 1]} : vector<8x32xf32> to vector<8x8xf32>
    %253 = vector.extract_strided_slice %205 {offsets = [0, 16], sizes = [8, 8], strides = [1, 1]} : vector<8x32xf32> to vector<8x8xf32>
    %cst_98 = arith.constant dense<0.000000e+00> : vector<8x8xf32>
    %254 = tpu.matmul %252, %253, %cst_98 {dimension_numbers = #tpu.dot_dimension_numbers<[1], [1], [0], [0], [0, 0, 1, 0], [], []>} : vector<8x8xf32>, vector<8x8xf32>, vector<8x8xf32> -> vector<8x8xf32>
    %cst_99 = arith.constant 0.353553385 : f32
    %255 = vector.broadcast %cst_99 : f32 to vector<8x8xf32>
    %256 = arith.mulf %254, %255 : vector<8x8xf32>
    %257 = vector.broadcast %194 : vector<1x8xf32> to vector<8x8xf32>
    %258 = arith.addf %256, %257 : vector<8x8xf32>
    %cst_100 = arith.constant dense<0xFF800000> : vector<8xf32>
    %259 = vector.multi_reduction <maximumf>, %258, %cst_100 [1] : vector<8x8xf32> to vector<8xf32>
    %260 = vector.shape_cast %259 : vector<8xf32> to vector<8x1xf32>
    %261 = vector.broadcast %260 : vector<8x1xf32> to vector<8x8xf32>
    %262 = arith.subf %258, %261 : vector<8x8xf32>
    %263 = math.exp %262 : vector<8x8xf32>
    %cst_101 = arith.constant dense<0.000000e+00> : vector<8xf32>
    %264 = vector.multi_reduction <add>, %263, %cst_101 [1] : vector<8x8xf32> to vector<8xf32>
    %265 = vector.shape_cast %264 : vector<8xf32> to vector<8x1xf32>
    %266 = vector.broadcast %265 : vector<8x1xf32> to vector<8x8xf32>
    %267 = arith.divf %263, %266 : vector<8x8xf32>
    %268 = vector.extract_strided_slice %206 {offsets = [0, 16], sizes = [8, 8], strides = [1, 1]} : vector<8x32xf32> to vector<8x8xf32>
    %cst_102 = arith.constant dense<0.000000e+00> : vector<8x8xf32>
    %269 = tpu.matmul %267, %268, %cst_102 {dimension_numbers = #tpu.dot_dimension_numbers<[1], [0], [0], [1], [0, 0, 1, 1], [], []>} : vector<8x8xf32>, vector<8x8xf32>, vector<8x8xf32> -> vector<8x8xf32>
    %270 = vector.extract_strided_slice %207 {offsets = [16, 0], sizes = [8, 32], strides = [1, 1]} : vector<32x32xf32> to vector<8x32xf32>
    %cst_103 = arith.constant dense<0.000000e+00> : vector<8x32xf32>
    %271 = tpu.matmul %269, %270, %cst_103 {dimension_numbers = #tpu.dot_dimension_numbers<[1], [0], [0], [1], [0, 0, 1, 1], [], []>} : vector<8x8xf32>, vector<8x32xf32>, vector<8x32xf32> -> vector<8x32xf32>
    %272 = arith.addf %251, %271 : vector<8x32xf32>
    %273 = vector.extract_strided_slice %199 {offsets = [0, 24], sizes = [8, 8], strides = [1, 1]} : vector<8x32xf32> to vector<8x8xf32>
    %274 = vector.extract_strided_slice %205 {offsets = [0, 24], sizes = [8, 8], strides = [1, 1]} : vector<8x32xf32> to vector<8x8xf32>
    %cst_104 = arith.constant dense<0.000000e+00> : vector<8x8xf32>
    %275 = tpu.matmul %273, %274, %cst_104 {dimension_numbers = #tpu.dot_dimension_numbers<[1], [1], [0], [0], [0, 0, 1, 0], [], []>} : vector<8x8xf32>, vector<8x8xf32>, vector<8x8xf32> -> vector<8x8xf32>
    %cst_105 = arith.constant 0.353553385 : f32
    %276 = vector.broadcast %cst_105 : f32 to vector<8x8xf32>
    %277 = arith.mulf %275, %276 : vector<8x8xf32>
    %278 = vector.broadcast %194 : vector<1x8xf32> to vector<8x8xf32>
    %279 = arith.addf %277, %278 : vector<8x8xf32>
    %cst_106 = arith.constant dense<0xFF800000> : vector<8xf32>
    %280 = vector.multi_reduction <maximumf>, %279, %cst_106 [1] : vector<8x8xf32> to vector<8xf32>
    %281 = vector.shape_cast %280 : vector<8xf32> to vector<8x1xf32>
    %282 = vector.broadcast %281 : vector<8x1xf32> to vector<8x8xf32>
    %283 = arith.subf %279, %282 : vector<8x8xf32>
    %284 = math.exp %283 : vector<8x8xf32>
    %cst_107 = arith.constant dense<0.000000e+00> : vector<8xf32>
    %285 = vector.multi_reduction <add>, %284, %cst_107 [1] : vector<8x8xf32> to vector<8xf32>
    %286 = vector.shape_cast %285 : vector<8xf32> to vector<8x1xf32>
    %287 = vector.broadcast %286 : vector<8x1xf32> to vector<8x8xf32>
    %288 = arith.divf %284, %287 : vector<8x8xf32>
    %289 = vector.extract_strided_slice %206 {offsets = [0, 24], sizes = [8, 8], strides = [1, 1]} : vector<8x32xf32> to vector<8x8xf32>
    %cst_108 = arith.constant dense<0.000000e+00> : vector<8x8xf32>
    %290 = tpu.matmul %288, %289, %cst_108 {dimension_numbers = #tpu.dot_dimension_numbers<[1], [0], [0], [1], [0, 0, 1, 1], [], []>} : vector<8x8xf32>, vector<8x8xf32>, vector<8x8xf32> -> vector<8x8xf32>
    %291 = vector.extract_strided_slice %207 {offsets = [24, 0], sizes = [8, 32], strides = [1, 1]} : vector<32x32xf32> to vector<8x32xf32>
    %cst_109 = arith.constant dense<0.000000e+00> : vector<8x32xf32>
    %292 = tpu.matmul %290, %291, %cst_109 {dimension_numbers = #tpu.dot_dimension_numbers<[1], [0], [0], [1], [0, 0, 1, 1], [], []>} : vector<8x8xf32>, vector<8x32xf32>, vector<8x32xf32> -> vector<8x32xf32>
    %293 = arith.addf %272, %292 : vector<8x32xf32>
    %294 = vector.broadcast %208 : vector<1x32xf32> to vector<8x32xf32>
    %295 = arith.addf %293, %294 : vector<8x32xf32>
    %296 = arith.addf %191, %295 : vector<8x32xf32>
    %cst_110 = arith.constant dense<0.000000e+00> : vector<8xf32>
    %297 = vector.multi_reduction <add>, %296, %cst_110 [1] : vector<8x32xf32> to vector<8xf32>
    %298 = vector.shape_cast %297 : vector<8xf32> to vector<8x1xf32>
    %cst_111 = arith.constant 3.200000e+01 : f32
    %299 = vector.broadcast %cst_111 : f32 to vector<8x1xf32>
    %300 = arith.divf %298, %299 : vector<8x1xf32>
    %301 = vector.broadcast %300 : vector<8x1xf32> to vector<8x32xf32>
    %302 = arith.subf %296, %301 : vector<8x32xf32>
    %303 = arith.mulf %302, %302 : vector<8x32xf32>
    %cst_112 = arith.constant dense<0.000000e+00> : vector<8xf32>
    %304 = vector.multi_reduction <add>, %303, %cst_112 [1] : vector<8x32xf32> to vector<8xf32>
    %305 = vector.shape_cast %304 : vector<8xf32> to vector<8x1xf32>
    %cst_113 = arith.constant 3.200000e+01 : f32
    %306 = vector.broadcast %cst_113 : f32 to vector<8x1xf32>
    %307 = arith.divf %305, %306 : vector<8x1xf32>
    %cst_114 = arith.constant 9.99999974E-6 : f32
    %308 = vector.broadcast %cst_114 : f32 to vector<8x1xf32>
    %309 = arith.addf %307, %308 : vector<8x1xf32>
    %310 = math.rsqrt %309 : vector<8x1xf32>
    %311 = vector.broadcast %310 : vector<8x1xf32> to vector<8x32xf32>
    %312 = arith.mulf %302, %311 : vector<8x32xf32>
    %313 = vector.extract_strided_slice %0 {offsets = [4, 0], sizes = [1, 32], strides = [1, 1]} : vector<8x32xf32> to vector<1x32xf32>
    %314 = vector.broadcast %313 : vector<1x32xf32> to vector<8x32xf32>
    %315 = arith.mulf %312, %314 : vector<8x32xf32>
    %316 = vector.extract_strided_slice %1 {offsets = [4, 0], sizes = [1, 32], strides = [1, 1]} : vector<8x32xf32> to vector<1x32xf32>
    %317 = vector.broadcast %316 : vector<1x32xf32> to vector<8x32xf32>
    %318 = arith.addf %315, %317 : vector<8x32xf32>
    %c0_115 = arith.constant 0 : index
    %c0_116 = arith.constant 0 : index
    %c0_117 = arith.constant 0 : index
    %319 = vector.load %arg2[%c0_115, %c0_116, %c0_117] : memref<1x8x32xf32, #tpu.memory_space<vmem>>, vector<1x8x32xf32>
    %320 = vector.shape_cast %319 : vector<1x8x32xf32> to vector<8x32xf32>
    %cst_118 = arith.constant dense<0.000000e+00> : vector<8xf32>
    %321 = vector.multi_reduction <add>, %320, %cst_118 [1] : vector<8x32xf32> to vector<8xf32>
    %322 = vector.shape_cast %321 : vector<8xf32> to vector<8x1xf32>
    %cst_119 = arith.constant 3.200000e+01 : f32
    %323 = vector.broadcast %cst_119 : f32 to vector<8x1xf32>
    %324 = arith.divf %322, %323 : vector<8x1xf32>
    %325 = vector.broadcast %324 : vector<8x1xf32> to vector<8x32xf32>
    %326 = arith.subf %320, %325 : vector<8x32xf32>
    %327 = arith.mulf %326, %326 : vector<8x32xf32>
    %cst_120 = arith.constant dense<0.000000e+00> : vector<8xf32>
    %328 = vector.multi_reduction <add>, %327, %cst_120 [1] : vector<8x32xf32> to vector<8xf32>
    %329 = vector.shape_cast %328 : vector<8xf32> to vector<8x1xf32>
    %cst_121 = arith.constant 3.200000e+01 : f32
    %330 = vector.broadcast %cst_121 : f32 to vector<8x1xf32>
    %331 = arith.divf %329, %330 : vector<8x1xf32>
    %cst_122 = arith.constant 9.99999974E-6 : f32
    %332 = vector.broadcast %cst_122 : f32 to vector<8x1xf32>
    %333 = arith.addf %331, %332 : vector<8x1xf32>
    %334 = math.rsqrt %333 : vector<8x1xf32>
    %335 = vector.broadcast %334 : vector<8x1xf32> to vector<8x32xf32>
    %336 = arith.mulf %326, %335 : vector<8x32xf32>
    %337 = vector.extract_strided_slice %0 {offsets = [1, 0], sizes = [1, 32], strides = [1, 1]} : vector<8x32xf32> to vector<1x32xf32>
    %338 = vector.broadcast %337 : vector<1x32xf32> to vector<8x32xf32>
    %339 = arith.mulf %336, %338 : vector<8x32xf32>
    %340 = vector.extract_strided_slice %1 {offsets = [1, 0], sizes = [1, 32], strides = [1, 1]} : vector<8x32xf32> to vector<1x32xf32>
    %341 = vector.broadcast %340 : vector<1x32xf32> to vector<8x32xf32>
    %342 = arith.addf %339, %341 : vector<8x32xf32>
    %343 = tpu.iota {dimensions = array<i32: 0>} : vector<8x8xi32>
    %344 = tpu.iota {dimensions = array<i32: 1>} : vector<8x8xi32>
    %345 = arith.cmpi sgt, %344, %343 : vector<8x8xi32>
    %cst_123 = arith.constant -1.000000e+09 : f32
    %cst_124 = arith.constant 0.000000e+00 : f32
    %346 = vector.broadcast %cst_123 : f32 to vector<8x8xf32>
    %347 = vector.broadcast %cst_124 : f32 to vector<8x8xf32>
    %348 = arith.select %345, %346, %347 : vector<8x8xi1>, vector<8x8xf32>
    %c0_125 = arith.constant 0 : index
    %c0_126 = arith.constant 0 : index
    %349 = vector.load %arg21[%c0_125, %c0_126] : memref<32x96xf32, #tpu.memory_space<vmem>>, vector<32x96xf32>
    %c0_127 = arith.constant 0 : index
    %c0_128 = arith.constant 0 : index
    %350 = vector.load %arg22[%c0_127, %c0_128] : memref<1x96xf32, #tpu.memory_space<vmem>>, vector<1x96xf32>
    %cst_129 = arith.constant dense<0.000000e+00> : vector<8x96xf32>
    %351 = tpu.matmul %342, %349, %cst_129 {dimension_numbers = #tpu.dot_dimension_numbers<[1], [0], [0], [1], [0, 0, 1, 1], [], []>} : vector<8x32xf32>, vector<32x96xf32>, vector<8x96xf32> -> vector<8x96xf32>
    %352 = vector.broadcast %350 : vector<1x96xf32> to vector<8x96xf32>
    %353 = arith.addf %351, %352 : vector<8x96xf32>
    %354 = vector.extract_strided_slice %353 {offsets = [0, 0], sizes = [8, 32], strides = [1, 1]} : vector<8x96xf32> to vector<8x32xf32>
    %355 = vector.extract_strided_slice %353 {offsets = [0, 32], sizes = [8, 32], strides = [1, 1]} : vector<8x96xf32> to vector<8x32xf32>
    %356 = vector.extract_strided_slice %353 {offsets = [0, 64], sizes = [8, 32], strides = [1, 1]} : vector<8x96xf32> to vector<8x32xf32>
    %c0_130 = arith.constant 0 : index
    %c0_131 = arith.constant 0 : index
    %357 = vector.load %arg23[%c0_130, %c0_131] : memref<32x32xf32, #tpu.memory_space<vmem>>, vector<32x32xf32>
    %c0_132 = arith.constant 0 : index
    %c0_133 = arith.constant 0 : index
    %358 = vector.load %arg24[%c0_132, %c0_133] : memref<1x32xf32, #tpu.memory_space<vmem>>, vector<1x32xf32>
    %cst_134 = arith.constant 0.000000e+00 : f32
    %359 = vector.broadcast %cst_134 : f32 to vector<8x32xf32>
    %360 = vector.extract_strided_slice %354 {offsets = [0, 0], sizes = [8, 8], strides = [1, 1]} : vector<8x32xf32> to vector<8x8xf32>
    %361 = vector.extract_strided_slice %355 {offsets = [0, 0], sizes = [8, 8], strides = [1, 1]} : vector<8x32xf32> to vector<8x8xf32>
    %cst_135 = arith.constant dense<0.000000e+00> : vector<8x8xf32>
    %362 = tpu.matmul %360, %361, %cst_135 {dimension_numbers = #tpu.dot_dimension_numbers<[1], [1], [0], [0], [0, 0, 1, 0], [], []>} : vector<8x8xf32>, vector<8x8xf32>, vector<8x8xf32> -> vector<8x8xf32>
    %cst_136 = arith.constant 0.353553385 : f32
    %363 = vector.broadcast %cst_136 : f32 to vector<8x8xf32>
    %364 = arith.mulf %362, %363 : vector<8x8xf32>
    %365 = arith.addf %364, %348 : vector<8x8xf32>
    %cst_137 = arith.constant dense<0xFF800000> : vector<8xf32>
    %366 = vector.multi_reduction <maximumf>, %365, %cst_137 [1] : vector<8x8xf32> to vector<8xf32>
    %367 = vector.shape_cast %366 : vector<8xf32> to vector<8x1xf32>
    %368 = vector.broadcast %367 : vector<8x1xf32> to vector<8x8xf32>
    %369 = arith.subf %365, %368 : vector<8x8xf32>
    %370 = math.exp %369 : vector<8x8xf32>
    %cst_138 = arith.constant dense<0.000000e+00> : vector<8xf32>
    %371 = vector.multi_reduction <add>, %370, %cst_138 [1] : vector<8x8xf32> to vector<8xf32>
    %372 = vector.shape_cast %371 : vector<8xf32> to vector<8x1xf32>
    %373 = vector.broadcast %372 : vector<8x1xf32> to vector<8x8xf32>
    %374 = arith.divf %370, %373 : vector<8x8xf32>
    %375 = vector.extract_strided_slice %356 {offsets = [0, 0], sizes = [8, 8], strides = [1, 1]} : vector<8x32xf32> to vector<8x8xf32>
    %cst_139 = arith.constant dense<0.000000e+00> : vector<8x8xf32>
    %376 = tpu.matmul %374, %375, %cst_139 {dimension_numbers = #tpu.dot_dimension_numbers<[1], [0], [0], [1], [0, 0, 1, 1], [], []>} : vector<8x8xf32>, vector<8x8xf32>, vector<8x8xf32> -> vector<8x8xf32>
    %377 = vector.extract_strided_slice %357 {offsets = [0, 0], sizes = [8, 32], strides = [1, 1]} : vector<32x32xf32> to vector<8x32xf32>
    %cst_140 = arith.constant dense<0.000000e+00> : vector<8x32xf32>
    %378 = tpu.matmul %376, %377, %cst_140 {dimension_numbers = #tpu.dot_dimension_numbers<[1], [0], [0], [1], [0, 0, 1, 1], [], []>} : vector<8x8xf32>, vector<8x32xf32>, vector<8x32xf32> -> vector<8x32xf32>
    %379 = arith.addf %359, %378 : vector<8x32xf32>
    %380 = vector.extract_strided_slice %354 {offsets = [0, 8], sizes = [8, 8], strides = [1, 1]} : vector<8x32xf32> to vector<8x8xf32>
    %381 = vector.extract_strided_slice %355 {offsets = [0, 8], sizes = [8, 8], strides = [1, 1]} : vector<8x32xf32> to vector<8x8xf32>
    %cst_141 = arith.constant dense<0.000000e+00> : vector<8x8xf32>
    %382 = tpu.matmul %380, %381, %cst_141 {dimension_numbers = #tpu.dot_dimension_numbers<[1], [1], [0], [0], [0, 0, 1, 0], [], []>} : vector<8x8xf32>, vector<8x8xf32>, vector<8x8xf32> -> vector<8x8xf32>
    %cst_142 = arith.constant 0.353553385 : f32
    %383 = vector.broadcast %cst_142 : f32 to vector<8x8xf32>
    %384 = arith.mulf %382, %383 : vector<8x8xf32>
    %385 = arith.addf %384, %348 : vector<8x8xf32>
    %cst_143 = arith.constant dense<0xFF800000> : vector<8xf32>
    %386 = vector.multi_reduction <maximumf>, %385, %cst_143 [1] : vector<8x8xf32> to vector<8xf32>
    %387 = vector.shape_cast %386 : vector<8xf32> to vector<8x1xf32>
    %388 = vector.broadcast %387 : vector<8x1xf32> to vector<8x8xf32>
    %389 = arith.subf %385, %388 : vector<8x8xf32>
    %390 = math.exp %389 : vector<8x8xf32>
    %cst_144 = arith.constant dense<0.000000e+00> : vector<8xf32>
    %391 = vector.multi_reduction <add>, %390, %cst_144 [1] : vector<8x8xf32> to vector<8xf32>
    %392 = vector.shape_cast %391 : vector<8xf32> to vector<8x1xf32>
    %393 = vector.broadcast %392 : vector<8x1xf32> to vector<8x8xf32>
    %394 = arith.divf %390, %393 : vector<8x8xf32>
    %395 = vector.extract_strided_slice %356 {offsets = [0, 8], sizes = [8, 8], strides = [1, 1]} : vector<8x32xf32> to vector<8x8xf32>
    %cst_145 = arith.constant dense<0.000000e+00> : vector<8x8xf32>
    %396 = tpu.matmul %394, %395, %cst_145 {dimension_numbers = #tpu.dot_dimension_numbers<[1], [0], [0], [1], [0, 0, 1, 1], [], []>} : vector<8x8xf32>, vector<8x8xf32>, vector<8x8xf32> -> vector<8x8xf32>
    %397 = vector.extract_strided_slice %357 {offsets = [8, 0], sizes = [8, 32], strides = [1, 1]} : vector<32x32xf32> to vector<8x32xf32>
    %cst_146 = arith.constant dense<0.000000e+00> : vector<8x32xf32>
    %398 = tpu.matmul %396, %397, %cst_146 {dimension_numbers = #tpu.dot_dimension_numbers<[1], [0], [0], [1], [0, 0, 1, 1], [], []>} : vector<8x8xf32>, vector<8x32xf32>, vector<8x32xf32> -> vector<8x32xf32>
    %399 = arith.addf %379, %398 : vector<8x32xf32>
    %400 = vector.extract_strided_slice %354 {offsets = [0, 16], sizes = [8, 8], strides = [1, 1]} : vector<8x32xf32> to vector<8x8xf32>
    %401 = vector.extract_strided_slice %355 {offsets = [0, 16], sizes = [8, 8], strides = [1, 1]} : vector<8x32xf32> to vector<8x8xf32>
    %cst_147 = arith.constant dense<0.000000e+00> : vector<8x8xf32>
    %402 = tpu.matmul %400, %401, %cst_147 {dimension_numbers = #tpu.dot_dimension_numbers<[1], [1], [0], [0], [0, 0, 1, 0], [], []>} : vector<8x8xf32>, vector<8x8xf32>, vector<8x8xf32> -> vector<8x8xf32>
    %cst_148 = arith.constant 0.353553385 : f32
    %403 = vector.broadcast %cst_148 : f32 to vector<8x8xf32>
    %404 = arith.mulf %402, %403 : vector<8x8xf32>
    %405 = arith.addf %404, %348 : vector<8x8xf32>
    %cst_149 = arith.constant dense<0xFF800000> : vector<8xf32>
    %406 = vector.multi_reduction <maximumf>, %405, %cst_149 [1] : vector<8x8xf32> to vector<8xf32>
    %407 = vector.shape_cast %406 : vector<8xf32> to vector<8x1xf32>
    %408 = vector.broadcast %407 : vector<8x1xf32> to vector<8x8xf32>
    %409 = arith.subf %405, %408 : vector<8x8xf32>
    %410 = math.exp %409 : vector<8x8xf32>
    %cst_150 = arith.constant dense<0.000000e+00> : vector<8xf32>
    %411 = vector.multi_reduction <add>, %410, %cst_150 [1] : vector<8x8xf32> to vector<8xf32>
    %412 = vector.shape_cast %411 : vector<8xf32> to vector<8x1xf32>
    %413 = vector.broadcast %412 : vector<8x1xf32> to vector<8x8xf32>
    %414 = arith.divf %410, %413 : vector<8x8xf32>
    %415 = vector.extract_strided_slice %356 {offsets = [0, 16], sizes = [8, 8], strides = [1, 1]} : vector<8x32xf32> to vector<8x8xf32>
    %cst_151 = arith.constant dense<0.000000e+00> : vector<8x8xf32>
    %416 = tpu.matmul %414, %415, %cst_151 {dimension_numbers = #tpu.dot_dimension_numbers<[1], [0], [0], [1], [0, 0, 1, 1], [], []>} : vector<8x8xf32>, vector<8x8xf32>, vector<8x8xf32> -> vector<8x8xf32>
    %417 = vector.extract_strided_slice %357 {offsets = [16, 0], sizes = [8, 32], strides = [1, 1]} : vector<32x32xf32> to vector<8x32xf32>
    %cst_152 = arith.constant dense<0.000000e+00> : vector<8x32xf32>
    %418 = tpu.matmul %416, %417, %cst_152 {dimension_numbers = #tpu.dot_dimension_numbers<[1], [0], [0], [1], [0, 0, 1, 1], [], []>} : vector<8x8xf32>, vector<8x32xf32>, vector<8x32xf32> -> vector<8x32xf32>
    %419 = arith.addf %399, %418 : vector<8x32xf32>
    %420 = vector.extract_strided_slice %354 {offsets = [0, 24], sizes = [8, 8], strides = [1, 1]} : vector<8x32xf32> to vector<8x8xf32>
    %421 = vector.extract_strided_slice %355 {offsets = [0, 24], sizes = [8, 8], strides = [1, 1]} : vector<8x32xf32> to vector<8x8xf32>
    %cst_153 = arith.constant dense<0.000000e+00> : vector<8x8xf32>
    %422 = tpu.matmul %420, %421, %cst_153 {dimension_numbers = #tpu.dot_dimension_numbers<[1], [1], [0], [0], [0, 0, 1, 0], [], []>} : vector<8x8xf32>, vector<8x8xf32>, vector<8x8xf32> -> vector<8x8xf32>
    %cst_154 = arith.constant 0.353553385 : f32
    %423 = vector.broadcast %cst_154 : f32 to vector<8x8xf32>
    %424 = arith.mulf %422, %423 : vector<8x8xf32>
    %425 = arith.addf %424, %348 : vector<8x8xf32>
    %cst_155 = arith.constant dense<0xFF800000> : vector<8xf32>
    %426 = vector.multi_reduction <maximumf>, %425, %cst_155 [1] : vector<8x8xf32> to vector<8xf32>
    %427 = vector.shape_cast %426 : vector<8xf32> to vector<8x1xf32>
    %428 = vector.broadcast %427 : vector<8x1xf32> to vector<8x8xf32>
    %429 = arith.subf %425, %428 : vector<8x8xf32>
    %430 = math.exp %429 : vector<8x8xf32>
    %cst_156 = arith.constant dense<0.000000e+00> : vector<8xf32>
    %431 = vector.multi_reduction <add>, %430, %cst_156 [1] : vector<8x8xf32> to vector<8xf32>
    %432 = vector.shape_cast %431 : vector<8xf32> to vector<8x1xf32>
    %433 = vector.broadcast %432 : vector<8x1xf32> to vector<8x8xf32>
    %434 = arith.divf %430, %433 : vector<8x8xf32>
    %435 = vector.extract_strided_slice %356 {offsets = [0, 24], sizes = [8, 8], strides = [1, 1]} : vector<8x32xf32> to vector<8x8xf32>
    %cst_157 = arith.constant dense<0.000000e+00> : vector<8x8xf32>
    %436 = tpu.matmul %434, %435, %cst_157 {dimension_numbers = #tpu.dot_dimension_numbers<[1], [0], [0], [1], [0, 0, 1, 1], [], []>} : vector<8x8xf32>, vector<8x8xf32>, vector<8x8xf32> -> vector<8x8xf32>
    %437 = vector.extract_strided_slice %357 {offsets = [24, 0], sizes = [8, 32], strides = [1, 1]} : vector<32x32xf32> to vector<8x32xf32>
    %cst_158 = arith.constant dense<0.000000e+00> : vector<8x32xf32>
    %438 = tpu.matmul %436, %437, %cst_158 {dimension_numbers = #tpu.dot_dimension_numbers<[1], [0], [0], [1], [0, 0, 1, 1], [], []>} : vector<8x8xf32>, vector<8x32xf32>, vector<8x32xf32> -> vector<8x32xf32>
    %439 = arith.addf %419, %438 : vector<8x32xf32>
    %440 = vector.broadcast %358 : vector<1x32xf32> to vector<8x32xf32>
    %441 = arith.addf %439, %440 : vector<8x32xf32>
    %442 = arith.addf %342, %441 : vector<8x32xf32>
    %cst_159 = arith.constant dense<0.000000e+00> : vector<8xf32>
    %443 = vector.multi_reduction <add>, %442, %cst_159 [1] : vector<8x32xf32> to vector<8xf32>
    %444 = vector.shape_cast %443 : vector<8xf32> to vector<8x1xf32>
    %cst_160 = arith.constant 3.200000e+01 : f32
    %445 = vector.broadcast %cst_160 : f32 to vector<8x1xf32>
    %446 = arith.divf %444, %445 : vector<8x1xf32>
    %447 = vector.broadcast %446 : vector<8x1xf32> to vector<8x32xf32>
    %448 = arith.subf %442, %447 : vector<8x32xf32>
    %449 = arith.mulf %448, %448 : vector<8x32xf32>
    %cst_161 = arith.constant dense<0.000000e+00> : vector<8xf32>
    %450 = vector.multi_reduction <add>, %449, %cst_161 [1] : vector<8x32xf32> to vector<8xf32>
    %451 = vector.shape_cast %450 : vector<8xf32> to vector<8x1xf32>
    %cst_162 = arith.constant 3.200000e+01 : f32
    %452 = vector.broadcast %cst_162 : f32 to vector<8x1xf32>
    %453 = arith.divf %451, %452 : vector<8x1xf32>
    %cst_163 = arith.constant 9.99999974E-6 : f32
    %454 = vector.broadcast %cst_163 : f32 to vector<8x1xf32>
    %455 = arith.addf %453, %454 : vector<8x1xf32>
    %456 = math.rsqrt %455 : vector<8x1xf32>
    %457 = vector.broadcast %456 : vector<8x1xf32> to vector<8x32xf32>
    %458 = arith.mulf %448, %457 : vector<8x32xf32>
    %459 = vector.extract_strided_slice %0 {offsets = [5, 0], sizes = [1, 32], strides = [1, 1]} : vector<8x32xf32> to vector<1x32xf32>
    %460 = vector.broadcast %459 : vector<1x32xf32> to vector<8x32xf32>
    %461 = arith.mulf %458, %460 : vector<8x32xf32>
    %462 = vector.extract_strided_slice %1 {offsets = [5, 0], sizes = [1, 32], strides = [1, 1]} : vector<8x32xf32> to vector<1x32xf32>
    %463 = vector.broadcast %462 : vector<1x32xf32> to vector<8x32xf32>
    %464 = arith.addf %461, %463 : vector<8x32xf32>
    %c0_164 = arith.constant 0 : index
    %c0_165 = arith.constant 0 : index
    %465 = vector.load %arg25[%c0_164, %c0_165] : memref<32x32xf32, #tpu.memory_space<vmem>>, vector<32x32xf32>
    %c0_166 = arith.constant 0 : index
    %c0_167 = arith.constant 0 : index
    %466 = vector.load %arg26[%c0_166, %c0_167] : memref<1x32xf32, #tpu.memory_space<vmem>>, vector<1x32xf32>
    %cst_168 = arith.constant dense<0.000000e+00> : vector<8x32xf32>
    %467 = tpu.matmul %464, %465, %cst_168 {dimension_numbers = #tpu.dot_dimension_numbers<[1], [0], [0], [1], [0, 0, 1, 1], [], []>} : vector<8x32xf32>, vector<32x32xf32>, vector<8x32xf32> -> vector<8x32xf32>
    %468 = vector.broadcast %466 : vector<1x32xf32> to vector<8x32xf32>
    %469 = arith.addf %467, %468 : vector<8x32xf32>
    %c0_169 = arith.constant 0 : index
    %c0_170 = arith.constant 0 : index
    %470 = vector.load %arg27[%c0_169, %c0_170] : memref<32x64xf32, #tpu.memory_space<vmem>>, vector<32x64xf32>
    %c0_171 = arith.constant 0 : index
    %c0_172 = arith.constant 0 : index
    %471 = vector.load %arg28[%c0_171, %c0_172] : memref<1x64xf32, #tpu.memory_space<vmem>>, vector<1x64xf32>
    %cst_173 = arith.constant dense<0.000000e+00> : vector<8x64xf32>
    %472 = tpu.matmul %318, %470, %cst_173 {dimension_numbers = #tpu.dot_dimension_numbers<[1], [0], [0], [1], [0, 0, 1, 1], [], []>} : vector<8x32xf32>, vector<32x64xf32>, vector<8x64xf32> -> vector<8x64xf32>
    %473 = vector.broadcast %471 : vector<1x64xf32> to vector<8x64xf32>
    %474 = arith.addf %472, %473 : vector<8x64xf32>
    %475 = vector.extract_strided_slice %474 {offsets = [0, 0], sizes = [8, 32], strides = [1, 1]} : vector<8x64xf32> to vector<8x32xf32>
    %476 = vector.extract_strided_slice %474 {offsets = [0, 32], sizes = [8, 32], strides = [1, 1]} : vector<8x64xf32> to vector<8x32xf32>
    %c0_174 = arith.constant 0 : index
    %c0_175 = arith.constant 0 : index
    %477 = vector.load %arg29[%c0_174, %c0_175] : memref<32x32xf32, #tpu.memory_space<vmem>>, vector<32x32xf32>
    %c0_176 = arith.constant 0 : index
    %c0_177 = arith.constant 0 : index
    %478 = vector.load %arg30[%c0_176, %c0_177] : memref<1x32xf32, #tpu.memory_space<vmem>>, vector<1x32xf32>
    %cst_178 = arith.constant 0.000000e+00 : f32
    %479 = vector.broadcast %cst_178 : f32 to vector<8x32xf32>
    %480 = vector.extract_strided_slice %469 {offsets = [0, 0], sizes = [8, 8], strides = [1, 1]} : vector<8x32xf32> to vector<8x8xf32>
    %481 = vector.extract_strided_slice %475 {offsets = [0, 0], sizes = [8, 8], strides = [1, 1]} : vector<8x32xf32> to vector<8x8xf32>
    %cst_179 = arith.constant dense<0.000000e+00> : vector<8x8xf32>
    %482 = tpu.matmul %480, %481, %cst_179 {dimension_numbers = #tpu.dot_dimension_numbers<[1], [1], [0], [0], [0, 0, 1, 0], [], []>} : vector<8x8xf32>, vector<8x8xf32>, vector<8x8xf32> -> vector<8x8xf32>
    %cst_180 = arith.constant 0.353553385 : f32
    %483 = vector.broadcast %cst_180 : f32 to vector<8x8xf32>
    %484 = arith.mulf %482, %483 : vector<8x8xf32>
    %485 = vector.broadcast %193 : vector<1x8xf32> to vector<8x8xf32>
    %486 = arith.addf %484, %485 : vector<8x8xf32>
    %cst_181 = arith.constant dense<0xFF800000> : vector<8xf32>
    %487 = vector.multi_reduction <maximumf>, %486, %cst_181 [1] : vector<8x8xf32> to vector<8xf32>
    %488 = vector.shape_cast %487 : vector<8xf32> to vector<8x1xf32>
    %489 = vector.broadcast %488 : vector<8x1xf32> to vector<8x8xf32>
    %490 = arith.subf %486, %489 : vector<8x8xf32>
    %491 = math.exp %490 : vector<8x8xf32>
    %cst_182 = arith.constant dense<0.000000e+00> : vector<8xf32>
    %492 = vector.multi_reduction <add>, %491, %cst_182 [1] : vector<8x8xf32> to vector<8xf32>
    %493 = vector.shape_cast %492 : vector<8xf32> to vector<8x1xf32>
    %494 = vector.broadcast %493 : vector<8x1xf32> to vector<8x8xf32>
    %495 = arith.divf %491, %494 : vector<8x8xf32>
    %496 = vector.extract_strided_slice %476 {offsets = [0, 0], sizes = [8, 8], strides = [1, 1]} : vector<8x32xf32> to vector<8x8xf32>
    %cst_183 = arith.constant dense<0.000000e+00> : vector<8x8xf32>
    %497 = tpu.matmul %495, %496, %cst_183 {dimension_numbers = #tpu.dot_dimension_numbers<[1], [0], [0], [1], [0, 0, 1, 1], [], []>} : vector<8x8xf32>, vector<8x8xf32>, vector<8x8xf32> -> vector<8x8xf32>
    %498 = vector.extract_strided_slice %477 {offsets = [0, 0], sizes = [8, 32], strides = [1, 1]} : vector<32x32xf32> to vector<8x32xf32>
    %cst_184 = arith.constant dense<0.000000e+00> : vector<8x32xf32>
    %499 = tpu.matmul %497, %498, %cst_184 {dimension_numbers = #tpu.dot_dimension_numbers<[1], [0], [0], [1], [0, 0, 1, 1], [], []>} : vector<8x8xf32>, vector<8x32xf32>, vector<8x32xf32> -> vector<8x32xf32>
    %500 = arith.addf %479, %499 : vector<8x32xf32>
    %501 = vector.extract_strided_slice %469 {offsets = [0, 8], sizes = [8, 8], strides = [1, 1]} : vector<8x32xf32> to vector<8x8xf32>
    %502 = vector.extract_strided_slice %475 {offsets = [0, 8], sizes = [8, 8], strides = [1, 1]} : vector<8x32xf32> to vector<8x8xf32>
    %cst_185 = arith.constant dense<0.000000e+00> : vector<8x8xf32>
    %503 = tpu.matmul %501, %502, %cst_185 {dimension_numbers = #tpu.dot_dimension_numbers<[1], [1], [0], [0], [0, 0, 1, 0], [], []>} : vector<8x8xf32>, vector<8x8xf32>, vector<8x8xf32> -> vector<8x8xf32>
    %cst_186 = arith.constant 0.353553385 : f32
    %504 = vector.broadcast %cst_186 : f32 to vector<8x8xf32>
    %505 = arith.mulf %503, %504 : vector<8x8xf32>
    %506 = vector.broadcast %193 : vector<1x8xf32> to vector<8x8xf32>
    %507 = arith.addf %505, %506 : vector<8x8xf32>
    %cst_187 = arith.constant dense<0xFF800000> : vector<8xf32>
    %508 = vector.multi_reduction <maximumf>, %507, %cst_187 [1] : vector<8x8xf32> to vector<8xf32>
    %509 = vector.shape_cast %508 : vector<8xf32> to vector<8x1xf32>
    %510 = vector.broadcast %509 : vector<8x1xf32> to vector<8x8xf32>
    %511 = arith.subf %507, %510 : vector<8x8xf32>
    %512 = math.exp %511 : vector<8x8xf32>
    %cst_188 = arith.constant dense<0.000000e+00> : vector<8xf32>
    %513 = vector.multi_reduction <add>, %512, %cst_188 [1] : vector<8x8xf32> to vector<8xf32>
    %514 = vector.shape_cast %513 : vector<8xf32> to vector<8x1xf32>
    %515 = vector.broadcast %514 : vector<8x1xf32> to vector<8x8xf32>
    %516 = arith.divf %512, %515 : vector<8x8xf32>
    %517 = vector.extract_strided_slice %476 {offsets = [0, 8], sizes = [8, 8], strides = [1, 1]} : vector<8x32xf32> to vector<8x8xf32>
    %cst_189 = arith.constant dense<0.000000e+00> : vector<8x8xf32>
    %518 = tpu.matmul %516, %517, %cst_189 {dimension_numbers = #tpu.dot_dimension_numbers<[1], [0], [0], [1], [0, 0, 1, 1], [], []>} : vector<8x8xf32>, vector<8x8xf32>, vector<8x8xf32> -> vector<8x8xf32>
    %519 = vector.extract_strided_slice %477 {offsets = [8, 0], sizes = [8, 32], strides = [1, 1]} : vector<32x32xf32> to vector<8x32xf32>
    %cst_190 = arith.constant dense<0.000000e+00> : vector<8x32xf32>
    %520 = tpu.matmul %518, %519, %cst_190 {dimension_numbers = #tpu.dot_dimension_numbers<[1], [0], [0], [1], [0, 0, 1, 1], [], []>} : vector<8x8xf32>, vector<8x32xf32>, vector<8x32xf32> -> vector<8x32xf32>
    %521 = arith.addf %500, %520 : vector<8x32xf32>
    %522 = vector.extract_strided_slice %469 {offsets = [0, 16], sizes = [8, 8], strides = [1, 1]} : vector<8x32xf32> to vector<8x8xf32>
    %523 = vector.extract_strided_slice %475 {offsets = [0, 16], sizes = [8, 8], strides = [1, 1]} : vector<8x32xf32> to vector<8x8xf32>
    %cst_191 = arith.constant dense<0.000000e+00> : vector<8x8xf32>
    %524 = tpu.matmul %522, %523, %cst_191 {dimension_numbers = #tpu.dot_dimension_numbers<[1], [1], [0], [0], [0, 0, 1, 0], [], []>} : vector<8x8xf32>, vector<8x8xf32>, vector<8x8xf32> -> vector<8x8xf32>
    %cst_192 = arith.constant 0.353553385 : f32
    %525 = vector.broadcast %cst_192 : f32 to vector<8x8xf32>
    %526 = arith.mulf %524, %525 : vector<8x8xf32>
    %527 = vector.broadcast %193 : vector<1x8xf32> to vector<8x8xf32>
    %528 = arith.addf %526, %527 : vector<8x8xf32>
    %cst_193 = arith.constant dense<0xFF800000> : vector<8xf32>
    %529 = vector.multi_reduction <maximumf>, %528, %cst_193 [1] : vector<8x8xf32> to vector<8xf32>
    %530 = vector.shape_cast %529 : vector<8xf32> to vector<8x1xf32>
    %531 = vector.broadcast %530 : vector<8x1xf32> to vector<8x8xf32>
    %532 = arith.subf %528, %531 : vector<8x8xf32>
    %533 = math.exp %532 : vector<8x8xf32>
    %cst_194 = arith.constant dense<0.000000e+00> : vector<8xf32>
    %534 = vector.multi_reduction <add>, %533, %cst_194 [1] : vector<8x8xf32> to vector<8xf32>
    %535 = vector.shape_cast %534 : vector<8xf32> to vector<8x1xf32>
    %536 = vector.broadcast %535 : vector<8x1xf32> to vector<8x8xf32>
    %537 = arith.divf %533, %536 : vector<8x8xf32>
    %538 = vector.extract_strided_slice %476 {offsets = [0, 16], sizes = [8, 8], strides = [1, 1]} : vector<8x32xf32> to vector<8x8xf32>
    %cst_195 = arith.constant dense<0.000000e+00> : vector<8x8xf32>
    %539 = tpu.matmul %537, %538, %cst_195 {dimension_numbers = #tpu.dot_dimension_numbers<[1], [0], [0], [1], [0, 0, 1, 1], [], []>} : vector<8x8xf32>, vector<8x8xf32>, vector<8x8xf32> -> vector<8x8xf32>
    %540 = vector.extract_strided_slice %477 {offsets = [16, 0], sizes = [8, 32], strides = [1, 1]} : vector<32x32xf32> to vector<8x32xf32>
    %cst_196 = arith.constant dense<0.000000e+00> : vector<8x32xf32>
    %541 = tpu.matmul %539, %540, %cst_196 {dimension_numbers = #tpu.dot_dimension_numbers<[1], [0], [0], [1], [0, 0, 1, 1], [], []>} : vector<8x8xf32>, vector<8x32xf32>, vector<8x32xf32> -> vector<8x32xf32>
    %542 = arith.addf %521, %541 : vector<8x32xf32>
    %543 = vector.extract_strided_slice %469 {offsets = [0, 24], sizes = [8, 8], strides = [1, 1]} : vector<8x32xf32> to vector<8x8xf32>
    %544 = vector.extract_strided_slice %475 {offsets = [0, 24], sizes = [8, 8], strides = [1, 1]} : vector<8x32xf32> to vector<8x8xf32>
    %cst_197 = arith.constant dense<0.000000e+00> : vector<8x8xf32>
    %545 = tpu.matmul %543, %544, %cst_197 {dimension_numbers = #tpu.dot_dimension_numbers<[1], [1], [0], [0], [0, 0, 1, 0], [], []>} : vector<8x8xf32>, vector<8x8xf32>, vector<8x8xf32> -> vector<8x8xf32>
    %cst_198 = arith.constant 0.353553385 : f32
    %546 = vector.broadcast %cst_198 : f32 to vector<8x8xf32>
    %547 = arith.mulf %545, %546 : vector<8x8xf32>
    %548 = vector.broadcast %193 : vector<1x8xf32> to vector<8x8xf32>
    %549 = arith.addf %547, %548 : vector<8x8xf32>
    %cst_199 = arith.constant dense<0xFF800000> : vector<8xf32>
    %550 = vector.multi_reduction <maximumf>, %549, %cst_199 [1] : vector<8x8xf32> to vector<8xf32>
    %551 = vector.shape_cast %550 : vector<8xf32> to vector<8x1xf32>
    %552 = vector.broadcast %551 : vector<8x1xf32> to vector<8x8xf32>
    %553 = arith.subf %549, %552 : vector<8x8xf32>
    %554 = math.exp %553 : vector<8x8xf32>
    %cst_200 = arith.constant dense<0.000000e+00> : vector<8xf32>
    %555 = vector.multi_reduction <add>, %554, %cst_200 [1] : vector<8x8xf32> to vector<8xf32>
    %556 = vector.shape_cast %555 : vector<8xf32> to vector<8x1xf32>
    %557 = vector.broadcast %556 : vector<8x1xf32> to vector<8x8xf32>
    %558 = arith.divf %554, %557 : vector<8x8xf32>
    %559 = vector.extract_strided_slice %476 {offsets = [0, 24], sizes = [8, 8], strides = [1, 1]} : vector<8x32xf32> to vector<8x8xf32>
    %cst_201 = arith.constant dense<0.000000e+00> : vector<8x8xf32>
    %560 = tpu.matmul %558, %559, %cst_201 {dimension_numbers = #tpu.dot_dimension_numbers<[1], [0], [0], [1], [0, 0, 1, 1], [], []>} : vector<8x8xf32>, vector<8x8xf32>, vector<8x8xf32> -> vector<8x8xf32>
    %561 = vector.extract_strided_slice %477 {offsets = [24, 0], sizes = [8, 32], strides = [1, 1]} : vector<32x32xf32> to vector<8x32xf32>
    %cst_202 = arith.constant dense<0.000000e+00> : vector<8x32xf32>
    %562 = tpu.matmul %560, %561, %cst_202 {dimension_numbers = #tpu.dot_dimension_numbers<[1], [0], [0], [1], [0, 0, 1, 1], [], []>} : vector<8x8xf32>, vector<8x32xf32>, vector<8x32xf32> -> vector<8x32xf32>
    %563 = arith.addf %542, %562 : vector<8x32xf32>
    %564 = vector.broadcast %478 : vector<1x32xf32> to vector<8x32xf32>
    %565 = arith.addf %563, %564 : vector<8x32xf32>
    %566 = arith.addf %464, %565 : vector<8x32xf32>
    %cst_203 = arith.constant dense<0.000000e+00> : vector<8xf32>
    %567 = vector.multi_reduction <add>, %566, %cst_203 [1] : vector<8x32xf32> to vector<8xf32>
    %568 = vector.shape_cast %567 : vector<8xf32> to vector<8x1xf32>
    %cst_204 = arith.constant 3.200000e+01 : f32
    %569 = vector.broadcast %cst_204 : f32 to vector<8x1xf32>
    %570 = arith.divf %568, %569 : vector<8x1xf32>
    %571 = vector.broadcast %570 : vector<8x1xf32> to vector<8x32xf32>
    %572 = arith.subf %566, %571 : vector<8x32xf32>
    %573 = arith.mulf %572, %572 : vector<8x32xf32>
    %cst_205 = arith.constant dense<0.000000e+00> : vector<8xf32>
    %574 = vector.multi_reduction <add>, %573, %cst_205 [1] : vector<8x32xf32> to vector<8xf32>
    %575 = vector.shape_cast %574 : vector<8xf32> to vector<8x1xf32>
    %cst_206 = arith.constant 3.200000e+01 : f32
    %576 = vector.broadcast %cst_206 : f32 to vector<8x1xf32>
    %577 = arith.divf %575, %576 : vector<8x1xf32>
    %cst_207 = arith.constant 9.99999974E-6 : f32
    %578 = vector.broadcast %cst_207 : f32 to vector<8x1xf32>
    %579 = arith.addf %577, %578 : vector<8x1xf32>
    %580 = math.rsqrt %579 : vector<8x1xf32>
    %581 = vector.broadcast %580 : vector<8x1xf32> to vector<8x32xf32>
    %582 = arith.mulf %572, %581 : vector<8x32xf32>
    %583 = vector.extract_strided_slice %0 {offsets = [6, 0], sizes = [1, 32], strides = [1, 1]} : vector<8x32xf32> to vector<1x32xf32>
    %584 = vector.broadcast %583 : vector<1x32xf32> to vector<8x32xf32>
    %585 = arith.mulf %582, %584 : vector<8x32xf32>
    %586 = vector.extract_strided_slice %1 {offsets = [6, 0], sizes = [1, 32], strides = [1, 1]} : vector<8x32xf32> to vector<1x32xf32>
    %587 = vector.broadcast %586 : vector<1x32xf32> to vector<8x32xf32>
    %588 = arith.addf %585, %587 : vector<8x32xf32>
    %c0_208 = arith.constant 0 : index
    %c0_209 = arith.constant 0 : index
    %589 = vector.load %arg31[%c0_208, %c0_209] : memref<32x64xf32, #tpu.memory_space<vmem>>, vector<32x64xf32>
    %c0_210 = arith.constant 0 : index
    %c0_211 = arith.constant 0 : index
    %590 = vector.load %arg32[%c0_210, %c0_211] : memref<1x64xf32, #tpu.memory_space<vmem>>, vector<1x64xf32>
    %cst_212 = arith.constant dense<0.000000e+00> : vector<8x64xf32>
    %591 = tpu.matmul %588, %589, %cst_212 {dimension_numbers = #tpu.dot_dimension_numbers<[1], [0], [0], [1], [0, 0, 1, 1], [], []>} : vector<8x32xf32>, vector<32x64xf32>, vector<8x64xf32> -> vector<8x64xf32>
    %592 = vector.broadcast %590 : vector<1x64xf32> to vector<8x64xf32>
    %593 = arith.addf %591, %592 : vector<8x64xf32>
    %cst_213 = arith.constant 0.000000e+00 : f32
    %594 = vector.broadcast %cst_213 : f32 to vector<8x64xf32>
    %595 = arith.maximumf %593, %594 : vector<8x64xf32>
    %c0_214 = arith.constant 0 : index
    %c0_215 = arith.constant 0 : index
    %596 = vector.load %arg33[%c0_214, %c0_215] : memref<64x32xf32, #tpu.memory_space<vmem>>, vector<64x32xf32>
    %c0_216 = arith.constant 0 : index
    %c0_217 = arith.constant 0 : index
    %597 = vector.load %arg34[%c0_216, %c0_217] : memref<1x32xf32, #tpu.memory_space<vmem>>, vector<1x32xf32>
    %cst_218 = arith.constant dense<0.000000e+00> : vector<8x32xf32>
    %598 = tpu.matmul %595, %596, %cst_218 {dimension_numbers = #tpu.dot_dimension_numbers<[1], [0], [0], [1], [0, 0, 1, 1], [], []>} : vector<8x64xf32>, vector<64x32xf32>, vector<8x32xf32> -> vector<8x32xf32>
    %599 = vector.broadcast %597 : vector<1x32xf32> to vector<8x32xf32>
    %600 = arith.addf %598, %599 : vector<8x32xf32>
    %601 = arith.addf %588, %600 : vector<8x32xf32>
    %cst_219 = arith.constant dense<0.000000e+00> : vector<8xf32>
    %602 = vector.multi_reduction <add>, %601, %cst_219 [1] : vector<8x32xf32> to vector<8xf32>
    %603 = vector.shape_cast %602 : vector<8xf32> to vector<8x1xf32>
    %cst_220 = arith.constant 3.200000e+01 : f32
    %604 = vector.broadcast %cst_220 : f32 to vector<8x1xf32>
    %605 = arith.divf %603, %604 : vector<8x1xf32>
    %606 = vector.broadcast %605 : vector<8x1xf32> to vector<8x32xf32>
    %607 = arith.subf %601, %606 : vector<8x32xf32>
    %608 = arith.mulf %607, %607 : vector<8x32xf32>
    %cst_221 = arith.constant dense<0.000000e+00> : vector<8xf32>
    %609 = vector.multi_reduction <add>, %608, %cst_221 [1] : vector<8x32xf32> to vector<8xf32>
    %610 = vector.shape_cast %609 : vector<8xf32> to vector<8x1xf32>
    %cst_222 = arith.constant 3.200000e+01 : f32
    %611 = vector.broadcast %cst_222 : f32 to vector<8x1xf32>
    %612 = arith.divf %610, %611 : vector<8x1xf32>
    %cst_223 = arith.constant 9.99999974E-6 : f32
    %613 = vector.broadcast %cst_223 : f32 to vector<8x1xf32>
    %614 = arith.addf %612, %613 : vector<8x1xf32>
    %615 = math.rsqrt %614 : vector<8x1xf32>
    %616 = vector.broadcast %615 : vector<8x1xf32> to vector<8x32xf32>
    %617 = arith.mulf %607, %616 : vector<8x32xf32>
    %618 = vector.extract_strided_slice %0 {offsets = [7, 0], sizes = [1, 32], strides = [1, 1]} : vector<8x32xf32> to vector<1x32xf32>
    %619 = vector.broadcast %618 : vector<1x32xf32> to vector<8x32xf32>
    %620 = arith.mulf %617, %619 : vector<8x32xf32>
    %621 = vector.extract_strided_slice %1 {offsets = [7, 0], sizes = [1, 32], strides = [1, 1]} : vector<8x32xf32> to vector<1x32xf32>
    %622 = vector.broadcast %621 : vector<1x32xf32> to vector<8x32xf32>
    %623 = arith.addf %620, %622 : vector<8x32xf32>
    %c0_224 = arith.constant 0 : index
    %c0_225 = arith.constant 0 : index
    %624 = vector.load %arg35[%c0_224, %c0_225] : memref<32x64xf32, #tpu.memory_space<vmem>>, vector<32x64xf32>
    %c0_226 = arith.constant 0 : index
    %c0_227 = arith.constant 0 : index
    %625 = vector.load %arg36[%c0_226, %c0_227] : memref<1x64xf32, #tpu.memory_space<vmem>>, vector<1x64xf32>
    %cst_228 = arith.constant dense<0.000000e+00> : vector<8x64xf32>
    %626 = tpu.matmul %623, %624, %cst_228 {dimension_numbers = #tpu.dot_dimension_numbers<[1], [0], [0], [1], [0, 0, 1, 1], [], []>} : vector<8x32xf32>, vector<32x64xf32>, vector<8x64xf32> -> vector<8x64xf32>
    %627 = vector.broadcast %625 : vector<1x64xf32> to vector<8x64xf32>
    %628 = arith.addf %626, %627 : vector<8x64xf32>
    %c0_229 = arith.constant 0 : index
    %c0_230 = arith.constant 0 : index
    %c0_231 = arith.constant 0 : index
    %629 = vector.load %arg4[%c0_229, %c0_230, %c0_231] : memref<1x8x1xi32, #tpu.memory_space<vmem>>, vector<1x8x1xi32>
    %630 = vector.shape_cast %629 : vector<1x8x1xi32> to vector<8x1xi32>
    %631 = tpu.iota {dimensions = array<i32: 1>} : vector<8x64xi32>
    %632 = vector.broadcast %630 : vector<8x1xi32> to vector<8x64xi32>
    %633 = arith.cmpi eq, %631, %632 : vector<8x64xi32>
    %cst_232 = arith.constant 0.000000e+00 : f32
    %634 = vector.broadcast %cst_232 : f32 to vector<8x64xf32>
    %635 = arith.select %633, %628, %634 : vector<8x64xi1>, vector<8x64xf32>
    %cst_233 = arith.constant dense<0.000000e+00> : vector<8xf32>
    %636 = vector.multi_reduction <add>, %635, %cst_233 [1] : vector<8x64xf32> to vector<8xf32>
    %637 = vector.shape_cast %636 : vector<8xf32> to vector<8x1xf32>
    %cst_234 = arith.constant dense<0xFF800000> : vector<8xf32>
    %638 = vector.multi_reduction <maximumf>, %628, %cst_234 [1] : vector<8x64xf32> to vector<8xf32>
    %639 = vector.shape_cast %638 : vector<8xf32> to vector<8x1xf32>
    %640 = vector.broadcast %639 : vector<8x1xf32> to vector<8x64xf32>
    %641 = arith.subf %628, %640 : vector<8x64xf32>
    %642 = math.exp %641 : vector<8x64xf32>
    %cst_235 = arith.constant dense<0.000000e+00> : vector<8xf32>
    %643 = vector.multi_reduction <add>, %642, %cst_235 [1] : vector<8x64xf32> to vector<8xf32>
    %644 = vector.shape_cast %643 : vector<8xf32> to vector<8x1xf32>
    %645 = math.log %644 : vector<8x1xf32>
    %646 = arith.addf %639, %645 : vector<8x1xf32>
    %647 = arith.subf %646, %637 : vector<8x1xf32>
    %c0_i32 = arith.constant 0 : i32
    %648 = vector.broadcast %c0_i32 : i32 to vector<8x1xi32>
    %649 = arith.cmpi ne, %630, %648 : vector<8x1xi32>
    %650 = arith.extui %649 : vector<8x1xi1> to vector<8x1xi32>
    %651 = arith.sitofp %650 : vector<8x1xi32> to vector<8x1xf32>
    %652 = arith.mulf %647, %651 : vector<8x1xf32>
    %653 = vector.shape_cast %652 : vector<8x1xf32> to vector<1x8x1xf32>
    %cst_236 = arith.constant dense<0.000000e+00> : vector<1xf32>
    %654 = vector.multi_reduction <add>, %653, %cst_236 [1, 2] : vector<1x8x1xf32> to vector<1xf32>
    %655 = vector.shape_cast %654 : vector<1xf32> to vector<1x1x1xf32>
    %656 = vector.extract %655[0, 0, 0] : f32 from vector<1x1x1xf32>
    %657 = vector.broadcast %656 : f32 to vector<1x1xf32>
    %658 = arith.cmpf oge, %637, %639 : vector<8x1xf32>
    %cst_237 = arith.constant 1.000000e+00 : f32
    %cst_238 = arith.constant 0.000000e+00 : f32
    %659 = vector.broadcast %cst_237 : f32 to vector<8x1xf32>
    %660 = vector.broadcast %cst_238 : f32 to vector<8x1xf32>
    %661 = arith.select %658, %659, %660 : vector<8x1xi1>, vector<8x1xf32>
    %662 = arith.mulf %661, %651 : vector<8x1xf32>
    %663 = vector.shape_cast %662 : vector<8x1xf32> to vector<1x8x1xf32>
    %cst_239 = arith.constant dense<0.000000e+00> : vector<1xf32>
    %664 = vector.multi_reduction <add>, %663, %cst_239 [1, 2] : vector<1x8x1xf32> to vector<1xf32>
    %665 = vector.shape_cast %664 : vector<1xf32> to vector<1x1x1xf32>
    %666 = vector.extract %665[0, 0, 0] : f32 from vector<1x1x1xf32>
    %667 = vector.broadcast %666 : f32 to vector<1x1xf32>
    %668 = vector.shape_cast %651 : vector<8x1xf32> to vector<1x8x1xf32>
    %cst_240 = arith.constant dense<0.000000e+00> : vector<1xf32>
    %669 = vector.multi_reduction <add>, %668, %cst_240 [1, 2] : vector<1x8x1xf32> to vector<1xf32>
    %670 = vector.shape_cast %669 : vector<1xf32> to vector<1x1x1xf32>
    %671 = vector.extract %670[0, 0, 0] : f32 from vector<1x1x1xf32>
    %672 = vector.broadcast %671 : f32 to vector<1x1xf32>
    %673 = tpu.iota {dimensions = array<i32: 1>} : vector<1x128xi32>
    %c0_i32_241 = arith.constant 0 : i32
    %674 = vector.broadcast %c0_i32_241 : i32 to vector<1x128xi32>
    %675 = arith.cmpi eq, %673, %674 : vector<1x128xi32>
    %cst_242 = arith.constant 0.000000e+00 : f32
    %676 = vector.shape_cast %657 : vector<1x1xf32> to vector<1x1xf32>
    %677 = vector.broadcast %676 : vector<1x1xf32> to vector<1x128xf32>
    %678 = vector.broadcast %cst_242 : f32 to vector<1x128xf32>
    %679 = arith.select %675, %677, %678 : vector<1x128xi1>, vector<1x128xf32>
    %c1_i32 = arith.constant 1 : i32
    %680 = vector.broadcast %c1_i32 : i32 to vector<1x128xi32>
    %681 = arith.cmpi eq, %673, %680 : vector<1x128xi32>
    %cst_243 = arith.constant 0.000000e+00 : f32
    %682 = vector.shape_cast %667 : vector<1x1xf32> to vector<1x1xf32>
    %683 = vector.broadcast %682 : vector<1x1xf32> to vector<1x128xf32>
    %684 = vector.broadcast %cst_243 : f32 to vector<1x128xf32>
    %685 = arith.select %681, %683, %684 : vector<1x128xi1>, vector<1x128xf32>
    %686 = arith.addf %679, %685 : vector<1x128xf32>
    %c2_i32 = arith.constant 2 : i32
    %687 = vector.broadcast %c2_i32 : i32 to vector<1x128xi32>
    %688 = arith.cmpi eq, %673, %687 : vector<1x128xi32>
    %cst_244 = arith.constant 0.000000e+00 : f32
    %689 = vector.shape_cast %672 : vector<1x1xf32> to vector<1x1xf32>
    %690 = vector.broadcast %689 : vector<1x1xf32> to vector<1x128xf32>
    %691 = vector.broadcast %cst_244 : f32 to vector<1x128xf32>
    %692 = arith.select %688, %690, %691 : vector<1x128xi1>, vector<1x128xf32>
    %693 = arith.addf %686, %692 : vector<1x128xf32>
    %c0_245 = arith.constant 0 : index
    %c0_246 = arith.constant 0 : index
    %c0_247 = arith.constant 0 : index
    %694 = vector.load %arg37[%c0_245, %c0_246, %c0_247] : memref<1x1x128xf32, #tpu.memory_space<vmem>>, vector<1x1x128xf32>
    %695 = vector.shape_cast %694 : vector<1x1x128xf32> to vector<1x128xf32>
    %696 = vector.shape_cast %693 : vector<1x128xf32> to vector<1x1x128xf32>
    tpu.vector_store %arg37[%c0_245, %c0_246, %c0_247], %696 {strides = array<i32>} : memref<1x1x128xf32, #tpu.memory_space<vmem>>, vector<1x1x128xf32>,
    return
  }
  func.func @transform_0(%arg0: i32) -> (i32, i32, i32) {
    %c0_i32 = arith.constant 0 : i32
    %c0_i32_0 = arith.constant 0 : i32
    %c0_i32_1 = arith.constant 0 : i32
    return %arg0, %c0_i32, %c0_i32_0 : i32, i32, i32
  }
  func.func @transform_1(%arg0: i32) -> (i32, i32, i32) {
    %c0_i32 = arith.constant 0 : i32
    %c0_i32_0 = arith.constant 0 : i32
    %c0_i32_1 = arith.constant 0 : i32
    return %arg0, %c0_i32, %c0_i32_0 : i32, i32, i32
  }
  func.func @transform_2(%arg0: i32) -> (i32, i32, i32) {
    %c0_i32 = arith.constant 0 : i32
    %c0_i32_0 = arith.constant 0 : i32
    %c0_i32_1 = arith.constant 0 : i32
    return %arg0, %c0_i32, %c0_i32_0 : i32, i32, i32
  }
  func.func @transform_3(%arg0: i32) -> (i32, i32, i32) {
    %c0_i32 = arith.constant 0 : i32
    %c0_i32_0 = arith.constant 0 : i32
    %c0_i32_1 = arith.constant 0 : i32
    return %arg0, %c0_i32, %c0_i32_0 : i32, i32, i32
  }
  func.func @transform_4(%arg0: i32) -> (i32, i32) {
    %c0_i32 = arith.constant 0 : i32
    %c0_i32_0 = arith.constant 0 : i32
    %c0_i32_1 = arith.constant 0 : i32
    return %c0_i32, %c0_i32_0 : i32, i32
  }
  func.func @transform_5(%arg0: i32) -> (i32, i32) {
    %c0_i32 = arith.constant 0 : i32
    %c0_i32_0 = arith.constant 0 : i32
    %c0_i32_1 = arith.constant 0 : i32
    return %c0_i32, %c0_i32_0 : i32, i32
  }
  func.func @transform_6(%arg0: i32) -> (i32, i32) {
    %c0_i32 = arith.constant 0 : i32
    %c0_i32_0 = arith.constant 0 : i32
    %c0_i32_1 = arith.constant 0 : i32
    return %c0_i32, %c0_i32_0 : i32, i32
  }
  func.func @transform_7(%arg0: i32) -> (i32, i32) {
    %c0_i32 = arith.constant 0 : i32
    %c0_i32_0 = arith.constant 0 : i32
    %c0_i32_1 = arith.constant 0 : i32
    return %c0_i32, %c0_i32_0 : i32, i32
  }
  func.func @transform_8(%arg0: i32) -> (i32, i32) {
    %c0_i32 = arith.constant 0 : i32
    %c0_i32_0 = arith.constant 0 : i32
    %c0_i32_1 = arith.constant 0 : i32
    return %c0_i32, %c0_i32_0 : i32, i32
  }
  func.func @transform_9(%arg0: i32) -> (i32, i32) {
    %c0_i32 = arith.constant 0 : i32
    %c0_i32_0 = arith.constant 0 : i32
    %c0_i32_1 = arith.constant 0 : i32
    return %c0_i32, %c0_i32_0 : i32, i32
  }
  func.func @transform_10(%arg0: i32) -> (i32, i32) {
    %c0_i32 = arith.constant 0 : i32
    %c0_i32_0 = arith.constant 0 : i32
    %c0_i32_1 = arith.constant 0 : i32
    return %c0_i32, %c0_i32_0 : i32, i32
  }
  func.func @transform_11(%arg0: i32) -> (i32, i32) {
    %c0_i32 = arith.constant 0 : i32
    %c0_i32_0 = arith.constant 0 : i32
    %c0_i32_1 = arith.constant 0 : i32
    return %c0_i32, %c0_i32_0 : i32, i32
  }
  func.func @transform_12(%arg0: i32) -> (i32, i32) {
    %c0_i32 = arith.constant 0 : i32
    %c0_i32_0 = arith.constant 0 : i32
    %c0_i32_1 = arith.constant 0 : i32
    return %c0_i32, %c0_i32_0 : i32, i32
  }
  func.func @transform_13(%arg0: i32) -> (i32, i32) {
    %c0_i32 = arith.constant 0 : i32
    %c0_i32_0 = arith.constant 0 : i32
    %c0_i32_1 = arith.constant 0 : i32
    return %c0_i32, %c0_i32_0 : i32, i32
  }
  func.func @transform_14(%arg0: i32) -> (i32, i32) {
    %c0_i32 = arith.constant 0 : i32
    %c0_i32_0 = arith.constant 0 : i32
    %c0_i32_1 = arith.constant 0 : i32
    return %c0_i32, %c0_i32_0 : i32, i32
  }
  func.func @transform_15(%arg0: i32) -> (i32, i32) {
    %c0_i32 = arith.constant 0 : i32
    %c0_i32_0 = arith.constant 0 : i32
    %c0_i32_1 = arith.constant 0 : i32
    return %c0_i32, %c0_i32_0 : i32, i32
  }
  func.func @transform_16(%arg0: i32) -> (i32, i32) {
    %c0_i32 = arith.constant 0 : i32
    %c0_i32_0 = arith.constant 0 : i32
    %c0_i32_1 = arith.constant 0 : i32
    return %c0_i32, %c0_i32_0 : i32, i32
  }
  func.func @transform_17(%arg0: i32) -> (i32, i32) {
    %c0_i32 = arith.constant 0 : i32
    %c0_i32_0 = arith.constant 0 : i32
    %c0_i32_1 = arith.constant 0 : i32
    return %c0_i32, %c0_i32_0 : i32, i32
  }
  func.func @transform_18(%arg0: i32) -> (i32, i32) {
    %c0_i32 = arith.constant 0 : i32
    %c0_i32_0 = arith.constant 0 : i32
    %c0_i32_1 = arith.constant 0 : i32
    return %c0_i32, %c0_i32_0 : i32, i32
  }
  func.func @transform_19(%arg0: i32) -> (i32, i32) {
    %c0_i32 = arith.constant 0 : i32
    %c0_i32_0 = arith.constant 0 : i32
    %c0_i32_1 = arith.constant 0 : i32
    return %c0_i32, %c0_i32_0 : i32, i32
  }
  func.func @transform_20(%arg0: i32) -> (i32, i32) {
    %c0_i32 = arith.constant 0 : i32
    %c0_i32_0 = arith.constant 0 : i32
    %c0_i32_1 = arith.constant 0 : i32
    return %c0_i32, %c0_i32_0 : i32, i32
  }
  func.func @transform_21(%arg0: i32) -> (i32, i32) {
    %c0_i32 = arith.constant 0 : i32
    %c0_i32_0 = arith.constant 0 : i32
    %c0_i32_1 = arith.constant 0 : i32
    return %c0_i32, %c0_i32_0 : i32, i32
  }
  func.func @transform_22(%arg0: i32) -> (i32, i32) {
    %c0_i32 = arith.constant 0 : i32
    %c0_i32_0 = arith.constant 0 : i32
    %c0_i32_1 = arith.constant 0 : i32
    return %c0_i32, %c0_i32_0 : i32, i32
  }
  func.func @transform_23(%arg0: i32) -> (i32, i32) {
    %c0_i32 = arith.constant 0 : i32
    %c0_i32_0 = arith.constant 0 : i32
    %c0_i32_1 = arith.constant 0 : i32
    return %c0_i32, %c0_i32_0 : i32, i32
  }
  func.func @transform_24(%arg0: i32) -> (i32, i32) {
    %c0_i32 = arith.constant 0 : i32
    %c0_i32_0 = arith.constant 0 : i32
    %c0_i32_1 = arith.constant 0 : i32
    return %c0_i32, %c0_i32_0 : i32, i32
  }
  func.func @transform_25(%arg0: i32) -> (i32, i32) {
    %c0_i32 = arith.constant 0 : i32
    %c0_i32_0 = arith.constant 0 : i32
    %c0_i32_1 = arith.constant 0 : i32
    return %c0_i32, %c0_i32_0 : i32, i32
  }
  func.func @transform_26(%arg0: i32) -> (i32, i32) {
    %c0_i32 = arith.constant 0 : i32
    %c0_i32_0 = arith.constant 0 : i32
    %c0_i32_1 = arith.constant 0 : i32
    return %c0_i32, %c0_i32_0 : i32, i32
  }
  func.func @transform_27(%arg0: i32) -> (i32, i32) {
    %c0_i32 = arith.constant 0 : i32
    %c0_i32_0 = arith.constant 0 : i32
    %c0_i32_1 = arith.constant 0 : i32
    return %c0_i32, %c0_i32_0 : i32, i32
  }
  func.func @transform_28(%arg0: i32) -> (i32, i32) {
    %c0_i32 = arith.constant 0 : i32
    %c0_i32_0 = arith.constant 0 : i32
    %c0_i32_1 = arith.constant 0 : i32
    return %c0_i32, %c0_i32_0 : i32, i32
  }
  func.func @transform_29(%arg0: i32) -> (i32, i32) {
    %c0_i32 = arith.constant 0 : i32
    %c0_i32_0 = arith.constant 0 : i32
    %c0_i32_1 = arith.constant 0 : i32
    return %c0_i32, %c0_i32_0 : i32, i32
  }
  func.func @transform_30(%arg0: i32) -> (i32, i32) {
    %c0_i32 = arith.constant 0 : i32
    %c0_i32_0 = arith.constant 0 : i32
    %c0_i32_1 = arith.constant 0 : i32
    return %c0_i32, %c0_i32_0 : i32, i32
  }
  func.func @transform_31(%arg0: i32) -> (i32, i32) {
    %c0_i32 = arith.constant 0 : i32
    %c0_i32_0 = arith.constant 0 : i32
    %c0_i32_1 = arith.constant 0 : i32
    return %c0_i32, %c0_i32_0 : i32, i32
  }
  func.func @transform_32(%arg0: i32) -> (i32, i32) {
    %c0_i32 = arith.constant 0 : i32
    %c0_i32_0 = arith.constant 0 : i32
    %c0_i32_1 = arith.constant 0 : i32
    return %c0_i32, %c0_i32_0 : i32, i32
  }
  func.func @transform_33(%arg0: i32) -> (i32, i32) {
    %c0_i32 = arith.constant 0 : i32
    %c0_i32_0 = arith.constant 0 : i32
    %c0_i32_1 = arith.constant 0 : i32
    return %c0_i32, %c0_i32_0 : i32, i32
  }
  func.func @transform_34(%arg0: i32) -> (i32, i32) {
    %c0_i32 = arith.constant 0 : i32
    %c0_i32_0 = arith.constant 0 : i32
    %c0_i32_1 = arith.constant 0 : i32
    return %c0_i32, %c0_i32_0 : i32, i32
  }
  func.func @transform_35(%arg0: i32) -> (i32, i32) {
    %c0_i32 = arith.constant 0 : i32
    %c0_i32_0 = arith.constant 0 : i32
    %c0_i32_1 = arith.constant 0 : i32
    return %c0_i32, %c0_i32_0 : i32, i32
  }
  func.func @transform_36(%arg0: i32) -> (i32, i32, i32) {
    %c0_i32 = arith.constant 0 : i32
    %c0_i32_0 = arith.constant 0 : i32
    %c0_i32_1 = arith.constant 0 : i32
    return %arg0, %c0_i32, %c0_i32_0 : i32, i32, i32
  }
}

</mosaic_0001>

<llo_original>
// kernel: pegasus_forward.1
$region0: #{pegasus_forward.1}
  #allocation0 [shape = 'u32[]', space=smem, size = 0x4, offset = 0x4, fixed_abs, tag = 'smem constant byte address 0x4 - core index']
  #allocation1 [shape = 'u32[144,128]{1,0:T(1,128)}', space=vmem, size = 0x12000, scoped, tag = 'internal scratch']
  %s0 = inlined_call_operand.smem [shape: u32[37], index: -1, kind: input, shape index: {}]
  %s1 = sld [smem:[%s0]]
  %s2 = scalar_lea.smem %s0, 1
  %s3 = sld [smem:[%s2]]
  %s4 = scalar_lea.smem %s0, 2
  %s5 = sld [smem:[%s4]]
  %s6 = scalar_lea.smem %s0, 3
  %s7 = sld [smem:[%s6]]
  %s8 = scalar_lea.smem %s0, 4
  %s9 = sld [smem:[%s8]]
  %s10 = scalar_lea.smem %s0, 5
  %s11 = sld [smem:[%s10]]
  %s12 = scalar_lea.smem %s0, 6
  %s13 = sld [smem:[%s12]]
  %s14 = scalar_lea.smem %s0, 7
  %s15 = sld [smem:[%s14]]
  %s16 = scalar_lea.smem %s0, 8
  %s17 = sld [smem:[%s16]]
  %s18 = scalar_lea.smem %s0, 9
  %s19 = sld [smem:[%s18]]
  %s20 = scalar_lea.smem %s0, 10
  %s21 = sld [smem:[%s20]]
  %s22 = scalar_lea.smem %s0, 11
  %s23 = sld [smem:[%s22]]
  %s24 = scalar_lea.smem %s0, 12
  %s25 = sld [smem:[%s24]]
  %s26 = scalar_lea.smem %s0, 13
  %s27 = sld [smem:[%s26]]
  %s28 = scalar_lea.smem %s0, 14
  %s29 = sld [smem:[%s28]]
  %s30 = scalar_lea.smem %s0, 15
  %s31 = sld [smem:[%s30]]
  %s32 = scalar_lea.smem %s0, 16
  %s33 = sld [smem:[%s32]]
  %s34 = scalar_lea.smem %s0, 17
  %s35 = sld [smem:[%s34]]
  %s36 = scalar_lea.smem %s0, 18
  %s37 = sld [smem:[%s36]]
  %s38 = scalar_lea.smem %s0, 19
  %s39 = sld [smem:[%s38]]
  %s40 = scalar_lea.smem %s0, 20
  %s41 = sld [smem:[%s40]]
  %s42 = scalar_lea.smem %s0, 21
  %s43 = sld [smem:[%s42]]
  %s44 = scalar_lea.smem %s0, 22
  %s45 = sld [smem:[%s44]]
  %s46 = scalar_lea.smem %s0, 23
  %s47 = sld [smem:[%s46]]
  %s48 = scalar_lea.smem %s0, 24
  %s49 = sld [smem:[%s48]]
  %s50 = scalar_lea.smem %s0, 25
  %s51 = sld [smem:[%s50]]
  %s52 = scalar_lea.smem %s0, 26
  %s53 = sld [smem:[%s52]]
  %s54 = scalar_lea.smem %s0, 27
  %s55 = sld [smem:[%s54]]
  %s56 = scalar_lea.smem %s0, 28
  %s57 = sld [smem:[%s56]]
  %s58 = scalar_lea.smem %s0, 29
  %s59 = sld [smem:[%s58]]
  %s60 = scalar_lea.smem %s0, 30
  %s61 = sld [smem:[%s60]]
  %s62 = scalar_lea.smem %s0, 31
  %s63 = sld [smem:[%s62]]
  %s64 = scalar_lea.smem %s0, 32
  %s65 = sld [smem:[%s64]]
  %s66 = scalar_lea.smem %s0, 33
  %s67 = sld [smem:[%s66]]
  %s68 = scalar_lea.smem %s0, 34
  %s69 = sld [smem:[%s68]]
  %s70 = scalar_lea.smem %s0, 35
  %s71 = sld [smem:[%s70]]
  %s72 = scalar_lea.smem %s0, 36
  %s73 = sld [smem:[%s72]]
  %s74 = sld [smem:[#allocation0]]
  $region177: #{pegasus_forward.1} parent=0
    _
  %s76 = ssub.s32 1, %s74
  %s77 = scalar_select 0, %s76, %s74
  loop: start=0, step=1, limit=4
  $region2: #{pegasus_forward.1} parent=0 // loop_pre_header
    _
  $region3: #{pegasus_forward.1} parent=0 // loop_header
    %s79 = sphi 0, %s83
    %p80 = scmp.ge.s32.totalorder %s79, 4
    %s89 = sphi 0, %s91
    %s92 = sphi 0, %s89
    %s93 = sphi 0, %s92
    %s109 = sphi 0, %s93
    %s115 = sphi 0, %s117
    %s118 = sphi 0, %s115
    %s119 = sphi 0, %s118
    %s135 = sphi 0, %s119
    %s141 = sphi 0, %s143
    %s144 = sphi 0, %s141
    %s145 = sphi 0, %s144
    %s161 = sphi 0, %s145
    %s167 = sphi 0, %s169
    %s170 = sphi 0, %s167
    %s171 = sphi 0, %s170
    %s187 = sphi 0, %s171
    %s191 = sphi 0, %s191
    %s193 = sphi 0, %s191
    %s194 = sphi 0, %s193
    %s208 = sphi 0, %s194
    %s212 = sphi 0, %s212
    %s214 = sphi 0, %s212
    %s215 = sphi 0, %s214
    %s229 = sphi 0, %s215
    %s233 = sphi 0, %s233
    %s235 = sphi 0, %s233
    %s236 = sphi 0, %s235
    %s250 = sphi 0, %s236
    %s254 = sphi 0, %s254
    %s256 = sphi 0, %s254
    %s257 = sphi 0, %s256
    %s271 = sphi 0, %s257
    %s275 = sphi 0, %s275
    %s277 = sphi 0, %s275
    %s278 = sphi 0, %s277
    %s292 = sphi 0, %s278
    %s296 = sphi 0, %s296
    %s298 = sphi 0, %s296
    %s299 = sphi 0, %s298
    %s313 = sphi 0, %s299
    %s317 = sphi 0, %s317
    %s319 = sphi 0, %s317
    %s320 = sphi 0, %s319
    %s334 = sphi 0, %s320
    %s338 = sphi 0, %s338
    %s340 = sphi 0, %s338
    %s341 = sphi 0, %s340
    %s355 = sphi 0, %s341
    %s359 = sphi 0, %s359
    %s361 = sphi 0, %s359
    %s362 = sphi 0, %s361
    %s376 = sphi 0, %s362
    %s380 = sphi 0, %s380
    %s382 = sphi 0, %s380
    %s383 = sphi 0, %s382
    %s397 = sphi 0, %s383
    %s401 = sphi 0, %s401
    %s403 = sphi 0, %s401
    %s404 = sphi 0, %s403
    %s418 = sphi 0, %s404
    %s422 = sphi 0, %s422
    %s424 = sphi 0, %s422
    %s425 = sphi 0, %s424
    %s439 = sphi 0, %s425
    %s443 = sphi 0, %s443
    %s445 = sphi 0, %s443
    %s446 = sphi 0, %s445
    %s460 = sphi 0, %s446
    %s464 = sphi 0, %s464
    %s466 = sphi 0, %s464
    %s467 = sphi 0, %s466
    %s481 = sphi 0, %s467
    %s485 = sphi 0, %s485
    %s487 = sphi 0, %s485
    %s488 = sphi 0, %s487
    %s502 = sphi 0, %s488
    %s506 = sphi 0, %s506
    %s508 = sphi 0, %s506
    %s509 = sphi 0, %s508
    %s523 = sphi 0, %s509
    %s527 = sphi 0, %s527
    %s529 = sphi 0, %s527
    %s530 = sphi 0, %s529
    %s544 = sphi 0, %s530
    %s548 = sphi 0, %s548
    %s550 = sphi 0, %s548
    %s551 = sphi 0, %s550
    %s565 = sphi 0, %s551
    %s569 = sphi 0, %s569
    %s571 = sphi 0, %s569
    %s572 = sphi 0, %s571
    %s586 = sphi 0, %s572
    %s590 = sphi 0, %s590
    %s592 = sphi 0, %s590
    %s593 = sphi 0, %s592
    %s607 = sphi 0, %s593
    %s611 = sphi 0, %s611
    %s613 = sphi 0, %s611
    %s614 = sphi 0, %s613
    %s628 = sphi 0, %s614
    %s632 = sphi 0, %s632
    %s634 = sphi 0, %s632
    %s635 = sphi 0, %s634
    %s649 = sphi 0, %s635
    %s653 = sphi 0, %s653
    %s655 = sphi 0, %s653
    %s656 = sphi 0, %s655
    %s670 = sphi 0, %s656
    %s674 = sphi 0, %s674
    %s676 = sphi 0, %s674
    %s677 = sphi 0, %s676
    %s691 = sphi 0, %s677
    %s695 = sphi 0, %s695
    %s697 = sphi 0, %s695
    %s698 = sphi 0, %s697
    %s712 = sphi 0, %s698
    %s716 = sphi 0, %s716
    %s718 = sphi 0, %s716
    %s719 = sphi 0, %s718
    %s733 = sphi 0, %s719
    %s737 = sphi 0, %s737
    %s739 = sphi 0, %s737
    %s740 = sphi 0, %s739
    %s754 = sphi 0, %s740
    %s758 = sphi 0, %s758
    %s760 = sphi 0, %s758
    %s761 = sphi 0, %s760
    %s775 = sphi 0, %s761
    %s779 = sphi 0, %s779
    %s781 = sphi 0, %s779
    %s782 = sphi 0, %s781
    %s796 = sphi 0, %s782
    %s800 = sphi 0, %s800
    %s802 = sphi 0, %s800
    %s803 = sphi 0, %s802
    %s817 = sphi 0, %s803
    %s821 = sphi 0, %s821
    %s823 = sphi 0, %s821
    %s824 = sphi 0, %s823
    %s838 = sphi 0, %s824
    %s842 = sphi 0, %s842
    %s844 = sphi 0, %s842
    %s845 = sphi 0, %s844
    %s859 = sphi 0, %s845
    %s865 = sphi 0, %s867
    %s868 = sphi 0, %s865
    %s869 = sphi 0, %s868
    %s885 = sphi 0, %s869
  $region4: #{pegasus_forward.1} parent=0 // loop_header_branch
    %82 = sbr.rel (%p80) target = $region8
  $region5: #{pegasus_forward.1} parent=0 // loop_body
    %s84 = ssub.s32 %s79, 1
    %s85 = ssub.s32 %s79, 2
    %s86 = sadd.s32 %s79, 1
    %s87 = ssub.s32 %s79, %s86
    %p88 = scmp.eq.s32.totalorder %s87, 0
    %s90 = sadd.s32 %s89, 1
    %s91 = scalar_select %p88, %s89, %s90
    %p94 = pneg %p88
    %p95 = scmp.eq.s32.totalorder %s79, 1
    %p96 = por %p94, %p95
    %p97 = scmp.ne.s32.totalorder %s89, %s92
    %p98 = scmp.eq.s32.totalorder %s79, 0
    %p99 = por %p97, %p98
    %p100 = scmp.ne.s32.totalorder %s89, %s92
    %p101 = scmp.eq.s32.totalorder %s84, 1
    %p102 = por %p100, %p101
    %p103 = scmp.ne.s32.totalorder %s92, %s93
    %p104 = scmp.eq.s32.totalorder %s84, 0
    %p105 = por %p103, %p104
    %p106 = scmp.ne.s32.totalorder %s92, %s93
    %p107 = scmp.eq.s32.totalorder %s85, 1
    %p108 = por %p106, %p107
    %p110 = scmp.ne.s32.totalorder %s93, %s109
    %p111 = scmp.eq.s32.totalorder %s85, 0
    %p112 = por %p110, %p111
    %s113 = ssub.s32 %s79, %s86
    %p114 = scmp.eq.s32.totalorder %s113, 0
    %s116 = sadd.s32 %s115, 1
    %s117 = scalar_select %p114, %s115, %s116
    %p120 = pneg %p114
    %p121 = scmp.eq.s32.totalorder %s79, 1
    %p122 = por %p120, %p121
    %p123 = scmp.ne.s32.totalorder %s115, %s118
    %p124 = scmp.eq.s32.totalorder %s79, 0
    %p125 = por %p123, %p124
    %p126 = scmp.ne.s32.totalorder %s115, %s118
    %p127 = scmp.eq.s32.totalorder %s84, 1
    %p128 = por %p126, %p127
    %p129 = scmp.ne.s32.totalorder %s118, %s119
    %p130 = scmp.eq.s32.totalorder %s84, 0
    %p131 = por %p129, %p130
    %p132 = scmp.ne.s32.totalorder %s118, %s119
    %p133 = scmp.eq.s32.totalorder %s85, 1
    %p134 = por %p132, %p133
    %p136 = scmp.ne.s32.totalorder %s119, %s135
    %p137 = scmp.eq.s32.totalorder %s85, 0
    %p138 = por %p136, %p137
    %s139 = ssub.s32 %s79, %s86
    %p140 = scmp.eq.s32.totalorder %s139, 0
    %s142 = sadd.s32 %s141, 1
    %s143 = scalar_select %p140, %s141, %s142
    %p146 = pneg %p140
    %p147 = scmp.eq.s32.totalorder %s79, 1
    %p148 = por %p146, %p147
    %p149 = scmp.ne.s32.totalorder %s141, %s144
    %p150 = scmp.eq.s32.totalorder %s79, 0
    %p151 = por %p149, %p150
    %p152 = scmp.ne.s32.totalorder %s141, %s144
    %p153 = scmp.eq.s32.totalorder %s84, 1
    %p154 = por %p152, %p153
    %p155 = scmp.ne.s32.totalorder %s144, %s145
    %p156 = scmp.eq.s32.totalorder %s84, 0
    %p157 = por %p155, %p156
    %p158 = scmp.ne.s32.totalorder %s144, %s145
    %p159 = scmp.eq.s32.totalorder %s85, 1
    %p160 = por %p158, %p159
    %p162 = scmp.ne.s32.totalorder %s145, %s161
    %p163 = scmp.eq.s32.totalorder %s85, 0
    %p164 = por %p162, %p163
    %s165 = ssub.s32 %s79, %s86
    %p166 = scmp.eq.s32.totalorder %s165, 0
    %s168 = sadd.s32 %s167, 1
    %s169 = scalar_select %p166, %s167, %s168
    %p172 = pneg %p166
    %p173 = scmp.eq.s32.totalorder %s79, 1
    %p174 = por %p172, %p173
    %p175 = scmp.ne.s32.totalorder %s167, %s170
    %p176 = scmp.eq.s32.totalorder %s79, 0
    %p177 = por %p175, %p176
    %p178 = scmp.ne.s32.totalorder %s167, %s170
    %p179 = scmp.eq.s32.totalorder %s84, 1
    %p180 = por %p178, %p179
    %p181 = scmp.ne.s32.totalorder %s170, %s171
    %p182 = scmp.eq.s32.totalorder %s84, 0
    %p183 = por %p181, %p182
    %p184 = scmp.ne.s32.totalorder %s170, %s171
    %p185 = scmp.eq.s32.totalorder %s85, 1
    %p186 = por %p184, %p185
    %p188 = scmp.ne.s32.totalorder %s171, %s187
    %p189 = scmp.eq.s32.totalorder %s85, 0
    %p190 = por %p188, %p189
    %s192 = sadd.s32 %s191, 1
    %p195 = scmp.eq.s32.totalorder %s79, 1
    %p196 = scmp.ne.s32.totalorder %s191, %s193
    %p197 = scmp.eq.s32.totalorder %s79, 0
    %p198 = por %p196, %p197
    %p199 = scmp.ne.s32.totalorder %s191, %s193
    %p200 = scmp.eq.s32.totalorder %s84, 1
    %p201 = por %p199, %p200
    %p202 = scmp.ne.s32.totalorder %s193, %s194
    %p203 = scmp.eq.s32.totalorder %s84, 0
    %p204 = por %p202, %p203
    %p205 = scmp.ne.s32.totalorder %s193, %s194
    %p206 = scmp.eq.s32.totalorder %s85, 1
    %p207 = por %p205, %p206
    %p209 = scmp.ne.s32.totalorder %s194, %s208
    %p210 = scmp.eq.s32.totalorder %s85, 0
    %p211 = por %p209, %p210
    %s213 = sadd.s32 %s212, 1
    %p216 = scmp.eq.s32.totalorder %s79, 1
    %p217 = scmp.ne.s32.totalorder %s212, %s214
    %p218 = scmp.eq.s32.totalorder %s79, 0
    %p219 = por %p217, %p218
    %p220 = scmp.ne.s32.totalorder %s212, %s214
    %p221 = scmp.eq.s32.totalorder %s84, 1
    %p222 = por %p220, %p221
    %p223 = scmp.ne.s32.totalorder %s214, %s215
    %p224 = scmp.eq.s32.totalorder %s84, 0
    %p225 = por %p223, %p224
    %p226 = scmp.ne.s32.totalorder %s214, %s215
    %p227 = scmp.eq.s32.totalorder %s85, 1
    %p228 = por %p226, %p227
    %p230 = scmp.ne.s32.totalorder %s215, %s229
    %p231 = scmp.eq.s32.totalorder %s85, 0
    %p232 = por %p230, %p231
    %s234 = sadd.s32 %s233, 1
    %p237 = scmp.eq.s32.totalorder %s79, 1
    %p238 = scmp.ne.s32.totalorder %s233, %s235
    %p239 = scmp.eq.s32.totalorder %s79, 0
    %p240 = por %p238, %p239
    %p241 = scmp.ne.s32.totalorder %s233, %s235
    %p242 = scmp.eq.s32.totalorder %s84, 1
    %p243 = por %p241, %p242
    %p244 = scmp.ne.s32.totalorder %s235, %s236
    %p245 = scmp.eq.s32.totalorder %s84, 0
    %p246 = por %p244, %p245
    %p247 = scmp.ne.s32.totalorder %s235, %s236
    %p248 = scmp.eq.s32.totalorder %s85, 1
    %p249 = por %p247, %p248
    %p251 = scmp.ne.s32.totalorder %s236, %s250
    %p252 = scmp.eq.s32.totalorder %s85, 0
    %p253 = por %p251, %p252
    %s255 = sadd.s32 %s254, 1
    %p258 = scmp.eq.s32.totalorder %s79, 1
    %p259 = scmp.ne.s32.totalorder %s254, %s256
    %p260 = scmp.eq.s32.totalorder %s79, 0
    %p261 = por %p259, %p260
    %p262 = scmp.ne.s32.totalorder %s254, %s256
    %p263 = scmp.eq.s32.totalorder %s84, 1
    %p264 = por %p262, %p263
    %p265 = scmp.ne.s32.totalorder %s256, %s257
    %p266 = scmp.eq.s32.totalorder %s84, 0
    %p267 = por %p265, %p266
    %p268 = scmp.ne.s32.totalorder %s256, %s257
    %p269 = scmp.eq.s32.totalorder %s85, 1
    %p270 = por %p268, %p269
    %p272 = scmp.ne.s32.totalorder %s257, %s271
    %p273 = scmp.eq.s32.totalorder %s85, 0
    %p274 = por %p272, %p273
    %s276 = sadd.s32 %s275, 1
    %p279 = scmp.eq.s32.totalorder %s79, 1
    %p280 = scmp.ne.s32.totalorder %s275, %s277
    %p281 = scmp.eq.s32.totalorder %s79, 0
    %p282 = por %p280, %p281
    %p283 = scmp.ne.s32.totalorder %s275, %s277
    %p284 = scmp.eq.s32.totalorder %s84, 1
    %p285 = por %p283, %p284
    %p286 = scmp.ne.s32.totalorder %s277, %s278
    %p287 = scmp.eq.s32.totalorder %s84, 0
    %p288 = por %p286, %p287
    %p289 = scmp.ne.s32.totalorder %s277, %s278
    %p290 = scmp.eq.s32.totalorder %s85, 1
    %p291 = por %p289, %p290
    %p293 = scmp.ne.s32.totalorder %s278, %s292
    %p294 = scmp.eq.s32.totalorder %s85, 0
    %p295 = por %p293, %p294
    %s297 = sadd.s32 %s296, 1
    %p300 = scmp.eq.s32.totalorder %s79, 1
    %p301 = scmp.ne.s32.totalorder %s296, %s298
    %p302 = scmp.eq.s32.totalorder %s79, 0
    %p303 = por %p301, %p302
    %p304 = scmp.ne.s32.totalorder %s296, %s298
    %p305 = scmp.eq.s32.totalorder %s84, 1
    %p306 = por %p304, %p305
    %p307 = scmp.ne.s32.totalorder %s298, %s299
    %p308 = scmp.eq.s32.totalorder %s84, 0
    %p309 = por %p307, %p308
    %p310 = scmp.ne.s32.totalorder %s298, %s299
    %p311 = scmp.eq.s32.totalorder %s85, 1
    %p312 = por %p310, %p311
    %p314 = scmp.ne.s32.totalorder %s299, %s313
    %p315 = scmp.eq.s32.totalorder %s85, 0
    %p316 = por %p314, %p315
    %s318 = sadd.s32 %s317, 1
    %p321 = scmp.eq.s32.totalorder %s79, 1
    %p322 = scmp.ne.s32.totalorder %s317, %s319
    %p323 = scmp.eq.s32.totalorder %s79, 0
    %p324 = por %p322, %p323
    %p325 = scmp.ne.s32.totalorder %s317, %s319
    %p326 = scmp.eq.s32.totalorder %s84, 1
    %p327 = por %p325, %p326
    %p328 = scmp.ne.s32.totalorder %s319, %s320
    %p329 = scmp.eq.s32.totalorder %s84, 0
    %p330 = por %p328, %p329
    %p331 = scmp.ne.s32.totalorder %s319, %s320
    %p332 = scmp.eq.s32.totalorder %s85, 1
    %p333 = por %p331, %p332
    %p335 = scmp.ne.s32.totalorder %s320, %s334
    %p336 = scmp.eq.s32.totalorder %s85, 0
    %p337 = por %p335, %p336
    %s339 = sadd.s32 %s338, 1
    %p342 = scmp.eq.s32.totalorder %s79, 1
    %p343 = scmp.ne.s32.totalorder %s338, %s340
    %p344 = scmp.eq.s32.totalorder %s79, 0
    %p345 = por %p343, %p344
    %p346 = scmp.ne.s32.totalorder %s338, %s340
    %p347 = scmp.eq.s32.totalorder %s84, 1
    %p348 = por %p346, %p347
    %p349 = scmp.ne.s32.totalorder %s340, %s341
    %p350 = scmp.eq.s32.totalorder %s84, 0
    %p351 = por %p349, %p350
    %p352 = scmp.ne.s32.totalorder %s340, %s341
    %p353 = scmp.eq.s32.totalorder %s85, 1
    %p354 = por %p352, %p353
    %p356 = scmp.ne.s32.totalorder %s341, %s355
    %p357 = scmp.eq.s32.totalorder %s85, 0
    %p358 = por %p356, %p357
    %s360 = sadd.s32 %s359, 1
    %p363 = scmp.eq.s32.totalorder %s79, 1
    %p364 = scmp.ne.s32.totalorder %s359, %s361
    %p365 = scmp.eq.s32.totalorder %s79, 0
    %p366 = por %p364, %p365
    %p367 = scmp.ne.s32.totalorder %s359, %s361
    %p368 = scmp.eq.s32.totalorder %s84, 1
    %p369 = por %p367, %p368
    %p370 = scmp.ne.s32.totalorder %s361, %s362
    %p371 = scmp.eq.s32.totalorder %s84, 0
    %p372 = por %p370, %p371
    %p373 = scmp.ne.s32.totalorder %s361, %s362
    %p374 = scmp.eq.s32.totalorder %s85, 1
    %p375 = por %p373, %p374
    %p377 = scmp.ne.s32.totalorder %s362, %s376
    %p378 = scmp.eq.s32.totalorder %s85, 0
    %p379 = por %p377, %p378
    %s381 = sadd.s32 %s380, 1
    %p384 = scmp.eq.s32.totalorder %s79, 1
    %p385 = scmp.ne.s32.totalorder %s380, %s382
    %p386 = scmp.eq.s32.totalorder %s79, 0
    %p387 = por %p385, %p386
    %p388 = scmp.ne.s32.totalorder %s380, %s382
    %p389 = scmp.eq.s32.totalorder %s84, 1
    %p390 = por %p388, %p389
    %p391 = scmp.ne.s32.totalorder %s382, %s383
    %p392 = scmp.eq.s32.totalorder %s84, 0
    %p393 = por %p391, %p392
    %p394 = scmp.ne.s32.totalorder %s382, %s383
    %p395 = scmp.eq.s32.totalorder %s85, 1
    %p396 = por %p394, %p395
    %p398 = scmp.ne.s32.totalorder %s383, %s397
    %p399 = scmp.eq.s32.totalorder %s85, 0
    %p400 = por %p398, %p399
    %s402 = sadd.s32 %s401, 1
    %p405 = scmp.eq.s32.totalorder %s79, 1
    %p406 = scmp.ne.s32.totalorder %s401, %s403
    %p407 = scmp.eq.s32.totalorder %s79, 0
    %p408 = por %p406, %p407
    %p409 = scmp.ne.s32.totalorder %s401, %s403
    %p410 = scmp.eq.s32.totalorder %s84, 1
    %p411 = por %p409, %p410
    %p412 = scmp.ne.s32.totalorder %s403, %s404
    %p413 = scmp.eq.s32.totalorder %s84, 0
    %p414 = por %p412, %p413
    %p415 = scmp.ne.s32.totalorder %s403, %s404
    %p416 = scmp.eq.s32.totalorder %s85, 1
    %p417 = por %p415, %p416
    %p419 = scmp.ne.s32.totalorder %s404, %s418
    %p420 = scmp.eq.s32.totalorder %s85, 0
    %p421 = por %p419, %p420
    %s423 = sadd.s32 %s422, 1
    %p426 = scmp.eq.s32.totalorder %s79, 1
    %p427 = scmp.ne.s32.totalorder %s422, %s424
    %p428 = scmp.eq.s32.totalorder %s79, 0
    %p429 = por %p427, %p428
    %p430 = scmp.ne.s32.totalorder %s422, %s424
    %p431 = scmp.eq.s32.totalorder %s84, 1
    %p432 = por %p430, %p431
    %p433 = scmp.ne.s32.totalorder %s424, %s425
    %p434 = scmp.eq.s32.totalorder %s84, 0
    %p435 = por %p433, %p434
    %p436 = scmp.ne.s32.totalorder %s424, %s425
    %p437 = scmp.eq.s32.totalorder %s85, 1
    %p438 = por %p436, %p437
    %p440 = scmp.ne.s32.totalorder %s425, %s439
    %p441 = scmp.eq.s32.totalorder %s85, 0
    %p442 = por %p440, %p441
    %s444 = sadd.s32 %s443, 1
    %p447 = scmp.eq.s32.totalorder %s79, 1
    %p448 = scmp.ne.s32.totalorder %s443, %s445
    %p449 = scmp.eq.s32.totalorder %s79, 0
    %p450 = por %p448, %p449
    %p451 = scmp.ne.s32.totalorder %s443, %s445
    %p452 = scmp.eq.s32.totalorder %s84, 1
    %p453 = por %p451, %p452
    %p454 = scmp.ne.s32.totalorder %s445, %s446
    %p455 = scmp.eq.s32.totalorder %s84, 0
    %p456 = por %p454, %p455
    %p457 = scmp.ne.s32.totalorder %s445, %s446
    %p458 = scmp.eq.s32.totalorder %s85, 1
    %p459 = por %p457, %p458
    %p461 = scmp.ne.s32.totalorder %s446, %s460
    %p462 = scmp.eq.s32.totalorder %s85, 0
    %p463 = por %p461, %p462
    %s465 = sadd.s32 %s464, 1
    %p468 = scmp.eq.s32.totalorder %s79, 1
    %p469 = scmp.ne.s32.totalorder %s464, %s466
    %p470 = scmp.eq.s32.totalorder %s79, 0
    %p471 = por %p469, %p470
    %p472 = scmp.ne.s32.totalorder %s464, %s466
    %p473 = scmp.eq.s32.totalorder %s84, 1
    %p474 = por %p472, %p473
    %p475 = scmp.ne.s32.totalorder %s466, %s467
    %p476 = scmp.eq.s32.totalorder %s84, 0
    %p477 = por %p475, %p476
    %p478 = scmp.ne.s32.totalorder %s466, %s467
    %p479 = scmp.eq.s32.totalorder %s85, 1
    %p480 = por %p478, %p479
    %p482 = scmp.ne.s32.totalorder %s467, %s481
    %p483 = scmp.eq.s32.totalorder %s85, 0
    %p484 = por %p482, %p483
    %s486 = sadd.s32 %s485, 1
    %p489 = scmp.eq.s32.totalorder %s79, 1
    %p490 = scmp.ne.s32.totalorder %s485, %s487
    %p491 = scmp.eq.s32.totalorder %s79, 0
    %p492 = por %p490, %p491
    %p493 = scmp.ne.s32.totalorder %s485, %s487
    %p494 = scmp.eq.s32.totalorder %s84, 1
    %p495 = por %p493, %p494
    %p496 = scmp.ne.s32.totalorder %s487, %s488
    %p497 = scmp.eq.s32.totalorder %s84, 0
    %p498 = por %p496, %p497
    %p499 = scmp.ne.s32.totalorder %s487, %s488
    %p500 = scmp.eq.s32.totalorder %s85, 1
    %p501 = por %p499, %p500
    %p503 = scmp.ne.s32.totalorder %s488, %s502
    %p504 = scmp.eq.s32.totalorder %s85, 0
    %p505 = por %p503, %p504
    %s507 = sadd.s32 %s506, 1
    %p510 = scmp.eq.s32.totalorder %s79, 1
    %p511 = scmp.ne.s32.totalorder %s506, %s508
    %p512 = scmp.eq.s32.totalorder %s79, 0
    %p513 = por %p511, %p512
    %p514 = scmp.ne.s32.totalorder %s506, %s508
    %p515 = scmp.eq.s32.totalorder %s84, 1
    %p516 = por %p514, %p515
    %p517 = scmp.ne.s32.totalorder %s508, %s509
    %p518 = scmp.eq.s32.totalorder %s84, 0
    %p519 = por %p517, %p518
    %p520 = scmp.ne.s32.totalorder %s508, %s509
    %p521 = scmp.eq.s32.totalorder %s85, 1
    %p522 = por %p520, %p521
    %p524 = scmp.ne.s32.totalorder %s509, %s523
    %p525 = scmp.eq.s32.totalorder %s85, 0
    %p526 = por %p524, %p525
    %s528 = sadd.s32 %s527, 1
    %p531 = scmp.eq.s32.totalorder %s79, 1
    %p532 = scmp.ne.s32.totalorder %s527, %s529
    %p533 = scmp.eq.s32.totalorder %s79, 0
    %p534 = por %p532, %p533
    %p535 = scmp.ne.s32.totalorder %s527, %s529
    %p536 = scmp.eq.s32.totalorder %s84, 1
    %p537 = por %p535, %p536
    %p538 = scmp.ne.s32.totalorder %s529, %s530
    %p539 = scmp.eq.s32.totalorder %s84, 0
    %p540 = por %p538, %p539
    %p541 = scmp.ne.s32.totalorder %s529, %s530
    %p542 = scmp.eq.s32.totalorder %s85, 1
    %p543 = por %p541, %p542
    %p545 = scmp.ne.s32.totalorder %s530, %s544
    %p546 = scmp.eq.s32.totalorder %s85, 0
    %p547 = por %p545, %p546
    %s549 = sadd.s32 %s548, 1
    %p552 = scmp.eq.s32.totalorder %s79, 1
    %p553 = scmp.ne.s32.totalorder %s548, %s550
    %p554 = scmp.eq.s32.totalorder %s79, 0
    %p555 = por %p553, %p554
    %p556 = scmp.ne.s32.totalorder %s548, %s550
    %p557 = scmp.eq.s32.totalorder %s84, 1
    %p558 = por %p556, %p557
    %p559 = scmp.ne.s32.totalorder %s550, %s551
    %p560 = scmp.eq.s32.totalorder %s84, 0
    %p561 = por %p559, %p560
    %p562 = scmp.ne.s32.totalorder %s550, %s551
    %p563 = scmp.eq.s32.totalorder %s85, 1
    %p564 = por %p562, %p563
    %p566 = scmp.ne.s32.totalorder %s551, %s565
    %p567 = scmp.eq.s32.totalorder %s85, 0
    %p568 = por %p566, %p567
    %s570 = sadd.s32 %s569, 1
    %p573 = scmp.eq.s32.totalorder %s79, 1
    %p574 = scmp.ne.s32.totalorder %s569, %s571
    %p575 = scmp.eq.s32.totalorder %s79, 0
    %p576 = por %p574, %p575
    %p577 = scmp.ne.s32.totalorder %s569, %s571
    %p578 = scmp.eq.s32.totalorder %s84, 1
    %p579 = por %p577, %p578
    %p580 = scmp.ne.s32.totalorder %s571, %s572
    %p581 = scmp.eq.s32.totalorder %s84, 0
    %p582 = por %p580, %p581
    %p583 = scmp.ne.s32.totalorder %s571, %s572
    %p584 = scmp.eq.s32.totalorder %s85, 1
    %p585 = por %p583, %p584
    %p587 = scmp.ne.s32.totalorder %s572, %s586
    %p588 = scmp.eq.s32.totalorder %s85, 0
    %p589 = por %p587, %p588
    %s591 = sadd.s32 %s590, 1
    %p594 = scmp.eq.s32.totalorder %s79, 1
    %p595 = scmp.ne.s32.totalorder %s590, %s592
    %p596 = scmp.eq.s32.totalorder %s79, 0
    %p597 = por %p595, %p596
    %p598 = scmp.ne.s32.totalorder %s590, %s592
    %p599 = scmp.eq.s32.totalorder %s84, 1
    %p600 = por %p598, %p599
    %p601 = scmp.ne.s32.totalorder %s592, %s593
    %p602 = scmp.eq.s32.totalorder %s84, 0
    %p603 = por %p601, %p602
    %p604 = scmp.ne.s32.totalorder %s592, %s593
    %p605 = scmp.eq.s32.totalorder %s85, 1
    %p606 = por %p604, %p605
    %p608 = scmp.ne.s32.totalorder %s593, %s607
    %p609 = scmp.eq.s32.totalorder %s85, 0
    %p610 = por %p608, %p609
    %s612 = sadd.s32 %s611, 1
    %p615 = scmp.eq.s32.totalorder %s79, 1
    %p616 = scmp.ne.s32.totalorder %s611, %s613
    %p617 = scmp.eq.s32.totalorder %s79, 0
    %p618 = por %p616, %p617
    %p619 = scmp.ne.s32.totalorder %s611, %s613
    %p620 = scmp.eq.s32.totalorder %s84, 1
    %p621 = por %p619, %p620
    %p622 = scmp.ne.s32.totalorder %s613, %s614
    %p623 = scmp.eq.s32.totalorder %s84, 0
    %p624 = por %p622, %p623
    %p625 = scmp.ne.s32.totalorder %s613, %s614
    %p626 = scmp.eq.s32.totalorder %s85, 1
    %p627 = por %p625, %p626
    %p629 = scmp.ne.s32.totalorder %s614, %s628
    %p630 = scmp.eq.s32.totalorder %s85, 0
    %p631 = por %p629, %p630
    %s633 = sadd.s32 %s632, 1
    %p636 = scmp.eq.s32.totalorder %s79, 1
    %p637 = scmp.ne.s32.totalorder %s632, %s634
    %p638 = scmp.eq.s32.totalorder %s79, 0
    %p639 = por %p637, %p638
    %p640 = scmp.ne.s32.totalorder %s632, %s634
    %p641 = scmp.eq.s32.totalorder %s84, 1
    %p642 = por %p640, %p641
    %p643 = scmp.ne.s32.totalorder %s634, %s635
    %p644 = scmp.eq.s32.totalorder %s84, 0
    %p645 = por %p643, %p644
    %p646 = scmp.ne.s32.totalorder %s634, %s635
    %p647 = scmp.eq.s32.totalorder %s85, 1
    %p648 = por %p646, %p647
    %p650 = scmp.ne.s32.totalorder %s635, %s649
    %p651 = scmp.eq.s32.totalorder %s85, 0
    %p652 = por %p650, %p651
    %s654 = sadd.s32 %s653, 1
    %p657 = scmp.eq.s32.totalorder %s79, 1
    %p658 = scmp.ne.s32.totalorder %s653, %s655
    %p659 = scmp.eq.s32.totalorder %s79, 0
    %p660 = por %p658, %p659
    %p661 = scmp.ne.s32.totalorder %s653, %s655
    %p662 = scmp.eq.s32.totalorder %s84, 1
    %p663 = por %p661, %p662
    %p664 = scmp.ne.s32.totalorder %s655, %s656
    %p665 = scmp.eq.s32.totalorder %s84, 0
    %p666 = por %p664, %p665
    %p667 = scmp.ne.s32.totalorder %s655, %s656
    %p668 = scmp.eq.s32.totalorder %s85, 1
    %p669 = por %p667, %p668
    %p671 = scmp.ne.s32.totalorder %s656, %s670
    %p672 = scmp.eq.s32.totalorder %s85, 0
    %p673 = por %p671, %p672
    %s675 = sadd.s32 %s674, 1
    %p678 = scmp.eq.s32.totalorder %s79, 1
    %p679 = scmp.ne.s32.totalorder %s674, %s676
    %p680 = scmp.eq.s32.totalorder %s79, 0
    %p681 = por %p679, %p680
    %p682 = scmp.ne.s32.totalorder %s674, %s676
    %p683 = scmp.eq.s32.totalorder %s84, 1
    %p684 = por %p682, %p683
    %p685 = scmp.ne.s32.totalorder %s676, %s677
    %p686 = scmp.eq.s32.totalorder %s84, 0
    %p687 = por %p685, %p686
    %p688 = scmp.ne.s32.totalorder %s676, %s677
    %p689 = scmp.eq.s32.totalorder %s85, 1
    %p690 = por %p688, %p689
    %p692 = scmp.ne.s32.totalorder %s677, %s691
    %p693 = scmp.eq.s32.totalorder %s85, 0
    %p694 = por %p692, %p693
    %s696 = sadd.s32 %s695, 1
    %p699 = scmp.eq.s32.totalorder %s79, 1
    %p700 = scmp.ne.s32.totalorder %s695, %s697
    %p701 = scmp.eq.s32.totalorder %s79, 0
    %p702 = por %p700, %p701
    %p703 = scmp.ne.s32.totalorder %s695, %s697
    %p704 = scmp.eq.s32.totalorder %s84, 1
    %p705 = por %p703, %p704
    %p706 = scmp.ne.s32.totalorder %s697, %s698
    %p707 = scmp.eq.s32.totalorder %s84, 0
    %p708 = por %p706, %p707
    %p709 = scmp.ne.s32.totalorder %s697, %s698
    %p710 = scmp.eq.s32.totalorder %s85, 1
    %p711 = por %p709, %p710
    %p713 = scmp.ne.s32.totalorder %s698, %s712
    %p714 = scmp.eq.s32.totalorder %s85, 0
    %p715 = por %p713, %p714
    %s717 = sadd.s32 %s716, 1
    %p720 = scmp.eq.s32.totalorder %s79, 1
    %p721 = scmp.ne.s32.totalorder %s716, %s718
    %p722 = scmp.eq.s32.totalorder %s79, 0
    %p723 = por %p721, %p722
    %p724 = scmp.ne.s32.totalorder %s716, %s718
    %p725 = scmp.eq.s32.totalorder %s84, 1
    %p726 = por %p724, %p725
    %p727 = scmp.ne.s32.totalorder %s718, %s719
    %p728 = scmp.eq.s32.totalorder %s84, 0
    %p729 = por %p727, %p728
    %p730 = scmp.ne.s32.totalorder %s718, %s719
    %p731 = scmp.eq.s32.totalorder %s85, 1
    %p732 = por %p730, %p731
    %p734 = scmp.ne.s32.totalorder %s719, %s733
    %p735 = scmp.eq.s32.totalorder %s85, 0
    %p736 = por %p734, %p735
    %s738 = sadd.s32 %s737, 1
    %p741 = scmp.eq.s32.totalorder %s79, 1
    %p742 = scmp.ne.s32.totalorder %s737, %s739
    %p743 = scmp.eq.s32.totalorder %s79, 0
    %p744 = por %p742, %p743
    %p745 = scmp.ne.s32.totalorder %s737, %s739
    %p746 = scmp.eq.s32.totalorder %s84, 1
    %p747 = por %p745, %p746
    %p748 = scmp.ne.s32.totalorder %s739, %s740
    %p749 = scmp.eq.s32.totalorder %s84, 0
    %p750 = por %p748, %p749
    %p751 = scmp.ne.s32.totalorder %s739, %s740
    %p752 = scmp.eq.s32.totalorder %s85, 1
    %p753 = por %p751, %p752
    %p755 = scmp.ne.s32.totalorder %s740, %s754
    %p756 = scmp.eq.s32.totalorder %s85, 0
    %p757 = por %p755, %p756
    %s759 = sadd.s32 %s758, 1
    %p762 = scmp.eq.s32.totalorder %s79, 1
    %p763 = scmp.ne.s32.totalorder %s758, %s760
    %p764 = scmp.eq.s32.totalorder %s79, 0
    %p765 = por %p763, %p764
    %p766 = scmp.ne.s32.totalorder %s758, %s760
    %p767 = scmp.eq.s32.totalorder %s84, 1
    %p768 = por %p766, %p767
    %p769 = scmp.ne.s32.totalorder %s760, %s761
    %p770 = scmp.eq.s32.totalorder %s84, 0
    %p771 = por %p769, %p770
    %p772 = scmp.ne.s32.totalorder %s760, %s761
    %p773 = scmp.eq.s32.totalorder %s85, 1
    %p774 = por %p772, %p773
    %p776 = scmp.ne.s32.totalorder %s761, %s775
    %p777 = scmp.eq.s32.totalorder %s85, 0
    %p778 = por %p776, %p777
    %s780 = sadd.s32 %s779, 1
    %p783 = scmp.eq.s32.totalorder %s79, 1
    %p784 = scmp.ne.s32.totalorder %s779, %s781
    %p785 = scmp.eq.s32.totalorder %s79, 0
    %p786 = por %p784, %p785
    %p787 = scmp.ne.s32.totalorder %s779, %s781
    %p788 = scmp.eq.s32.totalorder %s84, 1
    %p789 = por %p787, %p788
    %p790 = scmp.ne.s32.totalorder %s781, %s782
    %p791 = scmp.eq.s32.totalorder %s84, 0
    %p792 = por %p790, %p791
    %p793 = scmp.ne.s32.totalorder %s781, %s782
    %p794 = scmp.eq.s32.totalorder %s85, 1
    %p795 = por %p793, %p794
    %p797 = scmp.ne.s32.totalorder %s782, %s796
    %p798 = scmp.eq.s32.totalorder %s85, 0
    %p799 = por %p797, %p798
    %s801 = sadd.s32 %s800, 1
    %p804 = scmp.eq.s32.totalorder %s79, 1
    %p805 = scmp.ne.s32.totalorder %s800, %s802
    %p806 = scmp.eq.s32.totalorder %s79, 0
    %p807 = por %p805, %p806
    %p808 = scmp.ne.s32.totalorder %s800, %s802
    %p809 = scmp.eq.s32.totalorder %s84, 1
    %p810 = por %p808, %p809
    %p811 = scmp.ne.s32.totalorder %s802, %s803
    %p812 = scmp.eq.s32.totalorder %s84, 0
    %p813 = por %p811, %p812
    %p814 = scmp.ne.s32.totalorder %s802, %s803
    %p815 = scmp.eq.s32.totalorder %s85, 1
    %p816 = por %p814, %p815
    %p818 = scmp.ne.s32.totalorder %s803, %s817
    %p819 = scmp.eq.s32.totalorder %s85, 0
    %p820 = por %p818, %p819
    %s822 = sadd.s32 %s821, 1
    %p825 = scmp.eq.s32.totalorder %s79, 1
    %p826 = scmp.ne.s32.totalorder %s821, %s823
    %p827 = scmp.eq.s32.totalorder %s79, 0
    %p828 = por %p826, %p827
    %p829 = scmp.ne.s32.totalorder %s821, %s823
    %p830 = scmp.eq.s32.totalorder %s84, 1
    %p831 = por %p829, %p830
    %p832 = scmp.ne.s32.totalorder %s823, %s824
    %p833 = scmp.eq.s32.totalorder %s84, 0
    %p834 = por %p832, %p833
    %p835 = scmp.ne.s32.totalorder %s823, %s824
    %p836 = scmp.eq.s32.totalorder %s85, 1
    %p837 = por %p835, %p836
    %p839 = scmp.ne.s32.totalorder %s824, %s838
    %p840 = scmp.eq.s32.totalorder %s85, 0
    %p841 = por %p839, %p840
    %s843 = sadd.s32 %s842, 1
    %p846 = scmp.eq.s32.totalorder %s79, 1
    %p847 = scmp.ne.s32.totalorder %s842, %s844
    %p848 = scmp.eq.s32.totalorder %s79, 0
    %p849 = por %p847, %p848
    %p850 = scmp.ne.s32.totalorder %s842, %s844
    %p851 = scmp.eq.s32.totalorder %s84, 1
    %p852 = por %p850, %p851
    %p853 = scmp.ne.s32.totalorder %s844, %s845
    %p854 = scmp.eq.s32.totalorder %s84, 0
    %p855 = por %p853, %p854
    %p856 = scmp.ne.s32.totalorder %s844, %s845
    %p857 = scmp.eq.s32.totalorder %s85, 1
    %p858 = por %p856, %p857
    %p860 = scmp.ne.s32.totalorder %s845, %s859
    %p861 = scmp.eq.s32.totalorder %s85, 0
    %p862 = por %p860, %p861
    %s863 = ssub.s32 %s79, %s86
    %p864 = scmp.eq.s32.totalorder %s863, 0
    %s866 = sadd.s32 %s865, 1
    %s867 = scalar_select %p864, %s865, %s866
    %p870 = pneg %p864
    %p871 = scmp.eq.s32.totalorder %s79, 1
    %p872 = por %p870, %p871
    %p873 = scmp.ne.s32.totalorder %s865, %s868
    %p874 = scmp.eq.s32.totalorder %s79, 0
    %p875 = por %p873, %p874
    %p876 = scmp.ne.s32.totalorder %s865, %s868
    %p877 = scmp.eq.s32.totalorder %s84, 1
    %p878 = por %p876, %p877
    %p879 = scmp.ne.s32.totalorder %s868, %s869
    %p880 = scmp.eq.s32.totalorder %s84, 0
    %p881 = por %p879, %p880
    %p882 = scmp.ne.s32.totalorder %s868, %s869
    %p883 = scmp.eq.s32.totalorder %s85, 1
    %p884 = por %p882, %p883
    %p886 = scmp.ne.s32.totalorder %s869, %s885
    %p887 = scmp.eq.s32.totalorder %s85, 0
    %p888 = por %p886, %p887
    %p889 = scmp.le.s32.totalorder 1, %s79
    %p890 = scmp.lt.s32.totalorder %s79, 3
    %p891 = pnand %p889, %p890
    %p892 = pneg %p891
    // Predicated region
    $region9: #{pegasus_forward.1} parent=5 // pred_check
      _
    $region10: #{pegasus_forward.1} parent=5 // pred_check_branch
      %894 = sbr.rel (%p891) target = $region12
    $region11: #{pegasus_forward.1} parent=5 // pred_region
      %s895 = ssub.s32 %s79, 1
      // Predicated region
      $region13: #{pegasus_forward.1} parent=11 // pred_check
        %p896 = pneg %p204
      $region14: #{pegasus_forward.1} parent=11 // pred_check_branch
        %898 = sbr.rel (%p896) target = $region16
      $region15: #{pegasus_forward.1} parent=11 // pred_region
        _
      $region16: #{pegasus_forward.1} parent=11 // pred_fallthru
        _
      // Predicated region
      $region17: #{pegasus_forward.1} parent=11 // pred_check
        %p899 = pneg %p225
      $region18: #{pegasus_forward.1} parent=11 // pred_check_branch
        %901 = sbr.rel (%p899) target = $region20
      $region19: #{pegasus_forward.1} parent=11 // pred_region
        _
      $region20: #{pegasus_forward.1} parent=11 // pred_fallthru
        _
      // Predicated region
      $region21: #{pegasus_forward.1} parent=11 // pred_check
        %p902 = pneg %p246
      $region22: #{pegasus_forward.1} parent=11 // pred_check_branch
        %904 = sbr.rel (%p902) target = $region24
      $region23: #{pegasus_forward.1} parent=11 // pred_region
        _
      $region24: #{pegasus_forward.1} parent=11 // pred_fallthru
        _
      // Predicated region
      $region25: #{pegasus_forward.1} parent=11 // pred_check
        %p905 = pneg %p267
      $region26: #{pegasus_forward.1} parent=11 // pred_check_branch
        %907 = sbr.rel (%p905) target = $region28
      $region27: #{pegasus_forward.1} parent=11 // pred_region
        _
      $region28: #{pegasus_forward.1} parent=11 // pred_fallthru
        _
      // Predicated region
      $region29: #{pegasus_forward.1} parent=11 // pred_check
        %p908 = pneg %p288
      $region30: #{pegasus_forward.1} parent=11 // pred_check_branch
        %910 = sbr.rel (%p908) target = $region32
      $region31: #{pegasus_forward.1} parent=11 // pred_region
        _
      $region32: #{pegasus_forward.1} parent=11 // pred_fallthru
        _
      // Predicated region
      $region33: #{pegasus_forward.1} parent=11 // pred_check
        %p911 = pneg %p309
      $region34: #{pegasus_forward.1} parent=11 // pred_check_branch
        %913 = sbr.rel (%p911) target = $region36
      $region35: #{pegasus_forward.1} parent=11 // pred_region
        _
      $region36: #{pegasus_forward.1} parent=11 // pred_fallthru
        _
      // Predicated region
      $region37: #{pegasus_forward.1} parent=11 // pred_check
        %p914 = pneg %p330
      $region38: #{pegasus_forward.1} parent=11 // pred_check_branch
        %916 = sbr.rel (%p914) target = $region40
      $region39: #{pegasus_forward.1} parent=11 // pred_region
        _
      $region40: #{pegasus_forward.1} parent=11 // pred_fallthru
        _
      // Predicated region
      $region41: #{pegasus_forward.1} parent=11 // pred_check
        %p917 = pneg %p351
      $region42: #{pegasus_forward.1} parent=11 // pred_check_branch
        %919 = sbr.rel (%p917) target = $region44
      $region43: #{pegasus_forward.1} parent=11 // pred_region
        _
      $region44: #{pegasus_forward.1} parent=11 // pred_fallthru
        _
      // Predicated region
      $region45: #{pegasus_forward.1} parent=11 // pred_check
        %p920 = pneg %p372
      $region46: #{pegasus_forward.1} parent=11 // pred_check_branch
        %922 = sbr.rel (%p920) target = $region48
      $region47: #{pegasus_forward.1} parent=11 // pred_region
        _
      $region48: #{pegasus_forward.1} parent=11 // pred_fallthru
        _
      // Predicated region
      $region49: #{pegasus_forward.1} parent=11 // pred_check
        %p923 = pneg %p393
      $region50: #{pegasus_forward.1} parent=11 // pred_check_branch
        %925 = sbr.rel (%p923) target = $region52
      $region51: #{pegasus_forward.1} parent=11 // pred_region
        _
      $region52: #{pegasus_forward.1} parent=11 // pred_fallthru
        _
      // Predicated region
      $region53: #{pegasus_forward.1} parent=11 // pred_check
        %p926 = pneg %p414
      $region54: #{pegasus_forward.1} parent=11 // pred_check_branch
        %928 = sbr.rel (%p926) target = $region56
      $region55: #{pegasus_forward.1} parent=11 // pred_region
        _
      $region56: #{pegasus_forward.1} parent=11 // pred_fallthru
        _
      // Predicated region
      $region57: #{pegasus_forward.1} parent=11 // pred_check
        %p929 = pneg %p435
      $region58: #{pegasus_forward.1} parent=11 // pred_check_branch
        %931 = sbr.rel (%p929) target = $region60
      $region59: #{pegasus_forward.1} parent=11 // pred_region
        _
      $region60: #{pegasus_forward.1} parent=11 // pred_fallthru
        _
      // Predicated region
      $region61: #{pegasus_forward.1} parent=11 // pred_check
        %p932 = pneg %p456
      $region62: #{pegasus_forward.1} parent=11 // pred_check_branch
        %934 = sbr.rel (%p932) target = $region64
      $region63: #{pegasus_forward.1} parent=11 // pred_region
        _
      $region64: #{pegasus_forward.1} parent=11 // pred_fallthru
        _
      // Predicated region
      $region65: #{pegasus_forward.1} parent=11 // pred_check
        %p935 = pneg %p477
      $region66: #{pegasus_forward.1} parent=11 // pred_check_branch
        %937 = sbr.rel (%p935) target = $region68
      $region67: #{pegasus_forward.1} parent=11 // pred_region
        _
      $region68: #{pegasus_forward.1} parent=11 // pred_fallthru
        _
      // Predicated region
      $region69: #{pegasus_forward.1} parent=11 // pred_check
        %p938 = pneg %p498
      $region70: #{pegasus_forward.1} parent=11 // pred_check_branch
        %940 = sbr.rel (%p938) target = $region72
      $region71: #{pegasus_forward.1} parent=11 // pred_region
        _
      $region72: #{pegasus_forward.1} parent=11 // pred_fallthru
        _
      // Predicated region
      $region73: #{pegasus_forward.1} parent=11 // pred_check
        %p941 = pneg %p519
      $region74: #{pegasus_forward.1} parent=11 // pred_check_branch
        %943 = sbr.rel (%p941) target = $region76
      $region75: #{pegasus_forward.1} parent=11 // pred_region
        _
      $region76: #{pegasus_forward.1} parent=11 // pred_fallthru
        _
      // Predicated region
      $region77: #{pegasus_forward.1} parent=11 // pred_check
        %p944 = pneg %p540
      $region78: #{pegasus_forward.1} parent=11 // pred_check_branch
        %946 = sbr.rel (%p944) target = $region80
      $region79: #{pegasus_forward.1} parent=11 // pred_region
        _
      $region80: #{pegasus_forward.1} parent=11 // pred_fallthru
        _
      // Predicated region
      $region81: #{pegasus_forward.1} parent=11 // pred_check
        %p947 = pneg %p561
      $region82: #{pegasus_forward.1} parent=11 // pred_check_branch
        %949 = sbr.rel (%p947) target = $region84
      $region83: #{pegasus_forward.1} parent=11 // pred_region
        _
      $region84: #{pegasus_forward.1} parent=11 // pred_fallthru
        _
      // Predicated region
      $region85: #{pegasus_forward.1} parent=11 // pred_check
        %p950 = pneg %p582
      $region86: #{pegasus_forward.1} parent=11 // pred_check_branch
        %952 = sbr.rel (%p950) target = $region88
      $region87: #{pegasus_forward.1} parent=11 // pred_region
        _
      $region88: #{pegasus_forward.1} parent=11 // pred_fallthru
        _
      // Predicated region
      $region89: #{pegasus_forward.1} parent=11 // pred_check
        %p953 = pneg %p603
      $region90: #{pegasus_forward.1} parent=11 // pred_check_branch
        %955 = sbr.rel (%p953) target = $region92
      $region91: #{pegasus_forward.1} parent=11 // pred_region
        _
      $region92: #{pegasus_forward.1} parent=11 // pred_fallthru
        _
      // Predicated region
      $region93: #{pegasus_forward.1} parent=11 // pred_check
        %p956 = pneg %p624
      $region94: #{pegasus_forward.1} parent=11 // pred_check_branch
        %958 = sbr.rel (%p956) target = $region96
      $region95: #{pegasus_forward.1} parent=11 // pred_region
        _
      $region96: #{pegasus_forward.1} parent=11 // pred_fallthru
        _
      // Predicated region
      $region97: #{pegasus_forward.1} parent=11 // pred_check
        %p959 = pneg %p645
      $region98: #{pegasus_forward.1} parent=11 // pred_check_branch
        %961 = sbr.rel (%p959) target = $region100
      $region99: #{pegasus_forward.1} parent=11 // pred_region
        _
      $region100: #{pegasus_forward.1} parent=11 // pred_fallthru
        _
      // Predicated region
      $region101: #{pegasus_forward.1} parent=11 // pred_check
        %p962 = pneg %p666
      $region102: #{pegasus_forward.1} parent=11 // pred_check_branch
        %964 = sbr.rel (%p962) target = $region104
      $region103: #{pegasus_forward.1} parent=11 // pred_region
        _
      $region104: #{pegasus_forward.1} parent=11 // pred_fallthru
        _
      // Predicated region
      $region105: #{pegasus_forward.1} parent=11 // pred_check
        %p965 = pneg %p687
      $region106: #{pegasus_forward.1} parent=11 // pred_check_branch
        %967 = sbr.rel (%p965) target = $region108
      $region107: #{pegasus_forward.1} parent=11 // pred_region
        _
      $region108: #{pegasus_forward.1} parent=11 // pred_fallthru
        _
      // Predicated region
      $region109: #{pegasus_forward.1} parent=11 // pred_check
        %p968 = pneg %p708
      $region110: #{pegasus_forward.1} parent=11 // pred_check_branch
        %970 = sbr.rel (%p968) target = $region112
      $region111: #{pegasus_forward.1} parent=11 // pred_region
        _
      $region112: #{pegasus_forward.1} parent=11 // pred_fallthru
        _
      // Predicated region
      $region113: #{pegasus_forward.1} parent=11 // pred_check
        %p971 = pneg %p729
      $region114: #{pegasus_forward.1} parent=11 // pred_check_branch
        %973 = sbr.rel (%p971) target = $region116
      $region115: #{pegasus_forward.1} parent=11 // pred_region
        _
      $region116: #{pegasus_forward.1} parent=11 // pred_fallthru
        _
      // Predicated region
      $region117: #{pegasus_forward.1} parent=11 // pred_check
        %p974 = pneg %p750
      $region118: #{pegasus_forward.1} parent=11 // pred_check_branch
        %976 = sbr.rel (%p974) target = $region120
      $region119: #{pegasus_forward.1} parent=11 // pred_region
        _
      $region120: #{pegasus_forward.1} parent=11 // pred_fallthru
        _
      // Predicated region
      $region121: #{pegasus_forward.1} parent=11 // pred_check
        %p977 = pneg %p771
      $region122: #{pegasus_forward.1} parent=11 // pred_check_branch
        %979 = sbr.rel (%p977) target = $region124
      $region123: #{pegasus_forward.1} parent=11 // pred_region
        _
      $region124: #{pegasus_forward.1} parent=11 // pred_fallthru
        _
      // Predicated region
      $region125: #{pegasus_forward.1} parent=11 // pred_check
        %p980 = pneg %p792
      $region126: #{pegasus_forward.1} parent=11 // pred_check_branch
        %982 = sbr.rel (%p980) target = $region128
      $region127: #{pegasus_forward.1} parent=11 // pred_region
        _
      $region128: #{pegasus_forward.1} parent=11 // pred_fallthru
        _
      // Predicated region
      $region129: #{pegasus_forward.1} parent=11 // pred_check
        %p983 = pneg %p813
      $region130: #{pegasus_forward.1} parent=11 // pred_check_branch
        %985 = sbr.rel (%p983) target = $region132
      $region131: #{pegasus_forward.1} parent=11 // pred_region
        _
      $region132: #{pegasus_forward.1} parent=11 // pred_fallthru
        _
      // Predicated region
      $region133: #{pegasus_forward.1} parent=11 // pred_check
        %p986 = pneg %p834
      $region134: #{pegasus_forward.1} parent=11 // pred_check_branch
        %988 = sbr.rel (%p986) target = $region136
      $region135: #{pegasus_forward.1} parent=11 // pred_region
        _
      $region136: #{pegasus_forward.1} parent=11 // pred_fallthru
        _
      // Predicated region
      $region137: #{pegasus_forward.1} parent=11 // pred_check
        %p989 = pneg %p855
      $region138: #{pegasus_forward.1} parent=11 // pred_check_branch
        %991 = sbr.rel (%p989) target = $region140
      $region139: #{pegasus_forward.1} parent=11 // pred_region
        _
      $region140: #{pegasus_forward.1} parent=11 // pred_fallthru
        _
    $region12: #{pegasus_forward.1} parent=5 // pred_fallthru
      _
    %p992 = scmp.lt.s32.totalorder %s79, 2
    // Predicated region
    $region141: #{pegasus_forward.1} parent=5 // pred_check
      %p993 = pneg %p992
    $region142: #{pegasus_forward.1} parent=5 // pred_check_branch
      %995 = sbr.rel (%p993) target = $region144
    $region143: #{pegasus_forward.1} parent=5 // pred_region
      // Predicated region
      $region145: #{pegasus_forward.1} parent=143 // pred_check
        %p996 = pneg %p99
      $region146: #{pegasus_forward.1} parent=143 // pred_check_branch
        %998 = sbr.rel (%p996) target = $region148
      $region147: #{pegasus_forward.1} parent=143 // pred_region
        %p999 = scmp.lt.s32.totalorder %s79, 1
        %s1000 = scalar_select %p999, %s79, 1
        %s1001 = smul.addr %s1000, 2
        %s1002 = smul.addr %s1001, 8
        %s1003 = scalar_lea.vmem %s1, %s1002
      $region148: #{pegasus_forward.1} parent=143 // pred_fallthru
        _
      // Predicated region
      $region149: #{pegasus_forward.1} parent=143 // pred_check
        %p1004 = pneg %p125
      $region150: #{pegasus_forward.1} parent=143 // pred_check_branch
        %1006 = sbr.rel (%p1004) target = $region152
      $region151: #{pegasus_forward.1} parent=143 // pred_region
        %p1007 = scmp.lt.s32.totalorder %s79, 1
        %s1008 = scalar_select %p1007, %s79, 1
        %s1009 = smul.addr %s1008, 8
        %s1010 = scalar_lea.vmem %s3, %s1009
      $region152: #{pegasus_forward.1} parent=143 // pred_fallthru
        _
      // Predicated region
      $region153: #{pegasus_forward.1} parent=143 // pred_check
        %p1011 = pneg %p151
      $region154: #{pegasus_forward.1} parent=143 // pred_check_branch
        %1013 = sbr.rel (%p1011) target = $region156
      $region155: #{pegasus_forward.1} parent=143 // pred_region
        %p1014 = scmp.lt.s32.totalorder %s79, 1
        %s1015 = scalar_select %p1014, %s79, 1
        %s1016 = scalar_lea.vmem %s5, %s1015
      $region156: #{pegasus_forward.1} parent=143 // pred_fallthru
        _
      // Predicated region
      $region157: #{pegasus_forward.1} parent=143 // pred_check
        %p1017 = pneg %p177
      $region158: #{pegasus_forward.1} parent=143 // pred_check_branch
        %1019 = sbr.rel (%p1017) target = $region160
      $region159: #{pegasus_forward.1} parent=143 // pred_region
        %p1020 = scmp.lt.s32.totalorder %s79, 1
        %s1021 = scalar_select %p1020, %s79, 1
        %s1022 = smul.addr %s1021, 8
        %s1023 = scalar_lea.vmem %s7, %s1022
      $region160: #{pegasus_forward.1} parent=143 // pred_fallthru
        _
    $region144: #{pegasus_forward.1} parent=5 // pred_fallthru
      _
    %p1024 = scmp.le.s32.totalorder 1, %s79
    %p1025 = scmp.lt.s32.totalorder %s79, 3
    %p1026 = pnand %p1024, %p1025
    %p1027 = pneg %p1026
    // Predicated region
    $region161: #{pegasus_forward.1} parent=5 // pred_check
      _
    $region162: #{pegasus_forward.1} parent=5 // pred_check_branch
      %1029 = sbr.rel (%p1026) target = $region164
    $region163: #{pegasus_forward.1} parent=5 // pred_region
      %s1030 = ssub.s32 %s79, 1
      %p1031 = scmp.lt.s32.totalorder %s84, 1
      %s1032 = scalar_select %p1031, %s84, 1
      %s1033 = smul.addr %s1032, 2
      %s1034 = smul.addr %s1033, 8
      %s1035 = scalar_lea.vmem %s1, %s1034
      %p1036 = pneg %p105
      %p1037 = pneg %p102
      %p1038 = scmp.lt.s32.totalorder %s84, 1
      %s1039 = scalar_select %p1038, %s84, 1
      %s1040 = smul.addr %s1039, 8
      %s1041 = scalar_lea.vmem %s3, %s1040
      %p1042 = pneg %p131
      %p1043 = pneg %p128
      %p1044 = scmp.lt.s32.totalorder %s84, 1
      %s1045 = scalar_select %p1044, %s84, 1
      %s1046 = scalar_lea.vmem %s5, %s1045
      %p1047 = pneg %p157
      %p1048 = pneg %p154
      %p1049 = scmp.lt.s32.totalorder %s84, 1
      %s1050 = scalar_select %p1049, %s84, 1
      %s1051 = smul.addr %s1050, 8
      %s1052 = scalar_lea.vmem %s7, %s1051
      %p1053 = pneg %p183
      %p1054 = pneg %p180
      %p1055 = pneg %p204
      %p1056 = pneg %p201
      %p1057 = pneg %p225
      %p1058 = pneg %p222
      %p1059 = pneg %p246
      %p1060 = pneg %p243
      %p1061 = pneg %p267
      %p1062 = pneg %p264
      %p1063 = pneg %p288
      %p1064 = pneg %p285
      %p1065 = pneg %p309
      %p1066 = pneg %p306
      %p1067 = pneg %p330
      %p1068 = pneg %p327
      %p1069 = pneg %p351
      %p1070 = pneg %p348
      %p1071 = pneg %p372
      %p1072 = pneg %p369
      %p1073 = pneg %p393
      %p1074 = pneg %p390
      %p1075 = pneg %p414
      %p1076 = pneg %p411
      %p1077 = pneg %p435
      %p1078 = pneg %p432
      %p1079 = pneg %p456
      %p1080 = pneg %p453
      %p1081 = pneg %p477
      %p1082 = pneg %p474
      %p1083 = pneg %p498
      %p1084 = pneg %p495
      %p1085 = pneg %p519
      %p1086 = pneg %p516
      %p1087 = pneg %p540
      %p1088 = pneg %p537
      %p1089 = pneg %p561
      %p1090 = pneg %p558
      %p1091 = pneg %p582
      %p1092 = pneg %p579
      %p1093 = pneg %p603
      %p1094 = pneg %p600
      %p1095 = pneg %p624
      %p1096 = pneg %p621
      %p1097 = pneg %p645
      %p1098 = pneg %p642
      %p1099 = pneg %p666
      %p1100 = pneg %p663
      %p1101 = pneg %p687
      %p1102 = pneg %p684
      %p1103 = pneg %p708
      %p1104 = pneg %p705
      %p1105 = pneg %p729
      %p1106 = pneg %p726
      %p1107 = pneg %p750
      %p1108 = pneg %p747
      %p1109 = pneg %p771
      %p1110 = pneg %p768
      %p1111 = pneg %p792
      %p1112 = pneg %p789
      %p1113 = pneg %p813
      %p1114 = pneg %p810
      %p1115 = pneg %p834
      %p1116 = pneg %p831
      %p1117 = pneg %p855
      %p1118 = pneg %p852
      %p1119 = pneg %p881
      %p1120 = pneg %p878
      %p1121 = scmp.lt.s32.totalorder %s84, 1
      %s1122 = scalar_select %p1121, %s84, 1
      %s1123 = scalar_lea.vmem %s73, %s1122
      %p1124 = scmp.lt.s32.totalorder %s84, 1
      %s1125 = scalar_select %p1124, %s84, 1
      %s1126 = smul.addr %s1125, 2
      %s1127 = smul.addr %s1126, 8
      %s1128 = scalar_lea.vmem %s1, %s1127
      %p1129 = scmp.lt.s32.totalorder %s84, 1
      %s1130 = scalar_select %p1129, %s84, 1
      %s1131 = smul.addr %s1130, 8
      %s1132 = scalar_lea.vmem %s3, %s1131
      %p1133 = scmp.lt.s32.totalorder %s84, 1
      %s1134 = scalar_select %p1133, %s84, 1
      %s1135 = scalar_lea.vmem %s5, %s1134
      %p1136 = scmp.lt.s32.totalorder %s84, 1
      %s1137 = scalar_select %p1136, %s84, 1
      %s1138 = smul.addr %s1137, 8
      %s1139 = scalar_lea.vmem %s7, %s1138
      %p1140 = scmp.lt.s32.totalorder %s84, 1
      %s1141 = scalar_select %p1140, %s84, 1
      %s1142 = scalar_lea.vmem %s73, %s1141
      %v1143 = vld [vmem:[%s9] sm:$0xff]
      %v1144 = vld [vmem:[%s11] sm:$0xff]
      %v1145 = vld [vmem:[%s1135] sm:$0x1]
      %v1146 = vlaneseq
      %v1147 = vshrl.u32 %v1146, 7
      %v1148 = vadd.s32 %v1147, 8
      %vm1149 = vcmp.ge.s32.totalorder %v1147, 8
      %vm1150 = vcmp.ge.s32.totalorder %v1148, 8
      %v1151 = vlaneseq
      %v1152 = vand.u32 %v1151, 127
      %vm1153 = vcmp.ge.s32.totalorder %v1152, 8
      %vm1154 = vmxor %vm1149, %vm1153
      %vm1155 = vmxor %vm1150, %vm1153
      %v1156 = vsel %vm1154, -1e+09, 0.0
      %v1157 = vsel %vm1155, -1e+09, 0.0
      %v1159 = vlaneseq
      %v1160 = vshrl.u32 %v1159, 7
      %v1161 = vsub.s32 0, %v1160
      %v1162 = vrot.slane %v1145, %v1161
      %v1164 = vadd.f32 %v1156, %v1162
      %v1165 = vadd.f32 %v1157, %v1162
      %v1166 = vld [vmem:[%s1128] sm:$0xff]
      %v1167 = vld [vmem:[%s1128 + $0x8] sm:$0xff]
      %vm1168 = vcmask 261120
      %v1169 = vsel %vm1168, %v1166, 0.0
      %1170 = vadd.xlane.f32.xlu0 %v1169
      %v1171 = vpop.xlane.xlu0 %1170
      %v1172 = vsel %vm1168, %v1167, 0.0
      %1173 = vadd.xlane.f32.xlu0 %v1172
      %v1174 = vpop.xlane.xlu0 %1173
      %v1175 = vrcp.pop 32.0
      %v1176 = vmul.f32 %v1171, %v1175
      %v1177 = vmul.f32 %v1174, %v1175
      %v1178 = vsub.f32 %v1166, %v1176
      %v1179 = vsub.f32 %v1167, %v1177
      %v1180 = vmul.f32 %v1178, %v1178
      %v1181 = vmul.f32 %v1179, %v1179
      %v1182 = vsel %vm1168, %v1180, 0.0
      %1183 = vadd.xlane.f32.xlu0 %v1182
      %v1184 = vpop.xlane.xlu0 %1183
      %v1185 = vsel %vm1168, %v1181, 0.0
      %1186 = vadd.xlane.f32.xlu0 %v1185
      %v1187 = vpop.xlane.xlu0 %1186
      %v1188 = vmul.f32 %v1184, %v1175
      %v1189 = vmul.f32 %v1187, %v1175
      %v1190 = vadd.f32 %v1188, 1e-05
      %v1191 = vadd.f32 %v1189, 1e-05
      %v1192 = vrsqrt.pop %v1190
      %v1193 = vrsqrt.pop %v1191
      %v1194 = vmul.f32 %v1178, %v1192
      %v1195 = vmul.f32 %v1179, %v1193
      %v1196 = vlaneseq
      %v1197 = vshrl.u32 %v1196, 7
      %v1198 = vsub.s32 0, %v1197
      %v1199 = vrot.slane %v1143, %v1198
      %v1200 = vmul.f32 %v1194, %v1199
      %v1201 = vmul.f32 %v1195, %v1199
      %v1202 = vlaneseq
      %v1203 = vshrl.u32 %v1202, 7
      %v1204 = vsub.s32 0, %v1203
      %v1205 = vrot.slane %v1144, %v1204
      %v1206 = vadd.f32 %v1200, %v1205
      %v1207 = vadd.f32 %v1201, %v1205
      %v1208 = vld [vmem:[%s13] sm:$0xff]
      %v1209 = vld [vmem:[%s13 + $0x8] sm:$0xff]
      %v1210 = vld [vmem:[%s13 + $0x10] sm:$0xff]
      %v1211 = vld [vmem:[%s13 + $0x18] sm:$0xff]
      %v1212 = vld [vmem:[%s15] sm:$0x1]
      %v1214 = vlaneseq
      %v1215 = vshrl.u32 %v1214, 7
      %v1216 = vsub.s32 0, %v1215
      %v1217 = vrot.slane %v1212, %v1216
      %v1220 = vsel %vm1168, %v1206, 0
      %v1223 = vsel %vm1168, %v1207, 0
      %1225 = vmatprep.subr.mxu0 0.0
      %1226 = vmatpush1.msra.mxu0 %v1208
      %1227 = vmatprep.subr.mxu0 0.0
      %1228 = vmatpush1.msra.mxu0 %v1209
      %1229 = vmatprep.subr.mxu0 0.0
      %1230 = vmatpush1.msra.mxu0 %v1210
      %1231 = vmatprep.subr.mxu0 0.0
      %1232 = vmatpush1.msra.mxu0 %v1211
      %1233 = vmatprep.subr.mxu0 0.0
      %1234 = vmatpush1.msra.mxu0 0.0
      %1235 = vmatprep.subr.mxu0 0.0
      %1236 = vmatpush1.msra.mxu0 0.0
      %1237 = vmatprep.subr.mxu0 0.0
      %1238 = vmatpush1.msra.mxu0 0.0
      %1239 = vmatprep.subr.mxu0 0.0
      %1240 = vmatpush1.msra.mxu0 0.0
      %1241 = vmatprep.subr.mxu0 0.0
      %1242 = vmatpush1.msra.mxu0 0.0
      %1243 = vmatprep.subr.mxu0 0.0
      %1244 = vmatpush1.msra.mxu0 0.0
      %1245 = vmatprep.subr.mxu0 0.0
      %1246 = vmatpush1.msra.mxu0 0.0
      %1247 = vmatprep.subr.mxu0 0.0
      %1248 = vmatpush1.msra.mxu0 0.0
      %1249 = vmatprep.subr.mxu0 0.0
      %1250 = vmatpush1.msra.mxu0 0.0
      %1251 = vmatprep.subr.mxu0 0.0
      %1252 = vmatpush1.msra.mxu0 0.0
      %1253 = vmatprep.subr.mxu0 0.0
      %1254 = vmatpush1.msra.mxu0 0.0
      %1255 = vmatprep.subr.mxu0 0.0
      %1256 = vmatpush1.msra.mxu0 0.0
      %1257 = vmatprep.subr.mxu0 0.0
      %1258 = vmatpush1.msra.mxu0 0.0
      %1259 = vmatprep.subr.mxu0 0.0
      %1260 = vmatpush1.msra.mxu0 0.0
      %1261 = vmatprep.subr.mxu0 0.0
      %1262 = vmatpush1.msra.mxu0 0.0
      %1263 = vmatprep.subr.mxu0 0.0
      %1264 = vmatpush1.msra.mxu0 0.0
      %1265 = vmatprep.subr.mxu0 0.0
      %1266 = vmatpush1.msra.mxu0 0.0
      %1267 = vmatprep.subr.mxu0 0.0
      %1268 = vmatpush1.msra.mxu0 0.0
      %1269 = vmatprep.subr.mxu0 0.0
      %1270 = vmatpush1.msra.mxu0 0.0
      %1271 = vmatprep.subr.mxu0 0.0
      %1272 = vmatpush1.msra.mxu0 0.0
      %1273 = vmatprep.subr.mxu0 0.0
      %1274 = vmatpush1.msra.mxu0 0.0
      %1275 = vmatprep.subr.mxu0 0.0
      %1276 = vmatpush1.msra.mxu0 0.0
      %1277 = vmatprep.subr.mxu0 0.0
      %1278 = vmatpush1.msra.mxu0 0.0
      %1279 = vmatprep.subr.mxu0 0.0
      %1280 = vmatpush1.msra.mxu0 0.0
      %1281 = vmatprep.subr.mxu0 0.0
      %1282 = vmatpush1.msra.mxu0 0.0
      %1283 = vmatprep.subr.mxu0 0.0
      %1284 = vmatpush1.msra.mxu0 0.0
      %1285 = vmatprep.subr.mxu0 0.0
      %1286 = vmatpush1.msra.mxu0 0.0
      %1287 = vmatprep.subr.mxu0 0.0
      %1288 = vmatpush1.msra.mxu0 0.0
      %1289 = vmatprep.mubr.f32.mxu0 0.0
      %1290 = vmatmul.mubr.f32.gmra.mrb[0].mxu0 %v1220
      %v1291 = vpop.f32.mrb[0].mxu0
      %v1292 = vadd.f32 %v1217, %v1291
      %v1293 = vpop.f32.mrb[0].mxu0
      %1294 = vmatprep.mubr.f32.mxu0 0.0
      %1295 = vmatmul.mubr.f32.gmra.mrb[0].mxu0 %v1223
      %v1296 = vpop.f32.mrb[0].mxu0
      %v1297 = vadd.f32 %v1217, %v1296
      %v1298 = vpop.f32.mrb[0].mxu0
      %1299 = vdwg.mxu0
      %v1300 = vld [vmem:[%s17] sm:$0xff]
      %v1301 = vld [vmem:[%s17 + $0x8] sm:$0xff]
      %v1302 = vld [vmem:[%s17 + $0x10] sm:$0xff]
      %v1303 = vld [vmem:[%s17 + $0x18] sm:$0xff]
      %v1304 = vld [vmem:[%s19] sm:$0x1]
      %1307 = vrot.lane.b32.xlu0 %v1292, 96
      %v1308 = vpop.permute.xlu0 %1307
      %1309 = vrot.lane.b32.xlu0 %v1297, 96
      %v1310 = vpop.permute.xlu0 %1309
      %vm1311 = vcmask 64512
      %v1312 = vsel %vm1311, %v1292, 0
      %v1314 = vsel %vm1311, %v1297, 0
      %v1316 = vsel %vm1311, %v1308, 0
      %v1318 = vsel %vm1311, %v1310, 0
      %1320 = vmatprep.subr.mxu0 0.0
      %1321 = vmatpush1.xpose.msra.mxu0 %v1316
      %1322 = vmatprep.subr.mxu0 0.0
      %1323 = vmatpush1.xpose.msra.mxu0 %v1318
      %1324 = vmatprep.subr.mxu0 0.0
      %1325 = vmatpush1.xpose.msra.mxu0 0.0
      %1326 = vmatprep.subr.mxu0 0.0
      %1327 = vmatpush1.xpose.msra.mxu0 0.0
      %1328 = vmatprep.subr.mxu0 0.0
      %1329 = vmatpush1.xpose.msra.mxu0 0.0
      %1330 = vmatprep.subr.mxu0 0.0
      %1331 = vmatpush1.xpose.msra.mxu0 0.0
      %1332 = vmatprep.subr.mxu0 0.0
      %1333 = vmatpush1.xpose.msra.mxu0 0.0
      %1334 = vmatprep.subr.mxu0 0.0
      %1335 = vmatpush1.xpose.msra.mxu0 0.0
      %1336 = vmatprep.subr.mxu0 0.0
      %1337 = vmatpush1.xpose.msra.mxu0 0.0
      %1338 = vmatprep.subr.mxu0 0.0
      %1339 = vmatpush1.xpose.msra.mxu0 0.0
      %1340 = vmatprep.subr.mxu0 0.0
      %1341 = vmatpush1.xpose.msra.mxu0 0.0
      %1342 = vmatprep.subr.mxu0 0.0
      %1343 = vmatpush1.xpose.msra.mxu0 0.0
      %1344 = vmatprep.subr.mxu0 0.0
      %1345 = vmatpush1.xpose.msra.mxu0 0.0
      %1346 = vmatprep.subr.mxu0 0.0
      %1347 = vmatpush1.xpose.msra.mxu0 0.0
      %1348 = vmatprep.subr.mxu0 0.0
      %1349 = vmatpush1.xpose.msra.mxu0 0.0
      %1350 = vmatprep.subr.mxu0 0.0
      %1351 = vmatpush1.xpose.msra.mxu0 0.0
      %1352 = vmatprep.subr.mxu0 0.0
      %1353 = vmatpush1.xpose.msra.mxu0 0.0
      %1354 = vmatprep.subr.mxu0 0.0
      %1355 = vmatpush1.xpose.msra.mxu0 0.0
      %1356 = vmatprep.subr.mxu0 0.0
      %1357 = vmatpush1.xpose.msra.mxu0 0.0
      %1358 = vmatprep.subr.mxu0 0.0
      %1359 = vmatpush1.xpose.msra.mxu0 0.0
      %1360 = vmatprep.subr.mxu0 0.0
      %1361 = vmatpush1.xpose.msra.mxu0 0.0
      %1362 = vmatprep.subr.mxu0 0.0
      %1363 = vmatpush1.xpose.msra.mxu0 0.0
      %1364 = vmatprep.subr.mxu0 0.0
      %1365 = vmatpush1.xpose.msra.mxu0 0.0
      %1366 = vmatprep.subr.mxu0 0.0
      %1367 = vmatpush1.xpose.msra.mxu0 0.0
      %1368 = vmatprep.subr.mxu0 0.0
      %1369 = vmatpush1.xpose.msra.mxu0 0.0
      %1370 = vmatprep.subr.mxu0 0.0
      %1371 = vmatpush1.xpose.msra.mxu0 0.0
      %1372 = vmatprep.subr.mxu0 0.0
      %1373 = vmatpush1.xpose.msra.mxu0 0.0
      %1374 = vmatprep.subr.mxu0 0.0
      %1375 = vmatpush1.xpose.msra.mxu0 0.0
      %1376 = vmatprep.subr.mxu0 0.0
      %1377 = vmatpush1.xpose.msra.mxu0 0.0
      %1378 = vmatprep.subr.mxu0 0.0
      %1379 = vmatpush1.xpose.msra.mxu0 0.0
      %1380 = vmatprep.subr.mxu0 0.0
      %1381 = vmatpush1.xpose.msra.mxu0 0.0
      %1382 = vmatprep.subr.mxu0 0.0
      %1383 = vmatpush1.xpose.msra.mxu0 0.0
      %1384 = vmatprep.mubr.f32.mxu0 0.0
      %1385 = vmatmul.mubr.f32.gmra.mrb[0].mxu0 %v1312
      %v1386 = vpop.f32.mrb[0].mxu0
      %v1387 = vadd.f32 0.0, %v1386
      %v1388 = vpop.f32.mrb[0].mxu0
      %1389 = vmatprep.mubr.f32.mxu0 0.0
      %1390 = vmatmul.mubr.f32.gmra.mrb[0].mxu0 %v1314
      %v1391 = vpop.f32.mrb[0].mxu0
      %v1392 = vadd.f32 0.0, %v1391
      %v1393 = vpop.f32.mrb[0].mxu0
      %1394 = vdwg.mxu0
      %v1395 = vmul.f32 %v1387, 0.35355338
      %v1396 = vmul.f32 %v1392, 0.35355338
      %v1397 = vadd.f32 %v1395, %v1164
      %v1398 = vadd.f32 %v1396, %v1165
      %vm1399 = vcmask 130048
      %v1400 = vsel %vm1399, %v1397, -inf
      %1401 = vmax.xlane.f32.xlu0 %v1400
      %v1402 = vpop.xlane.xlu0 %1401
      %v1403 = vsel %vm1399, %v1398, -inf
      %1404 = vmax.xlane.f32.xlu0 %v1403
      %v1405 = vpop.xlane.xlu0 %1404
      %v1406 = vsub.f32 %v1397, %v1402
      %v1407 = vsub.f32 %v1398, %v1405
      %v1408 = vmul.f32 %v1406, 1.442695
      %v1409 = vpow.pop %v1408
      %v1410 = vmul.f32 %v1407, 1.442695
      %v1411 = vpow.pop %v1410
      %v1412 = vsel %vm1399, %v1409, 0.0
      %1413 = vadd.xlane.f32.xlu0 %v1412
      %v1414 = vpop.xlane.xlu0 %1413
      %v1415 = vsel %vm1399, %v1411, 0.0
      %1416 = vadd.xlane.f32.xlu0 %v1415
      %v1417 = vpop.xlane.xlu0 %1416
      %v1418 = vrcp.pop %v1414
      %v1419 = vmul.f32 %v1409, %v1418
      %v1420 = vrcp.pop %v1417
      %v1421 = vmul.f32 %v1411, %v1420
      %1422 = vrot.lane.b32.xlu0 %v1292, 64
      %v1423 = vpop.permute.xlu0 %1422
      %1424 = vrot.lane.b32.xlu0 %v1297, 64
      %v1425 = vpop.permute.xlu0 %1424
      %v1429 = vsel %vm1399, %v1419, 0
      %v1432 = vsel %vm1399, %v1421, 0
      %1434 = vmatprep.subr.mxu0 0.0
      %1435 = vmatpush1.msra.mxu0 %v1423
      %1436 = vmatprep.subr.mxu0 0.0
      %1437 = vmatpush1.msra.mxu0 %v1425
      %1438 = vmatprep.subr.mxu0 0.0
      %1439 = vmatpush1.msra.mxu0 0.0
      %1440 = vmatprep.subr.mxu0 0.0
      %1441 = vmatpush1.msra.mxu0 0.0
      %1442 = vmatprep.subr.mxu0 0.0
      %1443 = vmatpush1.msra.mxu0 0.0
      %1444 = vmatprep.subr.mxu0 0.0
      %1445 = vmatpush1.msra.mxu0 0.0
      %1446 = vmatprep.subr.mxu0 0.0
      %1447 = vmatpush1.msra.mxu0 0.0
      %1448 = vmatprep.subr.mxu0 0.0
      %1449 = vmatpush1.msra.mxu0 0.0
      %1450 = vmatprep.subr.mxu0 0.0
      %1451 = vmatpush1.msra.mxu0 0.0
      %1452 = vmatprep.subr.mxu0 0.0
      %1453 = vmatpush1.msra.mxu0 0.0
      %1454 = vmatprep.subr.mxu0 0.0
      %1455 = vmatpush1.msra.mxu0 0.0
      %1456 = vmatprep.subr.mxu0 0.0
      %1457 = vmatpush1.msra.mxu0 0.0
      %1458 = vmatprep.subr.mxu0 0.0
      %1459 = vmatpush1.msra.mxu0 0.0
      %1460 = vmatprep.subr.mxu0 0.0
      %1461 = vmatpush1.msra.mxu0 0.0
      %1462 = vmatprep.subr.mxu0 0.0
      %1463 = vmatpush1.msra.mxu0 0.0
      %1464 = vmatprep.subr.mxu0 0.0
      %1465 = vmatpush1.msra.mxu0 0.0
      %1466 = vmatprep.subr.mxu0 0.0
      %1467 = vmatpush1.msra.mxu0 0.0
      %1468 = vmatprep.subr.mxu0 0.0
      %1469 = vmatpush1.msra.mxu0 0.0
      %1470 = vmatprep.subr.mxu0 0.0
      %1471 = vmatpush1.msra.mxu0 0.0
      %1472 = vmatprep.subr.mxu0 0.0
      %1473 = vmatpush1.msra.mxu0 0.0
      %1474 = vmatprep.subr.mxu0 0.0
      %1475 = vmatpush1.msra.mxu0 0.0
      %1476 = vmatprep.subr.mxu0 0.0
      %1477 = vmatpush1.msra.mxu0 0.0
      %1478 = vmatprep.subr.mxu0 0.0
      %1479 = vmatpush1.msra.mxu0 0.0
      %1480 = vmatprep.subr.mxu0 0.0
      %1481 = vmatpush1.msra.mxu0 0.0
      %1482 = vmatprep.subr.mxu0 0.0
      %1483 = vmatpush1.msra.mxu0 0.0
      %1484 = vmatprep.subr.mxu0 0.0
      %1485 = vmatpush1.msra.mxu0 0.0
      %1486 = vmatprep.subr.mxu0 0.0
      %1487 = vmatpush1.msra.mxu0 0.0
      %1488 = vmatprep.subr.mxu0 0.0
      %1489 = vmatpush1.msra.mxu0 0.0
      %1490 = vmatprep.subr.mxu0 0.0
      %1491 = vmatpush1.msra.mxu0 0.0
      %1492 = vmatprep.subr.mxu0 0.0
      %1493 = vmatpush1.msra.mxu0 0.0
      %1494 = vmatprep.subr.mxu0 0.0
      %1495 = vmatpush1.msra.mxu0 0.0
      %1496 = vmatprep.subr.mxu0 0.0
      %1497 = vmatpush1.msra.mxu0 0.0
      %1498 = vmatprep.mubr.f32.mxu0 0.0
      %1499 = vmatmul.mubr.f32.gmra.mrb[0].mxu0 %v1429
      %v1500 = vpop.f32.mrb[0].mxu0
      %v1501 = vadd.f32 0.0, %v1500
      %v1502 = vpop.f32.mrb[0].mxu0
      %1503 = vmatprep.mubr.f32.mxu0 0.0
      %1504 = vmatmul.mubr.f32.gmra.mrb[0].mxu0 %v1432
      %v1505 = vpop.f32.mrb[0].mxu0
      %v1506 = vadd.f32 0.0, %v1505
      %v1507 = vpop.f32.mrb[0].mxu0
      %1508 = vdwg.mxu0
      %1509 = vrot.lane.b32.xlu0 %v1292, 120
      %v1510 = vpop.permute.xlu0 %1509
      %1511 = vrot.lane.b32.xlu0 %v1297, 120
      %v1512 = vpop.permute.xlu0 %1511
      %1513 = vrot.lane.b32.xlu0 %v1292, 88
      %v1514 = vpop.permute.xlu0 %1513
      %1515 = vrot.lane.b32.xlu0 %v1297, 88
      %v1516 = vpop.permute.xlu0 %1515
      %v1517 = vsel %vm1311, %v1510, 0
      %v1519 = vsel %vm1311, %v1512, 0
      %v1521 = vsel %vm1311, %v1514, 0
      %v1523 = vsel %vm1311, %v1516, 0
      %1525 = vmatprep.subr.mxu0 0.0
      %1526 = vmatpush1.xpose.msra.mxu0 %v1521
      %1527 = vmatprep.subr.mxu0 0.0
      %1528 = vmatpush1.xpose.msra.mxu0 %v1523
      %1529 = vmatprep.subr.mxu0 0.0
      %1530 = vmatpush1.xpose.msra.mxu0 0.0
      %1531 = vmatprep.subr.mxu0 0.0
      %1532 = vmatpush1.xpose.msra.mxu0 0.0
      %1533 = vmatprep.subr.mxu0 0.0
      %1534 = vmatpush1.xpose.msra.mxu0 0.0
      %1535 = vmatprep.subr.mxu0 0.0
      %1536 = vmatpush1.xpose.msra.mxu0 0.0
      %1537 = vmatprep.subr.mxu0 0.0
      %1538 = vmatpush1.xpose.msra.mxu0 0.0
      %1539 = vmatprep.subr.mxu0 0.0
      %1540 = vmatpush1.xpose.msra.mxu0 0.0
      %1541 = vmatprep.subr.mxu0 0.0
      %1542 = vmatpush1.xpose.msra.mxu0 0.0
      %1543 = vmatprep.subr.mxu0 0.0
      %1544 = vmatpush1.xpose.msra.mxu0 0.0
      %1545 = vmatprep.subr.mxu0 0.0
      %1546 = vmatpush1.xpose.msra.mxu0 0.0
      %1547 = vmatprep.subr.mxu0 0.0
      %1548 = vmatpush1.xpose.msra.mxu0 0.0
      %1549 = vmatprep.subr.mxu0 0.0
      %1550 = vmatpush1.xpose.msra.mxu0 0.0
      %1551 = vmatprep.subr.mxu0 0.0
      %1552 = vmatpush1.xpose.msra.mxu0 0.0
      %1553 = vmatprep.subr.mxu0 0.0
      %1554 = vmatpush1.xpose.msra.mxu0 0.0
      %1555 = vmatprep.subr.mxu0 0.0
      %1556 = vmatpush1.xpose.msra.mxu0 0.0
      %1557 = vmatprep.subr.mxu0 0.0
      %1558 = vmatpush1.xpose.msra.mxu0 0.0
      %1559 = vmatprep.subr.mxu0 0.0
      %1560 = vmatpush1.xpose.msra.mxu0 0.0
      %1561 = vmatprep.subr.mxu0 0.0
      %1562 = vmatpush1.xpose.msra.mxu0 0.0
      %1563 = vmatprep.subr.mxu0 0.0
      %1564 = vmatpush1.xpose.msra.mxu0 0.0
      %1565 = vmatprep.subr.mxu0 0.0
      %1566 = vmatpush1.xpose.msra.mxu0 0.0
      %1567 = vmatprep.subr.mxu0 0.0
      %1568 = vmatpush1.xpose.msra.mxu0 0.0
      %1569 = vmatprep.subr.mxu0 0.0
      %1570 = vmatpush1.xpose.msra.mxu0 0.0
      %1571 = vmatprep.subr.mxu0 0.0
      %1572 = vmatpush1.xpose.msra.mxu0 0.0
      %1573 = vmatprep.subr.mxu0 0.0
      %1574 = vmatpush1.xpose.msra.mxu0 0.0
      %1575 = vmatprep.subr.mxu0 0.0
      %1576 = vmatpush1.xpose.msra.mxu0 0.0
      %1577 = vmatprep.subr.mxu0 0.0
      %1578 = vmatpush1.xpose.msra.mxu0 0.0
      %1579 = vmatprep.subr.mxu0 0.0
      %1580 = vmatpush1.xpose.msra.mxu0 0.0
      %1581 = vmatprep.subr.mxu0 0.0
      %1582 = vmatpush1.xpose.msra.mxu0 0.0
      %1583 = vmatprep.subr.mxu0 0.0
      %1584 = vmatpush1.xpose.msra.mxu0 0.0
      %1585 = vmatprep.subr.mxu0 0.0
      %1586 = vmatpush1.xpose.msra.mxu0 0.0
      %1587 = vmatprep.subr.mxu0 0.0
      %1588 = vmatpush1.xpose.msra.mxu0 0.0
      %1589 = vmatprep.mubr.f32.mxu0 0.0
      %1590 = vmatmul.mubr.f32.gmra.mrb[0].mxu0 %v1517
      %v1591 = vpop.f32.mrb[0].mxu0
      %v1592 = vadd.f32 0.0, %v1591
      %v1593 = vpop.f32.mrb[0].mxu0
      %1594 = vmatprep.mubr.f32.mxu0 0.0
      %1595 = vmatmul.mubr.f32.gmra.mrb[0].mxu0 %v1519
      %v1596 = vpop.f32.mrb[0].mxu0
      %v1597 = vadd.f32 0.0, %v1596
      %v1598 = vpop.f32.mrb[0].mxu0
      %1599 = vdwg.mxu0
      %v1600 = vmul.f32 %v1592, 0.35355338
      %v1601 = vmul.f32 %v1597, 0.35355338
      %v1602 = vadd.f32 %v1600, %v1164
      %v1603 = vadd.f32 %v1601, %v1165
      %v1604 = vsel %vm1399, %v1602, -inf
      %1605 = vmax.xlane.f32.xlu0 %v1604
      %v1606 = vpop.xlane.xlu0 %1605
      %v1607 = vsel %vm1399, %v1603, -inf
      %1608 = vmax.xlane.f32.xlu0 %v1607
      %v1609 = vpop.xlane.xlu0 %1608
      %v1610 = vsub.f32 %v1602, %v1606
      %v1611 = vsub.f32 %v1603, %v1609
      %v1612 = vmul.f32 %v1610, 1.442695
      %v1613 = vpow.pop %v1612
      %v1614 = vmul.f32 %v1611, 1.442695
      %v1615 = vpow.pop %v1614
      %v1616 = vsel %vm1399, %v1613, 0.0
      %1617 = vadd.xlane.f32.xlu0 %v1616
      %v1618 = vpop.xlane.xlu0 %1617
      %v1619 = vsel %vm1399, %v1615, 0.0
      %1620 = vadd.xlane.f32.xlu0 %v1619
      %v1621 = vpop.xlane.xlu0 %1620
      %v1622 = vrcp.pop %v1618
      %v1623 = vmul.f32 %v1613, %v1622
      %v1624 = vrcp.pop %v1621
      %v1625 = vmul.f32 %v1615, %v1624
      %1626 = vrot.lane.b32.xlu0 %v1292, 56
      %v1627 = vpop.permute.xlu0 %1626
      %1628 = vrot.lane.b32.xlu0 %v1297, 56
      %v1629 = vpop.permute.xlu0 %1628
      %v1633 = vsel %vm1399, %v1623, 0
      %v1636 = vsel %vm1399, %v1625, 0
      %1638 = vmatprep.subr.mxu0 0.0
      %1639 = vmatpush1.msra.mxu0 %v1627
      %1640 = vmatprep.subr.mxu0 0.0
      %1641 = vmatpush1.msra.mxu0 %v1629
      %1642 = vmatprep.subr.mxu0 0.0
      %1643 = vmatpush1.msra.mxu0 0.0
      %1644 = vmatprep.subr.mxu0 0.0
      %1645 = vmatpush1.msra.mxu0 0.0
      %1646 = vmatprep.subr.mxu0 0.0
      %1647 = vmatpush1.msra.mxu0 0.0
      %1648 = vmatprep.subr.mxu0 0.0
      %1649 = vmatpush1.msra.mxu0 0.0
      %1650 = vmatprep.subr.mxu0 0.0
      %1651 = vmatpush1.msra.mxu0 0.0
      %1652 = vmatprep.subr.mxu0 0.0
      %1653 = vmatpush1.msra.mxu0 0.0
      %1654 = vmatprep.subr.mxu0 0.0
      %1655 = vmatpush1.msra.mxu0 0.0
      %1656 = vmatprep.subr.mxu0 0.0
      %1657 = vmatpush1.msra.mxu0 0.0
      %1658 = vmatprep.subr.mxu0 0.0
      %1659 = vmatpush1.msra.mxu0 0.0
      %1660 = vmatprep.subr.mxu0 0.0
      %1661 = vmatpush1.msra.mxu0 0.0
      %1662 = vmatprep.subr.mxu0 0.0
      %1663 = vmatpush1.msra.mxu0 0.0
      %1664 = vmatprep.subr.mxu0 0.0
      %1665 = vmatpush1.msra.mxu0 0.0
      %1666 = vmatprep.subr.mxu0 0.0
      %1667 = vmatpush1.msra.mxu0 0.0
      %1668 = vmatprep.subr.mxu0 0.0
      %1669 = vmatpush1.msra.mxu0 0.0
      %1670 = vmatprep.subr.mxu0 0.0
      %1671 = vmatpush1.msra.mxu0 0.0
      %1672 = vmatprep.subr.mxu0 0.0
      %1673 = vmatpush1.msra.mxu0 0.0
      %1674 = vmatprep.subr.mxu0 0.0
      %1675 = vmatpush1.msra.mxu0 0.0
      %1676 = vmatprep.subr.mxu0 0.0
      %1677 = vmatpush1.msra.mxu0 0.0
      %1678 = vmatprep.subr.mxu0 0.0
      %1679 = vmatpush1.msra.mxu0 0.0
      %1680 = vmatprep.subr.mxu0 0.0
      %1681 = vmatpush1.msra.mxu0 0.0
      %1682 = vmatprep.subr.mxu0 0.0
      %1683 = vmatpush1.msra.mxu0 0.0
      %1684 = vmatprep.subr.mxu0 0.0
      %1685 = vmatpush1.msra.mxu0 0.0
      %1686 = vmatprep.subr.mxu0 0.0
      %1687 = vmatpush1.msra.mxu0 0.0
      %1688 = vmatprep.subr.mxu0 0.0
      %1689 = vmatpush1.msra.mxu0 0.0
      %1690 = vmatprep.subr.mxu0 0.0
      %1691 = vmatpush1.msra.mxu0 0.0
      %1692 = vmatprep.subr.mxu0 0.0
      %1693 = vmatpush1.msra.mxu0 0.0
      %1694 = vmatprep.subr.mxu0 0.0
      %1695 = vmatpush1.msra.mxu0 0.0
      %1696 = vmatprep.subr.mxu0 0.0
      %1697 = vmatpush1.msra.mxu0 0.0
      %1698 = vmatprep.subr.mxu0 0.0
      %1699 = vmatpush1.msra.mxu0 0.0
      %1700 = vmatprep.subr.mxu0 0.0
      %1701 = vmatpush1.msra.mxu0 0.0
      %1702 = vmatprep.mubr.f32.mxu0 0.0
      %1703 = vmatmul.mubr.f32.gmra.mrb[0].mxu0 %v1633
      %v1704 = vpop.f32.mrb[0].mxu0
      %v1705 = vadd.f32 0.0, %v1704
      %v1706 = vpop.f32.mrb[0].mxu0
      %1707 = vmatprep.mubr.f32.mxu0 0.0
      %1708 = vmatmul.mubr.f32.gmra.mrb[0].mxu0 %v1636
      %v1709 = vpop.f32.mrb[0].mxu0
      %v1710 = vadd.f32 0.0, %v1709
      %v1711 = vpop.f32.mrb[0].mxu0
      %1712 = vdwg.mxu0
      %v1714 = vsel %vm1311, %v1705, 0
      %v1717 = vsel %vm1311, %v1710, 0
      %1719 = vmatprep.subr.mxu0 0.0
      %1720 = vmatpush1.msra.mxu0 %v1301
      %1721 = vmatprep.subr.mxu0 0.0
      %1722 = vmatpush1.msra.mxu0 0.0
      %1723 = vmatprep.subr.mxu0 0.0
      %1724 = vmatpush1.msra.mxu0 0.0
      %1725 = vmatprep.subr.mxu0 0.0
      %1726 = vmatpush1.msra.mxu0 0.0
      %1727 = vmatprep.subr.mxu0 0.0
      %1728 = vmatpush1.msra.mxu0 0.0
      %1729 = vmatprep.subr.mxu0 0.0
      %1730 = vmatpush1.msra.mxu0 0.0
      %1731 = vmatprep.subr.mxu0 0.0
      %1732 = vmatpush1.msra.mxu0 0.0
      %1733 = vmatprep.subr.mxu0 0.0
      %1734 = vmatpush1.msra.mxu0 0.0
      %1735 = vmatprep.subr.mxu0 0.0
      %1736 = vmatpush1.msra.mxu0 0.0
      %1737 = vmatprep.subr.mxu0 0.0
      %1738 = vmatpush1.msra.mxu0 0.0
      %1739 = vmatprep.subr.mxu0 0.0
      %1740 = vmatpush1.msra.mxu0 0.0
      %1741 = vmatprep.subr.mxu0 0.0
      %1742 = vmatpush1.msra.mxu0 0.0
      %1743 = vmatprep.subr.mxu0 0.0
      %1744 = vmatpush1.msra.mxu0 0.0
      %1745 = vmatprep.subr.mxu0 0.0
      %1746 = vmatpush1.msra.mxu0 0.0
      %1747 = vmatprep.subr.mxu0 0.0
      %1748 = vmatpush1.msra.mxu0 0.0
      %1749 = vmatprep.subr.mxu0 0.0
      %1750 = vmatpush1.msra.mxu0 0.0
      %1751 = vmatprep.subr.mxu0 0.0
      %1752 = vmatpush1.msra.mxu0 0.0
      %1753 = vmatprep.subr.mxu0 0.0
      %1754 = vmatpush1.msra.mxu0 0.0
      %1755 = vmatprep.subr.mxu0 0.0
      %1756 = vmatpush1.msra.mxu0 0.0
      %1757 = vmatprep.subr.mxu0 0.0
      %1758 = vmatpush1.msra.mxu0 0.0
      %1759 = vmatprep.subr.mxu0 0.0
      %1760 = vmatpush1.msra.mxu0 0.0
      %1761 = vmatprep.subr.mxu0 0.0
      %1762 = vmatpush1.msra.mxu0 0.0
      %1763 = vmatprep.subr.mxu0 0.0
      %1764 = vmatpush1.msra.mxu0 0.0
      %1765 = vmatprep.subr.mxu0 0.0
      %1766 = vmatpush1.msra.mxu0 0.0
      %1767 = vmatprep.subr.mxu0 0.0
      %1768 = vmatpush1.msra.mxu0 0.0
      %1769 = vmatprep.subr.mxu0 0.0
      %1770 = vmatpush1.msra.mxu0 0.0
      %1771 = vmatprep.subr.mxu0 0.0
      %1772 = vmatpush1.msra.mxu0 0.0
      %1773 = vmatprep.subr.mxu0 0.0
      %1774 = vmatpush1.msra.mxu0 0.0
      %1775 = vmatprep.subr.mxu0 0.0
      %1776 = vmatpush1.msra.mxu0 0.0
      %1777 = vmatprep.subr.mxu0 0.0
      %1778 = vmatpush1.msra.mxu0 0.0
      %1779 = vmatprep.subr.mxu0 0.0
      %1780 = vmatpush1.msra.mxu0 0.0
      %1781 = vmatprep.subr.mxu0 0.0
      %1782 = vmatpush1.msra.mxu0 0.0
      %1783 = vmatprep.mubr.f32.mxu0 0.0
      %1784 = vmatmul.mubr.f32.gmra.mrb[0].mxu0 %v1714
      %v1785 = vpop.f32.mrb[0].mxu0
      %v1786 = vadd.f32 0.0, %v1785
      %v1787 = vpop.f32.mrb[0].mxu0
      %1788 = vmatprep.mubr.f32.mxu0 0.0
      %1789 = vmatmul.mubr.f32.gmra.mrb[0].mxu0 %v1717
      %v1790 = vpop.f32.mrb[0].mxu0
      %v1791 = vadd.f32 0.0, %v1790
      %v1792 = vpop.f32.mrb[0].mxu0
      %1793 = vdwg.mxu0
      %v1795 = vsel %vm1311, %v1501, 0
      %v1798 = vsel %vm1311, %v1506, 0
      %1800 = vmatprep.subr.mxu0 0.0
      %1801 = vmatpush1.msra.mxu0 %v1300
      %1802 = vmatprep.subr.mxu0 0.0
      %1803 = vmatpush1.msra.mxu0 0.0
      %1804 = vmatprep.subr.mxu0 0.0
      %1805 = vmatpush1.msra.mxu0 0.0
      %1806 = vmatprep.subr.mxu0 0.0
      %1807 = vmatpush1.msra.mxu0 0.0
      %1808 = vmatprep.subr.mxu0 0.0
      %1809 = vmatpush1.msra.mxu0 0.0
      %1810 = vmatprep.subr.mxu0 0.0
      %1811 = vmatpush1.msra.mxu0 0.0
      %1812 = vmatprep.subr.mxu0 0.0
      %1813 = vmatpush1.msra.mxu0 0.0
      %1814 = vmatprep.subr.mxu0 0.0
      %1815 = vmatpush1.msra.mxu0 0.0
      %1816 = vmatprep.subr.mxu0 0.0
      %1817 = vmatpush1.msra.mxu0 0.0
      %1818 = vmatprep.subr.mxu0 0.0
      %1819 = vmatpush1.msra.mxu0 0.0
      %1820 = vmatprep.subr.mxu0 0.0
      %1821 = vmatpush1.msra.mxu0 0.0
      %1822 = vmatprep.subr.mxu0 0.0
      %1823 = vmatpush1.msra.mxu0 0.0
      %1824 = vmatprep.subr.mxu0 0.0
      %1825 = vmatpush1.msra.mxu0 0.0
      %1826 = vmatprep.subr.mxu0 0.0
      %1827 = vmatpush1.msra.mxu0 0.0
      %1828 = vmatprep.subr.mxu0 0.0
      %1829 = vmatpush1.msra.mxu0 0.0
      %1830 = vmatprep.subr.mxu0 0.0
      %1831 = vmatpush1.msra.mxu0 0.0
      %1832 = vmatprep.subr.mxu0 0.0
      %1833 = vmatpush1.msra.mxu0 0.0
      %1834 = vmatprep.subr.mxu0 0.0
      %1835 = vmatpush1.msra.mxu0 0.0
      %1836 = vmatprep.subr.mxu0 0.0
      %1837 = vmatpush1.msra.mxu0 0.0
      %1838 = vmatprep.subr.mxu0 0.0
      %1839 = vmatpush1.msra.mxu0 0.0
      %1840 = vmatprep.subr.mxu0 0.0
      %1841 = vmatpush1.msra.mxu0 0.0
      %1842 = vmatprep.subr.mxu0 0.0
      %1843 = vmatpush1.msra.mxu0 0.0
      %1844 = vmatprep.subr.mxu0 0.0
      %1845 = vmatpush1.msra.mxu0 0.0
      %1846 = vmatprep.subr.mxu0 0.0
      %1847 = vmatpush1.msra.mxu0 0.0
      %1848 = vmatprep.subr.mxu0 0.0
      %1849 = vmatpush1.msra.mxu0 0.0
      %1850 = vmatprep.subr.mxu0 0.0
      %1851 = vmatpush1.msra.mxu0 0.0
      %1852 = vmatprep.subr.mxu0 0.0
      %1853 = vmatpush1.msra.mxu0 0.0
      %1854 = vmatprep.subr.mxu0 0.0
      %1855 = vmatpush1.msra.mxu0 0.0
      %1856 = vmatprep.subr.mxu0 0.0
      %1857 = vmatpush1.msra.mxu0 0.0
      %1858 = vmatprep.subr.mxu0 0.0
      %1859 = vmatpush1.msra.mxu0 0.0
      %1860 = vmatprep.subr.mxu0 0.0
      %1861 = vmatpush1.msra.mxu0 0.0
      %1862 = vmatprep.subr.mxu0 0.0
      %1863 = vmatpush1.msra.mxu0 0.0
      %1864 = vmatprep.mubr.f32.mxu0 0.0
      %1865 = vmatmul.mubr.f32.gmra.mrb[0].mxu0 %v1795
      %v1866 = vpop.f32.mrb[0].mxu0
      %v1867 = vadd.f32 %v1786, %v1866
      %v1868 = vpop.f32.mrb[0].mxu0
      %1869 = vmatprep.mubr.f32.mxu0 0.0
      %1870 = vmatmul.mubr.f32.gmra.mrb[0].mxu0 %v1798
      %v1871 = vpop.f32.mrb[0].mxu0
      %v1872 = vadd.f32 %v1791, %v1871
      %v1873 = vpop.f32.mrb[0].mxu0
      %1874 = vdwg.mxu0
      %1875 = vrot.lane.b32.xlu0 %v1292, 112
      %v1876 = vpop.permute.xlu0 %1875
      %1877 = vrot.lane.b32.xlu0 %v1297, 112
      %v1878 = vpop.permute.xlu0 %1877
      %1879 = vrot.lane.b32.xlu0 %v1292, 80
      %v1880 = vpop.permute.xlu0 %1879
      %1881 = vrot.lane.b32.xlu0 %v1297, 80
      %v1882 = vpop.permute.xlu0 %1881
      %v1883 = vsel %vm1311, %v1876, 0
      %v1885 = vsel %vm1311, %v1878, 0
      %v1887 = vsel %vm1311, %v1880, 0
      %v1889 = vsel %vm1311, %v1882, 0
      %1891 = vmatprep.subr.mxu0 0.0
      %1892 = vmatpush1.xpose.msra.mxu0 %v1887
      %1893 = vmatprep.subr.mxu0 0.0
      %1894 = vmatpush1.xpose.msra.mxu0 %v1889
      %1895 = vmatprep.subr.mxu0 0.0
      %1896 = vmatpush1.xpose.msra.mxu0 0.0
      %1897 = vmatprep.subr.mxu0 0.0
      %1898 = vmatpush1.xpose.msra.mxu0 0.0
      %1899 = vmatprep.subr.mxu0 0.0
      %1900 = vmatpush1.xpose.msra.mxu0 0.0
      %1901 = vmatprep.subr.mxu0 0.0
      %1902 = vmatpush1.xpose.msra.mxu0 0.0
      %1903 = vmatprep.subr.mxu0 0.0
      %1904 = vmatpush1.xpose.msra.mxu0 0.0
      %1905 = vmatprep.subr.mxu0 0.0
      %1906 = vmatpush1.xpose.msra.mxu0 0.0
      %1907 = vmatprep.subr.mxu0 0.0
      %1908 = vmatpush1.xpose.msra.mxu0 0.0
      %1909 = vmatprep.subr.mxu0 0.0
      %1910 = vmatpush1.xpose.msra.mxu0 0.0
      %1911 = vmatprep.subr.mxu0 0.0
      %1912 = vmatpush1.xpose.msra.mxu0 0.0
      %1913 = vmatprep.subr.mxu0 0.0
      %1914 = vmatpush1.xpose.msra.mxu0 0.0
      %1915 = vmatprep.subr.mxu0 0.0
      %1916 = vmatpush1.xpose.msra.mxu0 0.0
      %1917 = vmatprep.subr.mxu0 0.0
      %1918 = vmatpush1.xpose.msra.mxu0 0.0
      %1919 = vmatprep.subr.mxu0 0.0
      %1920 = vmatpush1.xpose.msra.mxu0 0.0
      %1921 = vmatprep.subr.mxu0 0.0
      %1922 = vmatpush1.xpose.msra.mxu0 0.0
      %1923 = vmatprep.subr.mxu0 0.0
      %1924 = vmatpush1.xpose.msra.mxu0 0.0
      %1925 = vmatprep.subr.mxu0 0.0
      %1926 = vmatpush1.xpose.msra.mxu0 0.0
      %1927 = vmatprep.subr.mxu0 0.0
      %1928 = vmatpush1.xpose.msra.mxu0 0.0
      %1929 = vmatprep.subr.mxu0 0.0
      %1930 = vmatpush1.xpose.msra.mxu0 0.0
      %1931 = vmatprep.subr.mxu0 0.0
      %1932 = vmatpush1.xpose.msra.mxu0 0.0
      %1933 = vmatprep.subr.mxu0 0.0
      %1934 = vmatpush1.xpose.msra.mxu0 0.0
      %1935 = vmatprep.subr.mxu0 0.0
      %1936 = vmatpush1.xpose.msra.mxu0 0.0
      %1937 = vmatprep.subr.mxu0 0.0
      %1938 = vmatpush1.xpose.msra.mxu0 0.0
      %1939 = vmatprep.subr.mxu0 0.0
      %1940 = vmatpush1.xpose.msra.mxu0 0.0
      %1941 = vmatprep.subr.mxu0 0.0
      %1942 = vmatpush1.xpose.msra.mxu0 0.0
      %1943 = vmatprep.subr.mxu0 0.0
      %1944 = vmatpush1.xpose.msra.mxu0 0.0
      %1945 = vmatprep.subr.mxu0 0.0
      %1946 = vmatpush1.xpose.msra.mxu0 0.0
      %1947 = vmatprep.subr.mxu0 0.0
      %1948 = vmatpush1.xpose.msra.mxu0 0.0
      %1949 = vmatprep.subr.mxu0 0.0
      %1950 = vmatpush1.xpose.msra.mxu0 0.0
      %1951 = vmatprep.subr.mxu0 0.0
      %1952 = vmatpush1.xpose.msra.mxu0 0.0
      %1953 = vmatprep.subr.mxu0 0.0
      %1954 = vmatpush1.xpose.msra.mxu0 0.0
      %1955 = vmatprep.mubr.f32.mxu0 0.0
      %1956 = vmatmul.mubr.f32.gmra.mrb[0].mxu0 %v1883
      %v1957 = vpop.f32.mrb[0].mxu0
      %v1958 = vadd.f32 0.0, %v1957
      %v1959 = vpop.f32.mrb[0].mxu0
      %1960 = vmatprep.mubr.f32.mxu0 0.0
      %1961 = vmatmul.mubr.f32.gmra.mrb[0].mxu0 %v1885
      %v1962 = vpop.f32.mrb[0].mxu0
      %v1963 = vadd.f32 0.0, %v1962
      %v1964 = vpop.f32.mrb[0].mxu0
      %1965 = vdwg.mxu0
      %v1966 = vmul.f32 %v1958, 0.35355338
      %v1967 = vmul.f32 %v1963, 0.35355338
      %v1968 = vadd.f32 %v1966, %v1164
      %v1969 = vadd.f32 %v1967, %v1165
      %v1970 = vsel %vm1399, %v1968, -inf
      %1971 = vmax.xlane.f32.xlu0 %v1970
      %v1972 = vpop.xlane.xlu0 %1971
      %v1973 = vsel %vm1399, %v1969, -inf
      %1974 = vmax.xlane.f32.xlu0 %v1973
      %v1975 = vpop.xlane.xlu0 %1974
      %v1976 = vsub.f32 %v1968, %v1972
      %v1977 = vsub.f32 %v1969, %v1975
      %v1978 = vmul.f32 %v1976, 1.442695
      %v1979 = vpow.pop %v1978
      %v1980 = vmul.f32 %v1977, 1.442695
      %v1981 = vpow.pop %v1980
      %v1982 = vsel %vm1399, %v1979, 0.0
      %1983 = vadd.xlane.f32.xlu0 %v1982
      %v1984 = vpop.xlane.xlu0 %1983
      %v1985 = vsel %vm1399, %v1981, 0.0
      %1986 = vadd.xlane.f32.xlu0 %v1985
      %v1987 = vpop.xlane.xlu0 %1986
      %v1988 = vrcp.pop %v1984
      %v1989 = vmul.f32 %v1979, %v1988
      %v1990 = vrcp.pop %v1987
      %v1991 = vmul.f32 %v1981, %v1990
      %1992 = vrot.lane.b32.xlu0 %v1292, 48
      %v1993 = vpop.permute.xlu0 %1992
      %1994 = vrot.lane.b32.xlu0 %v1297, 48
      %v1995 = vpop.permute.xlu0 %1994
      %v1999 = vsel %vm1399, %v1989, 0
      %v2002 = vsel %vm1399, %v1991, 0
      %2004 = vmatprep.subr.mxu0 0.0
      %2005 = vmatpush1.msra.mxu0 %v1993
      %2006 = vmatprep.subr.mxu0 0.0
      %2007 = vmatpush1.msra.mxu0 %v1995
      %2008 = vmatprep.subr.mxu0 0.0
      %2009 = vmatpush1.msra.mxu0 0.0
      %2010 = vmatprep.subr.mxu0 0.0
      %2011 = vmatpush1.msra.mxu0 0.0
      %2012 = vmatprep.subr.mxu0 0.0
      %2013 = vmatpush1.msra.mxu0 0.0
      %2014 = vmatprep.subr.mxu0 0.0
      %2015 = vmatpush1.msra.mxu0 0.0
      %2016 = vmatprep.subr.mxu0 0.0
      %2017 = vmatpush1.msra.mxu0 0.0
      %2018 = vmatprep.subr.mxu0 0.0
      %2019 = vmatpush1.msra.mxu0 0.0
      %2020 = vmatprep.subr.mxu0 0.0
      %2021 = vmatpush1.msra.mxu0 0.0
      %2022 = vmatprep.subr.mxu0 0.0
      %2023 = vmatpush1.msra.mxu0 0.0
      %2024 = vmatprep.subr.mxu0 0.0
      %2025 = vmatpush1.msra.mxu0 0.0
      %2026 = vmatprep.subr.mxu0 0.0
      %2027 = vmatpush1.msra.mxu0 0.0
      %2028 = vmatprep.subr.mxu0 0.0
      %2029 = vmatpush1.msra.mxu0 0.0
      %2030 = vmatprep.subr.mxu0 0.0
      %2031 = vmatpush1.msra.mxu0 0.0
      %2032 = vmatprep.subr.mxu0 0.0
      %2033 = vmatpush1.msra.mxu0 0.0
      %2034 = vmatprep.subr.mxu0 0.0
      %2035 = vmatpush1.msra.mxu0 0.0
      %2036 = vmatprep.subr.mxu0 0.0
      %2037 = vmatpush1.msra.mxu0 0.0
      %2038 = vmatprep.subr.mxu0 0.0
      %2039 = vmatpush1.msra.mxu0 0.0
      %2040 = vmatprep.subr.mxu0 0.0
      %2041 = vmatpush1.msra.mxu0 0.0
      %2042 = vmatprep.subr.mxu0 0.0
      %2043 = vmatpush1.msra.mxu0 0.0
      %2044 = vmatprep.subr.mxu0 0.0
      %2045 = vmatpush1.msra.mxu0 0.0
      %2046 = vmatprep.subr.mxu0 0.0
      %2047 = vmatpush1.msra.mxu0 0.0
      %2048 = vmatprep.subr.mxu0 0.0
      %2049 = vmatpush1.msra.mxu0 0.0
      %2050 = vmatprep.subr.mxu0 0.0
      %2051 = vmatpush1.msra.mxu0 0.0
      %2052 = vmatprep.subr.mxu0 0.0
      %2053 = vmatpush1.msra.mxu0 0.0
      %2054 = vmatprep.subr.mxu0 0.0
      %2055 = vmatpush1.msra.mxu0 0.0
      %2056 = vmatprep.subr.mxu0 0.0
      %2057 = vmatpush1.msra.mxu0 0.0
      %2058 = vmatprep.subr.mxu0 0.0
      %2059 = vmatpush1.msra.mxu0 0.0
      %2060 = vmatprep.subr.mxu0 0.0
      %2061 = vmatpush1.msra.mxu0 0.0
      %2062 = vmatprep.subr.mxu0 0.0
      %2063 = vmatpush1.msra.mxu0 0.0
      %2064 = vmatprep.subr.mxu0 0.0
      %2065 = vmatpush1.msra.mxu0 0.0
      %2066 = vmatprep.subr.mxu0 0.0
      %2067 = vmatpush1.msra.mxu0 0.0
      %2068 = vmatprep.mubr.f32.mxu0 0.0
      %2069 = vmatmul.mubr.f32.gmra.mrb[0].mxu0 %v1999
      %v2070 = vpop.f32.mrb[0].mxu0
      %v2071 = vadd.f32 0.0, %v2070
      %v2072 = vpop.f32.mrb[0].mxu0
      %2073 = vmatprep.mubr.f32.mxu0 0.0
      %2074 = vmatmul.mubr.f32.gmra.mrb[0].mxu0 %v2002
      %v2075 = vpop.f32.mrb[0].mxu0
      %v2076 = vadd.f32 0.0, %v2075
      %v2077 = vpop.f32.mrb[0].mxu0
      %2078 = vdwg.mxu0
      %v2080 = vsel %vm1311, %v2071, 0
      %v2083 = vsel %vm1311, %v2076, 0
      %2085 = vmatprep.subr.mxu0 0.0
      %2086 = vmatpush1.msra.mxu0 %v1302
      %2087 = vmatprep.subr.mxu0 0.0
      %2088 = vmatpush1.msra.mxu0 0.0
      %2089 = vmatprep.subr.mxu0 0.0
      %2090 = vmatpush1.msra.mxu0 0.0
      %2091 = vmatprep.subr.mxu0 0.0
      %2092 = vmatpush1.msra.mxu0 0.0
      %2093 = vmatprep.subr.mxu0 0.0
      %2094 = vmatpush1.msra.mxu0 0.0
      %2095 = vmatprep.subr.mxu0 0.0
      %2096 = vmatpush1.msra.mxu0 0.0
      %2097 = vmatprep.subr.mxu0 0.0
      %2098 = vmatpush1.msra.mxu0 0.0
      %2099 = vmatprep.subr.mxu0 0.0
      %2100 = vmatpush1.msra.mxu0 0.0
      %2101 = vmatprep.subr.mxu0 0.0
      %2102 = vmatpush1.msra.mxu0 0.0
      %2103 = vmatprep.subr.mxu0 0.0
      %2104 = vmatpush1.msra.mxu0 0.0
      %2105 = vmatprep.subr.mxu0 0.0
      %2106 = vmatpush1.msra.mxu0 0.0
      %2107 = vmatprep.subr.mxu0 0.0
      %2108 = vmatpush1.msra.mxu0 0.0
      %2109 = vmatprep.subr.mxu0 0.0
      %2110 = vmatpush1.msra.mxu0 0.0
      %2111 = vmatprep.subr.mxu0 0.0
      %2112 = vmatpush1.msra.mxu0 0.0
      %2113 = vmatprep.subr.mxu0 0.0
      %2114 = vmatpush1.msra.mxu0 0.0
      %2115 = vmatprep.subr.mxu0 0.0
      %2116 = vmatpush1.msra.mxu0 0.0
      %2117 = vmatprep.subr.mxu0 0.0
      %2118 = vmatpush1.msra.mxu0 0.0
      %2119 = vmatprep.subr.mxu0 0.0
      %2120 = vmatpush1.msra.mxu0 0.0
      %2121 = vmatprep.subr.mxu0 0.0
      %2122 = vmatpush1.msra.mxu0 0.0
      %2123 = vmatprep.subr.mxu0 0.0
      %2124 = vmatpush1.msra.mxu0 0.0
      %2125 = vmatprep.subr.mxu0 0.0
      %2126 = vmatpush1.msra.mxu0 0.0
      %2127 = vmatprep.subr.mxu0 0.0
      %2128 = vmatpush1.msra.mxu0 0.0
      %2129 = vmatprep.subr.mxu0 0.0
      %2130 = vmatpush1.msra.mxu0 0.0
      %2131 = vmatprep.subr.mxu0 0.0
      %2132 = vmatpush1.msra.mxu0 0.0
      %2133 = vmatprep.subr.mxu0 0.0
      %2134 = vmatpush1.msra.mxu0 0.0
      %2135 = vmatprep.subr.mxu0 0.0
      %2136 = vmatpush1.msra.mxu0 0.0
      %2137 = vmatprep.subr.mxu0 0.0
      %2138 = vmatpush1.msra.mxu0 0.0
      %2139 = vmatprep.subr.mxu0 0.0
      %2140 = vmatpush1.msra.mxu0 0.0
      %2141 = vmatprep.subr.mxu0 0.0
      %2142 = vmatpush1.msra.mxu0 0.0
      %2143 = vmatprep.subr.mxu0 0.0
      %2144 = vmatpush1.msra.mxu0 0.0
      %2145 = vmatprep.subr.mxu0 0.0
      %2146 = vmatpush1.msra.mxu0 0.0
      %2147 = vmatprep.subr.mxu0 0.0
      %2148 = vmatpush1.msra.mxu0 0.0
      %2149 = vmatprep.mubr.f32.mxu0 0.0
      %2150 = vmatmul.mubr.f32.gmra.mrb[0].mxu0 %v2080
      %v2151 = vpop.f32.mrb[0].mxu0
      %v2152 = vadd.f32 0.0, %v2151
      %v2153 = vpop.f32.mrb[0].mxu0
      %2154 = vmatprep.mubr.f32.mxu0 0.0
      %2155 = vmatmul.mubr.f32.gmra.mrb[0].mxu0 %v2083
      %v2156 = vpop.f32.mrb[0].mxu0
      %v2157 = vadd.f32 0.0, %v2156
      %v2158 = vpop.f32.mrb[0].mxu0
      %2159 = vdwg.mxu0
      %v2160 = vadd.f32 %v1867, %v2152
      %v2161 = vadd.f32 %v1872, %v2157
      %2162 = vrot.lane.b32.xlu0 %v1292, 104
      %v2163 = vpop.permute.xlu0 %2162
      %2164 = vrot.lane.b32.xlu0 %v1297, 104
      %v2165 = vpop.permute.xlu0 %2164
      %2166 = vrot.lane.b32.xlu0 %v1292, 72
      %v2167 = vpop.permute.xlu0 %2166
      %2168 = vrot.lane.b32.xlu0 %v1297, 72
      %v2169 = vpop.permute.xlu0 %2168
      %v2170 = vsel %vm1311, %v2163, 0
      %v2172 = vsel %vm1311, %v2165, 0
      %v2174 = vsel %vm1311, %v2167, 0
      %v2176 = vsel %vm1311, %v2169, 0
      %2178 = vmatprep.subr.mxu0 0.0
      %2179 = vmatpush1.xpose.msra.mxu0 %v2174
      %2180 = vmatprep.subr.mxu0 0.0
      %2181 = vmatpush1.xpose.msra.mxu0 %v2176
      %2182 = vmatprep.subr.mxu0 0.0
      %2183 = vmatpush1.xpose.msra.mxu0 0.0
      %2184 = vmatprep.subr.mxu0 0.0
      %2185 = vmatpush1.xpose.msra.mxu0 0.0
      %2186 = vmatprep.subr.mxu0 0.0
      %2187 = vmatpush1.xpose.msra.mxu0 0.0
      %2188 = vmatprep.subr.mxu0 0.0
      %2189 = vmatpush1.xpose.msra.mxu0 0.0
      %2190 = vmatprep.subr.mxu0 0.0
      %2191 = vmatpush1.xpose.msra.mxu0 0.0
      %2192 = vmatprep.subr.mxu0 0.0
      %2193 = vmatpush1.xpose.msra.mxu0 0.0
      %2194 = vmatprep.subr.mxu0 0.0
      %2195 = vmatpush1.xpose.msra.mxu0 0.0
      %2196 = vmatprep.subr.mxu0 0.0
      %2197 = vmatpush1.xpose.msra.mxu0 0.0
      %2198 = vmatprep.subr.mxu0 0.0
      %2199 = vmatpush1.xpose.msra.mxu0 0.0
      %2200 = vmatprep.subr.mxu0 0.0
      %2201 = vmatpush1.xpose.msra.mxu0 0.0
      %2202 = vmatprep.subr.mxu0 0.0
      %2203 = vmatpush1.xpose.msra.mxu0 0.0
      %2204 = vmatprep.subr.mxu0 0.0
      %2205 = vmatpush1.xpose.msra.mxu0 0.0
      %2206 = vmatprep.subr.mxu0 0.0
      %2207 = vmatpush1.xpose.msra.mxu0 0.0
      %2208 = vmatprep.subr.mxu0 0.0
      %2209 = vmatpush1.xpose.msra.mxu0 0.0
      %2210 = vmatprep.subr.mxu0 0.0
      %2211 = vmatpush1.xpose.msra.mxu0 0.0
      %2212 = vmatprep.subr.mxu0 0.0
      %2213 = vmatpush1.xpose.msra.mxu0 0.0
      %2214 = vmatprep.subr.mxu0 0.0
      %2215 = vmatpush1.xpose.msra.mxu0 0.0
      %2216 = vmatprep.subr.mxu0 0.0
      %2217 = vmatpush1.xpose.msra.mxu0 0.0
      %2218 = vmatprep.subr.mxu0 0.0
      %2219 = vmatpush1.xpose.msra.mxu0 0.0
      %2220 = vmatprep.subr.mxu0 0.0
      %2221 = vmatpush1.xpose.msra.mxu0 0.0
      %2222 = vmatprep.subr.mxu0 0.0
      %2223 = vmatpush1.xpose.msra.mxu0 0.0
      %2224 = vmatprep.subr.mxu0 0.0
      %2225 = vmatpush1.xpose.msra.mxu0 0.0
      %2226 = vmatprep.subr.mxu0 0.0
      %2227 = vmatpush1.xpose.msra.mxu0 0.0
      %2228 = vmatprep.subr.mxu0 0.0
      %2229 = vmatpush1.xpose.msra.mxu0 0.0
      %2230 = vmatprep.subr.mxu0 0.0
      %2231 = vmatpush1.xpose.msra.mxu0 0.0
      %2232 = vmatprep.subr.mxu0 0.0
      %2233 = vmatpush1.xpose.msra.mxu0 0.0
      %2234 = vmatprep.subr.mxu0 0.0
      %2235 = vmatpush1.xpose.msra.mxu0 0.0
      %2236 = vmatprep.subr.mxu0 0.0
      %2237 = vmatpush1.xpose.msra.mxu0 0.0
      %2238 = vmatprep.subr.mxu0 0.0
      %2239 = vmatpush1.xpose.msra.mxu0 0.0
      %2240 = vmatprep.subr.mxu0 0.0
      %2241 = vmatpush1.xpose.msra.mxu0 0.0
      %2242 = vmatprep.mubr.f32.mxu0 0.0
      %2243 = vmatmul.mubr.f32.gmra.mrb[0].mxu0 %v2170
      %v2244 = vpop.f32.mrb[0].mxu0
      %v2245 = vadd.f32 0.0, %v2244
      %v2246 = vpop.f32.mrb[0].mxu0
      %2247 = vmatprep.mubr.f32.mxu0 0.0
      %2248 = vmatmul.mubr.f32.gmra.mrb[0].mxu0 %v2172
      %v2249 = vpop.f32.mrb[0].mxu0
      %v2250 = vadd.f32 0.0, %v2249
      %v2251 = vpop.f32.mrb[0].mxu0
      %2252 = vdwg.mxu0
      %v2253 = vmul.f32 %v2245, 0.35355338
      %v2254 = vmul.f32 %v2250, 0.35355338
      %v2255 = vadd.f32 %v2253, %v1164
      %v2256 = vadd.f32 %v2254, %v1165
      %v2257 = vsel %vm1399, %v2255, -inf
      %2258 = vmax.xlane.f32.xlu0 %v2257
      %v2259 = vpop.xlane.xlu0 %2258
      %v2260 = vsel %vm1399, %v2256, -inf
      %2261 = vmax.xlane.f32.xlu0 %v2260
      %v2262 = vpop.xlane.xlu0 %2261
      %v2263 = vsub.f32 %v2255, %v2259
      %v2264 = vsub.f32 %v2256, %v2262
      %v2265 = vmul.f32 %v2263, 1.442695
      %v2266 = vpow.pop %v2265
      %v2267 = vmul.f32 %v2264, 1.442695
      %v2268 = vpow.pop %v2267
      %v2269 = vsel %vm1399, %v2266, 0.0
      %2270 = vadd.xlane.f32.xlu0 %v2269
      %v2271 = vpop.xlane.xlu0 %2270
      %v2272 = vsel %vm1399, %v2268, 0.0
      %2273 = vadd.xlane.f32.xlu0 %v2272
      %v2274 = vpop.xlane.xlu0 %2273
      %v2275 = vrcp.pop %v2271
      %v2276 = vmul.f32 %v2266, %v2275
      %v2277 = vrcp.pop %v2274
      %v2278 = vmul.f32 %v2268, %v2277
      %2279 = vrot.lane.b32.xlu0 %v1292, 40
      %v2280 = vpop.permute.xlu0 %2279
      %2281 = vrot.lane.b32.xlu0 %v1297, 40
      %v2282 = vpop.permute.xlu0 %2281
      %v2286 = vsel %vm1399, %v2276, 0
      %v2289 = vsel %vm1399, %v2278, 0
      %2291 = vmatprep.subr.mxu0 0.0
      %2292 = vmatpush1.msra.mxu0 %v2280
      %2293 = vmatprep.subr.mxu0 0.0
      %2294 = vmatpush1.msra.mxu0 %v2282
      %2295 = vmatprep.subr.mxu0 0.0
      %2296 = vmatpush1.msra.mxu0 0.0
      %2297 = vmatprep.subr.mxu0 0.0
      %2298 = vmatpush1.msra.mxu0 0.0
      %2299 = vmatprep.subr.mxu0 0.0
      %2300 = vmatpush1.msra.mxu0 0.0
      %2301 = vmatprep.subr.mxu0 0.0
      %2302 = vmatpush1.msra.mxu0 0.0
      %2303 = vmatprep.subr.mxu0 0.0
      %2304 = vmatpush1.msra.mxu0 0.0
      %2305 = vmatprep.subr.mxu0 0.0
      %2306 = vmatpush1.msra.mxu0 0.0
      %2307 = vmatprep.subr.mxu0 0.0
      %2308 = vmatpush1.msra.mxu0 0.0
      %2309 = vmatprep.subr.mxu0 0.0
      %2310 = vmatpush1.msra.mxu0 0.0
      %2311 = vmatprep.subr.mxu0 0.0
      %2312 = vmatpush1.msra.mxu0 0.0
      %2313 = vmatprep.subr.mxu0 0.0
      %2314 = vmatpush1.msra.mxu0 0.0
      %2315 = vmatprep.subr.mxu0 0.0
      %2316 = vmatpush1.msra.mxu0 0.0
      %2317 = vmatprep.subr.mxu0 0.0
      %2318 = vmatpush1.msra.mxu0 0.0
      %2319 = vmatprep.subr.mxu0 0.0
      %2320 = vmatpush1.msra.mxu0 0.0
      %2321 = vmatprep.subr.mxu0 0.0
      %2322 = vmatpush1.msra.mxu0 0.0
      %2323 = vmatprep.subr.mxu0 0.0
      %2324 = vmatpush1.msra.mxu0 0.0
      %2325 = vmatprep.subr.mxu0 0.0
      %2326 = vmatpush1.msra.mxu0 0.0
      %2327 = vmatprep.subr.mxu0 0.0
      %2328 = vmatpush1.msra.mxu0 0.0
      %2329 = vmatprep.subr.mxu0 0.0
      %2330 = vmatpush1.msra.mxu0 0.0
      %2331 = vmatprep.subr.mxu0 0.0
      %2332 = vmatpush1.msra.mxu0 0.0
      %2333 = vmatprep.subr.mxu0 0.0
      %2334 = vmatpush1.msra.mxu0 0.0
      %2335 = vmatprep.subr.mxu0 0.0
      %2336 = vmatpush1.msra.mxu0 0.0
      %2337 = vmatprep.subr.mxu0 0.0
      %2338 = vmatpush1.msra.mxu0 0.0
      %2339 = vmatprep.subr.mxu0 0.0
      %2340 = vmatpush1.msra.mxu0 0.0
      %2341 = vmatprep.subr.mxu0 0.0
      %2342 = vmatpush1.msra.mxu0 0.0
      %2343 = vmatprep.subr.mxu0 0.0
      %2344 = vmatpush1.msra.mxu0 0.0
      %2345 = vmatprep.subr.mxu0 0.0
      %2346 = vmatpush1.msra.mxu0 0.0
      %2347 = vmatprep.subr.mxu0 0.0
      %2348 = vmatpush1.msra.mxu0 0.0
      %2349 = vmatprep.subr.mxu0 0.0
      %2350 = vmatpush1.msra.mxu0 0.0
      %2351 = vmatprep.subr.mxu0 0.0
      %2352 = vmatpush1.msra.mxu0 0.0
      %2353 = vmatprep.subr.mxu0 0.0
      %2354 = vmatpush1.msra.mxu0 0.0
      %2355 = vmatprep.mubr.f32.mxu0 0.0
      %2356 = vmatmul.mubr.f32.gmra.mrb[0].mxu0 %v2286
      %v2357 = vpop.f32.mrb[0].mxu0
      %v2358 = vadd.f32 0.0, %v2357
      %v2359 = vpop.f32.mrb[0].mxu0
      %2360 = vmatprep.mubr.f32.mxu0 0.0
      %2361 = vmatmul.mubr.f32.gmra.mrb[0].mxu0 %v2289
      %v2362 = vpop.f32.mrb[0].mxu0
      %v2363 = vadd.f32 0.0, %v2362
      %v2364 = vpop.f32.mrb[0].mxu0
      %2365 = vdwg.mxu0
      %v2367 = vsel %vm1311, %v2358, 0
      %v2370 = vsel %vm1311, %v2363, 0
      %2372 = vmatprep.subr.mxu0 0.0
      %2373 = vmatpush1.msra.mxu0 %v1303
      %2374 = vmatprep.subr.mxu0 0.0
      %2375 = vmatpush1.msra.mxu0 0.0
      %2376 = vmatprep.subr.mxu0 0.0
      %2377 = vmatpush1.msra.mxu0 0.0
      %2378 = vmatprep.subr.mxu0 0.0
      %2379 = vmatpush1.msra.mxu0 0.0
      %2380 = vmatprep.subr.mxu0 0.0
      %2381 = vmatpush1.msra.mxu0 0.0
      %2382 = vmatprep.subr.mxu0 0.0
      %2383 = vmatpush1.msra.mxu0 0.0
      %2384 = vmatprep.subr.mxu0 0.0
      %2385 = vmatpush1.msra.mxu0 0.0
      %2386 = vmatprep.subr.mxu0 0.0
      %2387 = vmatpush1.msra.mxu0 0.0
      %2388 = vmatprep.subr.mxu0 0.0
      %2389 = vmatpush1.msra.mxu0 0.0
      %2390 = vmatprep.subr.mxu0 0.0
      %2391 = vmatpush1.msra.mxu0 0.0
      %2392 = vmatprep.subr.mxu0 0.0
      %2393 = vmatpush1.msra.mxu0 0.0
      %2394 = vmatprep.subr.mxu0 0.0
      %2395 = vmatpush1.msra.mxu0 0.0
      %2396 = vmatprep.subr.mxu0 0.0
      %2397 = vmatpush1.msra.mxu0 0.0
      %2398 = vmatprep.subr.mxu0 0.0
      %2399 = vmatpush1.msra.mxu0 0.0
      %2400 = vmatprep.subr.mxu0 0.0
      %2401 = vmatpush1.msra.mxu0 0.0
      %2402 = vmatprep.subr.mxu0 0.0
      %2403 = vmatpush1.msra.mxu0 0.0
      %2404 = vmatprep.subr.mxu0 0.0
      %2405 = vmatpush1.msra.mxu0 0.0
      %2406 = vmatprep.subr.mxu0 0.0
      %2407 = vmatpush1.msra.mxu0 0.0
      %2408 = vmatprep.subr.mxu0 0.0
      %2409 = vmatpush1.msra.mxu0 0.0
      %2410 = vmatprep.subr.mxu0 0.0
      %2411 = vmatpush1.msra.mxu0 0.0
      %2412 = vmatprep.subr.mxu0 0.0
      %2413 = vmatpush1.msra.mxu0 0.0
      %2414 = vmatprep.subr.mxu0 0.0
      %2415 = vmatpush1.msra.mxu0 0.0
      %2416 = vmatprep.subr.mxu0 0.0
      %2417 = vmatpush1.msra.mxu0 0.0
      %2418 = vmatprep.subr.mxu0 0.0
      %2419 = vmatpush1.msra.mxu0 0.0
      %2420 = vmatprep.subr.mxu0 0.0
      %2421 = vmatpush1.msra.mxu0 0.0
      %2422 = vmatprep.subr.mxu0 0.0
      %2423 = vmatpush1.msra.mxu0 0.0
      %2424 = vmatprep.subr.mxu0 0.0
      %2425 = vmatpush1.msra.mxu0 0.0
      %2426 = vmatprep.subr.mxu0 0.0
      %2427 = vmatpush1.msra.mxu0 0.0
      %2428 = vmatprep.subr.mxu0 0.0
      %2429 = vmatpush1.msra.mxu0 0.0
      %2430 = vmatprep.subr.mxu0 0.0
      %2431 = vmatpush1.msra.mxu0 0.0
      %2432 = vmatprep.subr.mxu0 0.0
      %2433 = vmatpush1.msra.mxu0 0.0
      %2434 = vmatprep.subr.mxu0 0.0
      %2435 = vmatpush1.msra.mxu0 0.0
      %2436 = vmatprep.mubr.f32.mxu0 0.0
      %2437 = vmatmul.mubr.f32.gmra.mrb[0].mxu0 %v2367
      %v2438 = vpop.f32.mrb[0].mxu0
      %v2439 = vadd.f32 0.0, %v2438
      %v2440 = vpop.f32.mrb[0].mxu0
      %2441 = vmatprep.mubr.f32.mxu0 0.0
      %2442 = vmatmul.mubr.f32.gmra.mrb[0].mxu0 %v2370
      %v2443 = vpop.f32.mrb[0].mxu0
      %v2444 = vadd.f32 0.0, %v2443
      %v2445 = vpop.f32.mrb[0].mxu0
      %2446 = vdwg.mxu0
      %v2447 = vadd.f32 %v2160, %v2439
      %v2448 = vadd.f32 %v2161, %v2444
      %v2450 = vlaneseq
      %v2451 = vshrl.u32 %v2450, 7
      %v2452 = vsub.s32 0, %v2451
      %v2453 = vrot.slane %v1304, %v2452
      %v2455 = vadd.f32 %v2447, %v2453
      %v2456 = vadd.f32 %v2448, %v2453
      %v2457 = vadd.f32 %v1206, %v2455
      %v2458 = vadd.f32 %v1207, %v2456
      %v2459 = vsel %vm1168, %v2457, 0.0
      %2460 = vadd.xlane.f32.xlu0 %v2459
      %v2461 = vpop.xlane.xlu0 %2460
      %v2462 = vsel %vm1168, %v2458, 0.0
      %2463 = vadd.xlane.f32.xlu0 %v2462
      %v2464 = vpop.xlane.xlu0 %2463
      %v2465 = vmul.f32 %v2461, %v1175
      %v2466 = vmul.f32 %v2464, %v1175
      %v2467 = vsub.f32 %v2457, %v2465
      %v2468 = vsub.f32 %v2458, %v2466
      %v2469 = vmul.f32 %v2467, %v2467
      %v2470 = vmul.f32 %v2468, %v2468
      %v2471 = vsel %vm1168, %v2469, 0.0
      %2472 = vadd.xlane.f32.xlu0 %v2471
      %v2473 = vpop.xlane.xlu0 %2472
      %v2474 = vsel %vm1168, %v2470, 0.0
      %2475 = vadd.xlane.f32.xlu0 %v2474
      %v2476 = vpop.xlane.xlu0 %2475
      %v2477 = vmul.f32 %v2473, %v1175
      %v2478 = vmul.f32 %v2476, %v1175
      %v2479 = vadd.f32 %v2477, 1e-05
      %v2480 = vadd.f32 %v2478, 1e-05
      %v2481 = vrsqrt.pop %v2479
      %v2482 = vrsqrt.pop %v2480
      %v2483 = vmul.f32 %v2467, %v2481
      %v2484 = vmul.f32 %v2468, %v2482
      %v2485 = vlaneseq
      %v2486 = vshrl.u32 %v2485, 7
      %v2487 = vsub.s32 2, %v2486
      %v2488 = vrot.slane %v1143, %v2487
      %v2489 = vmul.f32 %v2483, %v2488
      %v2490 = vmul.f32 %v2484, %v2488
      %v2491 = vlaneseq
      %v2492 = vshrl.u32 %v2491, 7
      %v2493 = vsub.s32 2, %v2492
      %v2494 = vrot.slane %v1144, %v2493
      %v2495 = vadd.f32 %v2489, %v2494
      %v2496 = vadd.f32 %v2490, %v2494
      %v2497 = vld [vmem:[%s21] sm:$0xff]
      %v2498 = vld [vmem:[%s21 + $0x8] sm:$0xff]
      %v2499 = vld [vmem:[%s21 + $0x10] sm:$0xff]
      %v2500 = vld [vmem:[%s21 + $0x18] sm:$0xff]
      %v2501 = vld [vmem:[%s23] sm:$0x1]
      %v2503 = vlaneseq
      %v2504 = vshrl.u32 %v2503, 7
      %v2505 = vsub.s32 0, %v2504
      %v2506 = vrot.slane %v2501, %v2505
      %v2509 = vsel %vm1168, %v2495, 0
      %v2512 = vsel %vm1168, %v2496, 0
      %2514 = vmatprep.subr.mxu0 0.0
      %2515 = vmatpush1.msra.mxu0 %v2497
      %2516 = vmatprep.subr.mxu0 0.0
      %2517 = vmatpush1.msra.mxu0 %v2498
      %2518 = vmatprep.subr.mxu0 0.0
      %2519 = vmatpush1.msra.mxu0 %v2499
      %2520 = vmatprep.subr.mxu0 0.0
      %2521 = vmatpush1.msra.mxu0 %v2500
      %2522 = vmatprep.subr.mxu0 0.0
      %2523 = vmatpush1.msra.mxu0 0.0
      %2524 = vmatprep.subr.mxu0 0.0
      %2525 = vmatpush1.msra.mxu0 0.0
      %2526 = vmatprep.subr.mxu0 0.0
      %2527 = vmatpush1.msra.mxu0 0.0
      %2528 = vmatprep.subr.mxu0 0.0
      %2529 = vmatpush1.msra.mxu0 0.0
      %2530 = vmatprep.subr.mxu0 0.0
      %2531 = vmatpush1.msra.mxu0 0.0
      %2532 = vmatprep.subr.mxu0 0.0
      %2533 = vmatpush1.msra.mxu0 0.0
      %2534 = vmatprep.subr.mxu0 0.0
      %2535 = vmatpush1.msra.mxu0 0.0
      %2536 = vmatprep.subr.mxu0 0.0
      %2537 = vmatpush1.msra.mxu0 0.0
      %2538 = vmatprep.subr.mxu0 0.0
      %2539 = vmatpush1.msra.mxu0 0.0
      %2540 = vmatprep.subr.mxu0 0.0
      %2541 = vmatpush1.msra.mxu0 0.0
      %2542 = vmatprep.subr.mxu0 0.0
      %2543 = vmatpush1.msra.mxu0 0.0
      %2544 = vmatprep.subr.mxu0 0.0
      %2545 = vmatpush1.msra.mxu0 0.0
      %2546 = vmatprep.subr.mxu0 0.0
      %2547 = vmatpush1.msra.mxu0 0.0
      %2548 = vmatprep.subr.mxu0 0.0
      %2549 = vmatpush1.msra.mxu0 0.0
      %2550 = vmatprep.subr.mxu0 0.0
      %2551 = vmatpush1.msra.mxu0 0.0
      %2552 = vmatprep.subr.mxu0 0.0
      %2553 = vmatpush1.msra.mxu0 0.0
      %2554 = vmatprep.subr.mxu0 0.0
      %2555 = vmatpush1.msra.mxu0 0.0
      %2556 = vmatprep.subr.mxu0 0.0
      %2557 = vmatpush1.msra.mxu0 0.0
      %2558 = vmatprep.subr.mxu0 0.0
      %2559 = vmatpush1.msra.mxu0 0.0
      %2560 = vmatprep.subr.mxu0 0.0
      %2561 = vmatpush1.msra.mxu0 0.0
      %2562 = vmatprep.subr.mxu0 0.0
      %2563 = vmatpush1.msra.mxu0 0.0
      %2564 = vmatprep.subr.mxu0 0.0
      %2565 = vmatpush1.msra.mxu0 0.0
      %2566 = vmatprep.subr.mxu0 0.0
      %2567 = vmatpush1.msra.mxu0 0.0
      %2568 = vmatprep.subr.mxu0 0.0
      %2569 = vmatpush1.msra.mxu0 0.0
      %2570 = vmatprep.subr.mxu0 0.0
      %2571 = vmatpush1.msra.mxu0 0.0
      %2572 = vmatprep.subr.mxu0 0.0
      %2573 = vmatpush1.msra.mxu0 0.0
      %2574 = vmatprep.subr.mxu0 0.0
      %2575 = vmatpush1.msra.mxu0 0.0
      %2576 = vmatprep.subr.mxu0 0.0
      %2577 = vmatpush1.msra.mxu0 0.0
      %2578 = vmatprep.mubr.f32.mxu0 0.0
      %2579 = vmatmul.mubr.f32.gmra.mrb[0].mxu0 %v2509
      %v2580 = vpop.f32.mrb[0].mxu0
      %v2581 = vadd.f32 %v2506, %v2580
      %v2582 = vpop.f32.mrb[0].mxu0
      %2583 = vmatprep.mubr.f32.mxu0 0.0
      %2584 = vmatmul.mubr.f32.gmra.mrb[0].mxu0 %v2512
      %v2585 = vpop.f32.mrb[0].mxu0
      %v2586 = vadd.f32 %v2506, %v2585
      %v2587 = vpop.f32.mrb[0].mxu0
      %2588 = vdwg.mxu0
      %v2589 = vmax.f32 %v2581, 0.0
      %v2590 = vmax.f32 %v2586, 0.0
      %v2591 = vld [vmem:[%s25] sm:$0xff]
      %v2592 = vld [vmem:[%s25 + $0x8] sm:$0xff]
      %v2593 = vld [vmem:[%s25 + $0x10] sm:$0xff]
      %v2594 = vld [vmem:[%s25 + $0x18] sm:$0xff]
      %v2595 = vld [vmem:[%s25 + $0x20] sm:$0xff]
      %v2596 = vld [vmem:[%s25 + $0x28] sm:$0xff]
      %v2597 = vld [vmem:[%s25 + $0x30] sm:$0xff]
      %v2598 = vld [vmem:[%s25 + $0x38] sm:$0xff]
      %v2599 = vld [vmem:[%s27] sm:$0x1]
      %v2601 = vlaneseq
      %v2602 = vshrl.u32 %v2601, 7
      %v2603 = vsub.s32 0, %v2602
      %v2604 = vrot.slane %v2599, %v2603
      %vm2606 = vcmask 523264
      %v2608 = vsel %vm2606, %v2589, 0
      %v2611 = vsel %vm2606, %v2590, 0
      %2613 = vmatprep.subr.mxu0 0.0
      %2614 = vmatpush1.msra.mxu0 %v2591
      %2615 = vmatprep.subr.mxu0 0.0
      %2616 = vmatpush1.msra.mxu0 %v2592
      %2617 = vmatprep.subr.mxu0 0.0
      %2618 = vmatpush1.msra.mxu0 %v2593
      %2619 = vmatprep.subr.mxu0 0.0
      %2620 = vmatpush1.msra.mxu0 %v2594
      %2621 = vmatprep.subr.mxu0 0.0
      %2622 = vmatpush1.msra.mxu0 %v2595
      %2623 = vmatprep.subr.mxu0 0.0
      %2624 = vmatpush1.msra.mxu0 %v2596
      %2625 = vmatprep.subr.mxu0 0.0
      %2626 = vmatpush1.msra.mxu0 %v2597
      %2627 = vmatprep.subr.mxu0 0.0
      %2628 = vmatpush1.msra.mxu0 %v2598
      %2629 = vmatprep.subr.mxu0 0.0
      %2630 = vmatpush1.msra.mxu0 0.0
      %2631 = vmatprep.subr.mxu0 0.0
      %2632 = vmatpush1.msra.mxu0 0.0
      %2633 = vmatprep.subr.mxu0 0.0
      %2634 = vmatpush1.msra.mxu0 0.0
      %2635 = vmatprep.subr.mxu0 0.0
      %2636 = vmatpush1.msra.mxu0 0.0
      %2637 = vmatprep.subr.mxu0 0.0
      %2638 = vmatpush1.msra.mxu0 0.0
      %2639 = vmatprep.subr.mxu0 0.0
      %2640 = vmatpush1.msra.mxu0 0.0
      %2641 = vmatprep.subr.mxu0 0.0
      %2642 = vmatpush1.msra.mxu0 0.0
      %2643 = vmatprep.subr.mxu0 0.0
      %2644 = vmatpush1.msra.mxu0 0.0
      %2645 = vmatprep.subr.mxu0 0.0
      %2646 = vmatpush1.msra.mxu0 0.0
      %2647 = vmatprep.subr.mxu0 0.0
      %2648 = vmatpush1.msra.mxu0 0.0
      %2649 = vmatprep.subr.mxu0 0.0
      %2650 = vmatpush1.msra.mxu0 0.0
      %2651 = vmatprep.subr.mxu0 0.0
      %2652 = vmatpush1.msra.mxu0 0.0
      %2653 = vmatprep.subr.mxu0 0.0
      %2654 = vmatpush1.msra.mxu0 0.0
      %2655 = vmatprep.subr.mxu0 0.0
      %2656 = vmatpush1.msra.mxu0 0.0
      %2657 = vmatprep.subr.mxu0 0.0
      %2658 = vmatpush1.msra.mxu0 0.0
      %2659 = vmatprep.subr.mxu0 0.0
      %2660 = vmatpush1.msra.mxu0 0.0
      %2661 = vmatprep.subr.mxu0 0.0
      %2662 = vmatpush1.msra.mxu0 0.0
      %2663 = vmatprep.subr.mxu0 0.0
      %2664 = vmatpush1.msra.mxu0 0.0
      %2665 = vmatprep.subr.mxu0 0.0
      %2666 = vmatpush1.msra.mxu0 0.0
      %2667 = vmatprep.subr.mxu0 0.0
      %2668 = vmatpush1.msra.mxu0 0.0
      %2669 = vmatprep.subr.mxu0 0.0
      %2670 = vmatpush1.msra.mxu0 0.0
      %2671 = vmatprep.subr.mxu0 0.0
      %2672 = vmatpush1.msra.mxu0 0.0
      %2673 = vmatprep.subr.mxu0 0.0
      %2674 = vmatpush1.msra.mxu0 0.0
      %2675 = vmatprep.subr.mxu0 0.0
      %2676 = vmatpush1.msra.mxu0 0.0
      %2677 = vmatprep.mubr.f32.mxu0 0.0
      %2678 = vmatmul.mubr.f32.gmra.mrb[0].mxu0 %v2608
      %v2679 = vpop.f32.mrb[0].mxu0
      %v2680 = vadd.f32 %v2604, %v2679
      %v2681 = vpop.f32.mrb[0].mxu0
      %2682 = vmatprep.mubr.f32.mxu0 0.0
      %2683 = vmatmul.mubr.f32.gmra.mrb[0].mxu0 %v2611
      %v2684 = vpop.f32.mrb[0].mxu0
      %v2685 = vadd.f32 %v2604, %v2684
      %v2686 = vpop.f32.mrb[0].mxu0
      %2687 = vdwg.mxu0
      %v2688 = vadd.f32 %v2495, %v2680
      %v2689 = vadd.f32 %v2496, %v2685
      %v2690 = vsel %vm1168, %v2688, 0.0
      %2691 = vadd.xlane.f32.xlu0 %v2690
      %v2692 = vpop.xlane.xlu0 %2691
      %v2693 = vsel %vm1168, %v2689, 0.0
      %2694 = vadd.xlane.f32.xlu0 %v2693
      %v2695 = vpop.xlane.xlu0 %2694
      %v2696 = vmul.f32 %v2692, %v1175
      %v2697 = vmul.f32 %v2695, %v1175
      %v2698 = vsub.f32 %v2688, %v2696
      %v2699 = vsub.f32 %v2689, %v2697
      %v2700 = vmul.f32 %v2698, %v2698
      %v2701 = vmul.f32 %v2699, %v2699
      %v2702 = vsel %vm1168, %v2700, 0.0
      %2703 = vadd.xlane.f32.xlu0 %v2702
      %v2704 = vpop.xlane.xlu0 %2703
      %v2705 = vsel %vm1168, %v2701, 0.0
      %2706 = vadd.xlane.f32.xlu0 %v2705
      %v2707 = vpop.xlane.xlu0 %2706
      %v2708 = vmul.f32 %v2704, %v1175
      %v2709 = vmul.f32 %v2707, %v1175
      %v2710 = vadd.f32 %v2708, 1e-05
      %v2711 = vadd.f32 %v2709, 1e-05
      %v2712 = vrsqrt.pop %v2710
      %v2713 = vrsqrt.pop %v2711
      %v2714 = vmul.f32 %v2698, %v2712
      %v2715 = vmul.f32 %v2699, %v2713
      %v2716 = vlaneseq
      %v2717 = vshrl.u32 %v2716, 7
      %v2718 = vsub.s32 3, %v2717
      %v2719 = vrot.slane %v1143, %v2718
      %v2720 = vmul.f32 %v2714, %v2719
      %v2721 = vmul.f32 %v2715, %v2719
      %v2722 = vlaneseq
      %v2723 = vshrl.u32 %v2722, 7
      %v2724 = vsub.s32 3, %v2723
      %v2725 = vrot.slane %v1144, %v2724
      %v2726 = vadd.f32 %v2720, %v2725
      %v2727 = vadd.f32 %v2721, %v2725
      %v2728 = vld [vmem:[%s29] sm:$0xff]
      %v2729 = vld [vmem:[%s29 + $0x8] sm:$0xff]
      %v2730 = vld [vmem:[%s29 + $0x10] sm:$0xff]
      %v2731 = vld [vmem:[%s29 + $0x18] sm:$0xff]
      %v2732 = vld [vmem:[%s31] sm:$0x1]
      %v2734 = vlaneseq
      %v2735 = vshrl.u32 %v2734, 7
      %v2736 = vsub.s32 0, %v2735
      %v2737 = vrot.slane %v2732, %v2736
      %v2740 = vsel %vm1168, %v2726, 0
      %2742 = vmatprep.subr.mxu0 0.0
      %2743 = vmatpush1.msra.mxu0 %v2728
      %2744 = vmatprep.subr.mxu0 0.0
      %2745 = vmatpush1.msra.mxu0 %v2729
      %2746 = vmatprep.subr.mxu0 0.0
      %2747 = vmatpush1.msra.mxu0 %v2730
      %2748 = vmatprep.subr.mxu0 0.0
      %2749 = vmatpush1.msra.mxu0 %v2731
      %2750 = vmatprep.subr.mxu0 0.0
      %2751 = vmatpush1.msra.mxu0 0.0
      %2752 = vmatprep.subr.mxu0 0.0
      %2753 = vmatpush1.msra.mxu0 0.0
      %2754 = vmatprep.subr.mxu0 0.0
      %2755 = vmatpush1.msra.mxu0 0.0
      %2756 = vmatprep.subr.mxu0 0.0
      %2757 = vmatpush1.msra.mxu0 0.0
      %2758 = vmatprep.subr.mxu0 0.0
      %2759 = vmatpush1.msra.mxu0 0.0
      %2760 = vmatprep.subr.mxu0 0.0
      %2761 = vmatpush1.msra.mxu0 0.0
      %2762 = vmatprep.subr.mxu0 0.0
      %2763 = vmatpush1.msra.mxu0 0.0
      %2764 = vmatprep.subr.mxu0 0.0
      %2765 = vmatpush1.msra.mxu0 0.0
      %2766 = vmatprep.subr.mxu0 0.0
      %2767 = vmatpush1.msra.mxu0 0.0
      %2768 = vmatprep.subr.mxu0 0.0
      %2769 = vmatpush1.msra.mxu0 0.0
      %2770 = vmatprep.subr.mxu0 0.0
      %2771 = vmatpush1.msra.mxu0 0.0
      %2772 = vmatprep.subr.mxu0 0.0
      %2773 = vmatpush1.msra.mxu0 0.0
      %2774 = vmatprep.subr.mxu0 0.0
      %2775 = vmatpush1.msra.mxu0 0.0
      %2776 = vmatprep.subr.mxu0 0.0
      %2777 = vmatpush1.msra.mxu0 0.0
      %2778 = vmatprep.subr.mxu0 0.0
      %2779 = vmatpush1.msra.mxu0 0.0
      %2780 = vmatprep.subr.mxu0 0.0
      %2781 = vmatpush1.msra.mxu0 0.0
      %2782 = vmatprep.subr.mxu0 0.0
      %2783 = vmatpush1.msra.mxu0 0.0
      %2784 = vmatprep.subr.mxu0 0.0
      %2785 = vmatpush1.msra.mxu0 0.0
      %2786 = vmatprep.subr.mxu0 0.0
      %2787 = vmatpush1.msra.mxu0 0.0
      %2788 = vmatprep.subr.mxu0 0.0
      %2789 = vmatpush1.msra.mxu0 0.0
      %2790 = vmatprep.subr.mxu0 0.0
      %2791 = vmatpush1.msra.mxu0 0.0
      %2792 = vmatprep.subr.mxu0 0.0
      %2793 = vmatpush1.msra.mxu0 0.0
      %2794 = vmatprep.subr.mxu0 0.0
      %2795 = vmatpush1.msra.mxu0 0.0
      %2796 = vmatprep.subr.mxu0 0.0
      %2797 = vmatpush1.msra.mxu0 0.0
      %2798 = vmatprep.subr.mxu0 0.0
      %2799 = vmatpush1.msra.mxu0 0.0
      %2800 = vmatprep.subr.mxu0 0.0
      %2801 = vmatpush1.msra.mxu0 0.0
      %2802 = vmatprep.subr.mxu0 0.0
      %2803 = vmatpush1.msra.mxu0 0.0
      %2804 = vmatprep.subr.mxu0 0.0
      %2805 = vmatpush1.msra.mxu0 0.0
      %2806 = vmatprep.mubr.f32.mxu0 0.0
      %2807 = vmatmul.mubr.f32.gmra.mrb[0].mxu0 %v2740
      %v2808 = vpop.f32.mrb[0].mxu0
      %v2809 = vadd.f32 %v2737, %v2808
      %v2810 = vpop.f32.mrb[0].mxu0
      %2811 = vdwg.mxu0
      %v2812 = vld [vmem:[%s33] sm:$0xff]
      %v2813 = vld [vmem:[%s33 + $0x8] sm:$0xff]
      %v2814 = vld [vmem:[%s33 + $0x10] sm:$0xff]
      %v2815 = vld [vmem:[%s33 + $0x18] sm:$0xff]
      %v2816 = vld [vmem:[%s35] sm:$0x1]
      %v2818 = vlaneseq
      %v2819 = vshrl.u32 %v2818, 7
      %v2820 = vsub.s32 0, %v2819
      %v2821 = vrot.slane %v2816, %v2820
      %v2824 = vsel %vm1168, %v2727, 0
      %2826 = vmatprep.subr.mxu0 0.0
      %2827 = vmatpush1.msra.mxu0 %v2812
      %2828 = vmatprep.subr.mxu0 0.0
      %2829 = vmatpush1.msra.mxu0 %v2813
      %2830 = vmatprep.subr.mxu0 0.0
      %2831 = vmatpush1.msra.mxu0 %v2814
      %2832 = vmatprep.subr.mxu0 0.0
      %2833 = vmatpush1.msra.mxu0 %v2815
      %2834 = vmatprep.subr.mxu0 0.0
      %2835 = vmatpush1.msra.mxu0 0.0
      %2836 = vmatprep.subr.mxu0 0.0
      %2837 = vmatpush1.msra.mxu0 0.0
      %2838 = vmatprep.subr.mxu0 0.0
      %2839 = vmatpush1.msra.mxu0 0.0
      %2840 = vmatprep.subr.mxu0 0.0
      %2841 = vmatpush1.msra.mxu0 0.0
      %2842 = vmatprep.subr.mxu0 0.0
      %2843 = vmatpush1.msra.mxu0 0.0
      %2844 = vmatprep.subr.mxu0 0.0
      %2845 = vmatpush1.msra.mxu0 0.0
      %2846 = vmatprep.subr.mxu0 0.0
      %2847 = vmatpush1.msra.mxu0 0.0
      %2848 = vmatprep.subr.mxu0 0.0
      %2849 = vmatpush1.msra.mxu0 0.0
      %2850 = vmatprep.subr.mxu0 0.0
      %2851 = vmatpush1.msra.mxu0 0.0
      %2852 = vmatprep.subr.mxu0 0.0
      %2853 = vmatpush1.msra.mxu0 0.0
      %2854 = vmatprep.subr.mxu0 0.0
      %2855 = vmatpush1.msra.mxu0 0.0
      %2856 = vmatprep.subr.mxu0 0.0
      %2857 = vmatpush1.msra.mxu0 0.0
      %2858 = vmatprep.subr.mxu0 0.0
      %2859 = vmatpush1.msra.mxu0 0.0
      %2860 = vmatprep.subr.mxu0 0.0
      %2861 = vmatpush1.msra.mxu0 0.0
      %2862 = vmatprep.subr.mxu0 0.0
      %2863 = vmatpush1.msra.mxu0 0.0
      %2864 = vmatprep.subr.mxu0 0.0
      %2865 = vmatpush1.msra.mxu0 0.0
      %2866 = vmatprep.subr.mxu0 0.0
      %2867 = vmatpush1.msra.mxu0 0.0
      %2868 = vmatprep.subr.mxu0 0.0
      %2869 = vmatpush1.msra.mxu0 0.0
      %2870 = vmatprep.subr.mxu0 0.0
      %2871 = vmatpush1.msra.mxu0 0.0
      %2872 = vmatprep.subr.mxu0 0.0
      %2873 = vmatpush1.msra.mxu0 0.0
      %2874 = vmatprep.subr.mxu0 0.0
      %2875 = vmatpush1.msra.mxu0 0.0
      %2876 = vmatprep.subr.mxu0 0.0
      %2877 = vmatpush1.msra.mxu0 0.0
      %2878 = vmatprep.subr.mxu0 0.0
      %2879 = vmatpush1.msra.mxu0 0.0
      %2880 = vmatprep.subr.mxu0 0.0
      %2881 = vmatpush1.msra.mxu0 0.0
      %2882 = vmatprep.subr.mxu0 0.0
      %2883 = vmatpush1.msra.mxu0 0.0
      %2884 = vmatprep.subr.mxu0 0.0
      %2885 = vmatpush1.msra.mxu0 0.0
      %2886 = vmatprep.subr.mxu0 0.0
      %2887 = vmatpush1.msra.mxu0 0.0
      %2888 = vmatprep.subr.mxu0 0.0
      %2889 = vmatpush1.msra.mxu0 0.0
      %2890 = vmatprep.mubr.f32.mxu0 0.0
      %2891 = vmatmul.mubr.f32.gmra.mrb[0].mxu0 %v2824
      %v2892 = vpop.f32.mrb[0].mxu0
      %v2893 = vadd.f32 %v2821, %v2892
      %v2894 = vpop.f32.mrb[0].mxu0
      %2895 = vdwg.mxu0
      %v2896 = vld [vmem:[%s37] sm:$0xff]
      %v2897 = vld [vmem:[%s37 + $0x8] sm:$0xff]
      %v2898 = vld [vmem:[%s37 + $0x10] sm:$0xff]
      %v2899 = vld [vmem:[%s37 + $0x18] sm:$0xff]
      %v2900 = vld [vmem:[%s39] sm:$0x1]
      %v2902 = vsel %vm1311, %v2809, 0
      %v2905 = vsel %vm1311, %v2893, 0
      %2907 = vmatprep.subr.mxu0 0.0
      %2908 = vmatpush1.xpose.msra.mxu0 %v2905
      %2909 = vmatprep.subr.mxu0 0.0
      %2910 = vmatpush1.xpose.msra.mxu0 0.0
      %2911 = vmatprep.subr.mxu0 0.0
      %2912 = vmatpush1.xpose.msra.mxu0 0.0
      %2913 = vmatprep.subr.mxu0 0.0
      %2914 = vmatpush1.xpose.msra.mxu0 0.0
      %2915 = vmatprep.subr.mxu0 0.0
      %2916 = vmatpush1.xpose.msra.mxu0 0.0
      %2917 = vmatprep.subr.mxu0 0.0
      %2918 = vmatpush1.xpose.msra.mxu0 0.0
      %2919 = vmatprep.subr.mxu0 0.0
      %2920 = vmatpush1.xpose.msra.mxu0 0.0
      %2921 = vmatprep.subr.mxu0 0.0
      %2922 = vmatpush1.xpose.msra.mxu0 0.0
      %2923 = vmatprep.subr.mxu0 0.0
      %2924 = vmatpush1.xpose.msra.mxu0 0.0
      %2925 = vmatprep.subr.mxu0 0.0
      %2926 = vmatpush1.xpose.msra.mxu0 0.0
      %2927 = vmatprep.subr.mxu0 0.0
      %2928 = vmatpush1.xpose.msra.mxu0 0.0
      %2929 = vmatprep.subr.mxu0 0.0
      %2930 = vmatpush1.xpose.msra.mxu0 0.0
      %2931 = vmatprep.subr.mxu0 0.0
      %2932 = vmatpush1.xpose.msra.mxu0 0.0
      %2933 = vmatprep.subr.mxu0 0.0
      %2934 = vmatpush1.xpose.msra.mxu0 0.0
      %2935 = vmatprep.subr.mxu0 0.0
      %2936 = vmatpush1.xpose.msra.mxu0 0.0
      %2937 = vmatprep.subr.mxu0 0.0
      %2938 = vmatpush1.xpose.msra.mxu0 0.0
      %2939 = vmatprep.subr.mxu0 0.0
      %2940 = vmatpush1.xpose.msra.mxu0 0.0
      %2941 = vmatprep.subr.mxu0 0.0
      %2942 = vmatpush1.xpose.msra.mxu0 0.0
      %2943 = vmatprep.subr.mxu0 0.0
      %2944 = vmatpush1.xpose.msra.mxu0 0.0
      %2945 = vmatprep.subr.mxu0 0.0
      %2946 = vmatpush1.xpose.msra.mxu0 0.0
      %2947 = vmatprep.subr.mxu0 0.0
      %2948 = vmatpush1.xpose.msra.mxu0 0.0
      %2949 = vmatprep.subr.mxu0 0.0
      %2950 = vmatpush1.xpose.msra.mxu0 0.0
      %2951 = vmatprep.subr.mxu0 0.0
      %2952 = vmatpush1.xpose.msra.mxu0 0.0
      %2953 = vmatprep.subr.mxu0 0.0
      %2954 = vmatpush1.xpose.msra.mxu0 0.0
      %2955 = vmatprep.subr.mxu0 0.0
      %2956 = vmatpush1.xpose.msra.mxu0 0.0
      %2957 = vmatprep.subr.mxu0 0.0
      %2958 = vmatpush1.xpose.msra.mxu0 0.0
      %2959 = vmatprep.subr.mxu0 0.0
      %2960 = vmatpush1.xpose.msra.mxu0 0.0
      %2961 = vmatprep.subr.mxu0 0.0
      %2962 = vmatpush1.xpose.msra.mxu0 0.0
      %2963 = vmatprep.subr.mxu0 0.0
      %2964 = vmatpush1.xpose.msra.mxu0 0.0
      %2965 = vmatprep.subr.mxu0 0.0
      %2966 = vmatpush1.xpose.msra.mxu0 0.0
      %2967 = vmatprep.subr.mxu0 0.0
      %2968 = vmatpush1.xpose.msra.mxu0 0.0
      %2969 = vmatprep.subr.mxu0 0.0
      %2970 = vmatpush1.xpose.msra.mxu0 0.0
      %2971 = vmatprep.mubr.f32.mxu0 0.0
      %2972 = vmatmul.mubr.f32.gmra.mrb[0].mxu0 %v2902
      %v2973 = vpop.f32.mrb[0].mxu0
      %v2974 = vadd.f32 0.0, %v2973
      %v2975 = vpop.f32.mrb[0].mxu0
      %2976 = vdwg.mxu0
      %v2977 = vmul.f32 %v2974, 0.35355338
      %2978 = vrot.lane.b32.xlu0 %v1162, 120
      %v2979 = vpop.permute.xlu0 %2978
      %v2981 = vadd.f32 %v2977, %v2979
      %v2982 = vsel %vm1311, %v2981, -inf
      %2983 = vmax.xlane.f32.xlu0 %v2982
      %v2984 = vpop.xlane.xlu0 %2983
      %v2985 = vsub.f32 %v2981, %v2984
      %v2986 = vmul.f32 %v2985, 1.442695
      %v2987 = vpow.pop %v2986
      %v2988 = vsel %vm1311, %v2987, 0.0
      %2989 = vadd.xlane.f32.xlu0 %v2988
      %v2990 = vpop.xlane.xlu0 %2989
      %v2991 = vrcp.pop %v2990
      %v2992 = vmul.f32 %v2987, %v2991
      %2993 = vrot.lane.b32.xlu0 %v2893, 96
      %v2994 = vpop.permute.xlu0 %2993
      %v2997 = vsel %vm1311, %v2992, 0
      %2999 = vmatprep.subr.mxu0 0.0
      %3000 = vmatpush1.msra.mxu0 %v2994
      %3001 = vmatprep.subr.mxu0 0.0
      %3002 = vmatpush1.msra.mxu0 0.0
      %3003 = vmatprep.subr.mxu0 0.0
      %3004 = vmatpush1.msra.mxu0 0.0
      %3005 = vmatprep.subr.mxu0 0.0
      %3006 = vmatpush1.msra.mxu0 0.0
      %3007 = vmatprep.subr.mxu0 0.0
      %3008 = vmatpush1.msra.mxu0 0.0
      %3009 = vmatprep.subr.mxu0 0.0
      %3010 = vmatpush1.msra.mxu0 0.0
      %3011 = vmatprep.subr.mxu0 0.0
      %3012 = vmatpush1.msra.mxu0 0.0
      %3013 = vmatprep.subr.mxu0 0.0
      %3014 = vmatpush1.msra.mxu0 0.0
      %3015 = vmatprep.subr.mxu0 0.0
      %3016 = vmatpush1.msra.mxu0 0.0
      %3017 = vmatprep.subr.mxu0 0.0
      %3018 = vmatpush1.msra.mxu0 0.0
      %3019 = vmatprep.subr.mxu0 0.0
      %3020 = vmatpush1.msra.mxu0 0.0
      %3021 = vmatprep.subr.mxu0 0.0
      %3022 = vmatpush1.msra.mxu0 0.0
      %3023 = vmatprep.subr.mxu0 0.0
      %3024 = vmatpush1.msra.mxu0 0.0
      %3025 = vmatprep.subr.mxu0 0.0
      %3026 = vmatpush1.msra.mxu0 0.0
      %3027 = vmatprep.subr.mxu0 0.0
      %3028 = vmatpush1.msra.mxu0 0.0
      %3029 = vmatprep.subr.mxu0 0.0
      %3030 = vmatpush1.msra.mxu0 0.0
      %3031 = vmatprep.subr.mxu0 0.0
      %3032 = vmatpush1.msra.mxu0 0.0
      %3033 = vmatprep.subr.mxu0 0.0
      %3034 = vmatpush1.msra.mxu0 0.0
      %3035 = vmatprep.subr.mxu0 0.0
      %3036 = vmatpush1.msra.mxu0 0.0
      %3037 = vmatprep.subr.mxu0 0.0
      %3038 = vmatpush1.msra.mxu0 0.0
      %3039 = vmatprep.subr.mxu0 0.0
      %3040 = vmatpush1.msra.mxu0 0.0
      %3041 = vmatprep.subr.mxu0 0.0
      %3042 = vmatpush1.msra.mxu0 0.0
      %3043 = vmatprep.subr.mxu0 0.0
      %3044 = vmatpush1.msra.mxu0 0.0
      %3045 = vmatprep.subr.mxu0 0.0
      %3046 = vmatpush1.msra.mxu0 0.0
      %3047 = vmatprep.subr.mxu0 0.0
      %3048 = vmatpush1.msra.mxu0 0.0
      %3049 = vmatprep.subr.mxu0 0.0
      %3050 = vmatpush1.msra.mxu0 0.0
      %3051 = vmatprep.subr.mxu0 0.0
      %3052 = vmatpush1.msra.mxu0 0.0
      %3053 = vmatprep.subr.mxu0 0.0
      %3054 = vmatpush1.msra.mxu0 0.0
      %3055 = vmatprep.subr.mxu0 0.0
      %3056 = vmatpush1.msra.mxu0 0.0
      %3057 = vmatprep.subr.mxu0 0.0
      %3058 = vmatpush1.msra.mxu0 0.0
      %3059 = vmatprep.subr.mxu0 0.0
      %3060 = vmatpush1.msra.mxu0 0.0
      %3061 = vmatprep.subr.mxu0 0.0
      %3062 = vmatpush1.msra.mxu0 0.0
      %3063 = vmatprep.mubr.f32.mxu0 0.0
      %3064 = vmatmul.mubr.f32.gmra.mrb[0].mxu0 %v2997
      %v3065 = vpop.f32.mrb[0].mxu0
      %v3066 = vadd.f32 0.0, %v3065
      %v3067 = vpop.f32.mrb[0].mxu0
      %3068 = vdwg.mxu0
      %3069 = vrot.lane.b32.xlu0 %v2809, 120
      %v3070 = vpop.permute.xlu0 %3069
      %3071 = vrot.lane.b32.xlu0 %v2893, 120
      %v3072 = vpop.permute.xlu0 %3071
      %v3073 = vsel %vm1311, %v3070, 0
      %v3075 = vsel %vm1311, %v3072, 0
      %3077 = vmatprep.subr.mxu0 0.0
      %3078 = vmatpush1.xpose.msra.mxu0 %v3075
      %3079 = vmatprep.subr.mxu0 0.0
      %3080 = vmatpush1.xpose.msra.mxu0 0.0
      %3081 = vmatprep.subr.mxu0 0.0
      %3082 = vmatpush1.xpose.msra.mxu0 0.0
      %3083 = vmatprep.subr.mxu0 0.0
      %3084 = vmatpush1.xpose.msra.mxu0 0.0
      %3085 = vmatprep.subr.mxu0 0.0
      %3086 = vmatpush1.xpose.msra.mxu0 0.0
      %3087 = vmatprep.subr.mxu0 0.0
      %3088 = vmatpush1.xpose.msra.mxu0 0.0
      %3089 = vmatprep.subr.mxu0 0.0
      %3090 = vmatpush1.xpose.msra.mxu0 0.0
      %3091 = vmatprep.subr.mxu0 0.0
      %3092 = vmatpush1.xpose.msra.mxu0 0.0
      %3093 = vmatprep.subr.mxu0 0.0
      %3094 = vmatpush1.xpose.msra.mxu0 0.0
      %3095 = vmatprep.subr.mxu0 0.0
      %3096 = vmatpush1.xpose.msra.mxu0 0.0
      %3097 = vmatprep.subr.mxu0 0.0
      %3098 = vmatpush1.xpose.msra.mxu0 0.0
      %3099 = vmatprep.subr.mxu0 0.0
      %3100 = vmatpush1.xpose.msra.mxu0 0.0
      %3101 = vmatprep.subr.mxu0 0.0
      %3102 = vmatpush1.xpose.msra.mxu0 0.0
      %3103 = vmatprep.subr.mxu0 0.0
      %3104 = vmatpush1.xpose.msra.mxu0 0.0
      %3105 = vmatprep.subr.mxu0 0.0
      %3106 = vmatpush1.xpose.msra.mxu0 0.0
      %3107 = vmatprep.subr.mxu0 0.0
      %3108 = vmatpush1.xpose.msra.mxu0 0.0
      %3109 = vmatprep.subr.mxu0 0.0
      %3110 = vmatpush1.xpose.msra.mxu0 0.0
      %3111 = vmatprep.subr.mxu0 0.0
      %3112 = vmatpush1.xpose.msra.mxu0 0.0
      %3113 = vmatprep.subr.mxu0 0.0
      %3114 = vmatpush1.xpose.msra.mxu0 0.0
      %3115 = vmatprep.subr.mxu0 0.0
      %3116 = vmatpush1.xpose.msra.mxu0 0.0
      %3117 = vmatprep.subr.mxu0 0.0
      %3118 = vmatpush1.xpose.msra.mxu0 0.0
      %3119 = vmatprep.subr.mxu0 0.0
      %3120 = vmatpush1.xpose.msra.mxu0 0.0
      %3121 = vmatprep.subr.mxu0 0.0
      %3122 = vmatpush1.xpose.msra.mxu0 0.0
      %3123 = vmatprep.subr.mxu0 0.0
      %3124 = vmatpush1.xpose.msra.mxu0 0.0
      %3125 = vmatprep.subr.mxu0 0.0
      %3126 = vmatpush1.xpose.msra.mxu0 0.0
      %3127 = vmatprep.subr.mxu0 0.0
      %3128 = vmatpush1.xpose.msra.mxu0 0.0
      %3129 = vmatprep.subr.mxu0 0.0
      %3130 = vmatpush1.xpose.msra.mxu0 0.0
      %3131 = vmatprep.subr.mxu0 0.0
      %3132 = vmatpush1.xpose.msra.mxu0 0.0
      %3133 = vmatprep.subr.mxu0 0.0
      %3134 = vmatpush1.xpose.msra.mxu0 0.0
      %3135 = vmatprep.subr.mxu0 0.0
      %3136 = vmatpush1.xpose.msra.mxu0 0.0
      %3137 = vmatprep.subr.mxu0 0.0
      %3138 = vmatpush1.xpose.msra.mxu0 0.0
      %3139 = vmatprep.subr.mxu0 0.0
      %3140 = vmatpush1.xpose.msra.mxu0 0.0
      %3141 = vmatprep.mubr.f32.mxu0 0.0
      %3142 = vmatmul.mubr.f32.gmra.mrb[0].mxu0 %v3073
      %v3143 = vpop.f32.mrb[0].mxu0
      %v3144 = vadd.f32 0.0, %v3143
      %v3145 = vpop.f32.mrb[0].mxu0
      %3146 = vdwg.mxu0
      %v3147 = vmul.f32 %v3144, 0.35355338
      %v3148 = vadd.f32 %v3147, %v2979
      %v3149 = vsel %vm1311, %v3148, -inf
      %3150 = vmax.xlane.f32.xlu0 %v3149
      %v3151 = vpop.xlane.xlu0 %3150
      %v3152 = vsub.f32 %v3148, %v3151
      %v3153 = vmul.f32 %v3152, 1.442695
      %v3154 = vpow.pop %v3153
      %v3155 = vsel %vm1311, %v3154, 0.0
      %3156 = vadd.xlane.f32.xlu0 %v3155
      %v3157 = vpop.xlane.xlu0 %3156
      %v3158 = vrcp.pop %v3157
      %v3159 = vmul.f32 %v3154, %v3158
      %3160 = vrot.lane.b32.xlu0 %v2893, 88
      %v3161 = vpop.permute.xlu0 %3160
      %v3164 = vsel %vm1311, %v3159, 0
      %3166 = vmatprep.subr.mxu0 0.0
      %3167 = vmatpush1.msra.mxu0 %v3161
      %3168 = vmatprep.subr.mxu0 0.0
      %3169 = vmatpush1.msra.mxu0 0.0
      %3170 = vmatprep.subr.mxu0 0.0
      %3171 = vmatpush1.msra.mxu0 0.0
      %3172 = vmatprep.subr.mxu0 0.0
      %3173 = vmatpush1.msra.mxu0 0.0
      %3174 = vmatprep.subr.mxu0 0.0
      %3175 = vmatpush1.msra.mxu0 0.0
      %3176 = vmatprep.subr.mxu0 0.0
      %3177 = vmatpush1.msra.mxu0 0.0
      %3178 = vmatprep.subr.mxu0 0.0
      %3179 = vmatpush1.msra.mxu0 0.0
      %3180 = vmatprep.subr.mxu0 0.0
      %3181 = vmatpush1.msra.mxu0 0.0
      %3182 = vmatprep.subr.mxu0 0.0
      %3183 = vmatpush1.msra.mxu0 0.0
      %3184 = vmatprep.subr.mxu0 0.0
      %3185 = vmatpush1.msra.mxu0 0.0
      %3186 = vmatprep.subr.mxu0 0.0
      %3187 = vmatpush1.msra.mxu0 0.0
      %3188 = vmatprep.subr.mxu0 0.0
      %3189 = vmatpush1.msra.mxu0 0.0
      %3190 = vmatprep.subr.mxu0 0.0
      %3191 = vmatpush1.msra.mxu0 0.0
      %3192 = vmatprep.subr.mxu0 0.0
      %3193 = vmatpush1.msra.mxu0 0.0
      %3194 = vmatprep.subr.mxu0 0.0
      %3195 = vmatpush1.msra.mxu0 0.0
      %3196 = vmatprep.subr.mxu0 0.0
      %3197 = vmatpush1.msra.mxu0 0.0
      %3198 = vmatprep.subr.mxu0 0.0
      %3199 = vmatpush1.msra.mxu0 0.0
      %3200 = vmatprep.subr.mxu0 0.0
      %3201 = vmatpush1.msra.mxu0 0.0
      %3202 = vmatprep.subr.mxu0 0.0
      %3203 = vmatpush1.msra.mxu0 0.0
      %3204 = vmatprep.subr.mxu0 0.0
      %3205 = vmatpush1.msra.mxu0 0.0
      %3206 = vmatprep.subr.mxu0 0.0
      %3207 = vmatpush1.msra.mxu0 0.0
      %3208 = vmatprep.subr.mxu0 0.0
      %3209 = vmatpush1.msra.mxu0 0.0
      %3210 = vmatprep.subr.mxu0 0.0
      %3211 = vmatpush1.msra.mxu0 0.0
      %3212 = vmatprep.subr.mxu0 0.0
      %3213 = vmatpush1.msra.mxu0 0.0
      %3214 = vmatprep.subr.mxu0 0.0
      %3215 = vmatpush1.msra.mxu0 0.0
      %3216 = vmatprep.subr.mxu0 0.0
      %3217 = vmatpush1.msra.mxu0 0.0
      %3218 = vmatprep.subr.mxu0 0.0
      %3219 = vmatpush1.msra.mxu0 0.0
      %3220 = vmatprep.subr.mxu0 0.0
      %3221 = vmatpush1.msra.mxu0 0.0
      %3222 = vmatprep.subr.mxu0 0.0
      %3223 = vmatpush1.msra.mxu0 0.0
      %3224 = vmatprep.subr.mxu0 0.0
      %3225 = vmatpush1.msra.mxu0 0.0
      %3226 = vmatprep.subr.mxu0 0.0
      %3227 = vmatpush1.msra.mxu0 0.0
      %3228 = vmatprep.subr.mxu0 0.0
      %3229 = vmatpush1.msra.mxu0 0.0
      %3230 = vmatprep.mubr.f32.mxu0 0.0
      %3231 = vmatmul.mubr.f32.gmra.mrb[0].mxu0 %v3164
      %v3232 = vpop.f32.mrb[0].mxu0
      %v3233 = vadd.f32 0.0, %v3232
      %v3234 = vpop.f32.mrb[0].mxu0
      %3235 = vdwg.mxu0
      %v3237 = vsel %vm1311, %v3233, 0
      %3239 = vmatprep.subr.mxu0 0.0
      %3240 = vmatpush1.msra.mxu0 %v2897
      %3241 = vmatprep.subr.mxu0 0.0
      %3242 = vmatpush1.msra.mxu0 0.0
      %3243 = vmatprep.subr.mxu0 0.0
      %3244 = vmatpush1.msra.mxu0 0.0
      %3245 = vmatprep.subr.mxu0 0.0
      %3246 = vmatpush1.msra.mxu0 0.0
      %3247 = vmatprep.subr.mxu0 0.0
      %3248 = vmatpush1.msra.mxu0 0.0
      %3249 = vmatprep.subr.mxu0 0.0
      %3250 = vmatpush1.msra.mxu0 0.0
      %3251 = vmatprep.subr.mxu0 0.0
      %3252 = vmatpush1.msra.mxu0 0.0
      %3253 = vmatprep.subr.mxu0 0.0
      %3254 = vmatpush1.msra.mxu0 0.0
      %3255 = vmatprep.subr.mxu0 0.0
      %3256 = vmatpush1.msra.mxu0 0.0
      %3257 = vmatprep.subr.mxu0 0.0
      %3258 = vmatpush1.msra.mxu0 0.0
      %3259 = vmatprep.subr.mxu0 0.0
      %3260 = vmatpush1.msra.mxu0 0.0
      %3261 = vmatprep.subr.mxu0 0.0
      %3262 = vmatpush1.msra.mxu0 0.0
      %3263 = vmatprep.subr.mxu0 0.0
      %3264 = vmatpush1.msra.mxu0 0.0
      %3265 = vmatprep.subr.mxu0 0.0
      %3266 = vmatpush1.msra.mxu0 0.0
      %3267 = vmatprep.subr.mxu0 0.0
      %3268 = vmatpush1.msra.mxu0 0.0
      %3269 = vmatprep.subr.mxu0 0.0
      %3270 = vmatpush1.msra.mxu0 0.0
      %3271 = vmatprep.subr.mxu0 0.0
      %3272 = vmatpush1.msra.mxu0 0.0
      %3273 = vmatprep.subr.mxu0 0.0
      %3274 = vmatpush1.msra.mxu0 0.0
      %3275 = vmatprep.subr.mxu0 0.0
      %3276 = vmatpush1.msra.mxu0 0.0
      %3277 = vmatprep.subr.mxu0 0.0
      %3278 = vmatpush1.msra.mxu0 0.0
      %3279 = vmatprep.subr.mxu0 0.0
      %3280 = vmatpush1.msra.mxu0 0.0
      %3281 = vmatprep.subr.mxu0 0.0
      %3282 = vmatpush1.msra.mxu0 0.0
      %3283 = vmatprep.subr.mxu0 0.0
      %3284 = vmatpush1.msra.mxu0 0.0
      %3285 = vmatprep.subr.mxu0 0.0
      %3286 = vmatpush1.msra.mxu0 0.0
      %3287 = vmatprep.subr.mxu0 0.0
      %3288 = vmatpush1.msra.mxu0 0.0
      %3289 = vmatprep.subr.mxu0 0.0
      %3290 = vmatpush1.msra.mxu0 0.0
      %3291 = vmatprep.subr.mxu0 0.0
      %3292 = vmatpush1.msra.mxu0 0.0
      %3293 = vmatprep.subr.mxu0 0.0
      %3294 = vmatpush1.msra.mxu0 0.0
      %3295 = vmatprep.subr.mxu0 0.0
      %3296 = vmatpush1.msra.mxu0 0.0
      %3297 = vmatprep.subr.mxu0 0.0
      %3298 = vmatpush1.msra.mxu0 0.0
      %3299 = vmatprep.subr.mxu0 0.0
      %3300 = vmatpush1.msra.mxu0 0.0
      %3301 = vmatprep.subr.mxu0 0.0
      %3302 = vmatpush1.msra.mxu0 0.0
      %3303 = vmatprep.mubr.f32.mxu0 0.0
      %3304 = vmatmul.mubr.f32.gmra.mrb[0].mxu0 %v3237
      %v3305 = vpop.f32.mrb[0].mxu0
      %v3306 = vadd.f32 0.0, %v3305
      %v3307 = vpop.f32.mrb[0].mxu0
      %3308 = vdwg.mxu0
      %v3310 = vsel %vm1311, %v3066, 0
      %3312 = vmatprep.subr.mxu0 0.0
      %3313 = vmatpush1.msra.mxu0 %v2896
      %3314 = vmatprep.subr.mxu0 0.0
      %3315 = vmatpush1.msra.mxu0 0.0
      %3316 = vmatprep.subr.mxu0 0.0
      %3317 = vmatpush1.msra.mxu0 0.0
      %3318 = vmatprep.subr.mxu0 0.0
      %3319 = vmatpush1.msra.mxu0 0.0
      %3320 = vmatprep.subr.mxu0 0.0
      %3321 = vmatpush1.msra.mxu0 0.0
      %3322 = vmatprep.subr.mxu0 0.0
      %3323 = vmatpush1.msra.mxu0 0.0
      %3324 = vmatprep.subr.mxu0 0.0
      %3325 = vmatpush1.msra.mxu0 0.0
      %3326 = vmatprep.subr.mxu0 0.0
      %3327 = vmatpush1.msra.mxu0 0.0
      %3328 = vmatprep.subr.mxu0 0.0
      %3329 = vmatpush1.msra.mxu0 0.0
      %3330 = vmatprep.subr.mxu0 0.0
      %3331 = vmatpush1.msra.mxu0 0.0
      %3332 = vmatprep.subr.mxu0 0.0
      %3333 = vmatpush1.msra.mxu0 0.0
      %3334 = vmatprep.subr.mxu0 0.0
      %3335 = vmatpush1.msra.mxu0 0.0
      %3336 = vmatprep.subr.mxu0 0.0
      %3337 = vmatpush1.msra.mxu0 0.0
      %3338 = vmatprep.subr.mxu0 0.0
      %3339 = vmatpush1.msra.mxu0 0.0
      %3340 = vmatprep.subr.mxu0 0.0
      %3341 = vmatpush1.msra.mxu0 0.0
      %3342 = vmatprep.subr.mxu0 0.0
      %3343 = vmatpush1.msra.mxu0 0.0
      %3344 = vmatprep.subr.mxu0 0.0
      %3345 = vmatpush1.msra.mxu0 0.0
      %3346 = vmatprep.subr.mxu0 0.0
      %3347 = vmatpush1.msra.mxu0 0.0
      %3348 = vmatprep.subr.mxu0 0.0
      %3349 = vmatpush1.msra.mxu0 0.0
      %3350 = vmatprep.subr.mxu0 0.0
      %3351 = vmatpush1.msra.mxu0 0.0
      %3352 = vmatprep.subr.mxu0 0.0
      %3353 = vmatpush1.msra.mxu0 0.0
      %3354 = vmatprep.subr.mxu0 0.0
      %3355 = vmatpush1.msra.mxu0 0.0
      %3356 = vmatprep.subr.mxu0 0.0
      %3357 = vmatpush1.msra.mxu0 0.0
      %3358 = vmatprep.subr.mxu0 0.0
      %3359 = vmatpush1.msra.mxu0 0.0
      %3360 = vmatprep.subr.mxu0 0.0
      %3361 = vmatpush1.msra.mxu0 0.0
      %3362 = vmatprep.subr.mxu0 0.0
      %3363 = vmatpush1.msra.mxu0 0.0
      %3364 = vmatprep.subr.mxu0 0.0
      %3365 = vmatpush1.msra.mxu0 0.0
      %3366 = vmatprep.subr.mxu0 0.0
      %3367 = vmatpush1.msra.mxu0 0.0
      %3368 = vmatprep.subr.mxu0 0.0
      %3369 = vmatpush1.msra.mxu0 0.0
      %3370 = vmatprep.subr.mxu0 0.0
      %3371 = vmatpush1.msra.mxu0 0.0
      %3372 = vmatprep.subr.mxu0 0.0
      %3373 = vmatpush1.msra.mxu0 0.0
      %3374 = vmatprep.subr.mxu0 0.0
      %3375 = vmatpush1.msra.mxu0 0.0
      %3376 = vmatprep.mubr.f32.mxu0 0.0
      %3377 = vmatmul.mubr.f32.gmra.mrb[0].mxu0 %v3310
      %v3378 = vpop.f32.mrb[0].mxu0
      %v3379 = vadd.f32 %v3306, %v3378
      %v3380 = vpop.f32.mrb[0].mxu0
      %3381 = vdwg.mxu0
      %3382 = vrot.lane.b32.xlu0 %v2809, 112
      %v3383 = vpop.permute.xlu0 %3382
      %3384 = vrot.lane.b32.xlu0 %v2893, 112
      %v3385 = vpop.permute.xlu0 %3384
      %v3386 = vsel %vm1311, %v3383, 0
      %v3388 = vsel %vm1311, %v3385, 0
      %3390 = vmatprep.subr.mxu0 0.0
      %3391 = vmatpush1.xpose.msra.mxu0 %v3388
      %3392 = vmatprep.subr.mxu0 0.0
      %3393 = vmatpush1.xpose.msra.mxu0 0.0
      %3394 = vmatprep.subr.mxu0 0.0
      %3395 = vmatpush1.xpose.msra.mxu0 0.0
      %3396 = vmatprep.subr.mxu0 0.0
      %3397 = vmatpush1.xpose.msra.mxu0 0.0
      %3398 = vmatprep.subr.mxu0 0.0
      %3399 = vmatpush1.xpose.msra.mxu0 0.0
      %3400 = vmatprep.subr.mxu0 0.0
      %3401 = vmatpush1.xpose.msra.mxu0 0.0
      %3402 = vmatprep.subr.mxu0 0.0
      %3403 = vmatpush1.xpose.msra.mxu0 0.0
      %3404 = vmatprep.subr.mxu0 0.0
      %3405 = vmatpush1.xpose.msra.mxu0 0.0
      %3406 = vmatprep.subr.mxu0 0.0
      %3407 = vmatpush1.xpose.msra.mxu0 0.0
      %3408 = vmatprep.subr.mxu0 0.0
      %3409 = vmatpush1.xpose.msra.mxu0 0.0
      %3410 = vmatprep.subr.mxu0 0.0
      %3411 = vmatpush1.xpose.msra.mxu0 0.0
      %3412 = vmatprep.subr.mxu0 0.0
      %3413 = vmatpush1.xpose.msra.mxu0 0.0
      %3414 = vmatprep.subr.mxu0 0.0
      %3415 = vmatpush1.xpose.msra.mxu0 0.0
      %3416 = vmatprep.subr.mxu0 0.0
      %3417 = vmatpush1.xpose.msra.mxu0 0.0
      %3418 = vmatprep.subr.mxu0 0.0
      %3419 = vmatpush1.xpose.msra.mxu0 0.0
      %3420 = vmatprep.subr.mxu0 0.0
      %3421 = vmatpush1.xpose.msra.mxu0 0.0
      %3422 = vmatprep.subr.mxu0 0.0
      %3423 = vmatpush1.xpose.msra.mxu0 0.0
      %3424 = vmatprep.subr.mxu0 0.0
      %3425 = vmatpush1.xpose.msra.mxu0 0.0
      %3426 = vmatprep.subr.mxu0 0.0
      %3427 = vmatpush1.xpose.msra.mxu0 0.0
      %3428 = vmatprep.subr.mxu0 0.0
      %3429 = vmatpush1.xpose.msra.mxu0 0.0
      %3430 = vmatprep.subr.mxu0 0.0
      %3431 = vmatpush1.xpose.msra.mxu0 0.0
      %3432 = vmatprep.subr.mxu0 0.0
      %3433 = vmatpush1.xpose.msra.mxu0 0.0
      %3434 = vmatprep.subr.mxu0 0.0
      %3435 = vmatpush1.xpose.msra.mxu0 0.0
      %3436 = vmatprep.subr.mxu0 0.0
      %3437 = vmatpush1.xpose.msra.mxu0 0.0
      %3438 = vmatprep.subr.mxu0 0.0
      %3439 = vmatpush1.xpose.msra.mxu0 0.0
      %3440 = vmatprep.subr.mxu0 0.0
      %3441 = vmatpush1.xpose.msra.mxu0 0.0
      %3442 = vmatprep.subr.mxu0 0.0
      %3443 = vmatpush1.xpose.msra.mxu0 0.0
      %3444 = vmatprep.subr.mxu0 0.0
      %3445 = vmatpush1.xpose.msra.mxu0 0.0
      %3446 = vmatprep.subr.mxu0 0.0
      %3447 = vmatpush1.xpose.msra.mxu0 0.0
      %3448 = vmatprep.subr.mxu0 0.0
      %3449 = vmatpush1.xpose.msra.mxu0 0.0
      %3450 = vmatprep.subr.mxu0 0.0
      %3451 = vmatpush1.xpose.msra.mxu0 0.0
      %3452 = vmatprep.subr.mxu0 0.0
      %3453 = vmatpush1.xpose.msra.mxu0 0.0
      %3454 = vmatprep.mubr.f32.mxu0 0.0
      %3455 = vmatmul.mubr.f32.gmra.mrb[0].mxu0 %v3386
      %v3456 = vpop.f32.mrb[0].mxu0
      %v3457 = vadd.f32 0.0, %v3456
      %v3458 = vpop.f32.mrb[0].mxu0
      %3459 = vdwg.mxu0
      %v3460 = vmul.f32 %v3457, 0.35355338
      %v3461 = vadd.f32 %v3460, %v2979
      %v3462 = vsel %vm1311, %v3461, -inf
      %3463 = vmax.xlane.f32.xlu0 %v3462
      %v3464 = vpop.xlane.xlu0 %3463
      %v3465 = vsub.f32 %v3461, %v3464
      %v3466 = vmul.f32 %v3465, 1.442695
      %v3467 = vpow.pop %v3466
      %v3468 = vsel %vm1311, %v3467, 0.0
      %3469 = vadd.xlane.f32.xlu0 %v3468
      %v3470 = vpop.xlane.xlu0 %3469
      %v3471 = vrcp.pop %v3470
      %v3472 = vmul.f32 %v3467, %v3471
      %3473 = vrot.lane.b32.xlu0 %v2893, 80
      %v3474 = vpop.permute.xlu0 %3473
      %v3477 = vsel %vm1311, %v3472, 0
      %3479 = vmatprep.subr.mxu0 0.0
      %3480 = vmatpush1.msra.mxu0 %v3474
      %3481 = vmatprep.subr.mxu0 0.0
      %3482 = vmatpush1.msra.mxu0 0.0
      %3483 = vmatprep.subr.mxu0 0.0
      %3484 = vmatpush1.msra.mxu0 0.0
      %3485 = vmatprep.subr.mxu0 0.0
      %3486 = vmatpush1.msra.mxu0 0.0
      %3487 = vmatprep.subr.mxu0 0.0
      %3488 = vmatpush1.msra.mxu0 0.0
      %3489 = vmatprep.subr.mxu0 0.0
      %3490 = vmatpush1.msra.mxu0 0.0
      %3491 = vmatprep.subr.mxu0 0.0
      %3492 = vmatpush1.msra.mxu0 0.0
      %3493 = vmatprep.subr.mxu0 0.0
      %3494 = vmatpush1.msra.mxu0 0.0
      %3495 = vmatprep.subr.mxu0 0.0
      %3496 = vmatpush1.msra.mxu0 0.0
      %3497 = vmatprep.subr.mxu0 0.0
      %3498 = vmatpush1.msra.mxu0 0.0
      %3499 = vmatprep.subr.mxu0 0.0
      %3500 = vmatpush1.msra.mxu0 0.0
      %3501 = vmatprep.subr.mxu0 0.0
      %3502 = vmatpush1.msra.mxu0 0.0
      %3503 = vmatprep.subr.mxu0 0.0
      %3504 = vmatpush1.msra.mxu0 0.0
      %3505 = vmatprep.subr.mxu0 0.0
      %3506 = vmatpush1.msra.mxu0 0.0
      %3507 = vmatprep.subr.mxu0 0.0
      %3508 = vmatpush1.msra.mxu0 0.0
      %3509 = vmatprep.subr.mxu0 0.0
      %3510 = vmatpush1.msra.mxu0 0.0
      %3511 = vmatprep.subr.mxu0 0.0
      %3512 = vmatpush1.msra.mxu0 0.0
      %3513 = vmatprep.subr.mxu0 0.0
      %3514 = vmatpush1.msra.mxu0 0.0
      %3515 = vmatprep.subr.mxu0 0.0
      %3516 = vmatpush1.msra.mxu0 0.0
      %3517 = vmatprep.subr.mxu0 0.0
      %3518 = vmatpush1.msra.mxu0 0.0
      %3519 = vmatprep.subr.mxu0 0.0
      %3520 = vmatpush1.msra.mxu0 0.0
      %3521 = vmatprep.subr.mxu0 0.0
      %3522 = vmatpush1.msra.mxu0 0.0
      %3523 = vmatprep.subr.mxu0 0.0
      %3524 = vmatpush1.msra.mxu0 0.0
      %3525 = vmatprep.subr.mxu0 0.0
      %3526 = vmatpush1.msra.mxu0 0.0
      %3527 = vmatprep.subr.mxu0 0.0
      %3528 = vmatpush1.msra.mxu0 0.0
      %3529 = vmatprep.subr.mxu0 0.0
      %3530 = vmatpush1.msra.mxu0 0.0
      %3531 = vmatprep.subr.mxu0 0.0
      %3532 = vmatpush1.msra.mxu0 0.0
      %3533 = vmatprep.subr.mxu0 0.0
      %3534 = vmatpush1.msra.mxu0 0.0
      %3535 = vmatprep.subr.mxu0 0.0
      %3536 = vmatpush1.msra.mxu0 0.0
      %3537 = vmatprep.subr.mxu0 0.0
      %3538 = vmatpush1.msra.mxu0 0.0
      %3539 = vmatprep.subr.mxu0 0.0
      %3540 = vmatpush1.msra.mxu0 0.0
      %3541 = vmatprep.subr.mxu0 0.0
      %3542 = vmatpush1.msra.mxu0 0.0
      %3543 = vmatprep.mubr.f32.mxu0 0.0
      %3544 = vmatmul.mubr.f32.gmra.mrb[0].mxu0 %v3477
      %v3545 = vpop.f32.mrb[0].mxu0
      %v3546 = vadd.f32 0.0, %v3545
      %v3547 = vpop.f32.mrb[0].mxu0
      %3548 = vdwg.mxu0
      %v3550 = vsel %vm1311, %v3546, 0
      %3552 = vmatprep.subr.mxu0 0.0
      %3553 = vmatpush1.msra.mxu0 %v2898
      %3554 = vmatprep.subr.mxu0 0.0
      %3555 = vmatpush1.msra.mxu0 0.0
      %3556 = vmatprep.subr.mxu0 0.0
      %3557 = vmatpush1.msra.mxu0 0.0
      %3558 = vmatprep.subr.mxu0 0.0
      %3559 = vmatpush1.msra.mxu0 0.0
      %3560 = vmatprep.subr.mxu0 0.0
      %3561 = vmatpush1.msra.mxu0 0.0
      %3562 = vmatprep.subr.mxu0 0.0
      %3563 = vmatpush1.msra.mxu0 0.0
      %3564 = vmatprep.subr.mxu0 0.0
      %3565 = vmatpush1.msra.mxu0 0.0
      %3566 = vmatprep.subr.mxu0 0.0
      %3567 = vmatpush1.msra.mxu0 0.0
      %3568 = vmatprep.subr.mxu0 0.0
      %3569 = vmatpush1.msra.mxu0 0.0
      %3570 = vmatprep.subr.mxu0 0.0
      %3571 = vmatpush1.msra.mxu0 0.0
      %3572 = vmatprep.subr.mxu0 0.0
      %3573 = vmatpush1.msra.mxu0 0.0
      %3574 = vmatprep.subr.mxu0 0.0
      %3575 = vmatpush1.msra.mxu0 0.0
      %3576 = vmatprep.subr.mxu0 0.0
      %3577 = vmatpush1.msra.mxu0 0.0
      %3578 = vmatprep.subr.mxu0 0.0
      %3579 = vmatpush1.msra.mxu0 0.0
      %3580 = vmatprep.subr.mxu0 0.0
      %3581 = vmatpush1.msra.mxu0 0.0
      %3582 = vmatprep.subr.mxu0 0.0
      %3583 = vmatpush1.msra.mxu0 0.0
      %3584 = vmatprep.subr.mxu0 0.0
      %3585 = vmatpush1.msra.mxu0 0.0
      %3586 = vmatprep.subr.mxu0 0.0
      %3587 = vmatpush1.msra.mxu0 0.0
      %3588 = vmatprep.subr.mxu0 0.0
      %3589 = vmatpush1.msra.mxu0 0.0
      %3590 = vmatprep.subr.mxu0 0.0
      %3591 = vmatpush1.msra.mxu0 0.0
      %3592 = vmatprep.subr.mxu0 0.0
      %3593 = vmatpush1.msra.mxu0 0.0
      %3594 = vmatprep.subr.mxu0 0.0
      %3595 = vmatpush1.msra.mxu0 0.0
      %3596 = vmatprep.subr.mxu0 0.0
      %3597 = vmatpush1.msra.mxu0 0.0
      %3598 = vmatprep.subr.mxu0 0.0
      %3599 = vmatpush1.msra.mxu0 0.0
      %3600 = vmatprep.subr.mxu0 0.0
      %3601 = vmatpush1.msra.mxu0 0.0
      %3602 = vmatprep.subr.mxu0 0.0
      %3603 = vmatpush1.msra.mxu0 0.0
      %3604 = vmatprep.subr.mxu0 0.0
      %3605 = vmatpush1.msra.mxu0 0.0
      %3606 = vmatprep.subr.mxu0 0.0
      %3607 = vmatpush1.msra.mxu0 0.0
      %3608 = vmatprep.subr.mxu0 0.0
      %3609 = vmatpush1.msra.mxu0 0.0
      %3610 = vmatprep.subr.mxu0 0.0
      %3611 = vmatpush1.msra.mxu0 0.0
      %3612 = vmatprep.subr.mxu0 0.0
      %3613 = vmatpush1.msra.mxu0 0.0
      %3614 = vmatprep.subr.mxu0 0.0
      %3615 = vmatpush1.msra.mxu0 0.0
      %3616 = vmatprep.mubr.f32.mxu0 0.0
      %3617 = vmatmul.mubr.f32.gmra.mrb[0].mxu0 %v3550
      %v3618 = vpop.f32.mrb[0].mxu0
      %v3619 = vadd.f32 0.0, %v3618
      %v3620 = vpop.f32.mrb[0].mxu0
      %3621 = vdwg.mxu0
      %v3622 = vadd.f32 %v3379, %v3619
      %3623 = vrot.lane.b32.xlu0 %v2809, 104
      %v3624 = vpop.permute.xlu0 %3623
      %3625 = vrot.lane.b32.xlu0 %v2893, 104
      %v3626 = vpop.permute.xlu0 %3625
      %v3627 = vsel %vm1311, %v3624, 0
      %v3629 = vsel %vm1311, %v3626, 0
      %3631 = vmatprep.subr.mxu0 0.0
      %3632 = vmatpush1.xpose.msra.mxu0 %v3629
      %3633 = vmatprep.subr.mxu0 0.0
      %3634 = vmatpush1.xpose.msra.mxu0 0.0
      %3635 = vmatprep.subr.mxu0 0.0
      %3636 = vmatpush1.xpose.msra.mxu0 0.0
      %3637 = vmatprep.subr.mxu0 0.0
      %3638 = vmatpush1.xpose.msra.mxu0 0.0
      %3639 = vmatprep.subr.mxu0 0.0
      %3640 = vmatpush1.xpose.msra.mxu0 0.0
      %3641 = vmatprep.subr.mxu0 0.0
      %3642 = vmatpush1.xpose.msra.mxu0 0.0
      %3643 = vmatprep.subr.mxu0 0.0
      %3644 = vmatpush1.xpose.msra.mxu0 0.0
      %3645 = vmatprep.subr.mxu0 0.0
      %3646 = vmatpush1.xpose.msra.mxu0 0.0
      %3647 = vmatprep.subr.mxu0 0.0
      %3648 = vmatpush1.xpose.msra.mxu0 0.0
      %3649 = vmatprep.subr.mxu0 0.0
      %3650 = vmatpush1.xpose.msra.mxu0 0.0
      %3651 = vmatprep.subr.mxu0 0.0
      %3652 = vmatpush1.xpose.msra.mxu0 0.0
      %3653 = vmatprep.subr.mxu0 0.0
      %3654 = vmatpush1.xpose.msra.mxu0 0.0
      %3655 = vmatprep.subr.mxu0 0.0
      %3656 = vmatpush1.xpose.msra.mxu0 0.0
      %3657 = vmatprep.subr.mxu0 0.0
      %3658 = vmatpush1.xpose.msra.mxu0 0.0
      %3659 = vmatprep.subr.mxu0 0.0
      %3660 = vmatpush1.xpose.msra.mxu0 0.0
      %3661 = vmatprep.subr.mxu0 0.0
      %3662 = vmatpush1.xpose.msra.mxu0 0.0
      %3663 = vmatprep.subr.mxu0 0.0
      %3664 = vmatpush1.xpose.msra.mxu0 0.0
      %3665 = vmatprep.subr.mxu0 0.0
      %3666 = vmatpush1.xpose.msra.mxu0 0.0
      %3667 = vmatprep.subr.mxu0 0.0
      %3668 = vmatpush1.xpose.msra.mxu0 0.0
      %3669 = vmatprep.subr.mxu0 0.0
      %3670 = vmatpush1.xpose.msra.mxu0 0.0
      %3671 = vmatprep.subr.mxu0 0.0
      %3672 = vmatpush1.xpose.msra.mxu0 0.0
      %3673 = vmatprep.subr.mxu0 0.0
      %3674 = vmatpush1.xpose.msra.mxu0 0.0
      %3675 = vmatprep.subr.mxu0 0.0
      %3676 = vmatpush1.xpose.msra.mxu0 0.0
      %3677 = vmatprep.subr.mxu0 0.0
      %3678 = vmatpush1.xpose.msra.mxu0 0.0
      %3679 = vmatprep.subr.mxu0 0.0
      %3680 = vmatpush1.xpose.msra.mxu0 0.0
      %3681 = vmatprep.subr.mxu0 0.0
      %3682 = vmatpush1.xpose.msra.mxu0 0.0
      %3683 = vmatprep.subr.mxu0 0.0
      %3684 = vmatpush1.xpose.msra.mxu0 0.0
      %3685 = vmatprep.subr.mxu0 0.0
      %3686 = vmatpush1.xpose.msra.mxu0 0.0
      %3687 = vmatprep.subr.mxu0 0.0
      %3688 = vmatpush1.xpose.msra.mxu0 0.0
      %3689 = vmatprep.subr.mxu0 0.0
      %3690 = vmatpush1.xpose.msra.mxu0 0.0
      %3691 = vmatprep.subr.mxu0 0.0
      %3692 = vmatpush1.xpose.msra.mxu0 0.0
      %3693 = vmatprep.subr.mxu0 0.0
      %3694 = vmatpush1.xpose.msra.mxu0 0.0
      %3695 = vmatprep.mubr.f32.mxu0 0.0
      %3696 = vmatmul.mubr.f32.gmra.mrb[0].mxu0 %v3627
      %v3697 = vpop.f32.mrb[0].mxu0
      %v3698 = vadd.f32 0.0, %v3697
      %v3699 = vpop.f32.mrb[0].mxu0
      %3700 = vdwg.mxu0
      %v3701 = vmul.f32 %v3698, 0.35355338
      %v3702 = vadd.f32 %v3701, %v2979
      %v3703 = vsel %vm1311, %v3702, -inf
      %3704 = vmax.xlane.f32.xlu0 %v3703
      %v3705 = vpop.xlane.xlu0 %3704
      %v3706 = vsub.f32 %v3702, %v3705
      %v3707 = vmul.f32 %v3706, 1.442695
      %v3708 = vpow.pop %v3707
      %v3709 = vsel %vm1311, %v3708, 0.0
      %3710 = vadd.xlane.f32.xlu0 %v3709
      %v3711 = vpop.xlane.xlu0 %3710
      %v3712 = vrcp.pop %v3711
      %v3713 = vmul.f32 %v3708, %v3712
      %3714 = vrot.lane.b32.xlu0 %v2893, 72
      %v3715 = vpop.permute.xlu0 %3714
      %v3718 = vsel %vm1311, %v3713, 0
      %3720 = vmatprep.subr.mxu0 0.0
      %3721 = vmatpush1.msra.mxu0 %v3715
      %3722 = vmatprep.subr.mxu0 0.0
      %3723 = vmatpush1.msra.mxu0 0.0
      %3724 = vmatprep.subr.mxu0 0.0
      %3725 = vmatpush1.msra.mxu0 0.0
      %3726 = vmatprep.subr.mxu0 0.0
      %3727 = vmatpush1.msra.mxu0 0.0
      %3728 = vmatprep.subr.mxu0 0.0
      %3729 = vmatpush1.msra.mxu0 0.0
      %3730 = vmatprep.subr.mxu0 0.0
      %3731 = vmatpush1.msra.mxu0 0.0
      %3732 = vmatprep.subr.mxu0 0.0
      %3733 = vmatpush1.msra.mxu0 0.0
      %3734 = vmatprep.subr.mxu0 0.0
      %3735 = vmatpush1.msra.mxu0 0.0
      %3736 = vmatprep.subr.mxu0 0.0
      %3737 = vmatpush1.msra.mxu0 0.0
      %3738 = vmatprep.subr.mxu0 0.0
      %3739 = vmatpush1.msra.mxu0 0.0
      %3740 = vmatprep.subr.mxu0 0.0
      %3741 = vmatpush1.msra.mxu0 0.0
      %3742 = vmatprep.subr.mxu0 0.0
      %3743 = vmatpush1.msra.mxu0 0.0
      %3744 = vmatprep.subr.mxu0 0.0
      %3745 = vmatpush1.msra.mxu0 0.0
      %3746 = vmatprep.subr.mxu0 0.0
      %3747 = vmatpush1.msra.mxu0 0.0
      %3748 = vmatprep.subr.mxu0 0.0
      %3749 = vmatpush1.msra.mxu0 0.0
      %3750 = vmatprep.subr.mxu0 0.0
      %3751 = vmatpush1.msra.mxu0 0.0
      %3752 = vmatprep.subr.mxu0 0.0
      %3753 = vmatpush1.msra.mxu0 0.0
      %3754 = vmatprep.subr.mxu0 0.0
      %3755 = vmatpush1.msra.mxu0 0.0
      %3756 = vmatprep.subr.mxu0 0.0
      %3757 = vmatpush1.msra.mxu0 0.0
      %3758 = vmatprep.subr.mxu0 0.0
      %3759 = vmatpush1.msra.mxu0 0.0
      %3760 = vmatprep.subr.mxu0 0.0
      %3761 = vmatpush1.msra.mxu0 0.0
      %3762 = vmatprep.subr.mxu0 0.0
      %3763 = vmatpush1.msra.mxu0 0.0
      %3764 = vmatprep.subr.mxu0 0.0
      %3765 = vmatpush1.msra.mxu0 0.0
      %3766 = vmatprep.subr.mxu0 0.0
      %3767 = vmatpush1.msra.mxu0 0.0
      %3768 = vmatprep.subr.mxu0 0.0
      %3769 = vmatpush1.msra.mxu0 0.0
      %3770 = vmatprep.subr.mxu0 0.0
      %3771 = vmatpush1.msra.mxu0 0.0
      %3772 = vmatprep.subr.mxu0 0.0
      %3773 = vmatpush1.msra.mxu0 0.0
      %3774 = vmatprep.subr.mxu0 0.0
      %3775 = vmatpush1.msra.mxu0 0.0
      %3776 = vmatprep.subr.mxu0 0.0
      %3777 = vmatpush1.msra.mxu0 0.0
      %3778 = vmatprep.subr.mxu0 0.0
      %3779 = vmatpush1.msra.mxu0 0.0
      %3780 = vmatprep.subr.mxu0 0.0
      %3781 = vmatpush1.msra.mxu0 0.0
      %3782 = vmatprep.subr.mxu0 0.0
      %3783 = vmatpush1.msra.mxu0 0.0
      %3784 = vmatprep.mubr.f32.mxu0 0.0
      %3785 = vmatmul.mubr.f32.gmra.mrb[0].mxu0 %v3718
      %v3786 = vpop.f32.mrb[0].mxu0
      %v3787 = vadd.f32 0.0, %v3786
      %v3788 = vpop.f32.mrb[0].mxu0
      %3789 = vdwg.mxu0
      %v3791 = vsel %vm1311, %v3787, 0
      %3793 = vmatprep.subr.mxu0 0.0
      %3794 = vmatpush1.msra.mxu0 %v2899
      %3795 = vmatprep.subr.mxu0 0.0
      %3796 = vmatpush1.msra.mxu0 0.0
      %3797 = vmatprep.subr.mxu0 0.0
      %3798 = vmatpush1.msra.mxu0 0.0
      %3799 = vmatprep.subr.mxu0 0.0
      %3800 = vmatpush1.msra.mxu0 0.0
      %3801 = vmatprep.subr.mxu0 0.0
      %3802 = vmatpush1.msra.mxu0 0.0
      %3803 = vmatprep.subr.mxu0 0.0
      %3804 = vmatpush1.msra.mxu0 0.0
      %3805 = vmatprep.subr.mxu0 0.0
      %3806 = vmatpush1.msra.mxu0 0.0
      %3807 = vmatprep.subr.mxu0 0.0
      %3808 = vmatpush1.msra.mxu0 0.0
      %3809 = vmatprep.subr.mxu0 0.0
      %3810 = vmatpush1.msra.mxu0 0.0
      %3811 = vmatprep.subr.mxu0 0.0
      %3812 = vmatpush1.msra.mxu0 0.0
      %3813 = vmatprep.subr.mxu0 0.0
      %3814 = vmatpush1.msra.mxu0 0.0
      %3815 = vmatprep.subr.mxu0 0.0
      %3816 = vmatpush1.msra.mxu0 0.0
      %3817 = vmatprep.subr.mxu0 0.0
      %3818 = vmatpush1.msra.mxu0 0.0
      %3819 = vmatprep.subr.mxu0 0.0
      %3820 = vmatpush1.msra.mxu0 0.0
      %3821 = vmatprep.subr.mxu0 0.0
      %3822 = vmatpush1.msra.mxu0 0.0
      %3823 = vmatprep.subr.mxu0 0.0
      %3824 = vmatpush1.msra.mxu0 0.0
      %3825 = vmatprep.subr.mxu0 0.0
      %3826 = vmatpush1.msra.mxu0 0.0
      %3827 = vmatprep.subr.mxu0 0.0
      %3828 = vmatpush1.msra.mxu0 0.0
      %3829 = vmatprep.subr.mxu0 0.0
      %3830 = vmatpush1.msra.mxu0 0.0
      %3831 = vmatprep.subr.mxu0 0.0
      %3832 = vmatpush1.msra.mxu0 0.0
      %3833 = vmatprep.subr.mxu0 0.0
      %3834 = vmatpush1.msra.mxu0 0.0
      %3835 = vmatprep.subr.mxu0 0.0
      %3836 = vmatpush1.msra.mxu0 0.0
      %3837 = vmatprep.subr.mxu0 0.0
      %3838 = vmatpush1.msra.mxu0 0.0
      %3839 = vmatprep.subr.mxu0 0.0
      %3840 = vmatpush1.msra.mxu0 0.0
      %3841 = vmatprep.subr.mxu0 0.0
      %3842 = vmatpush1.msra.mxu0 0.0
      %3843 = vmatprep.subr.mxu0 0.0
      %3844 = vmatpush1.msra.mxu0 0.0
      %3845 = vmatprep.subr.mxu0 0.0
      %3846 = vmatpush1.msra.mxu0 0.0
      %3847 = vmatprep.subr.mxu0 0.0
      %3848 = vmatpush1.msra.mxu0 0.0
      %3849 = vmatprep.subr.mxu0 0.0
      %3850 = vmatpush1.msra.mxu0 0.0
      %3851 = vmatprep.subr.mxu0 0.0
      %3852 = vmatpush1.msra.mxu0 0.0
      %3853 = vmatprep.subr.mxu0 0.0
      %3854 = vmatpush1.msra.mxu0 0.0
      %3855 = vmatprep.subr.mxu0 0.0
      %3856 = vmatpush1.msra.mxu0 0.0
      %3857 = vmatprep.mubr.f32.mxu0 0.0
      %3858 = vmatmul.mubr.f32.gmra.mrb[0].mxu0 %v3791
      %v3859 = vpop.f32.mrb[0].mxu0
      %v3860 = vadd.f32 0.0, %v3859
      %v3861 = vpop.f32.mrb[0].mxu0
      %3862 = vdwg.mxu0
      %v3863 = vadd.f32 %v3622, %v3860
      %v3865 = vlaneseq
      %v3866 = vshrl.u32 %v3865, 7
      %v3867 = vsub.s32 0, %v3866
      %v3868 = vrot.slane %v2900, %v3867
      %v3870 = vadd.f32 %v3863, %v3868
      %v3871 = vadd.f32 %v2726, %v3870
      %v3872 = vsel %vm1168, %v3871, 0.0
      %3873 = vadd.xlane.f32.xlu0 %v3872
      %v3874 = vpop.xlane.xlu0 %3873
      %v3875 = vmul.f32 %v3874, %v1175
      %v3876 = vsub.f32 %v3871, %v3875
      %v3877 = vmul.f32 %v3876, %v3876
      %v3878 = vsel %vm1168, %v3877, 0.0
      %3879 = vadd.xlane.f32.xlu0 %v3878
      %v3880 = vpop.xlane.xlu0 %3879
      %v3881 = vmul.f32 %v3880, %v1175
      %v3882 = vadd.f32 %v3881, 1e-05
      %v3883 = vrsqrt.pop %v3882
      %v3884 = vmul.f32 %v3876, %v3883
      %v3885 = vlaneseq
      %v3886 = vshrl.u32 %v3885, 7
      %v3887 = vsub.s32 4, %v3886
      %v3888 = vrot.slane %v1143, %v3887
      %v3889 = vmul.f32 %v3884, %v3888
      %v3890 = vlaneseq
      %v3891 = vshrl.u32 %v3890, 7
      %v3892 = vsub.s32 4, %v3891
      %v3893 = vrot.slane %v1144, %v3892
      %v3894 = vadd.f32 %v3889, %v3893
      %v3895 = vld [vmem:[%s1132] sm:$0xff]
      %v3896 = vsel %vm1168, %v3895, 0.0
      %3897 = vadd.xlane.f32.xlu0 %v3896
      %v3898 = vpop.xlane.xlu0 %3897
      %v3899 = vmul.f32 %v3898, %v1175
      %v3900 = vsub.f32 %v3895, %v3899
      %v3901 = vmul.f32 %v3900, %v3900
      %v3902 = vsel %vm1168, %v3901, 0.0
      %3903 = vadd.xlane.f32.xlu0 %v3902
      %v3904 = vpop.xlane.xlu0 %3903
      %v3905 = vmul.f32 %v3904, %v1175
      %v3906 = vadd.f32 %v3905, 1e-05
      %v3907 = vrsqrt.pop %v3906
      %v3908 = vmul.f32 %v3900, %v3907
      %v3909 = vlaneseq
      %v3910 = vshrl.u32 %v3909, 7
      %v3911 = vsub.s32 1, %v3910
      %v3912 = vrot.slane %v1143, %v3911
      %v3913 = vmul.f32 %v3908, %v3912
      %v3914 = vlaneseq
      %v3915 = vshrl.u32 %v3914, 7
      %v3916 = vsub.s32 1, %v3915
      %v3917 = vrot.slane %v1144, %v3916
      %v3918 = vadd.f32 %v3913, %v3917
      %vm3919 = vcmp.gt.s32.totalorder %v1152, %v1147
      %v3920 = vsel %vm3919, -1e+09, 0.0
      %v3921 = vld [vmem:[%s41] sm:$0xff]
      %v3922 = vld [vmem:[%s41 + $0x8] sm:$0xff]
      %v3923 = vld [vmem:[%s41 + $0x10] sm:$0xff]
      %v3924 = vld [vmem:[%s41 + $0x18] sm:$0xff]
      %v3925 = vld [vmem:[%s43] sm:$0x1]
      %v3927 = vlaneseq
      %v3928 = vshrl.u32 %v3927, 7
      %v3929 = vsub.s32 0, %v3928
      %v3930 = vrot.slane %v3925, %v3929
      %v3933 = vsel %vm1168, %v3918, 0
      %3935 = vmatprep.subr.mxu0 0.0
      %3936 = vmatpush1.msra.mxu0 %v3921
      %3937 = vmatprep.subr.mxu0 0.0
      %3938 = vmatpush1.msra.mxu0 %v3922
      %3939 = vmatprep.subr.mxu0 0.0
      %3940 = vmatpush1.msra.mxu0 %v3923
      %3941 = vmatprep.subr.mxu0 0.0
      %3942 = vmatpush1.msra.mxu0 %v3924
      %3943 = vmatprep.subr.mxu0 0.0
      %3944 = vmatpush1.msra.mxu0 0.0
      %3945 = vmatprep.subr.mxu0 0.0
      %3946 = vmatpush1.msra.mxu0 0.0
      %3947 = vmatprep.subr.mxu0 0.0
      %3948 = vmatpush1.msra.mxu0 0.0
      %3949 = vmatprep.subr.mxu0 0.0
      %3950 = vmatpush1.msra.mxu0 0.0
      %3951 = vmatprep.subr.mxu0 0.0
      %3952 = vmatpush1.msra.mxu0 0.0
      %3953 = vmatprep.subr.mxu0 0.0
      %3954 = vmatpush1.msra.mxu0 0.0
      %3955 = vmatprep.subr.mxu0 0.0
      %3956 = vmatpush1.msra.mxu0 0.0
      %3957 = vmatprep.subr.mxu0 0.0
      %3958 = vmatpush1.msra.mxu0 0.0
      %3959 = vmatprep.subr.mxu0 0.0
      %3960 = vmatpush1.msra.mxu0 0.0
      %3961 = vmatprep.subr.mxu0 0.0
      %3962 = vmatpush1.msra.mxu0 0.0
      %3963 = vmatprep.subr.mxu0 0.0
      %3964 = vmatpush1.msra.mxu0 0.0
      %3965 = vmatprep.subr.mxu0 0.0
      %3966 = vmatpush1.msra.mxu0 0.0
      %3967 = vmatprep.subr.mxu0 0.0
      %3968 = vmatpush1.msra.mxu0 0.0
      %3969 = vmatprep.subr.mxu0 0.0
      %3970 = vmatpush1.msra.mxu0 0.0
      %3971 = vmatprep.subr.mxu0 0.0
      %3972 = vmatpush1.msra.mxu0 0.0
      %3973 = vmatprep.subr.mxu0 0.0
      %3974 = vmatpush1.msra.mxu0 0.0
      %3975 = vmatprep.subr.mxu0 0.0
      %3976 = vmatpush1.msra.mxu0 0.0
      %3977 = vmatprep.subr.mxu0 0.0
      %3978 = vmatpush1.msra.mxu0 0.0
      %3979 = vmatprep.subr.mxu0 0.0
      %3980 = vmatpush1.msra.mxu0 0.0
      %3981 = vmatprep.subr.mxu0 0.0
      %3982 = vmatpush1.msra.mxu0 0.0
      %3983 = vmatprep.subr.mxu0 0.0
      %3984 = vmatpush1.msra.mxu0 0.0
      %3985 = vmatprep.subr.mxu0 0.0
      %3986 = vmatpush1.msra.mxu0 0.0
      %3987 = vmatprep.subr.mxu0 0.0
      %3988 = vmatpush1.msra.mxu0 0.0
      %3989 = vmatprep.subr.mxu0 0.0
      %3990 = vmatpush1.msra.mxu0 0.0
      %3991 = vmatprep.subr.mxu0 0.0
      %3992 = vmatpush1.msra.mxu0 0.0
      %3993 = vmatprep.subr.mxu0 0.0
      %3994 = vmatpush1.msra.mxu0 0.0
      %3995 = vmatprep.subr.mxu0 0.0
      %3996 = vmatpush1.msra.mxu0 0.0
      %3997 = vmatprep.subr.mxu0 0.0
      %3998 = vmatpush1.msra.mxu0 0.0
      %3999 = vmatprep.mubr.f32.mxu0 0.0
      %4000 = vmatmul.mubr.f32.gmra.mrb[0].mxu0 %v3933
      %v4001 = vpop.f32.mrb[0].mxu0
      %v4002 = vadd.f32 %v3930, %v4001
      %v4003 = vpop.f32.mrb[0].mxu0
      %4004 = vdwg.mxu0
      %v4005 = vld [vmem:[%s45] sm:$0xff]
      %v4006 = vld [vmem:[%s45 + $0x8] sm:$0xff]
      %v4007 = vld [vmem:[%s45 + $0x10] sm:$0xff]
      %v4008 = vld [vmem:[%s45 + $0x18] sm:$0xff]
      %v4009 = vld [vmem:[%s47] sm:$0x1]
      %4011 = vrot.lane.b32.xlu0 %v4002, 96
      %v4012 = vpop.permute.xlu0 %4011
      %v4013 = vsel %vm1311, %v4002, 0
      %v4015 = vsel %vm1311, %v4012, 0
      %4017 = vmatprep.subr.mxu0 0.0
      %4018 = vmatpush1.xpose.msra.mxu0 %v4015
      %4019 = vmatprep.subr.mxu0 0.0
      %4020 = vmatpush1.xpose.msra.mxu0 0.0
      %4021 = vmatprep.subr.mxu0 0.0
      %4022 = vmatpush1.xpose.msra.mxu0 0.0
      %4023 = vmatprep.subr.mxu0 0.0
      %4024 = vmatpush1.xpose.msra.mxu0 0.0
      %4025 = vmatprep.subr.mxu0 0.0
      %4026 = vmatpush1.xpose.msra.mxu0 0.0
      %4027 = vmatprep.subr.mxu0 0.0
      %4028 = vmatpush1.xpose.msra.mxu0 0.0
      %4029 = vmatprep.subr.mxu0 0.0
      %4030 = vmatpush1.xpose.msra.mxu0 0.0
      %4031 = vmatprep.subr.mxu0 0.0
      %4032 = vmatpush1.xpose.msra.mxu0 0.0
      %4033 = vmatprep.subr.mxu0 0.0
      %4034 = vmatpush1.xpose.msra.mxu0 0.0
      %4035 = vmatprep.subr.mxu0 0.0
      %4036 = vmatpush1.xpose.msra.mxu0 0.0
      %4037 = vmatprep.subr.mxu0 0.0
      %4038 = vmatpush1.xpose.msra.mxu0 0.0
      %4039 = vmatprep.subr.mxu0 0.0
      %4040 = vmatpush1.xpose.msra.mxu0 0.0
      %4041 = vmatprep.subr.mxu0 0.0
      %4042 = vmatpush1.xpose.msra.mxu0 0.0
      %4043 = vmatprep.subr.mxu0 0.0
      %4044 = vmatpush1.xpose.msra.mxu0 0.0
      %4045 = vmatprep.subr.mxu0 0.0
      %4046 = vmatpush1.xpose.msra.mxu0 0.0
      %4047 = vmatprep.subr.mxu0 0.0
      %4048 = vmatpush1.xpose.msra.mxu0 0.0
      %4049 = vmatprep.subr.mxu0 0.0
      %4050 = vmatpush1.xpose.msra.mxu0 0.0
      %4051 = vmatprep.subr.mxu0 0.0
      %4052 = vmatpush1.xpose.msra.mxu0 0.0
      %4053 = vmatprep.subr.mxu0 0.0
      %4054 = vmatpush1.xpose.msra.mxu0 0.0
      %4055 = vmatprep.subr.mxu0 0.0
      %4056 = vmatpush1.xpose.msra.mxu0 0.0
      %4057 = vmatprep.subr.mxu0 0.0
      %4058 = vmatpush1.xpose.msra.mxu0 0.0
      %4059 = vmatprep.subr.mxu0 0.0
      %4060 = vmatpush1.xpose.msra.mxu0 0.0
      %4061 = vmatprep.subr.mxu0 0.0
      %4062 = vmatpush1.xpose.msra.mxu0 0.0
      %4063 = vmatprep.subr.mxu0 0.0
      %4064 = vmatpush1.xpose.msra.mxu0 0.0
      %4065 = vmatprep.subr.mxu0 0.0
      %4066 = vmatpush1.xpose.msra.mxu0 0.0
      %4067 = vmatprep.subr.mxu0 0.0
      %4068 = vmatpush1.xpose.msra.mxu0 0.0
      %4069 = vmatprep.subr.mxu0 0.0
      %4070 = vmatpush1.xpose.msra.mxu0 0.0
      %4071 = vmatprep.subr.mxu0 0.0
      %4072 = vmatpush1.xpose.msra.mxu0 0.0
      %4073 = vmatprep.subr.mxu0 0.0
      %4074 = vmatpush1.xpose.msra.mxu0 0.0
      %4075 = vmatprep.subr.mxu0 0.0
      %4076 = vmatpush1.xpose.msra.mxu0 0.0
      %4077 = vmatprep.subr.mxu0 0.0
      %4078 = vmatpush1.xpose.msra.mxu0 0.0
      %4079 = vmatprep.subr.mxu0 0.0
      %4080 = vmatpush1.xpose.msra.mxu0 0.0
      %4081 = vmatprep.mubr.f32.mxu0 0.0
      %4082 = vmatmul.mubr.f32.gmra.mrb[0].mxu0 %v4013
      %v4083 = vpop.f32.mrb[0].mxu0
      %v4084 = vadd.f32 0.0, %v4083
      %v4085 = vpop.f32.mrb[0].mxu0
      %4086 = vdwg.mxu0
      %v4087 = vmul.f32 %v4084, 0.35355338
      %v4088 = vadd.f32 %v4087, %v3920
      %v4089 = vsel %vm1311, %v4088, -inf
      %4090 = vmax.xlane.f32.xlu0 %v4089
      %v4091 = vpop.xlane.xlu0 %4090
      %v4092 = vsub.f32 %v4088, %v4091
      %v4093 = vmul.f32 %v4092, 1.442695
      %v4094 = vpow.pop %v4093
      %v4095 = vsel %vm1311, %v4094, 0.0
      %4096 = vadd.xlane.f32.xlu0 %v4095
      %v4097 = vpop.xlane.xlu0 %4096
      %v4098 = vrcp.pop %v4097
      %v4099 = vmul.f32 %v4094, %v4098
      %4100 = vrot.lane.b32.xlu0 %v4002, 64
      %v4101 = vpop.permute.xlu0 %4100
      %v4104 = vsel %vm1311, %v4099, 0
      %4106 = vmatprep.subr.mxu0 0.0
      %4107 = vmatpush1.msra.mxu0 %v4101
      %4108 = vmatprep.subr.mxu0 0.0
      %4109 = vmatpush1.msra.mxu0 0.0
      %4110 = vmatprep.subr.mxu0 0.0
      %4111 = vmatpush1.msra.mxu0 0.0
      %4112 = vmatprep.subr.mxu0 0.0
      %4113 = vmatpush1.msra.mxu0 0.0
      %4114 = vmatprep.subr.mxu0 0.0
      %4115 = vmatpush1.msra.mxu0 0.0
      %4116 = vmatprep.subr.mxu0 0.0
      %4117 = vmatpush1.msra.mxu0 0.0
      %4118 = vmatprep.subr.mxu0 0.0
      %4119 = vmatpush1.msra.mxu0 0.0
      %4120 = vmatprep.subr.mxu0 0.0
      %4121 = vmatpush1.msra.mxu0 0.0
      %4122 = vmatprep.subr.mxu0 0.0
      %4123 = vmatpush1.msra.mxu0 0.0
      %4124 = vmatprep.subr.mxu0 0.0
      %4125 = vmatpush1.msra.mxu0 0.0
      %4126 = vmatprep.subr.mxu0 0.0
      %4127 = vmatpush1.msra.mxu0 0.0
      %4128 = vmatprep.subr.mxu0 0.0
      %4129 = vmatpush1.msra.mxu0 0.0
      %4130 = vmatprep.subr.mxu0 0.0
      %4131 = vmatpush1.msra.mxu0 0.0
      %4132 = vmatprep.subr.mxu0 0.0
      %4133 = vmatpush1.msra.mxu0 0.0
      %4134 = vmatprep.subr.mxu0 0.0
      %4135 = vmatpush1.msra.mxu0 0.0
      %4136 = vmatprep.subr.mxu0 0.0
      %4137 = vmatpush1.msra.mxu0 0.0
      %4138 = vmatprep.subr.mxu0 0.0
      %4139 = vmatpush1.msra.mxu0 0.0
      %4140 = vmatprep.subr.mxu0 0.0
      %4141 = vmatpush1.msra.mxu0 0.0
      %4142 = vmatprep.subr.mxu0 0.0
      %4143 = vmatpush1.msra.mxu0 0.0
      %4144 = vmatprep.subr.mxu0 0.0
      %4145 = vmatpush1.msra.mxu0 0.0
      %4146 = vmatprep.subr.mxu0 0.0
      %4147 = vmatpush1.msra.mxu0 0.0
      %4148 = vmatprep.subr.mxu0 0.0
      %4149 = vmatpush1.msra.mxu0 0.0
      %4150 = vmatprep.subr.mxu0 0.0
      %4151 = vmatpush1.msra.mxu0 0.0
      %4152 = vmatprep.subr.mxu0 0.0
      %4153 = vmatpush1.msra.mxu0 0.0
      %4154 = vmatprep.subr.mxu0 0.0
      %4155 = vmatpush1.msra.mxu0 0.0
      %4156 = vmatprep.subr.mxu0 0.0
      %4157 = vmatpush1.msra.mxu0 0.0
      %4158 = vmatprep.subr.mxu0 0.0
      %4159 = vmatpush1.msra.mxu0 0.0
      %4160 = vmatprep.subr.mxu0 0.0
      %4161 = vmatpush1.msra.mxu0 0.0
      %4162 = vmatprep.subr.mxu0 0.0
      %4163 = vmatpush1.msra.mxu0 0.0
      %4164 = vmatprep.subr.mxu0 0.0
      %4165 = vmatpush1.msra.mxu0 0.0
      %4166 = vmatprep.subr.mxu0 0.0
      %4167 = vmatpush1.msra.mxu0 0.0
      %4168 = vmatprep.subr.mxu0 0.0
      %4169 = vmatpush1.msra.mxu0 0.0
      %4170 = vmatprep.mubr.f32.mxu0 0.0
      %4171 = vmatmul.mubr.f32.gmra.mrb[0].mxu0 %v4104
      %v4172 = vpop.f32.mrb[0].mxu0
      %v4173 = vadd.f32 0.0, %v4172
      %v4174 = vpop.f32.mrb[0].mxu0
      %4175 = vdwg.mxu0
      %4176 = vrot.lane.b32.xlu0 %v4002, 120
      %v4177 = vpop.permute.xlu0 %4176
      %4178 = vrot.lane.b32.xlu0 %v4002, 88
      %v4179 = vpop.permute.xlu0 %4178
      %v4180 = vsel %vm1311, %v4177, 0
      %v4182 = vsel %vm1311, %v4179, 0
      %4184 = vmatprep.subr.mxu0 0.0
      %4185 = vmatpush1.xpose.msra.mxu0 %v4182
      %4186 = vmatprep.subr.mxu0 0.0
      %4187 = vmatpush1.xpose.msra.mxu0 0.0
      %4188 = vmatprep.subr.mxu0 0.0
      %4189 = vmatpush1.xpose.msra.mxu0 0.0
      %4190 = vmatprep.subr.mxu0 0.0
      %4191 = vmatpush1.xpose.msra.mxu0 0.0
      %4192 = vmatprep.subr.mxu0 0.0
      %4193 = vmatpush1.xpose.msra.mxu0 0.0
      %4194 = vmatprep.subr.mxu0 0.0
      %4195 = vmatpush1.xpose.msra.mxu0 0.0
      %4196 = vmatprep.subr.mxu0 0.0
      %4197 = vmatpush1.xpose.msra.mxu0 0.0
      %4198 = vmatprep.subr.mxu0 0.0
      %4199 = vmatpush1.xpose.msra.mxu0 0.0
      %4200 = vmatprep.subr.mxu0 0.0
      %4201 = vmatpush1.xpose.msra.mxu0 0.0
      %4202 = vmatprep.subr.mxu0 0.0
      %4203 = vmatpush1.xpose.msra.mxu0 0.0
      %4204 = vmatprep.subr.mxu0 0.0
      %4205 = vmatpush1.xpose.msra.mxu0 0.0
      %4206 = vmatprep.subr.mxu0 0.0
      %4207 = vmatpush1.xpose.msra.mxu0 0.0
      %4208 = vmatprep.subr.mxu0 0.0
      %4209 = vmatpush1.xpose.msra.mxu0 0.0
      %4210 = vmatprep.subr.mxu0 0.0
      %4211 = vmatpush1.xpose.msra.mxu0 0.0
      %4212 = vmatprep.subr.mxu0 0.0
      %4213 = vmatpush1.xpose.msra.mxu0 0.0
      %4214 = vmatprep.subr.mxu0 0.0
      %4215 = vmatpush1.xpose.msra.mxu0 0.0
      %4216 = vmatprep.subr.mxu0 0.0
      %4217 = vmatpush1.xpose.msra.mxu0 0.0
      %4218 = vmatprep.subr.mxu0 0.0
      %4219 = vmatpush1.xpose.msra.mxu0 0.0
      %4220 = vmatprep.subr.mxu0 0.0
      %4221 = vmatpush1.xpose.msra.mxu0 0.0
      %4222 = vmatprep.subr.mxu0 0.0
      %4223 = vmatpush1.xpose.msra.mxu0 0.0
      %4224 = vmatprep.subr.mxu0 0.0
      %4225 = vmatpush1.xpose.msra.mxu0 0.0
      %4226 = vmatprep.subr.mxu0 0.0
      %4227 = vmatpush1.xpose.msra.mxu0 0.0
      %4228 = vmatprep.subr.mxu0 0.0
      %4229 = vmatpush1.xpose.msra.mxu0 0.0
      %4230 = vmatprep.subr.mxu0 0.0
      %4231 = vmatpush1.xpose.msra.mxu0 0.0
      %4232 = vmatprep.subr.mxu0 0.0
      %4233 = vmatpush1.xpose.msra.mxu0 0.0
      %4234 = vmatprep.subr.mxu0 0.0
      %4235 = vmatpush1.xpose.msra.mxu0 0.0
      %4236 = vmatprep.subr.mxu0 0.0
      %4237 = vmatpush1.xpose.msra.mxu0 0.0
      %4238 = vmatprep.subr.mxu0 0.0
      %4239 = vmatpush1.xpose.msra.mxu0 0.0
      %4240 = vmatprep.subr.mxu0 0.0
      %4241 = vmatpush1.xpose.msra.mxu0 0.0
      %4242 = vmatprep.subr.mxu0 0.0
      %4243 = vmatpush1.xpose.msra.mxu0 0.0
      %4244 = vmatprep.subr.mxu0 0.0
      %4245 = vmatpush1.xpose.msra.mxu0 0.0
      %4246 = vmatprep.subr.mxu0 0.0
      %4247 = vmatpush1.xpose.msra.mxu0 0.0
      %4248 = vmatprep.mubr.f32.mxu0 0.0
      %4249 = vmatmul.mubr.f32.gmra.mrb[0].mxu0 %v4180
      %v4250 = vpop.f32.mrb[0].mxu0
      %v4251 = vadd.f32 0.0, %v4250
      %v4252 = vpop.f32.mrb[0].mxu0
      %4253 = vdwg.mxu0
      %v4254 = vmul.f32 %v4251, 0.35355338
      %v4255 = vadd.f32 %v4254, %v3920
      %v4256 = vsel %vm1311, %v4255, -inf
      %4257 = vmax.xlane.f32.xlu0 %v4256
      %v4258 = vpop.xlane.xlu0 %4257
      %v4259 = vsub.f32 %v4255, %v4258
      %v4260 = vmul.f32 %v4259, 1.442695
      %v4261 = vpow.pop %v4260
      %v4262 = vsel %vm1311, %v4261, 0.0
      %4263 = vadd.xlane.f32.xlu0 %v4262
      %v4264 = vpop.xlane.xlu0 %4263
      %v4265 = vrcp.pop %v4264
      %v4266 = vmul.f32 %v4261, %v4265
      %4267 = vrot.lane.b32.xlu0 %v4002, 56
      %v4268 = vpop.permute.xlu0 %4267
      %v4271 = vsel %vm1311, %v4266, 0
      %4273 = vmatprep.subr.mxu0 0.0
      %4274 = vmatpush1.msra.mxu0 %v4268
      %4275 = vmatprep.subr.mxu0 0.0
      %4276 = vmatpush1.msra.mxu0 0.0
      %4277 = vmatprep.subr.mxu0 0.0
      %4278 = vmatpush1.msra.mxu0 0.0
      %4279 = vmatprep.subr.mxu0 0.0
      %4280 = vmatpush1.msra.mxu0 0.0
      %4281 = vmatprep.subr.mxu0 0.0
      %4282 = vmatpush1.msra.mxu0 0.0
      %4283 = vmatprep.subr.mxu0 0.0
      %4284 = vmatpush1.msra.mxu0 0.0
      %4285 = vmatprep.subr.mxu0 0.0
      %4286 = vmatpush1.msra.mxu0 0.0
      %4287 = vmatprep.subr.mxu0 0.0
      %4288 = vmatpush1.msra.mxu0 0.0
      %4289 = vmatprep.subr.mxu0 0.0
      %4290 = vmatpush1.msra.mxu0 0.0
      %4291 = vmatprep.subr.mxu0 0.0
      %4292 = vmatpush1.msra.mxu0 0.0
      %4293 = vmatprep.subr.mxu0 0.0
      %4294 = vmatpush1.msra.mxu0 0.0
      %4295 = vmatprep.subr.mxu0 0.0
      %4296 = vmatpush1.msra.mxu0 0.0
      %4297 = vmatprep.subr.mxu0 0.0
      %4298 = vmatpush1.msra.mxu0 0.0
      %4299 = vmatprep.subr.mxu0 0.0
      %4300 = vmatpush1.msra.mxu0 0.0
      %4301 = vmatprep.subr.mxu0 0.0
      %4302 = vmatpush1.msra.mxu0 0.0
      %4303 = vmatprep.subr.mxu0 0.0
      %4304 = vmatpush1.msra.mxu0 0.0
      %4305 = vmatprep.subr.mxu0 0.0
      %4306 = vmatpush1.msra.mxu0 0.0
      %4307 = vmatprep.subr.mxu0 0.0
      %4308 = vmatpush1.msra.mxu0 0.0
      %4309 = vmatprep.subr.mxu0 0.0
      %4310 = vmatpush1.msra.mxu0 0.0
      %4311 = vmatprep.subr.mxu0 0.0
      %4312 = vmatpush1.msra.mxu0 0.0
      %4313 = vmatprep.subr.mxu0 0.0
      %4314 = vmatpush1.msra.mxu0 0.0
      %4315 = vmatprep.subr.mxu0 0.0
      %4316 = vmatpush1.msra.mxu0 0.0
      %4317 = vmatprep.subr.mxu0 0.0
      %4318 = vmatpush1.msra.mxu0 0.0
      %4319 = vmatprep.subr.mxu0 0.0
      %4320 = vmatpush1.msra.mxu0 0.0
      %4321 = vmatprep.subr.mxu0 0.0
      %4322 = vmatpush1.msra.mxu0 0.0
      %4323 = vmatprep.subr.mxu0 0.0
      %4324 = vmatpush1.msra.mxu0 0.0
      %4325 = vmatprep.subr.mxu0 0.0
      %4326 = vmatpush1.msra.mxu0 0.0
      %4327 = vmatprep.subr.mxu0 0.0
      %4328 = vmatpush1.msra.mxu0 0.0
      %4329 = vmatprep.subr.mxu0 0.0
      %4330 = vmatpush1.msra.mxu0 0.0
      %4331 = vmatprep.subr.mxu0 0.0
      %4332 = vmatpush1.msra.mxu0 0.0
      %4333 = vmatprep.subr.mxu0 0.0
      %4334 = vmatpush1.msra.mxu0 0.0
      %4335 = vmatprep.subr.mxu0 0.0
      %4336 = vmatpush1.msra.mxu0 0.0
      %4337 = vmatprep.mubr.f32.mxu0 0.0
      %4338 = vmatmul.mubr.f32.gmra.mrb[0].mxu0 %v4271
      %v4339 = vpop.f32.mrb[0].mxu0
      %v4340 = vadd.f32 0.0, %v4339
      %v4341 = vpop.f32.mrb[0].mxu0
      %4342 = vdwg.mxu0
      %v4344 = vsel %vm1311, %v4340, 0
      %4346 = vmatprep.subr.mxu0 0.0
      %4347 = vmatpush1.msra.mxu0 %v4006
      %4348 = vmatprep.subr.mxu0 0.0
      %4349 = vmatpush1.msra.mxu0 0.0
      %4350 = vmatprep.subr.mxu0 0.0
      %4351 = vmatpush1.msra.mxu0 0.0
      %4352 = vmatprep.subr.mxu0 0.0
      %4353 = vmatpush1.msra.mxu0 0.0
      %4354 = vmatprep.subr.mxu0 0.0
      %4355 = vmatpush1.msra.mxu0 0.0
      %4356 = vmatprep.subr.mxu0 0.0
      %4357 = vmatpush1.msra.mxu0 0.0
      %4358 = vmatprep.subr.mxu0 0.0
      %4359 = vmatpush1.msra.mxu0 0.0
      %4360 = vmatprep.subr.mxu0 0.0
      %4361 = vmatpush1.msra.mxu0 0.0
      %4362 = vmatprep.subr.mxu0 0.0
      %4363 = vmatpush1.msra.mxu0 0.0
      %4364 = vmatprep.subr.mxu0 0.0
      %4365 = vmatpush1.msra.mxu0 0.0
      %4366 = vmatprep.subr.mxu0 0.0
      %4367 = vmatpush1.msra.mxu0 0.0
      %4368 = vmatprep.subr.mxu0 0.0
      %4369 = vmatpush1.msra.mxu0 0.0
      %4370 = vmatprep.subr.mxu0 0.0
      %4371 = vmatpush1.msra.mxu0 0.0
      %4372 = vmatprep.subr.mxu0 0.0
      %4373 = vmatpush1.msra.mxu0 0.0
      %4374 = vmatprep.subr.mxu0 0.0
      %4375 = vmatpush1.msra.mxu0 0.0
      %4376 = vmatprep.subr.mxu0 0.0
      %4377 = vmatpush1.msra.mxu0 0.0
      %4378 = vmatprep.subr.mxu0 0.0
      %4379 = vmatpush1.msra.mxu0 0.0
      %4380 = vmatprep.subr.mxu0 0.0
      %4381 = vmatpush1.msra.mxu0 0.0
      %4382 = vmatprep.subr.mxu0 0.0
      %4383 = vmatpush1.msra.mxu0 0.0
      %4384 = vmatprep.subr.mxu0 0.0
      %4385 = vmatpush1.msra.mxu0 0.0
      %4386 = vmatprep.subr.mxu0 0.0
      %4387 = vmatpush1.msra.mxu0 0.0
      %4388 = vmatprep.subr.mxu0 0.0
      %4389 = vmatpush1.msra.mxu0 0.0
      %4390 = vmatprep.subr.mxu0 0.0
      %4391 = vmatpush1.msra.mxu0 0.0
      %4392 = vmatprep.subr.mxu0 0.0
      %4393 = vmatpush1.msra.mxu0 0.0
      %4394 = vmatprep.subr.mxu0 0.0
      %4395 = vmatpush1.msra.mxu0 0.0
      %4396 = vmatprep.subr.mxu0 0.0
      %4397 = vmatpush1.msra.mxu0 0.0
      %4398 = vmatprep.subr.mxu0 0.0
      %4399 = vmatpush1.msra.mxu0 0.0
      %4400 = vmatprep.subr.mxu0 0.0
      %4401 = vmatpush1.msra.mxu0 0.0
      %4402 = vmatprep.subr.mxu0 0.0
      %4403 = vmatpush1.msra.mxu0 0.0
      %4404 = vmatprep.subr.mxu0 0.0
      %4405 = vmatpush1.msra.mxu0 0.0
      %4406 = vmatprep.subr.mxu0 0.0
      %4407 = vmatpush1.msra.mxu0 0.0
      %4408 = vmatprep.subr.mxu0 0.0
      %4409 = vmatpush1.msra.mxu0 0.0
      %4410 = vmatprep.mubr.f32.mxu0 0.0
      %4411 = vmatmul.mubr.f32.gmra.mrb[0].mxu0 %v4344
      %v4412 = vpop.f32.mrb[0].mxu0
      %v4413 = vadd.f32 0.0, %v4412
      %v4414 = vpop.f32.mrb[0].mxu0
      %4415 = vdwg.mxu0
      %v4417 = vsel %vm1311, %v4173, 0
      %4419 = vmatprep.subr.mxu0 0.0
      %4420 = vmatpush1.msra.mxu0 %v4005
      %4421 = vmatprep.subr.mxu0 0.0
      %4422 = vmatpush1.msra.mxu0 0.0
      %4423 = vmatprep.subr.mxu0 0.0
      %4424 = vmatpush1.msra.mxu0 0.0
      %4425 = vmatprep.subr.mxu0 0.0
      %4426 = vmatpush1.msra.mxu0 0.0
      %4427 = vmatprep.subr.mxu0 0.0
      %4428 = vmatpush1.msra.mxu0 0.0
      %4429 = vmatprep.subr.mxu0 0.0
      %4430 = vmatpush1.msra.mxu0 0.0
      %4431 = vmatprep.subr.mxu0 0.0
      %4432 = vmatpush1.msra.mxu0 0.0
      %4433 = vmatprep.subr.mxu0 0.0
      %4434 = vmatpush1.msra.mxu0 0.0
      %4435 = vmatprep.subr.mxu0 0.0
      %4436 = vmatpush1.msra.mxu0 0.0
      %4437 = vmatprep.subr.mxu0 0.0
      %4438 = vmatpush1.msra.mxu0 0.0
      %4439 = vmatprep.subr.mxu0 0.0
      %4440 = vmatpush1.msra.mxu0 0.0
      %4441 = vmatprep.subr.mxu0 0.0
      %4442 = vmatpush1.msra.mxu0 0.0
      %4443 = vmatprep.subr.mxu0 0.0
      %4444 = vmatpush1.msra.mxu0 0.0
      %4445 = vmatprep.subr.mxu0 0.0
      %4446 = vmatpush1.msra.mxu0 0.0
      %4447 = vmatprep.subr.mxu0 0.0
      %4448 = vmatpush1.msra.mxu0 0.0
      %4449 = vmatprep.subr.mxu0 0.0
      %4450 = vmatpush1.msra.mxu0 0.0
      %4451 = vmatprep.subr.mxu0 0.0
      %4452 = vmatpush1.msra.mxu0 0.0
      %4453 = vmatprep.subr.mxu0 0.0
      %4454 = vmatpush1.msra.mxu0 0.0
      %4455 = vmatprep.subr.mxu0 0.0
      %4456 = vmatpush1.msra.mxu0 0.0
      %4457 = vmatprep.subr.mxu0 0.0
      %4458 = vmatpush1.msra.mxu0 0.0
      %4459 = vmatprep.subr.mxu0 0.0
      %4460 = vmatpush1.msra.mxu0 0.0
      %4461 = vmatprep.subr.mxu0 0.0
      %4462 = vmatpush1.msra.mxu0 0.0
      %4463 = vmatprep.subr.mxu0 0.0
      %4464 = vmatpush1.msra.mxu0 0.0
      %4465 = vmatprep.subr.mxu0 0.0
      %4466 = vmatpush1.msra.mxu0 0.0
      %4467 = vmatprep.subr.mxu0 0.0
      %4468 = vmatpush1.msra.mxu0 0.0
      %4469 = vmatprep.subr.mxu0 0.0
      %4470 = vmatpush1.msra.mxu0 0.0
      %4471 = vmatprep.subr.mxu0 0.0
      %4472 = vmatpush1.msra.mxu0 0.0
      %4473 = vmatprep.subr.mxu0 0.0
      %4474 = vmatpush1.msra.mxu0 0.0
      %4475 = vmatprep.subr.mxu0 0.0
      %4476 = vmatpush1.msra.mxu0 0.0
      %4477 = vmatprep.subr.mxu0 0.0
      %4478 = vmatpush1.msra.mxu0 0.0
      %4479 = vmatprep.subr.mxu0 0.0
      %4480 = vmatpush1.msra.mxu0 0.0
      %4481 = vmatprep.subr.mxu0 0.0
      %4482 = vmatpush1.msra.mxu0 0.0
      %4483 = vmatprep.mubr.f32.mxu0 0.0
      %4484 = vmatmul.mubr.f32.gmra.mrb[0].mxu0 %v4417
      %v4485 = vpop.f32.mrb[0].mxu0
      %v4486 = vadd.f32 %v4413, %v4485
      %v4487 = vpop.f32.mrb[0].mxu0
      %4488 = vdwg.mxu0
      %4489 = vrot.lane.b32.xlu0 %v4002, 112
      %v4490 = vpop.permute.xlu0 %4489
      %4491 = vrot.lane.b32.xlu0 %v4002, 80
      %v4492 = vpop.permute.xlu0 %4491
      %v4493 = vsel %vm1311, %v4490, 0
      %v4495 = vsel %vm1311, %v4492, 0
      %4497 = vmatprep.subr.mxu0 0.0
      %4498 = vmatpush1.xpose.msra.mxu0 %v4495
      %4499 = vmatprep.subr.mxu0 0.0
      %4500 = vmatpush1.xpose.msra.mxu0 0.0
      %4501 = vmatprep.subr.mxu0 0.0
      %4502 = vmatpush1.xpose.msra.mxu0 0.0
      %4503 = vmatprep.subr.mxu0 0.0
      %4504 = vmatpush1.xpose.msra.mxu0 0.0
      %4505 = vmatprep.subr.mxu0 0.0
      %4506 = vmatpush1.xpose.msra.mxu0 0.0
      %4507 = vmatprep.subr.mxu0 0.0
      %4508 = vmatpush1.xpose.msra.mxu0 0.0
      %4509 = vmatprep.subr.mxu0 0.0
      %4510 = vmatpush1.xpose.msra.mxu0 0.0
      %4511 = vmatprep.subr.mxu0 0.0
      %4512 = vmatpush1.xpose.msra.mxu0 0.0
      %4513 = vmatprep.subr.mxu0 0.0
      %4514 = vmatpush1.xpose.msra.mxu0 0.0
      %4515 = vmatprep.subr.mxu0 0.0
      %4516 = vmatpush1.xpose.msra.mxu0 0.0
      %4517 = vmatprep.subr.mxu0 0.0
      %4518 = vmatpush1.xpose.msra.mxu0 0.0
      %4519 = vmatprep.subr.mxu0 0.0
      %4520 = vmatpush1.xpose.msra.mxu0 0.0
      %4521 = vmatprep.subr.mxu0 0.0
      %4522 = vmatpush1.xpose.msra.mxu0 0.0
      %4523 = vmatprep.subr.mxu0 0.0
      %4524 = vmatpush1.xpose.msra.mxu0 0.0
      %4525 = vmatprep.subr.mxu0 0.0
      %4526 = vmatpush1.xpose.msra.mxu0 0.0
      %4527 = vmatprep.subr.mxu0 0.0
      %4528 = vmatpush1.xpose.msra.mxu0 0.0
      %4529 = vmatprep.subr.mxu0 0.0
      %4530 = vmatpush1.xpose.msra.mxu0 0.0
      %4531 = vmatprep.subr.mxu0 0.0
      %4532 = vmatpush1.xpose.msra.mxu0 0.0
      %4533 = vmatprep.subr.mxu0 0.0
      %4534 = vmatpush1.xpose.msra.mxu0 0.0
      %4535 = vmatprep.subr.mxu0 0.0
      %4536 = vmatpush1.xpose.msra.mxu0 0.0
      %4537 = vmatprep.subr.mxu0 0.0
      %4538 = vmatpush1.xpose.msra.mxu0 0.0
      %4539 = vmatprep.subr.mxu0 0.0
      %4540 = vmatpush1.xpose.msra.mxu0 0.0
      %4541 = vmatprep.subr.mxu0 0.0
      %4542 = vmatpush1.xpose.msra.mxu0 0.0
      %4543 = vmatprep.subr.mxu0 0.0
      %4544 = vmatpush1.xpose.msra.mxu0 0.0
      %4545 = vmatprep.subr.mxu0 0.0
      %4546 = vmatpush1.xpose.msra.mxu0 0.0
      %4547 = vmatprep.subr.mxu0 0.0
      %4548 = vmatpush1.xpose.msra.mxu0 0.0
      %4549 = vmatprep.subr.mxu0 0.0
      %4550 = vmatpush1.xpose.msra.mxu0 0.0
      %4551 = vmatprep.subr.mxu0 0.0
      %4552 = vmatpush1.xpose.msra.mxu0 0.0
      %4553 = vmatprep.subr.mxu0 0.0
      %4554 = vmatpush1.xpose.msra.mxu0 0.0
      %4555 = vmatprep.subr.mxu0 0.0
      %4556 = vmatpush1.xpose.msra.mxu0 0.0
      %4557 = vmatprep.subr.mxu0 0.0
      %4558 = vmatpush1.xpose.msra.mxu0 0.0
      %4559 = vmatprep.subr.mxu0 0.0
      %4560 = vmatpush1.xpose.msra.mxu0 0.0
      %4561 = vmatprep.mubr.f32.mxu0 0.0
      %4562 = vmatmul.mubr.f32.gmra.mrb[0].mxu0 %v4493
      %v4563 = vpop.f32.mrb[0].mxu0
      %v4564 = vadd.f32 0.0, %v4563
      %v4565 = vpop.f32.mrb[0].mxu0
      %4566 = vdwg.mxu0
      %v4567 = vmul.f32 %v4564, 0.35355338
      %v4568 = vadd.f32 %v4567, %v3920
      %v4569 = vsel %vm1311, %v4568, -inf
      %4570 = vmax.xlane.f32.xlu0 %v4569
      %v4571 = vpop.xlane.xlu0 %4570
      %v4572 = vsub.f32 %v4568, %v4571
      %v4573 = vmul.f32 %v4572, 1.442695
      %v4574 = vpow.pop %v4573
      %v4575 = vsel %vm1311, %v4574, 0.0
      %4576 = vadd.xlane.f32.xlu0 %v4575
      %v4577 = vpop.xlane.xlu0 %4576
      %v4578 = vrcp.pop %v4577
      %v4579 = vmul.f32 %v4574, %v4578
      %4580 = vrot.lane.b32.xlu0 %v4002, 48
      %v4581 = vpop.permute.xlu0 %4580
      %v4584 = vsel %vm1311, %v4579, 0
      %4586 = vmatprep.subr.mxu0 0.0
      %4587 = vmatpush1.msra.mxu0 %v4581
      %4588 = vmatprep.subr.mxu0 0.0
      %4589 = vmatpush1.msra.mxu0 0.0
      %4590 = vmatprep.subr.mxu0 0.0
      %4591 = vmatpush1.msra.mxu0 0.0
      %4592 = vmatprep.subr.mxu0 0.0
      %4593 = vmatpush1.msra.mxu0 0.0
      %4594 = vmatprep.subr.mxu0 0.0
      %4595 = vmatpush1.msra.mxu0 0.0
      %4596 = vmatprep.subr.mxu0 0.0
      %4597 = vmatpush1.msra.mxu0 0.0
      %4598 = vmatprep.subr.mxu0 0.0
      %4599 = vmatpush1.msra.mxu0 0.0
      %4600 = vmatprep.subr.mxu0 0.0
      %4601 = vmatpush1.msra.mxu0 0.0
      %4602 = vmatprep.subr.mxu0 0.0
      %4603 = vmatpush1.msra.mxu0 0.0
      %4604 = vmatprep.subr.mxu0 0.0
      %4605 = vmatpush1.msra.mxu0 0.0
      %4606 = vmatprep.subr.mxu0 0.0
      %4607 = vmatpush1.msra.mxu0 0.0
      %4608 = vmatprep.subr.mxu0 0.0
      %4609 = vmatpush1.msra.mxu0 0.0
      %4610 = vmatprep.subr.mxu0 0.0
      %4611 = vmatpush1.msra.mxu0 0.0
      %4612 = vmatprep.subr.mxu0 0.0
      %4613 = vmatpush1.msra.mxu0 0.0
      %4614 = vmatprep.subr.mxu0 0.0
      %4615 = vmatpush1.msra.mxu0 0.0
      %4616 = vmatprep.subr.mxu0 0.0
      %4617 = vmatpush1.msra.mxu0 0.0
      %4618 = vmatprep.subr.mxu0 0.0
      %4619 = vmatpush1.msra.mxu0 0.0
      %4620 = vmatprep.subr.mxu0 0.0
      %4621 = vmatpush1.msra.mxu0 0.0
      %4622 = vmatprep.subr.mxu0 0.0
      %4623 = vmatpush1.msra.mxu0 0.0
      %4624 = vmatprep.subr.mxu0 0.0
      %4625 = vmatpush1.msra.mxu0 0.0
      %4626 = vmatprep.subr.mxu0 0.0
      %4627 = vmatpush1.msra.mxu0 0.0
      %4628 = vmatprep.subr.mxu0 0.0
      %4629 = vmatpush1.msra.mxu0 0.0
      %4630 = vmatprep.subr.mxu0 0.0
      %4631 = vmatpush1.msra.mxu0 0.0
      %4632 = vmatprep.subr.mxu0 0.0
      %4633 = vmatpush1.msra.mxu0 0.0
      %4634 = vmatprep.subr.mxu0 0.0
      %4635 = vmatpush1.msra.mxu0 0.0
      %4636 = vmatprep.subr.mxu0 0.0
      %4637 = vmatpush1.msra.mxu0 0.0
      %4638 = vmatprep.subr.mxu0 0.0
      %4639 = vmatpush1.msra.mxu0 0.0
      %4640 = vmatprep.subr.mxu0 0.0
      %4641 = vmatpush1.msra.mxu0 0.0
      %4642 = vmatprep.subr.mxu0 0.0
      %4643 = vmatpush1.msra.mxu0 0.0
      %4644 = vmatprep.subr.mxu0 0.0
      %4645 = vmatpush1.msra.mxu0 0.0
      %4646 = vmatprep.subr.mxu0 0.0
      %4647 = vmatpush1.msra.mxu0 0.0
      %4648 = vmatprep.subr.mxu0 0.0
      %4649 = vmatpush1.msra.mxu0 0.0
      %4650 = vmatprep.mubr.f32.mxu0 0.0
      %4651 = vmatmul.mubr.f32.gmra.mrb[0].mxu0 %v4584
      %v4652 = vpop.f32.mrb[0].mxu0
      %v4653 = vadd.f32 0.0, %v4652
      %v4654 = vpop.f32.mrb[0].mxu0
      %4655 = vdwg.mxu0
      %v4657 = vsel %vm1311, %v4653, 0
      %4659 = vmatprep.subr.mxu0 0.0
      %4660 = vmatpush1.msra.mxu0 %v4007
      %4661 = vmatprep.subr.mxu0 0.0
      %4662 = vmatpush1.msra.mxu0 0.0
      %4663 = vmatprep.subr.mxu0 0.0
      %4664 = vmatpush1.msra.mxu0 0.0
      %4665 = vmatprep.subr.mxu0 0.0
      %4666 = vmatpush1.msra.mxu0 0.0
      %4667 = vmatprep.subr.mxu0 0.0
      %4668 = vmatpush1.msra.mxu0 0.0
      %4669 = vmatprep.subr.mxu0 0.0
      %4670 = vmatpush1.msra.mxu0 0.0
      %4671 = vmatprep.subr.mxu0 0.0
      %4672 = vmatpush1.msra.mxu0 0.0
      %4673 = vmatprep.subr.mxu0 0.0
      %4674 = vmatpush1.msra.mxu0 0.0
      %4675 = vmatprep.subr.mxu0 0.0
      %4676 = vmatpush1.msra.mxu0 0.0
      %4677 = vmatprep.subr.mxu0 0.0
      %4678 = vmatpush1.msra.mxu0 0.0
      %4679 = vmatprep.subr.mxu0 0.0
      %4680 = vmatpush1.msra.mxu0 0.0
      %4681 = vmatprep.subr.mxu0 0.0
      %4682 = vmatpush1.msra.mxu0 0.0
      %4683 = vmatprep.subr.mxu0 0.0
      %4684 = vmatpush1.msra.mxu0 0.0
      %4685 = vmatprep.subr.mxu0 0.0
      %4686 = vmatpush1.msra.mxu0 0.0
      %4687 = vmatprep.subr.mxu0 0.0
      %4688 = vmatpush1.msra.mxu0 0.0
      %4689 = vmatprep.subr.mxu0 0.0
      %4690 = vmatpush1.msra.mxu0 0.0
      %4691 = vmatprep.subr.mxu0 0.0
      %4692 = vmatpush1.msra.mxu0 0.0
      %4693 = vmatprep.subr.mxu0 0.0
      %4694 = vmatpush1.msra.mxu0 0.0
      %4695 = vmatprep.subr.mxu0 0.0
      %4696 = vmatpush1.msra.mxu0 0.0
      %4697 = vmatprep.subr.mxu0 0.0
      %4698 = vmatpush1.msra.mxu0 0.0
      %4699 = vmatprep.subr.mxu0 0.0
      %4700 = vmatpush1.msra.mxu0 0.0
      %4701 = vmatprep.subr.mxu0 0.0
      %4702 = vmatpush1.msra.mxu0 0.0
      %4703 = vmatprep.subr.mxu0 0.0
      %4704 = vmatpush1.msra.mxu0 0.0
      %4705 = vmatprep.subr.mxu0 0.0
      %4706 = vmatpush1.msra.mxu0 0.0
      %4707 = vmatprep.subr.mxu0 0.0
      %4708 = vmatpush1.msra.mxu0 0.0
      %4709 = vmatprep.subr.mxu0 0.0
      %4710 = vmatpush1.msra.mxu0 0.0
      %4711 = vmatprep.subr.mxu0 0.0
      %4712 = vmatpush1.msra.mxu0 0.0
      %4713 = vmatprep.subr.mxu0 0.0
      %4714 = vmatpush1.msra.mxu0 0.0
      %4715 = vmatprep.subr.mxu0 0.0
      %4716 = vmatpush1.msra.mxu0 0.0
      %4717 = vmatprep.subr.mxu0 0.0
      %4718 = vmatpush1.msra.mxu0 0.0
      %4719 = vmatprep.subr.mxu0 0.0
      %4720 = vmatpush1.msra.mxu0 0.0
      %4721 = vmatprep.subr.mxu0 0.0
      %4722 = vmatpush1.msra.mxu0 0.0
      %4723 = vmatprep.mubr.f32.mxu0 0.0
      %4724 = vmatmul.mubr.f32.gmra.mrb[0].mxu0 %v4657
      %v4725 = vpop.f32.mrb[0].mxu0
      %v4726 = vadd.f32 0.0, %v4725
      %v4727 = vpop.f32.mrb[0].mxu0
      %4728 = vdwg.mxu0
      %v4729 = vadd.f32 %v4486, %v4726
      %4730 = vrot.lane.b32.xlu0 %v4002, 104
      %v4731 = vpop.permute.xlu0 %4730
      %4732 = vrot.lane.b32.xlu0 %v4002, 72
      %v4733 = vpop.permute.xlu0 %4732
      %v4734 = vsel %vm1311, %v4731, 0
      %v4736 = vsel %vm1311, %v4733, 0
      %4738 = vmatprep.subr.mxu0 0.0
      %4739 = vmatpush1.xpose.msra.mxu0 %v4736
      %4740 = vmatprep.subr.mxu0 0.0
      %4741 = vmatpush1.xpose.msra.mxu0 0.0
      %4742 = vmatprep.subr.mxu0 0.0
      %4743 = vmatpush1.xpose.msra.mxu0 0.0
      %4744 = vmatprep.subr.mxu0 0.0
      %4745 = vmatpush1.xpose.msra.mxu0 0.0
      %4746 = vmatprep.subr.mxu0 0.0
      %4747 = vmatpush1.xpose.msra.mxu0 0.0
      %4748 = vmatprep.subr.mxu0 0.0
      %4749 = vmatpush1.xpose.msra.mxu0 0.0
      %4750 = vmatprep.subr.mxu0 0.0
      %4751 = vmatpush1.xpose.msra.mxu0 0.0
      %4752 = vmatprep.subr.mxu0 0.0
      %4753 = vmatpush1.xpose.msra.mxu0 0.0
      %4754 = vmatprep.subr.mxu0 0.0
      %4755 = vmatpush1.xpose.msra.mxu0 0.0
      %4756 = vmatprep.subr.mxu0 0.0
      %4757 = vmatpush1.xpose.msra.mxu0 0.0
      %4758 = vmatprep.subr.mxu0 0.0
      %4759 = vmatpush1.xpose.msra.mxu0 0.0
      %4760 = vmatprep.subr.mxu0 0.0
      %4761 = vmatpush1.xpose.msra.mxu0 0.0
      %4762 = vmatprep.subr.mxu0 0.0
      %4763 = vmatpush1.xpose.msra.mxu0 0.0
      %4764 = vmatprep.subr.mxu0 0.0
      %4765 = vmatpush1.xpose.msra.mxu0 0.0
      %4766 = vmatprep.subr.mxu0 0.0
      %4767 = vmatpush1.xpose.msra.mxu0 0.0
      %4768 = vmatprep.subr.mxu0 0.0
      %4769 = vmatpush1.xpose.msra.mxu0 0.0
      %4770 = vmatprep.subr.mxu0 0.0
      %4771 = vmatpush1.xpose.msra.mxu0 0.0
      %4772 = vmatprep.subr.mxu0 0.0
      %4773 = vmatpush1.xpose.msra.mxu0 0.0
      %4774 = vmatprep.subr.mxu0 0.0
      %4775 = vmatpush1.xpose.msra.mxu0 0.0
      %4776 = vmatprep.subr.mxu0 0.0
      %4777 = vmatpush1.xpose.msra.mxu0 0.0
      %4778 = vmatprep.subr.mxu0 0.0
      %4779 = vmatpush1.xpose.msra.mxu0 0.0
      %4780 = vmatprep.subr.mxu0 0.0
      %4781 = vmatpush1.xpose.msra.mxu0 0.0
      %4782 = vmatprep.subr.mxu0 0.0
      %4783 = vmatpush1.xpose.msra.mxu0 0.0
      %4784 = vmatprep.subr.mxu0 0.0
      %4785 = vmatpush1.xpose.msra.mxu0 0.0
      %4786 = vmatprep.subr.mxu0 0.0
      %4787 = vmatpush1.xpose.msra.mxu0 0.0
      %4788 = vmatprep.subr.mxu0 0.0
      %4789 = vmatpush1.xpose.msra.mxu0 0.0
      %4790 = vmatprep.subr.mxu0 0.0
      %4791 = vmatpush1.xpose.msra.mxu0 0.0
      %4792 = vmatprep.subr.mxu0 0.0
      %4793 = vmatpush1.xpose.msra.mxu0 0.0
      %4794 = vmatprep.subr.mxu0 0.0
      %4795 = vmatpush1.xpose.msra.mxu0 0.0
      %4796 = vmatprep.subr.mxu0 0.0
      %4797 = vmatpush1.xpose.msra.mxu0 0.0
      %4798 = vmatprep.subr.mxu0 0.0
      %4799 = vmatpush1.xpose.msra.mxu0 0.0
      %4800 = vmatprep.subr.mxu0 0.0
      %4801 = vmatpush1.xpose.msra.mxu0 0.0
      %4802 = vmatprep.mubr.f32.mxu0 0.0
      %4803 = vmatmul.mubr.f32.gmra.mrb[0].mxu0 %v4734
      %v4804 = vpop.f32.mrb[0].mxu0
      %v4805 = vadd.f32 0.0, %v4804
      %v4806 = vpop.f32.mrb[0].mxu0
      %4807 = vdwg.mxu0
      %v4808 = vmul.f32 %v4805, 0.35355338
      %v4809 = vadd.f32 %v4808, %v3920
      %v4810 = vsel %vm1311, %v4809, -inf
      %4811 = vmax.xlane.f32.xlu0 %v4810
      %v4812 = vpop.xlane.xlu0 %4811
      %v4813 = vsub.f32 %v4809, %v4812
      %v4814 = vmul.f32 %v4813, 1.442695
      %v4815 = vpow.pop %v4814
      %v4816 = vsel %vm1311, %v4815, 0.0
      %4817 = vadd.xlane.f32.xlu0 %v4816
      %v4818 = vpop.xlane.xlu0 %4817
      %v4819 = vrcp.pop %v4818
      %v4820 = vmul.f32 %v4815, %v4819
      %4821 = vrot.lane.b32.xlu0 %v4002, 40
      %v4822 = vpop.permute.xlu0 %4821
      %v4825 = vsel %vm1311, %v4820, 0
      %4827 = vmatprep.subr.mxu0 0.0
      %4828 = vmatpush1.msra.mxu0 %v4822
      %4829 = vmatprep.subr.mxu0 0.0
      %4830 = vmatpush1.msra.mxu0 0.0
      %4831 = vmatprep.subr.mxu0 0.0
      %4832 = vmatpush1.msra.mxu0 0.0
      %4833 = vmatprep.subr.mxu0 0.0
      %4834 = vmatpush1.msra.mxu0 0.0
      %4835 = vmatprep.subr.mxu0 0.0
      %4836 = vmatpush1.msra.mxu0 0.0
      %4837 = vmatprep.subr.mxu0 0.0
      %4838 = vmatpush1.msra.mxu0 0.0
      %4839 = vmatprep.subr.mxu0 0.0
      %4840 = vmatpush1.msra.mxu0 0.0
      %4841 = vmatprep.subr.mxu0 0.0
      %4842 = vmatpush1.msra.mxu0 0.0
      %4843 = vmatprep.subr.mxu0 0.0
      %4844 = vmatpush1.msra.mxu0 0.0
      %4845 = vmatprep.subr.mxu0 0.0
      %4846 = vmatpush1.msra.mxu0 0.0
      %4847 = vmatprep.subr.mxu0 0.0
      %4848 = vmatpush1.msra.mxu0 0.0
      %4849 = vmatprep.subr.mxu0 0.0
      %4850 = vmatpush1.msra.mxu0 0.0
      %4851 = vmatprep.subr.mxu0 0.0
      %4852 = vmatpush1.msra.mxu0 0.0
      %4853 = vmatprep.subr.mxu0 0.0
      %4854 = vmatpush1.msra.mxu0 0.0
      %4855 = vmatprep.subr.mxu0 0.0
      %4856 = vmatpush1.msra.mxu0 0.0
      %4857 = vmatprep.subr.mxu0 0.0
      %4858 = vmatpush1.msra.mxu0 0.0
      %4859 = vmatprep.subr.mxu0 0.0
      %4860 = vmatpush1.msra.mxu0 0.0
      %4861 = vmatprep.subr.mxu0 0.0
      %4862 = vmatpush1.msra.mxu0 0.0
      %4863 = vmatprep.subr.mxu0 0.0
      %4864 = vmatpush1.msra.mxu0 0.0
      %4865 = vmatprep.subr.mxu0 0.0
      %4866 = vmatpush1.msra.mxu0 0.0
      %4867 = vmatprep.subr.mxu0 0.0
      %4868 = vmatpush1.msra.mxu0 0.0
      %4869 = vmatprep.subr.mxu0 0.0
      %4870 = vmatpush1.msra.mxu0 0.0
      %4871 = vmatprep.subr.mxu0 0.0
      %4872 = vmatpush1.msra.mxu0 0.0
      %4873 = vmatprep.subr.mxu0 0.0
      %4874 = vmatpush1.msra.mxu0 0.0
      %4875 = vmatprep.subr.mxu0 0.0
      %4876 = vmatpush1.msra.mxu0 0.0
      %4877 = vmatprep.subr.mxu0 0.0
      %4878 = vmatpush1.msra.mxu0 0.0
      %4879 = vmatprep.subr.mxu0 0.0
      %4880 = vmatpush1.msra.mxu0 0.0
      %4881 = vmatprep.subr.mxu0 0.0
      %4882 = vmatpush1.msra.mxu0 0.0
      %4883 = vmatprep.subr.mxu0 0.0
      %4884 = vmatpush1.msra.mxu0 0.0
      %4885 = vmatprep.subr.mxu0 0.0
      %4886 = vmatpush1.msra.mxu0 0.0
      %4887 = vmatprep.subr.mxu0 0.0
      %4888 = vmatpush1.msra.mxu0 0.0
      %4889 = vmatprep.subr.mxu0 0.0
      %4890 = vmatpush1.msra.mxu0 0.0
      %4891 = vmatprep.mubr.f32.mxu0 0.0
      %4892 = vmatmul.mubr.f32.gmra.mrb[0].mxu0 %v4825
      %v4893 = vpop.f32.mrb[0].mxu0
      %v4894 = vadd.f32 0.0, %v4893
      %v4895 = vpop.f32.mrb[0].mxu0
      %4896 = vdwg.mxu0
      %v4898 = vsel %vm1311, %v4894, 0
      %4900 = vmatprep.subr.mxu0 0.0
      %4901 = vmatpush1.msra.mxu0 %v4008
      %4902 = vmatprep.subr.mxu0 0.0
      %4903 = vmatpush1.msra.mxu0 0.0
      %4904 = vmatprep.subr.mxu0 0.0
      %4905 = vmatpush1.msra.mxu0 0.0
      %4906 = vmatprep.subr.mxu0 0.0
      %4907 = vmatpush1.msra.mxu0 0.0
      %4908 = vmatprep.subr.mxu0 0.0
      %4909 = vmatpush1.msra.mxu0 0.0
      %4910 = vmatprep.subr.mxu0 0.0
      %4911 = vmatpush1.msra.mxu0 0.0
      %4912 = vmatprep.subr.mxu0 0.0
      %4913 = vmatpush1.msra.mxu0 0.0
      %4914 = vmatprep.subr.mxu0 0.0
      %4915 = vmatpush1.msra.mxu0 0.0
      %4916 = vmatprep.subr.mxu0 0.0
      %4917 = vmatpush1.msra.mxu0 0.0
      %4918 = vmatprep.subr.mxu0 0.0
      %4919 = vmatpush1.msra.mxu0 0.0
      %4920 = vmatprep.subr.mxu0 0.0
      %4921 = vmatpush1.msra.mxu0 0.0
      %4922 = vmatprep.subr.mxu0 0.0
      %4923 = vmatpush1.msra.mxu0 0.0
      %4924 = vmatprep.subr.mxu0 0.0
      %4925 = vmatpush1.msra.mxu0 0.0
      %4926 = vmatprep.subr.mxu0 0.0
      %4927 = vmatpush1.msra.mxu0 0.0
      %4928 = vmatprep.subr.mxu0 0.0
      %4929 = vmatpush1.msra.mxu0 0.0
      %4930 = vmatprep.subr.mxu0 0.0
      %4931 = vmatpush1.msra.mxu0 0.0
      %4932 = vmatprep.subr.mxu0 0.0
      %4933 = vmatpush1.msra.mxu0 0.0
      %4934 = vmatprep.subr.mxu0 0.0
      %4935 = vmatpush1.msra.mxu0 0.0
      %4936 = vmatprep.subr.mxu0 0.0
      %4937 = vmatpush1.msra.mxu0 0.0
      %4938 = vmatprep.subr.mxu0 0.0
      %4939 = vmatpush1.msra.mxu0 0.0
      %4940 = vmatprep.subr.mxu0 0.0
      %4941 = vmatpush1.msra.mxu0 0.0
      %4942 = vmatprep.subr.mxu0 0.0
      %4943 = vmatpush1.msra.mxu0 0.0
      %4944 = vmatprep.subr.mxu0 0.0
      %4945 = vmatpush1.msra.mxu0 0.0
      %4946 = vmatprep.subr.mxu0 0.0
      %4947 = vmatpush1.msra.mxu0 0.0
      %4948 = vmatprep.subr.mxu0 0.0
      %4949 = vmatpush1.msra.mxu0 0.0
      %4950 = vmatprep.subr.mxu0 0.0
      %4951 = vmatpush1.msra.mxu0 0.0
      %4952 = vmatprep.subr.mxu0 0.0
      %4953 = vmatpush1.msra.mxu0 0.0
      %4954 = vmatprep.subr.mxu0 0.0
      %4955 = vmatpush1.msra.mxu0 0.0
      %4956 = vmatprep.subr.mxu0 0.0
      %4957 = vmatpush1.msra.mxu0 0.0
      %4958 = vmatprep.subr.mxu0 0.0
      %4959 = vmatpush1.msra.mxu0 0.0
      %4960 = vmatprep.subr.mxu0 0.0
      %4961 = vmatpush1.msra.mxu0 0.0
      %4962 = vmatprep.subr.mxu0 0.0
      %4963 = vmatpush1.msra.mxu0 0.0
      %4964 = vmatprep.mubr.f32.mxu0 0.0
      %4965 = vmatmul.mubr.f32.gmra.mrb[0].mxu0 %v4898
      %v4966 = vpop.f32.mrb[0].mxu0
      %v4967 = vadd.f32 0.0, %v4966
      %v4968 = vpop.f32.mrb[0].mxu0
      %4969 = vdwg.mxu0
      %v4970 = vadd.f32 %v4729, %v4967
      %v4972 = vlaneseq
      %v4973 = vshrl.u32 %v4972, 7
      %v4974 = vsub.s32 0, %v4973
      %v4975 = vrot.slane %v4009, %v4974
      %v4977 = vadd.f32 %v4970, %v4975
      %v4978 = vadd.f32 %v3918, %v4977
      %v4979 = vsel %vm1168, %v4978, 0.0
      %4980 = vadd.xlane.f32.xlu0 %v4979
      %v4981 = vpop.xlane.xlu0 %4980
      %v4982 = vmul.f32 %v4981, %v1175
      %v4983 = vsub.f32 %v4978, %v4982
      %v4984 = vmul.f32 %v4983, %v4983
      %v4985 = vsel %vm1168, %v4984, 0.0
      %4986 = vadd.xlane.f32.xlu0 %v4985
      %v4987 = vpop.xlane.xlu0 %4986
      %v4988 = vmul.f32 %v4987, %v1175
      %v4989 = vadd.f32 %v4988, 1e-05
      %v4990 = vrsqrt.pop %v4989
      %v4991 = vmul.f32 %v4983, %v4990
      %v4992 = vlaneseq
      %v4993 = vshrl.u32 %v4992, 7
      %v4994 = vsub.s32 5, %v4993
      %v4995 = vrot.slane %v1143, %v4994
      %v4996 = vmul.f32 %v4991, %v4995
      %v4997 = vlaneseq
      %v4998 = vshrl.u32 %v4997, 7
      %v4999 = vsub.s32 5, %v4998
      %v5000 = vrot.slane %v1144, %v4999
      %v5001 = vadd.f32 %v4996, %v5000
      %v5002 = vld [vmem:[%s49] sm:$0xff]
      %v5003 = vld [vmem:[%s49 + $0x8] sm:$0xff]
      %v5004 = vld [vmem:[%s49 + $0x10] sm:$0xff]
      %v5005 = vld [vmem:[%s49 + $0x18] sm:$0xff]
      %v5006 = vld [vmem:[%s51] sm:$0x1]
      %v5008 = vlaneseq
      %v5009 = vshrl.u32 %v5008, 7
      %v5010 = vsub.s32 0, %v5009
      %v5011 = vrot.slane %v5006, %v5010
      %v5014 = vsel %vm1168, %v5001, 0
      %5016 = vmatprep.subr.mxu0 0.0
      %5017 = vmatpush1.msra.mxu0 %v5002
      %5018 = vmatprep.subr.mxu0 0.0
      %5019 = vmatpush1.msra.mxu0 %v5003
      %5020 = vmatprep.subr.mxu0 0.0
      %5021 = vmatpush1.msra.mxu0 %v5004
      %5022 = vmatprep.subr.mxu0 0.0
      %5023 = vmatpush1.msra.mxu0 %v5005
      %5024 = vmatprep.subr.mxu0 0.0
      %5025 = vmatpush1.msra.mxu0 0.0
      %5026 = vmatprep.subr.mxu0 0.0
      %5027 = vmatpush1.msra.mxu0 0.0
      %5028 = vmatprep.subr.mxu0 0.0
      %5029 = vmatpush1.msra.mxu0 0.0
      %5030 = vmatprep.subr.mxu0 0.0
      %5031 = vmatpush1.msra.mxu0 0.0
      %5032 = vmatprep.subr.mxu0 0.0
      %5033 = vmatpush1.msra.mxu0 0.0
      %5034 = vmatprep.subr.mxu0 0.0
      %5035 = vmatpush1.msra.mxu0 0.0
      %5036 = vmatprep.subr.mxu0 0.0
      %5037 = vmatpush1.msra.mxu0 0.0
      %5038 = vmatprep.subr.mxu0 0.0
      %5039 = vmatpush1.msra.mxu0 0.0
      %5040 = vmatprep.subr.mxu0 0.0
      %5041 = vmatpush1.msra.mxu0 0.0
      %5042 = vmatprep.subr.mxu0 0.0
      %5043 = vmatpush1.msra.mxu0 0.0
      %5044 = vmatprep.subr.mxu0 0.0
      %5045 = vmatpush1.msra.mxu0 0.0
      %5046 = vmatprep.subr.mxu0 0.0
      %5047 = vmatpush1.msra.mxu0 0.0
      %5048 = vmatprep.subr.mxu0 0.0
      %5049 = vmatpush1.msra.mxu0 0.0
      %5050 = vmatprep.subr.mxu0 0.0
      %5051 = vmatpush1.msra.mxu0 0.0
      %5052 = vmatprep.subr.mxu0 0.0
      %5053 = vmatpush1.msra.mxu0 0.0
      %5054 = vmatprep.subr.mxu0 0.0
      %5055 = vmatpush1.msra.mxu0 0.0
      %5056 = vmatprep.subr.mxu0 0.0
      %5057 = vmatpush1.msra.mxu0 0.0
      %5058 = vmatprep.subr.mxu0 0.0
      %5059 = vmatpush1.msra.mxu0 0.0
      %5060 = vmatprep.subr.mxu0 0.0
      %5061 = vmatpush1.msra.mxu0 0.0
      %5062 = vmatprep.subr.mxu0 0.0
      %5063 = vmatpush1.msra.mxu0 0.0
      %5064 = vmatprep.subr.mxu0 0.0
      %5065 = vmatpush1.msra.mxu0 0.0
      %5066 = vmatprep.subr.mxu0 0.0
      %5067 = vmatpush1.msra.mxu0 0.0
      %5068 = vmatprep.subr.mxu0 0.0
      %5069 = vmatpush1.msra.mxu0 0.0
      %5070 = vmatprep.subr.mxu0 0.0
      %5071 = vmatpush1.msra.mxu0 0.0
      %5072 = vmatprep.subr.mxu0 0.0
      %5073 = vmatpush1.msra.mxu0 0.0
      %5074 = vmatprep.subr.mxu0 0.0
      %5075 = vmatpush1.msra.mxu0 0.0
      %5076 = vmatprep.subr.mxu0 0.0
      %5077 = vmatpush1.msra.mxu0 0.0
      %5078 = vmatprep.subr.mxu0 0.0
      %5079 = vmatpush1.msra.mxu0 0.0
      %5080 = vmatprep.mubr.f32.mxu0 0.0
      %5081 = vmatmul.mubr.f32.gmra.mrb[0].mxu0 %v5014
      %v5082 = vpop.f32.mrb[0].mxu0
      %v5083 = vadd.f32 %v5011, %v5082
      %v5084 = vpop.f32.mrb[0].mxu0
      %5085 = vdwg.mxu0
      %v5086 = vld [vmem:[%s53] sm:$0xff]
      %v5087 = vld [vmem:[%s53 + $0x8] sm:$0xff]
      %v5088 = vld [vmem:[%s53 + $0x10] sm:$0xff]
      %v5089 = vld [vmem:[%s53 + $0x18] sm:$0xff]
      %v5090 = vld [vmem:[%s55] sm:$0x1]
      %v5092 = vlaneseq
      %v5093 = vshrl.u32 %v5092, 7
      %v5094 = vsub.s32 0, %v5093
      %v5095 = vrot.slane %v5090, %v5094
      %v5098 = vsel %vm1168, %v3894, 0
      %5100 = vmatprep.subr.mxu0 0.0
      %5101 = vmatpush1.msra.mxu0 %v5086
      %5102 = vmatprep.subr.mxu0 0.0
      %5103 = vmatpush1.msra.mxu0 %v5087
      %5104 = vmatprep.subr.mxu0 0.0
      %5105 = vmatpush1.msra.mxu0 %v5088
      %5106 = vmatprep.subr.mxu0 0.0
      %5107 = vmatpush1.msra.mxu0 %v5089
      %5108 = vmatprep.subr.mxu0 0.0
      %5109 = vmatpush1.msra.mxu0 0.0
      %5110 = vmatprep.subr.mxu0 0.0
      %5111 = vmatpush1.msra.mxu0 0.0
      %5112 = vmatprep.subr.mxu0 0.0
      %5113 = vmatpush1.msra.mxu0 0.0
      %5114 = vmatprep.subr.mxu0 0.0
      %5115 = vmatpush1.msra.mxu0 0.0
      %5116 = vmatprep.subr.mxu0 0.0
      %5117 = vmatpush1.msra.mxu0 0.0
      %5118 = vmatprep.subr.mxu0 0.0
      %5119 = vmatpush1.msra.mxu0 0.0
      %5120 = vmatprep.subr.mxu0 0.0
      %5121 = vmatpush1.msra.mxu0 0.0
      %5122 = vmatprep.subr.mxu0 0.0
      %5123 = vmatpush1.msra.mxu0 0.0
      %5124 = vmatprep.subr.mxu0 0.0
      %5125 = vmatpush1.msra.mxu0 0.0
      %5126 = vmatprep.subr.mxu0 0.0
      %5127 = vmatpush1.msra.mxu0 0.0
      %5128 = vmatprep.subr.mxu0 0.0
      %5129 = vmatpush1.msra.mxu0 0.0
      %5130 = vmatprep.subr.mxu0 0.0
      %5131 = vmatpush1.msra.mxu0 0.0
      %5132 = vmatprep.subr.mxu0 0.0
      %5133 = vmatpush1.msra.mxu0 0.0
      %5134 = vmatprep.subr.mxu0 0.0
      %5135 = vmatpush1.msra.mxu0 0.0
      %5136 = vmatprep.subr.mxu0 0.0
      %5137 = vmatpush1.msra.mxu0 0.0
      %5138 = vmatprep.subr.mxu0 0.0
      %5139 = vmatpush1.msra.mxu0 0.0
      %5140 = vmatprep.subr.mxu0 0.0
      %5141 = vmatpush1.msra.mxu0 0.0
      %5142 = vmatprep.subr.mxu0 0.0
      %5143 = vmatpush1.msra.mxu0 0.0
      %5144 = vmatprep.subr.mxu0 0.0
      %5145 = vmatpush1.msra.mxu0 0.0
      %5146 = vmatprep.subr.mxu0 0.0
      %5147 = vmatpush1.msra.mxu0 0.0
      %5148 = vmatprep.subr.mxu0 0.0
      %5149 = vmatpush1.msra.mxu0 0.0
      %5150 = vmatprep.subr.mxu0 0.0
      %5151 = vmatpush1.msra.mxu0 0.0
      %5152 = vmatprep.subr.mxu0 0.0
      %5153 = vmatpush1.msra.mxu0 0.0
      %5154 = vmatprep.subr.mxu0 0.0
      %5155 = vmatpush1.msra.mxu0 0.0
      %5156 = vmatprep.subr.mxu0 0.0
      %5157 = vmatpush1.msra.mxu0 0.0
      %5158 = vmatprep.subr.mxu0 0.0
      %5159 = vmatpush1.msra.mxu0 0.0
      %5160 = vmatprep.subr.mxu0 0.0
      %5161 = vmatpush1.msra.mxu0 0.0
      %5162 = vmatprep.subr.mxu0 0.0
      %5163 = vmatpush1.msra.mxu0 0.0
      %5164 = vmatprep.mubr.f32.mxu0 0.0
      %5165 = vmatmul.mubr.f32.gmra.mrb[0].mxu0 %v5098
      %v5166 = vpop.f32.mrb[0].mxu0
      %v5167 = vadd.f32 %v5095, %v5166
      %v5168 = vpop.f32.mrb[0].mxu0
      %5169 = vdwg.mxu0
      %v5170 = vld [vmem:[%s57] sm:$0xff]
      %v5171 = vld [vmem:[%s57 + $0x8] sm:$0xff]
      %v5172 = vld [vmem:[%s57 + $0x10] sm:$0xff]
      %v5173 = vld [vmem:[%s57 + $0x18] sm:$0xff]
      %v5174 = vld [vmem:[%s59] sm:$0x1]
      %v5176 = vsel %vm1311, %v5083, 0
      %v5179 = vsel %vm1311, %v5167, 0
      %5181 = vmatprep.subr.mxu0 0.0
      %5182 = vmatpush1.xpose.msra.mxu0 %v5179
      %5183 = vmatprep.subr.mxu0 0.0
      %5184 = vmatpush1.xpose.msra.mxu0 0.0
      %5185 = vmatprep.subr.mxu0 0.0
      %5186 = vmatpush1.xpose.msra.mxu0 0.0
      %5187 = vmatprep.subr.mxu0 0.0
      %5188 = vmatpush1.xpose.msra.mxu0 0.0
      %5189 = vmatprep.subr.mxu0 0.0
      %5190 = vmatpush1.xpose.msra.mxu0 0.0
      %5191 = vmatprep.subr.mxu0 0.0
      %5192 = vmatpush1.xpose.msra.mxu0 0.0
      %5193 = vmatprep.subr.mxu0 0.0
      %5194 = vmatpush1.xpose.msra.mxu0 0.0
      %5195 = vmatprep.subr.mxu0 0.0
      %5196 = vmatpush1.xpose.msra.mxu0 0.0
      %5197 = vmatprep.subr.mxu0 0.0
      %5198 = vmatpush1.xpose.msra.mxu0 0.0
      %5199 = vmatprep.subr.mxu0 0.0
      %5200 = vmatpush1.xpose.msra.mxu0 0.0
      %5201 = vmatprep.subr.mxu0 0.0
      %5202 = vmatpush1.xpose.msra.mxu0 0.0
      %5203 = vmatprep.subr.mxu0 0.0
      %5204 = vmatpush1.xpose.msra.mxu0 0.0
      %5205 = vmatprep.subr.mxu0 0.0
      %5206 = vmatpush1.xpose.msra.mxu0 0.0
      %5207 = vmatprep.subr.mxu0 0.0
      %5208 = vmatpush1.xpose.msra.mxu0 0.0
      %5209 = vmatprep.subr.mxu0 0.0
      %5210 = vmatpush1.xpose.msra.mxu0 0.0
      %5211 = vmatprep.subr.mxu0 0.0
      %5212 = vmatpush1.xpose.msra.mxu0 0.0
      %5213 = vmatprep.subr.mxu0 0.0
      %5214 = vmatpush1.xpose.msra.mxu0 0.0
      %5215 = vmatprep.subr.mxu0 0.0
      %5216 = vmatpush1.xpose.msra.mxu0 0.0
      %5217 = vmatprep.subr.mxu0 0.0
      %5218 = vmatpush1.xpose.msra.mxu0 0.0
      %5219 = vmatprep.subr.mxu0 0.0
      %5220 = vmatpush1.xpose.msra.mxu0 0.0
      %5221 = vmatprep.subr.mxu0 0.0
      %5222 = vmatpush1.xpose.msra.mxu0 0.0
      %5223 = vmatprep.subr.mxu0 0.0
      %5224 = vmatpush1.xpose.msra.mxu0 0.0
      %5225 = vmatprep.subr.mxu0 0.0
      %5226 = vmatpush1.xpose.msra.mxu0 0.0
      %5227 = vmatprep.subr.mxu0 0.0
      %5228 = vmatpush1.xpose.msra.mxu0 0.0
      %5229 = vmatprep.subr.mxu0 0.0
      %5230 = vmatpush1.xpose.msra.mxu0 0.0
      %5231 = vmatprep.subr.mxu0 0.0
      %5232 = vmatpush1.xpose.msra.mxu0 0.0
      %5233 = vmatprep.subr.mxu0 0.0
      %5234 = vmatpush1.xpose.msra.mxu0 0.0
      %5235 = vmatprep.subr.mxu0 0.0
      %5236 = vmatpush1.xpose.msra.mxu0 0.0
      %5237 = vmatprep.subr.mxu0 0.0
      %5238 = vmatpush1.xpose.msra.mxu0 0.0
      %5239 = vmatprep.subr.mxu0 0.0
      %5240 = vmatpush1.xpose.msra.mxu0 0.0
      %5241 = vmatprep.subr.mxu0 0.0
      %5242 = vmatpush1.xpose.msra.mxu0 0.0
      %5243 = vmatprep.subr.mxu0 0.0
      %5244 = vmatpush1.xpose.msra.mxu0 0.0
      %5245 = vmatprep.mubr.f32.mxu0 0.0
      %5246 = vmatmul.mubr.f32.gmra.mrb[0].mxu0 %v5176
      %v5247 = vpop.f32.mrb[0].mxu0
      %v5248 = vadd.f32 0.0, %v5247
      %v5249 = vpop.f32.mrb[0].mxu0
      %5250 = vdwg.mxu0
      %v5251 = vmul.f32 %v5248, 0.35355338
      %v5252 = vadd.f32 %v5251, %v1162
      %v5253 = vsel %vm1311, %v5252, -inf
      %5254 = vmax.xlane.f32.xlu0 %v5253
      %v5255 = vpop.xlane.xlu0 %5254
      %v5256 = vsub.f32 %v5252, %v5255
      %v5257 = vmul.f32 %v5256, 1.442695
      %v5258 = vpow.pop %v5257
      %v5259 = vsel %vm1311, %v5258, 0.0
      %5260 = vadd.xlane.f32.xlu0 %v5259
      %v5261 = vpop.xlane.xlu0 %5260
      %v5262 = vrcp.pop %v5261
      %v5263 = vmul.f32 %v5258, %v5262
      %5264 = vrot.lane.b32.xlu0 %v5167, 96
      %v5265 = vpop.permute.xlu0 %5264
      %v5268 = vsel %vm1311, %v5263, 0
      %5270 = vmatprep.subr.mxu0 0.0
      %5271 = vmatpush1.msra.mxu0 %v5265
      %5272 = vmatprep.subr.mxu0 0.0
      %5273 = vmatpush1.msra.mxu0 0.0
      %5274 = vmatprep.subr.mxu0 0.0
      %5275 = vmatpush1.msra.mxu0 0.0
      %5276 = vmatprep.subr.mxu0 0.0
      %5277 = vmatpush1.msra.mxu0 0.0
      %5278 = vmatprep.subr.mxu0 0.0
      %5279 = vmatpush1.msra.mxu0 0.0
      %5280 = vmatprep.subr.mxu0 0.0
      %5281 = vmatpush1.msra.mxu0 0.0
      %5282 = vmatprep.subr.mxu0 0.0
      %5283 = vmatpush1.msra.mxu0 0.0
      %5284 = vmatprep.subr.mxu0 0.0
      %5285 = vmatpush1.msra.mxu0 0.0
      %5286 = vmatprep.subr.mxu0 0.0
      %5287 = vmatpush1.msra.mxu0 0.0
      %5288 = vmatprep.subr.mxu0 0.0
      %5289 = vmatpush1.msra.mxu0 0.0
      %5290 = vmatprep.subr.mxu0 0.0
      %5291 = vmatpush1.msra.mxu0 0.0
      %5292 = vmatprep.subr.mxu0 0.0
      %5293 = vmatpush1.msra.mxu0 0.0
      %5294 = vmatprep.subr.mxu0 0.0
      %5295 = vmatpush1.msra.mxu0 0.0
      %5296 = vmatprep.subr.mxu0 0.0
      %5297 = vmatpush1.msra.mxu0 0.0
      %5298 = vmatprep.subr.mxu0 0.0
      %5299 = vmatpush1.msra.mxu0 0.0
      %5300 = vmatprep.subr.mxu0 0.0
      %5301 = vmatpush1.msra.mxu0 0.0
      %5302 = vmatprep.subr.mxu0 0.0
      %5303 = vmatpush1.msra.mxu0 0.0
      %5304 = vmatprep.subr.mxu0 0.0
      %5305 = vmatpush1.msra.mxu0 0.0
      %5306 = vmatprep.subr.mxu0 0.0
      %5307 = vmatpush1.msra.mxu0 0.0
      %5308 = vmatprep.subr.mxu0 0.0
      %5309 = vmatpush1.msra.mxu0 0.0
      %5310 = vmatprep.subr.mxu0 0.0
      %5311 = vmatpush1.msra.mxu0 0.0
      %5312 = vmatprep.subr.mxu0 0.0
      %5313 = vmatpush1.msra.mxu0 0.0
      %5314 = vmatprep.subr.mxu0 0.0
      %5315 = vmatpush1.msra.mxu0 0.0
      %5316 = vmatprep.subr.mxu0 0.0
      %5317 = vmatpush1.msra.mxu0 0.0
      %5318 = vmatprep.subr.mxu0 0.0
      %5319 = vmatpush1.msra.mxu0 0.0
      %5320 = vmatprep.subr.mxu0 0.0
      %5321 = vmatpush1.msra.mxu0 0.0
      %5322 = vmatprep.subr.mxu0 0.0
      %5323 = vmatpush1.msra.mxu0 0.0
      %5324 = vmatprep.subr.mxu0 0.0
      %5325 = vmatpush1.msra.mxu0 0.0
      %5326 = vmatprep.subr.mxu0 0.0
      %5327 = vmatpush1.msra.mxu0 0.0
      %5328 = vmatprep.subr.mxu0 0.0
      %5329 = vmatpush1.msra.mxu0 0.0
      %5330 = vmatprep.subr.mxu0 0.0
      %5331 = vmatpush1.msra.mxu0 0.0
      %5332 = vmatprep.subr.mxu0 0.0
      %5333 = vmatpush1.msra.mxu0 0.0
      %5334 = vmatprep.mubr.f32.mxu0 0.0
      %5335 = vmatmul.mubr.f32.gmra.mrb[0].mxu0 %v5268
      %v5336 = vpop.f32.mrb[0].mxu0
      %v5337 = vadd.f32 0.0, %v5336
      %v5338 = vpop.f32.mrb[0].mxu0
      %5339 = vdwg.mxu0
      %5340 = vrot.lane.b32.xlu0 %v5083, 120
      %v5341 = vpop.permute.xlu0 %5340
      %5342 = vrot.lane.b32.xlu0 %v5167, 120
      %v5343 = vpop.permute.xlu0 %5342
      %v5344 = vsel %vm1311, %v5341, 0
      %v5346 = vsel %vm1311, %v5343, 0
      %5348 = vmatprep.subr.mxu0 0.0
      %5349 = vmatpush1.xpose.msra.mxu0 %v5346
      %5350 = vmatprep.subr.mxu0 0.0
      %5351 = vmatpush1.xpose.msra.mxu0 0.0
      %5352 = vmatprep.subr.mxu0 0.0
      %5353 = vmatpush1.xpose.msra.mxu0 0.0
      %5354 = vmatprep.subr.mxu0 0.0
      %5355 = vmatpush1.xpose.msra.mxu0 0.0
      %5356 = vmatprep.subr.mxu0 0.0
      %5357 = vmatpush1.xpose.msra.mxu0 0.0
      %5358 = vmatprep.subr.mxu0 0.0
      %5359 = vmatpush1.xpose.msra.mxu0 0.0
      %5360 = vmatprep.subr.mxu0 0.0
      %5361 = vmatpush1.xpose.msra.mxu0 0.0
      %5362 = vmatprep.subr.mxu0 0.0
      %5363 = vmatpush1.xpose.msra.mxu0 0.0
      %5364 = vmatprep.subr.mxu0 0.0
      %5365 = vmatpush1.xpose.msra.mxu0 0.0
      %5366 = vmatprep.subr.mxu0 0.0
      %5367 = vmatpush1.xpose.msra.mxu0 0.0
      %5368 = vmatprep.subr.mxu0 0.0
      %5369 = vmatpush1.xpose.msra.mxu0 0.0
      %5370 = vmatprep.subr.mxu0 0.0
      %5371 = vmatpush1.xpose.msra.mxu0 0.0
      %5372 = vmatprep.subr.mxu0 0.0
      %5373 = vmatpush1.xpose.msra.mxu0 0.0
      %5374 = vmatprep.subr.mxu0 0.0
      %5375 = vmatpush1.xpose.msra.mxu0 0.0
      %5376 = vmatprep.subr.mxu0 0.0
      %5377 = vmatpush1.xpose.msra.mxu0 0.0
      %5378 = vmatprep.subr.mxu0 0.0
      %5379 = vmatpush1.xpose.msra.mxu0 0.0
      %5380 = vmatprep.subr.mxu0 0.0
      %5381 = vmatpush1.xpose.msra.mxu0 0.0
      %5382 = vmatprep.subr.mxu0 0.0
      %5383 = vmatpush1.xpose.msra.mxu0 0.0
      %5384 = vmatprep.subr.mxu0 0.0
      %5385 = vmatpush1.xpose.msra.mxu0 0.0
      %5386 = vmatprep.subr.mxu0 0.0
      %5387 = vmatpush1.xpose.msra.mxu0 0.0
      %5388 = vmatprep.subr.mxu0 0.0
      %5389 = vmatpush1.xpose.msra.mxu0 0.0
      %5390 = vmatprep.subr.mxu0 0.0
      %5391 = vmatpush1.xpose.msra.mxu0 0.0
      %5392 = vmatprep.subr.mxu0 0.0
      %5393 = vmatpush1.xpose.msra.mxu0 0.0
      %5394 = vmatprep.subr.mxu0 0.0
      %5395 = vmatpush1.xpose.msra.mxu0 0.0
      %5396 = vmatprep.subr.mxu0 0.0
      %5397 = vmatpush1.xpose.msra.mxu0 0.0
      %5398 = vmatprep.subr.mxu0 0.0
      %5399 = vmatpush1.xpose.msra.mxu0 0.0
      %5400 = vmatprep.subr.mxu0 0.0
      %5401 = vmatpush1.xpose.msra.mxu0 0.0
      %5402 = vmatprep.subr.mxu0 0.0
      %5403 = vmatpush1.xpose.msra.mxu0 0.0
      %5404 = vmatprep.subr.mxu0 0.0
      %5405 = vmatpush1.xpose.msra.mxu0 0.0
      %5406 = vmatprep.subr.mxu0 0.0
      %5407 = vmatpush1.xpose.msra.mxu0 0.0
      %5408 = vmatprep.subr.mxu0 0.0
      %5409 = vmatpush1.xpose.msra.mxu0 0.0
      %5410 = vmatprep.subr.mxu0 0.0
      %5411 = vmatpush1.xpose.msra.mxu0 0.0
      %5412 = vmatprep.mubr.f32.mxu0 0.0
      %5413 = vmatmul.mubr.f32.gmra.mrb[0].mxu0 %v5344
      %v5414 = vpop.f32.mrb[0].mxu0
      %v5415 = vadd.f32 0.0, %v5414
      %v5416 = vpop.f32.mrb[0].mxu0
      %5417 = vdwg.mxu0
      %v5418 = vmul.f32 %v5415, 0.35355338
      %v5419 = vadd.f32 %v5418, %v1162
      %v5420 = vsel %vm1311, %v5419, -inf
      %5421 = vmax.xlane.f32.xlu0 %v5420
      %v5422 = vpop.xlane.xlu0 %5421
      %v5423 = vsub.f32 %v5419, %v5422
      %v5424 = vmul.f32 %v5423, 1.442695
      %v5425 = vpow.pop %v5424
      %v5426 = vsel %vm1311, %v5425, 0.0
      %5427 = vadd.xlane.f32.xlu0 %v5426
      %v5428 = vpop.xlane.xlu0 %5427
      %v5429 = vrcp.pop %v5428
      %v5430 = vmul.f32 %v5425, %v5429
      %5431 = vrot.lane.b32.xlu0 %v5167, 88
      %v5432 = vpop.permute.xlu0 %5431
      %v5435 = vsel %vm1311, %v5430, 0
      %5437 = vmatprep.subr.mxu0 0.0
      %5438 = vmatpush1.msra.mxu0 %v5432
      %5439 = vmatprep.subr.mxu0 0.0
      %5440 = vmatpush1.msra.mxu0 0.0
      %5441 = vmatprep.subr.mxu0 0.0
      %5442 = vmatpush1.msra.mxu0 0.0
      %5443 = vmatprep.subr.mxu0 0.0
      %5444 = vmatpush1.msra.mxu0 0.0
      %5445 = vmatprep.subr.mxu0 0.0
      %5446 = vmatpush1.msra.mxu0 0.0
      %5447 = vmatprep.subr.mxu0 0.0
      %5448 = vmatpush1.msra.mxu0 0.0
      %5449 = vmatprep.subr.mxu0 0.0
      %5450 = vmatpush1.msra.mxu0 0.0
      %5451 = vmatprep.subr.mxu0 0.0
      %5452 = vmatpush1.msra.mxu0 0.0
      %5453 = vmatprep.subr.mxu0 0.0
      %5454 = vmatpush1.msra.mxu0 0.0
      %5455 = vmatprep.subr.mxu0 0.0
      %5456 = vmatpush1.msra.mxu0 0.0
      %5457 = vmatprep.subr.mxu0 0.0
      %5458 = vmatpush1.msra.mxu0 0.0
      %5459 = vmatprep.subr.mxu0 0.0
      %5460 = vmatpush1.msra.mxu0 0.0
      %5461 = vmatprep.subr.mxu0 0.0
      %5462 = vmatpush1.msra.mxu0 0.0
      %5463 = vmatprep.subr.mxu0 0.0
      %5464 = vmatpush1.msra.mxu0 0.0
      %5465 = vmatprep.subr.mxu0 0.0
      %5466 = vmatpush1.msra.mxu0 0.0
      %5467 = vmatprep.subr.mxu0 0.0
      %5468 = vmatpush1.msra.mxu0 0.0
      %5469 = vmatprep.subr.mxu0 0.0
      %5470 = vmatpush1.msra.mxu0 0.0
      %5471 = vmatprep.subr.mxu0 0.0
      %5472 = vmatpush1.msra.mxu0 0.0
      %5473 = vmatprep.subr.mxu0 0.0
      %5474 = vmatpush1.msra.mxu0 0.0
      %5475 = vmatprep.subr.mxu0 0.0
      %5476 = vmatpush1.msra.mxu0 0.0
      %5477 = vmatprep.subr.mxu0 0.0
      %5478 = vmatpush1.msra.mxu0 0.0
      %5479 = vmatprep.subr.mxu0 0.0
      %5480 = vmatpush1.msra.mxu0 0.0
      %5481 = vmatprep.subr.mxu0 0.0
      %5482 = vmatpush1.msra.mxu0 0.0
      %5483 = vmatprep.subr.mxu0 0.0
      %5484 = vmatpush1.msra.mxu0 0.0
      %5485 = vmatprep.subr.mxu0 0.0
      %5486 = vmatpush1.msra.mxu0 0.0
      %5487 = vmatprep.subr.mxu0 0.0
      %5488 = vmatpush1.msra.mxu0 0.0
      %5489 = vmatprep.subr.mxu0 0.0
      %5490 = vmatpush1.msra.mxu0 0.0
      %5491 = vmatprep.subr.mxu0 0.0
      %5492 = vmatpush1.msra.mxu0 0.0
      %5493 = vmatprep.subr.mxu0 0.0
      %5494 = vmatpush1.msra.mxu0 0.0
      %5495 = vmatprep.subr.mxu0 0.0
      %5496 = vmatpush1.msra.mxu0 0.0
      %5497 = vmatprep.subr.mxu0 0.0
      %5498 = vmatpush1.msra.mxu0 0.0
      %5499 = vmatprep.subr.mxu0 0.0
      %5500 = vmatpush1.msra.mxu0 0.0
      %5501 = vmatprep.mubr.f32.mxu0 0.0
      %5502 = vmatmul.mubr.f32.gmra.mrb[0].mxu0 %v5435
      %v5503 = vpop.f32.mrb[0].mxu0
      %v5504 = vadd.f32 0.0, %v5503
      %v5505 = vpop.f32.mrb[0].mxu0
      %5506 = vdwg.mxu0
      %v5508 = vsel %vm1311, %v5504, 0
      %5510 = vmatprep.subr.mxu0 0.0
      %5511 = vmatpush1.msra.mxu0 %v5171
      %5512 = vmatprep.subr.mxu0 0.0
      %5513 = vmatpush1.msra.mxu0 0.0
      %5514 = vmatprep.subr.mxu0 0.0
      %5515 = vmatpush1.msra.mxu0 0.0
      %5516 = vmatprep.subr.mxu0 0.0
      %5517 = vmatpush1.msra.mxu0 0.0
      %5518 = vmatprep.subr.mxu0 0.0
      %5519 = vmatpush1.msra.mxu0 0.0
      %5520 = vmatprep.subr.mxu0 0.0
      %5521 = vmatpush1.msra.mxu0 0.0
      %5522 = vmatprep.subr.mxu0 0.0
      %5523 = vmatpush1.msra.mxu0 0.0
      %5524 = vmatprep.subr.mxu0 0.0
      %5525 = vmatpush1.msra.mxu0 0.0
      %5526 = vmatprep.subr.mxu0 0.0
      %5527 = vmatpush1.msra.mxu0 0.0
      %5528 = vmatprep.subr.mxu0 0.0
      %5529 = vmatpush1.msra.mxu0 0.0
      %5530 = vmatprep.subr.mxu0 0.0
      %5531 = vmatpush1.msra.mxu0 0.0
      %5532 = vmatprep.subr.mxu0 0.0
      %5533 = vmatpush1.msra.mxu0 0.0
      %5534 = vmatprep.subr.mxu0 0.0
      %5535 = vmatpush1.msra.mxu0 0.0
      %5536 = vmatprep.subr.mxu0 0.0
      %5537 = vmatpush1.msra.mxu0 0.0
      %5538 = vmatprep.subr.mxu0 0.0
      %5539 = vmatpush1.msra.mxu0 0.0
      %5540 = vmatprep.subr.mxu0 0.0
      %5541 = vmatpush1.msra.mxu0 0.0
      %5542 = vmatprep.subr.mxu0 0.0
      %5543 = vmatpush1.msra.mxu0 0.0
      %5544 = vmatprep.subr.mxu0 0.0
      %5545 = vmatpush1.msra.mxu0 0.0
      %5546 = vmatprep.subr.mxu0 0.0
      %5547 = vmatpush1.msra.mxu0 0.0
      %5548 = vmatprep.subr.mxu0 0.0
      %5549 = vmatpush1.msra.mxu0 0.0
      %5550 = vmatprep.subr.mxu0 0.0
      %5551 = vmatpush1.msra.mxu0 0.0
      %5552 = vmatprep.subr.mxu0 0.0
      %5553 = vmatpush1.msra.mxu0 0.0
      %5554 = vmatprep.subr.mxu0 0.0
      %5555 = vmatpush1.msra.mxu0 0.0
      %5556 = vmatprep.subr.mxu0 0.0
      %5557 = vmatpush1.msra.mxu0 0.0
      %5558 = vmatprep.subr.mxu0 0.0
      %5559 = vmatpush1.msra.mxu0 0.0
      %5560 = vmatprep.subr.mxu0 0.0
      %5561 = vmatpush1.msra.mxu0 0.0
      %5562 = vmatprep.subr.mxu0 0.0
      %5563 = vmatpush1.msra.mxu0 0.0
      %5564 = vmatprep.subr.mxu0 0.0
      %5565 = vmatpush1.msra.mxu0 0.0
      %5566 = vmatprep.subr.mxu0 0.0
      %5567 = vmatpush1.msra.mxu0 0.0
      %5568 = vmatprep.subr.mxu0 0.0
      %5569 = vmatpush1.msra.mxu0 0.0
      %5570 = vmatprep.subr.mxu0 0.0
      %5571 = vmatpush1.msra.mxu0 0.0
      %5572 = vmatprep.subr.mxu0 0.0
      %5573 = vmatpush1.msra.mxu0 0.0
      %5574 = vmatprep.mubr.f32.mxu0 0.0
      %5575 = vmatmul.mubr.f32.gmra.mrb[0].mxu0 %v5508
      %v5576 = vpop.f32.mrb[0].mxu0
      %v5577 = vadd.f32 0.0, %v5576
      %v5578 = vpop.f32.mrb[0].mxu0
      %5579 = vdwg.mxu0
      %v5581 = vsel %vm1311, %v5337, 0
      %5583 = vmatprep.subr.mxu0 0.0
      %5584 = vmatpush1.msra.mxu0 %v5170
      %5585 = vmatprep.subr.mxu0 0.0
      %5586 = vmatpush1.msra.mxu0 0.0
      %5587 = vmatprep.subr.mxu0 0.0
      %5588 = vmatpush1.msra.mxu0 0.0
      %5589 = vmatprep.subr.mxu0 0.0
      %5590 = vmatpush1.msra.mxu0 0.0
      %5591 = vmatprep.subr.mxu0 0.0
      %5592 = vmatpush1.msra.mxu0 0.0
      %5593 = vmatprep.subr.mxu0 0.0
      %5594 = vmatpush1.msra.mxu0 0.0
      %5595 = vmatprep.subr.mxu0 0.0
      %5596 = vmatpush1.msra.mxu0 0.0
      %5597 = vmatprep.subr.mxu0 0.0
      %5598 = vmatpush1.msra.mxu0 0.0
      %5599 = vmatprep.subr.mxu0 0.0
      %5600 = vmatpush1.msra.mxu0 0.0
      %5601 = vmatprep.subr.mxu0 0.0
      %5602 = vmatpush1.msra.mxu0 0.0
      %5603 = vmatprep.subr.mxu0 0.0
      %5604 = vmatpush1.msra.mxu0 0.0
      %5605 = vmatprep.subr.mxu0 0.0
      %5606 = vmatpush1.msra.mxu0 0.0
      %5607 = vmatprep.subr.mxu0 0.0
      %5608 = vmatpush1.msra.mxu0 0.0
      %5609 = vmatprep.subr.mxu0 0.0
      %5610 = vmatpush1.msra.mxu0 0.0
      %5611 = vmatprep.subr.mxu0 0.0
      %5612 = vmatpush1.msra.mxu0 0.0
      %5613 = vmatprep.subr.mxu0 0.0
      %5614 = vmatpush1.msra.mxu0 0.0
      %5615 = vmatprep.subr.mxu0 0.0
      %5616 = vmatpush1.msra.mxu0 0.0
      %5617 = vmatprep.subr.mxu0 0.0
      %5618 = vmatpush1.msra.mxu0 0.0
      %5619 = vmatprep.subr.mxu0 0.0
      %5620 = vmatpush1.msra.mxu0 0.0
      %5621 = vmatprep.subr.mxu0 0.0
      %5622 = vmatpush1.msra.mxu0 0.0
      %5623 = vmatprep.subr.mxu0 0.0
      %5624 = vmatpush1.msra.mxu0 0.0
      %5625 = vmatprep.subr.mxu0 0.0
      %5626 = vmatpush1.msra.mxu0 0.0
      %5627 = vmatprep.subr.mxu0 0.0
      %5628 = vmatpush1.msra.mxu0 0.0
      %5629 = vmatprep.subr.mxu0 0.0
      %5630 = vmatpush1.msra.mxu0 0.0
      %5631 = vmatprep.subr.mxu0 0.0
      %5632 = vmatpush1.msra.mxu0 0.0
      %5633 = vmatprep.subr.mxu0 0.0
      %5634 = vmatpush1.msra.mxu0 0.0
      %5635 = vmatprep.subr.mxu0 0.0
      %5636 = vmatpush1.msra.mxu0 0.0
      %5637 = vmatprep.subr.mxu0 0.0
      %5638 = vmatpush1.msra.mxu0 0.0
      %5639 = vmatprep.subr.mxu0 0.0
      %5640 = vmatpush1.msra.mxu0 0.0
      %5641 = vmatprep.subr.mxu0 0.0
      %5642 = vmatpush1.msra.mxu0 0.0
      %5643 = vmatprep.subr.mxu0 0.0
      %5644 = vmatpush1.msra.mxu0 0.0
      %5645 = vmatprep.subr.mxu0 0.0
      %5646 = vmatpush1.msra.mxu0 0.0
      %5647 = vmatprep.mubr.f32.mxu0 0.0
      %5648 = vmatmul.mubr.f32.gmra.mrb[0].mxu0 %v5581
      %v5649 = vpop.f32.mrb[0].mxu0
      %v5650 = vadd.f32 %v5577, %v5649
      %v5651 = vpop.f32.mrb[0].mxu0
      %5652 = vdwg.mxu0
      %5653 = vrot.lane.b32.xlu0 %v5083, 112
      %v5654 = vpop.permute.xlu0 %5653
      %5655 = vrot.lane.b32.xlu0 %v5167, 112
      %v5656 = vpop.permute.xlu0 %5655
      %v5657 = vsel %vm1311, %v5654, 0
      %v5659 = vsel %vm1311, %v5656, 0
      %5661 = vmatprep.subr.mxu0 0.0
      %5662 = vmatpush1.xpose.msra.mxu0 %v5659
      %5663 = vmatprep.subr.mxu0 0.0
      %5664 = vmatpush1.xpose.msra.mxu0 0.0
      %5665 = vmatprep.subr.mxu0 0.0
      %5666 = vmatpush1.xpose.msra.mxu0 0.0
      %5667 = vmatprep.subr.mxu0 0.0
      %5668 = vmatpush1.xpose.msra.mxu0 0.0
      %5669 = vmatprep.subr.mxu0 0.0
      %5670 = vmatpush1.xpose.msra.mxu0 0.0
      %5671 = vmatprep.subr.mxu0 0.0
      %5672 = vmatpush1.xpose.msra.mxu0 0.0
      %5673 = vmatprep.subr.mxu0 0.0
      %5674 = vmatpush1.xpose.msra.mxu0 0.0
      %5675 = vmatprep.subr.mxu0 0.0
      %5676 = vmatpush1.xpose.msra.mxu0 0.0
      %5677 = vmatprep.subr.mxu0 0.0
      %5678 = vmatpush1.xpose.msra.mxu0 0.0
      %5679 = vmatprep.subr.mxu0 0.0
      %5680 = vmatpush1.xpose.msra.mxu0 0.0
      %5681 = vmatprep.subr.mxu0 0.0
      %5682 = vmatpush1.xpose.msra.mxu0 0.0
      %5683 = vmatprep.subr.mxu0 0.0
      %5684 = vmatpush1.xpose.msra.mxu0 0.0
      %5685 = vmatprep.subr.mxu0 0.0
      %5686 = vmatpush1.xpose.msra.mxu0 0.0
      %5687 = vmatprep.subr.mxu0 0.0
      %5688 = vmatpush1.xpose.msra.mxu0 0.0
      %5689 = vmatprep.subr.mxu0 0.0
      %5690 = vmatpush1.xpose.msra.mxu0 0.0
      %5691 = vmatprep.subr.mxu0 0.0
      %5692 = vmatpush1.xpose.msra.mxu0 0.0
      %5693 = vmatprep.subr.mxu0 0.0
      %5694 = vmatpush1.xpose.msra.mxu0 0.0
      %5695 = vmatprep.subr.mxu0 0.0
      %5696 = vmatpush1.xpose.msra.mxu0 0.0
      %5697 = vmatprep.subr.mxu0 0.0
      %5698 = vmatpush1.xpose.msra.mxu0 0.0
      %5699 = vmatprep.subr.mxu0 0.0
      %5700 = vmatpush1.xpose.msra.mxu0 0.0
      %5701 = vmatprep.subr.mxu0 0.0
      %5702 = vmatpush1.xpose.msra.mxu0 0.0
      %5703 = vmatprep.subr.mxu0 0.0
      %5704 = vmatpush1.xpose.msra.mxu0 0.0
      %5705 = vmatprep.subr.mxu0 0.0
      %5706 = vmatpush1.xpose.msra.mxu0 0.0
      %5707 = vmatprep.subr.mxu0 0.0
      %5708 = vmatpush1.xpose.msra.mxu0 0.0
      %5709 = vmatprep.subr.mxu0 0.0
      %5710 = vmatpush1.xpose.msra.mxu0 0.0
      %5711 = vmatprep.subr.mxu0 0.0
      %5712 = vmatpush1.xpose.msra.mxu0 0.0
      %5713 = vmatprep.subr.mxu0 0.0
      %5714 = vmatpush1.xpose.msra.mxu0 0.0
      %5715 = vmatprep.subr.mxu0 0.0
      %5716 = vmatpush1.xpose.msra.mxu0 0.0
      %5717 = vmatprep.subr.mxu0 0.0
      %5718 = vmatpush1.xpose.msra.mxu0 0.0
      %5719 = vmatprep.subr.mxu0 0.0
      %5720 = vmatpush1.xpose.msra.mxu0 0.0
      %5721 = vmatprep.subr.mxu0 0.0
      %5722 = vmatpush1.xpose.msra.mxu0 0.0
      %5723 = vmatprep.subr.mxu0 0.0
      %5724 = vmatpush1.xpose.msra.mxu0 0.0
      %5725 = vmatprep.mubr.f32.mxu0 0.0
      %5726 = vmatmul.mubr.f32.gmra.mrb[0].mxu0 %v5657
      %v5727 = vpop.f32.mrb[0].mxu0
      %v5728 = vadd.f32 0.0, %v5727
      %v5729 = vpop.f32.mrb[0].mxu0
      %5730 = vdwg.mxu0
      %v5731 = vmul.f32 %v5728, 0.35355338
      %v5732 = vadd.f32 %v5731, %v1162
      %v5733 = vsel %vm1311, %v5732, -inf
      %5734 = vmax.xlane.f32.xlu0 %v5733
      %v5735 = vpop.xlane.xlu0 %5734
      %v5736 = vsub.f32 %v5732, %v5735
      %v5737 = vmul.f32 %v5736, 1.442695
      %v5738 = vpow.pop %v5737
      %v5739 = vsel %vm1311, %v5738, 0.0
      %5740 = vadd.xlane.f32.xlu0 %v5739
      %v5741 = vpop.xlane.xlu0 %5740
      %v5742 = vrcp.pop %v5741
      %v5743 = vmul.f32 %v5738, %v5742
      %5744 = vrot.lane.b32.xlu0 %v5167, 80
      %v5745 = vpop.permute.xlu0 %5744
      %v5748 = vsel %vm1311, %v5743, 0
      %5750 = vmatprep.subr.mxu0 0.0
      %5751 = vmatpush1.msra.mxu0 %v5745
      %5752 = vmatprep.subr.mxu0 0.0
      %5753 = vmatpush1.msra.mxu0 0.0
      %5754 = vmatprep.subr.mxu0 0.0
      %5755 = vmatpush1.msra.mxu0 0.0
      %5756 = vmatprep.subr.mxu0 0.0
      %5757 = vmatpush1.msra.mxu0 0.0
      %5758 = vmatprep.subr.mxu0 0.0
      %5759 = vmatpush1.msra.mxu0 0.0
      %5760 = vmatprep.subr.mxu0 0.0
      %5761 = vmatpush1.msra.mxu0 0.0
      %5762 = vmatprep.subr.mxu0 0.0
      %5763 = vmatpush1.msra.mxu0 0.0
      %5764 = vmatprep.subr.mxu0 0.0
      %5765 = vmatpush1.msra.mxu0 0.0
      %5766 = vmatprep.subr.mxu0 0.0
      %5767 = vmatpush1.msra.mxu0 0.0
      %5768 = vmatprep.subr.mxu0 0.0
      %5769 = vmatpush1.msra.mxu0 0.0
      %5770 = vmatprep.subr.mxu0 0.0
      %5771 = vmatpush1.msra.mxu0 0.0
      %5772 = vmatprep.subr.mxu0 0.0
      %5773 = vmatpush1.msra.mxu0 0.0
      %5774 = vmatprep.subr.mxu0 0.0
      %5775 = vmatpush1.msra.mxu0 0.0
      %5776 = vmatprep.subr.mxu0 0.0
      %5777 = vmatpush1.msra.mxu0 0.0
      %5778 = vmatprep.subr.mxu0 0.0
      %5779 = vmatpush1.msra.mxu0 0.0
      %5780 = vmatprep.subr.mxu0 0.0
      %5781 = vmatpush1.msra.mxu0 0.0
      %5782 = vmatprep.subr.mxu0 0.0
      %5783 = vmatpush1.msra.mxu0 0.0
      %5784 = vmatprep.subr.mxu0 0.0
      %5785 = vmatpush1.msra.mxu0 0.0
      %5786 = vmatprep.subr.mxu0 0.0
      %5787 = vmatpush1.msra.mxu0 0.0
      %5788 = vmatprep.subr.mxu0 0.0
      %5789 = vmatpush1.msra.mxu0 0.0
      %5790 = vmatprep.subr.mxu0 0.0
      %5791 = vmatpush1.msra.mxu0 0.0
      %5792 = vmatprep.subr.mxu0 0.0
      %5793 = vmatpush1.msra.mxu0 0.0
      %5794 = vmatprep.subr.mxu0 0.0
      %5795 = vmatpush1.msra.mxu0 0.0
      %5796 = vmatprep.subr.mxu0 0.0
      %5797 = vmatpush1.msra.mxu0 0.0
      %5798 = vmatprep.subr.mxu0 0.0
      %5799 = vmatpush1.msra.mxu0 0.0
      %5800 = vmatprep.subr.mxu0 0.0
      %5801 = vmatpush1.msra.mxu0 0.0
      %5802 = vmatprep.subr.mxu0 0.0
      %5803 = vmatpush1.msra.mxu0 0.0
      %5804 = vmatprep.subr.mxu0 0.0
      %5805 = vmatpush1.msra.mxu0 0.0
      %5806 = vmatprep.subr.mxu0 0.0
      %5807 = vmatpush1.msra.mxu0 0.0
      %5808 = vmatprep.subr.mxu0 0.0
      %5809 = vmatpush1.msra.mxu0 0.0
      %5810 = vmatprep.subr.mxu0 0.0
      %5811 = vmatpush1.msra.mxu0 0.0
      %5812 = vmatprep.subr.mxu0 0.0
      %5813 = vmatpush1.msra.mxu0 0.0
      %5814 = vmatprep.mubr.f32.mxu0 0.0
      %5815 = vmatmul.mubr.f32.gmra.mrb[0].mxu0 %v5748
      %v5816 = vpop.f32.mrb[0].mxu0
      %v5817 = vadd.f32 0.0, %v5816
      %v5818 = vpop.f32.mrb[0].mxu0
      %5819 = vdwg.mxu0
      %v5821 = vsel %vm1311, %v5817, 0
      %5823 = vmatprep.subr.mxu0 0.0
      %5824 = vmatpush1.msra.mxu0 %v5172
      %5825 = vmatprep.subr.mxu0 0.0
      %5826 = vmatpush1.msra.mxu0 0.0
      %5827 = vmatprep.subr.mxu0 0.0
      %5828 = vmatpush1.msra.mxu0 0.0
      %5829 = vmatprep.subr.mxu0 0.0
      %5830 = vmatpush1.msra.mxu0 0.0
      %5831 = vmatprep.subr.mxu0 0.0
      %5832 = vmatpush1.msra.mxu0 0.0
      %5833 = vmatprep.subr.mxu0 0.0
      %5834 = vmatpush1.msra.mxu0 0.0
      %5835 = vmatprep.subr.mxu0 0.0
      %5836 = vmatpush1.msra.mxu0 0.0
      %5837 = vmatprep.subr.mxu0 0.0
      %5838 = vmatpush1.msra.mxu0 0.0
      %5839 = vmatprep.subr.mxu0 0.0
      %5840 = vmatpush1.msra.mxu0 0.0
      %5841 = vmatprep.subr.mxu0 0.0
      %5842 = vmatpush1.msra.mxu0 0.0
      %5843 = vmatprep.subr.mxu0 0.0
      %5844 = vmatpush1.msra.mxu0 0.0
      %5845 = vmatprep.subr.mxu0 0.0
      %5846 = vmatpush1.msra.mxu0 0.0
      %5847 = vmatprep.subr.mxu0 0.0
      %5848 = vmatpush1.msra.mxu0 0.0
      %5849 = vmatprep.subr.mxu0 0.0
      %5850 = vmatpush1.msra.mxu0 0.0
      %5851 = vmatprep.subr.mxu0 0.0
      %5852 = vmatpush1.msra.mxu0 0.0
      %5853 = vmatprep.subr.mxu0 0.0
      %5854 = vmatpush1.msra.mxu0 0.0
      %5855 = vmatprep.subr.mxu0 0.0
      %5856 = vmatpush1.msra.mxu0 0.0
      %5857 = vmatprep.subr.mxu0 0.0
      %5858 = vmatpush1.msra.mxu0 0.0
      %5859 = vmatprep.subr.mxu0 0.0
      %5860 = vmatpush1.msra.mxu0 0.0
      %5861 = vmatprep.subr.mxu0 0.0
      %5862 = vmatpush1.msra.mxu0 0.0
      %5863 = vmatprep.subr.mxu0 0.0
      %5864 = vmatpush1.msra.mxu0 0.0
      %5865 = vmatprep.subr.mxu0 0.0
      %5866 = vmatpush1.msra.mxu0 0.0
      %5867 = vmatprep.subr.mxu0 0.0
      %5868 = vmatpush1.msra.mxu0 0.0
      %5869 = vmatprep.subr.mxu0 0.0
      %5870 = vmatpush1.msra.mxu0 0.0
      %5871 = vmatprep.subr.mxu0 0.0
      %5872 = vmatpush1.msra.mxu0 0.0
      %5873 = vmatprep.subr.mxu0 0.0
      %5874 = vmatpush1.msra.mxu0 0.0
      %5875 = vmatprep.subr.mxu0 0.0
      %5876 = vmatpush1.msra.mxu0 0.0
      %5877 = vmatprep.subr.mxu0 0.0
      %5878 = vmatpush1.msra.mxu0 0.0
      %5879 = vmatprep.subr.mxu0 0.0
      %5880 = vmatpush1.msra.mxu0 0.0
      %5881 = vmatprep.subr.mxu0 0.0
      %5882 = vmatpush1.msra.mxu0 0.0
      %5883 = vmatprep.subr.mxu0 0.0
      %5884 = vmatpush1.msra.mxu0 0.0
      %5885 = vmatprep.subr.mxu0 0.0
      %5886 = vmatpush1.msra.mxu0 0.0
      %5887 = vmatprep.mubr.f32.mxu0 0.0
      %5888 = vmatmul.mubr.f32.gmra.mrb[0].mxu0 %v5821
      %v5889 = vpop.f32.mrb[0].mxu0
      %v5890 = vadd.f32 0.0, %v5889
      %v5891 = vpop.f32.mrb[0].mxu0
      %5892 = vdwg.mxu0
      %v5893 = vadd.f32 %v5650, %v5890
      %5894 = vrot.lane.b32.xlu0 %v5083, 104
      %v5895 = vpop.permute.xlu0 %5894
      %5896 = vrot.lane.b32.xlu0 %v5167, 104
      %v5897 = vpop.permute.xlu0 %5896
      %v5898 = vsel %vm1311, %v5895, 0
      %v5900 = vsel %vm1311, %v5897, 0
      %5902 = vmatprep.subr.mxu0 0.0
      %5903 = vmatpush1.xpose.msra.mxu0 %v5900
      %5904 = vmatprep.subr.mxu0 0.0
      %5905 = vmatpush1.xpose.msra.mxu0 0.0
      %5906 = vmatprep.subr.mxu0 0.0
      %5907 = vmatpush1.xpose.msra.mxu0 0.0
      %5908 = vmatprep.subr.mxu0 0.0
      %5909 = vmatpush1.xpose.msra.mxu0 0.0
      %5910 = vmatprep.subr.mxu0 0.0
      %5911 = vmatpush1.xpose.msra.mxu0 0.0
      %5912 = vmatprep.subr.mxu0 0.0
      %5913 = vmatpush1.xpose.msra.mxu0 0.0
      %5914 = vmatprep.subr.mxu0 0.0
      %5915 = vmatpush1.xpose.msra.mxu0 0.0
      %5916 = vmatprep.subr.mxu0 0.0
      %5917 = vmatpush1.xpose.msra.mxu0 0.0
      %5918 = vmatprep.subr.mxu0 0.0
      %5919 = vmatpush1.xpose.msra.mxu0 0.0
      %5920 = vmatprep.subr.mxu0 0.0
      %5921 = vmatpush1.xpose.msra.mxu0 0.0
      %5922 = vmatprep.subr.mxu0 0.0
      %5923 = vmatpush1.xpose.msra.mxu0 0.0
      %5924 = vmatprep.subr.mxu0 0.0
      %5925 = vmatpush1.xpose.msra.mxu0 0.0
      %5926 = vmatprep.subr.mxu0 0.0
      %5927 = vmatpush1.xpose.msra.mxu0 0.0
      %5928 = vmatprep.subr.mxu0 0.0
      %5929 = vmatpush1.xpose.msra.mxu0 0.0
      %5930 = vmatprep.subr.mxu0 0.0
      %5931 = vmatpush1.xpose.msra.mxu0 0.0
      %5932 = vmatprep.subr.mxu0 0.0
      %5933 = vmatpush1.xpose.msra.mxu0 0.0
      %5934 = vmatprep.subr.mxu0 0.0
      %5935 = vmatpush1.xpose.msra.mxu0 0.0
      %5936 = vmatprep.subr.mxu0 0.0
      %5937 = vmatpush1.xpose.msra.mxu0 0.0
      %5938 = vmatprep.subr.mxu0 0.0
      %5939 = vmatpush1.xpose.msra.mxu0 0.0
      %5940 = vmatprep.subr.mxu0 0.0
      %5941 = vmatpush1.xpose.msra.mxu0 0.0
      %5942 = vmatprep.subr.mxu0 0.0
      %5943 = vmatpush1.xpose.msra.mxu0 0.0
      %5944 = vmatprep.subr.mxu0 0.0
      %5945 = vmatpush1.xpose.msra.mxu0 0.0
      %5946 = vmatprep.subr.mxu0 0.0
      %5947 = vmatpush1.xpose.msra.mxu0 0.0
      %5948 = vmatprep.subr.mxu0 0.0
      %5949 = vmatpush1.xpose.msra.mxu0 0.0
      %5950 = vmatprep.subr.mxu0 0.0
      %5951 = vmatpush1.xpose.msra.mxu0 0.0
      %5952 = vmatprep.subr.mxu0 0.0
      %5953 = vmatpush1.xpose.msra.mxu0 0.0
      %5954 = vmatprep.subr.mxu0 0.0
      %5955 = vmatpush1.xpose.msra.mxu0 0.0
      %5956 = vmatprep.subr.mxu0 0.0
      %5957 = vmatpush1.xpose.msra.mxu0 0.0
      %5958 = vmatprep.subr.mxu0 0.0
      %5959 = vmatpush1.xpose.msra.mxu0 0.0
      %5960 = vmatprep.subr.mxu0 0.0
      %5961 = vmatpush1.xpose.msra.mxu0 0.0
      %5962 = vmatprep.subr.mxu0 0.0
      %5963 = vmatpush1.xpose.msra.mxu0 0.0
      %5964 = vmatprep.subr.mxu0 0.0
      %5965 = vmatpush1.xpose.msra.mxu0 0.0
      %5966 = vmatprep.mubr.f32.mxu0 0.0
      %5967 = vmatmul.mubr.f32.gmra.mrb[0].mxu0 %v5898
      %v5968 = vpop.f32.mrb[0].mxu0
      %v5969 = vadd.f32 0.0, %v5968
      %v5970 = vpop.f32.mrb[0].mxu0
      %5971 = vdwg.mxu0
      %v5972 = vmul.f32 %v5969, 0.35355338
      %v5973 = vadd.f32 %v5972, %v1162
      %v5974 = vsel %vm1311, %v5973, -inf
      %5975 = vmax.xlane.f32.xlu0 %v5974
      %v5976 = vpop.xlane.xlu0 %5975
      %v5977 = vsub.f32 %v5973, %v5976
      %v5978 = vmul.f32 %v5977, 1.442695
      %v5979 = vpow.pop %v5978
      %v5980 = vsel %vm1311, %v5979, 0.0
      %5981 = vadd.xlane.f32.xlu0 %v5980
      %v5982 = vpop.xlane.xlu0 %5981
      %v5983 = vrcp.pop %v5982
      %v5984 = vmul.f32 %v5979, %v5983
      %5985 = vrot.lane.b32.xlu0 %v5167, 72
      %v5986 = vpop.permute.xlu0 %5985
      %v5989 = vsel %vm1311, %v5984, 0
      %5991 = vmatprep.subr.mxu0 0.0
      %5992 = vmatpush1.msra.mxu0 %v5986
      %5993 = vmatprep.subr.mxu0 0.0
      %5994 = vmatpush1.msra.mxu0 0.0
      %5995 = vmatprep.subr.mxu0 0.0
      %5996 = vmatpush1.msra.mxu0 0.0
      %5997 = vmatprep.subr.mxu0 0.0
      %5998 = vmatpush1.msra.mxu0 0.0
      %5999 = vmatprep.subr.mxu0 0.0
      %6000 = vmatpush1.msra.mxu0 0.0
      %6001 = vmatprep.subr.mxu0 0.0
      %6002 = vmatpush1.msra.mxu0 0.0
      %6003 = vmatprep.subr.mxu0 0.0
      %6004 = vmatpush1.msra.mxu0 0.0
      %6005 = vmatprep.subr.mxu0 0.0
      %6006 = vmatpush1.msra.mxu0 0.0
      %6007 = vmatprep.subr.mxu0 0.0
      %6008 = vmatpush1.msra.mxu0 0.0
      %6009 = vmatprep.subr.mxu0 0.0
      %6010 = vmatpush1.msra.mxu0 0.0
      %6011 = vmatprep.subr.mxu0 0.0
      %6012 = vmatpush1.msra.mxu0 0.0
      %6013 = vmatprep.subr.mxu0 0.0
      %6014 = vmatpush1.msra.mxu0 0.0
      %6015 = vmatprep.subr.mxu0 0.0
      %6016 = vmatpush1.msra.mxu0 0.0
      %6017 = vmatprep.subr.mxu0 0.0
      %6018 = vmatpush1.msra.mxu0 0.0
      %6019 = vmatprep.subr.mxu0 0.0
      %6020 = vmatpush1.msra.mxu0 0.0
      %6021 = vmatprep.subr.mxu0 0.0
      %6022 = vmatpush1.msra.mxu0 0.0
      %6023 = vmatprep.subr.mxu0 0.0
      %6024 = vmatpush1.msra.mxu0 0.0
      %6025 = vmatprep.subr.mxu0 0.0
      %6026 = vmatpush1.msra.mxu0 0.0
      %6027 = vmatprep.subr.mxu0 0.0
      %6028 = vmatpush1.msra.mxu0 0.0
      %6029 = vmatprep.subr.mxu0 0.0
      %6030 = vmatpush1.msra.mxu0 0.0
      %6031 = vmatprep.subr.mxu0 0.0
      %6032 = vmatpush1.msra.mxu0 0.0
      %6033 = vmatprep.subr.mxu0 0.0
      %6034 = vmatpush1.msra.mxu0 0.0
      %6035 = vmatprep.subr.mxu0 0.0
      %6036 = vmatpush1.msra.mxu0 0.0
      %6037 = vmatprep.subr.mxu0 0.0
      %6038 = vmatpush1.msra.mxu0 0.0
      %6039 = vmatprep.subr.mxu0 0.0
      %6040 = vmatpush1.msra.mxu0 0.0
      %6041 = vmatprep.subr.mxu0 0.0
      %6042 = vmatpush1.msra.mxu0 0.0
      %6043 = vmatprep.subr.mxu0 0.0
      %6044 = vmatpush1.msra.mxu0 0.0
      %6045 = vmatprep.subr.mxu0 0.0
      %6046 = vmatpush1.msra.mxu0 0.0
      %6047 = vmatprep.subr.mxu0 0.0
      %6048 = vmatpush1.msra.mxu0 0.0
      %6049 = vmatprep.subr.mxu0 0.0
      %6050 = vmatpush1.msra.mxu0 0.0
      %6051 = vmatprep.subr.mxu0 0.0
      %6052 = vmatpush1.msra.mxu0 0.0
      %6053 = vmatprep.subr.mxu0 0.0
      %6054 = vmatpush1.msra.mxu0 0.0
      %6055 = vmatprep.mubr.f32.mxu0 0.0
      %6056 = vmatmul.mubr.f32.gmra.mrb[0].mxu0 %v5989
      %v6057 = vpop.f32.mrb[0].mxu0
      %v6058 = vadd.f32 0.0, %v6057
      %v6059 = vpop.f32.mrb[0].mxu0
      %6060 = vdwg.mxu0
      %v6062 = vsel %vm1311, %v6058, 0
      %6064 = vmatprep.subr.mxu0 0.0
      %6065 = vmatpush1.msra.mxu0 %v5173
      %6066 = vmatprep.subr.mxu0 0.0
      %6067 = vmatpush1.msra.mxu0 0.0
      %6068 = vmatprep.subr.mxu0 0.0
      %6069 = vmatpush1.msra.mxu0 0.0
      %6070 = vmatprep.subr.mxu0 0.0
      %6071 = vmatpush1.msra.mxu0 0.0
      %6072 = vmatprep.subr.mxu0 0.0
      %6073 = vmatpush1.msra.mxu0 0.0
      %6074 = vmatprep.subr.mxu0 0.0
      %6075 = vmatpush1.msra.mxu0 0.0
      %6076 = vmatprep.subr.mxu0 0.0
      %6077 = vmatpush1.msra.mxu0 0.0
      %6078 = vmatprep.subr.mxu0 0.0
      %6079 = vmatpush1.msra.mxu0 0.0
      %6080 = vmatprep.subr.mxu0 0.0
      %6081 = vmatpush1.msra.mxu0 0.0
      %6082 = vmatprep.subr.mxu0 0.0
      %6083 = vmatpush1.msra.mxu0 0.0
      %6084 = vmatprep.subr.mxu0 0.0
      %6085 = vmatpush1.msra.mxu0 0.0
      %6086 = vmatprep.subr.mxu0 0.0
      %6087 = vmatpush1.msra.mxu0 0.0
      %6088 = vmatprep.subr.mxu0 0.0
      %6089 = vmatpush1.msra.mxu0 0.0
      %6090 = vmatprep.subr.mxu0 0.0
      %6091 = vmatpush1.msra.mxu0 0.0
      %6092 = vmatprep.subr.mxu0 0.0
      %6093 = vmatpush1.msra.mxu0 0.0
      %6094 = vmatprep.subr.mxu0 0.0
      %6095 = vmatpush1.msra.mxu0 0.0
      %6096 = vmatprep.subr.mxu0 0.0
      %6097 = vmatpush1.msra.mxu0 0.0
      %6098 = vmatprep.subr.mxu0 0.0
      %6099 = vmatpush1.msra.mxu0 0.0
      %6100 = vmatprep.subr.mxu0 0.0
      %6101 = vmatpush1.msra.mxu0 0.0
      %6102 = vmatprep.subr.mxu0 0.0
      %6103 = vmatpush1.msra.mxu0 0.0
      %6104 = vmatprep.subr.mxu0 0.0
      %6105 = vmatpush1.msra.mxu0 0.0
      %6106 = vmatprep.subr.mxu0 0.0
      %6107 = vmatpush1.msra.mxu0 0.0
      %6108 = vmatprep.subr.mxu0 0.0
      %6109 = vmatpush1.msra.mxu0 0.0
      %6110 = vmatprep.subr.mxu0 0.0
      %6111 = vmatpush1.msra.mxu0 0.0
      %6112 = vmatprep.subr.mxu0 0.0
      %6113 = vmatpush1.msra.mxu0 0.0
      %6114 = vmatprep.subr.mxu0 0.0
      %6115 = vmatpush1.msra.mxu0 0.0
      %6116 = vmatprep.subr.mxu0 0.0
      %6117 = vmatpush1.msra.mxu0 0.0
      %6118 = vmatprep.subr.mxu0 0.0
      %6119 = vmatpush1.msra.mxu0 0.0
      %6120 = vmatprep.subr.mxu0 0.0
      %6121 = vmatpush1.msra.mxu0 0.0
      %6122 = vmatprep.subr.mxu0 0.0
      %6123 = vmatpush1.msra.mxu0 0.0
      %6124 = vmatprep.subr.mxu0 0.0
      %6125 = vmatpush1.msra.mxu0 0.0
      %6126 = vmatprep.subr.mxu0 0.0
      %6127 = vmatpush1.msra.mxu0 0.0
      %6128 = vmatprep.mubr.f32.mxu0 0.0
      %6129 = vmatmul.mubr.f32.gmra.mrb[0].mxu0 %v6062
      %v6130 = vpop.f32.mrb[0].mxu0
      %v6131 = vadd.f32 0.0, %v6130
      %v6132 = vpop.f32.mrb[0].mxu0
      %6133 = vdwg.mxu0
      %v6134 = vadd.f32 %v5893, %v6131
      %v6136 = vlaneseq
      %v6137 = vshrl.u32 %v6136, 7
      %v6138 = vsub.s32 0, %v6137
      %v6139 = vrot.slane %v5174, %v6138
      %v6141 = vadd.f32 %v6134, %v6139
      %v6142 = vadd.f32 %v5001, %v6141
      %v6143 = vsel %vm1168, %v6142, 0.0
      %6144 = vadd.xlane.f32.xlu0 %v6143
      %v6145 = vpop.xlane.xlu0 %6144
      %v6146 = vmul.f32 %v6145, %v1175
      %v6147 = vsub.f32 %v6142, %v6146
      %v6148 = vmul.f32 %v6147, %v6147
      %v6149 = vsel %vm1168, %v6148, 0.0
      %6150 = vadd.xlane.f32.xlu0 %v6149
      %v6151 = vpop.xlane.xlu0 %6150
      %v6152 = vmul.f32 %v6151, %v1175
      %v6153 = vadd.f32 %v6152, 1e-05
      %v6154 = vrsqrt.pop %v6153
      %v6155 = vmul.f32 %v6147, %v6154
      %v6156 = vlaneseq
      %v6157 = vshrl.u32 %v6156, 7
      %v6158 = vsub.s32 6, %v6157
      %v6159 = vrot.slane %v1143, %v6158
      %v6160 = vmul.f32 %v6155, %v6159
      %v6161 = vlaneseq
      %v6162 = vshrl.u32 %v6161, 7
      %v6163 = vsub.s32 6, %v6162
      %v6164 = vrot.slane %v1144, %v6163
      %v6165 = vadd.f32 %v6160, %v6164
      %v6166 = vld [vmem:[%s61] sm:$0xff]
      %v6167 = vld [vmem:[%s61 + $0x8] sm:$0xff]
      %v6168 = vld [vmem:[%s61 + $0x10] sm:$0xff]
      %v6169 = vld [vmem:[%s61 + $0x18] sm:$0xff]
      %v6170 = vld [vmem:[%s63] sm:$0x1]
      %v6172 = vlaneseq
      %v6173 = vshrl.u32 %v6172, 7
      %v6174 = vsub.s32 0, %v6173
      %v6175 = vrot.slane %v6170, %v6174
      %v6178 = vsel %vm1168, %v6165, 0
      %6180 = vmatprep.subr.mxu0 0.0
      %6181 = vmatpush1.msra.mxu0 %v6166
      %6182 = vmatprep.subr.mxu0 0.0
      %6183 = vmatpush1.msra.mxu0 %v6167
      %6184 = vmatprep.subr.mxu0 0.0
      %6185 = vmatpush1.msra.mxu0 %v6168
      %6186 = vmatprep.subr.mxu0 0.0
      %6187 = vmatpush1.msra.mxu0 %v6169
      %6188 = vmatprep.subr.mxu0 0.0
      %6189 = vmatpush1.msra.mxu0 0.0
      %6190 = vmatprep.subr.mxu0 0.0
      %6191 = vmatpush1.msra.mxu0 0.0
      %6192 = vmatprep.subr.mxu0 0.0
      %6193 = vmatpush1.msra.mxu0 0.0
      %6194 = vmatprep.subr.mxu0 0.0
      %6195 = vmatpush1.msra.mxu0 0.0
      %6196 = vmatprep.subr.mxu0 0.0
      %6197 = vmatpush1.msra.mxu0 0.0
      %6198 = vmatprep.subr.mxu0 0.0
      %6199 = vmatpush1.msra.mxu0 0.0
      %6200 = vmatprep.subr.mxu0 0.0
      %6201 = vmatpush1.msra.mxu0 0.0
      %6202 = vmatprep.subr.mxu0 0.0
      %6203 = vmatpush1.msra.mxu0 0.0
      %6204 = vmatprep.subr.mxu0 0.0
      %6205 = vmatpush1.msra.mxu0 0.0
      %6206 = vmatprep.subr.mxu0 0.0
      %6207 = vmatpush1.msra.mxu0 0.0
      %6208 = vmatprep.subr.mxu0 0.0
      %6209 = vmatpush1.msra.mxu0 0.0
      %6210 = vmatprep.subr.mxu0 0.0
      %6211 = vmatpush1.msra.mxu0 0.0
      %6212 = vmatprep.subr.mxu0 0.0
      %6213 = vmatpush1.msra.mxu0 0.0
      %6214 = vmatprep.subr.mxu0 0.0
      %6215 = vmatpush1.msra.mxu0 0.0
      %6216 = vmatprep.subr.mxu0 0.0
      %6217 = vmatpush1.msra.mxu0 0.0
      %6218 = vmatprep.subr.mxu0 0.0
      %6219 = vmatpush1.msra.mxu0 0.0
      %6220 = vmatprep.subr.mxu0 0.0
      %6221 = vmatpush1.msra.mxu0 0.0
      %6222 = vmatprep.subr.mxu0 0.0
      %6223 = vmatpush1.msra.mxu0 0.0
      %6224 = vmatprep.subr.mxu0 0.0
      %6225 = vmatpush1.msra.mxu0 0.0
      %6226 = vmatprep.subr.mxu0 0.0
      %6227 = vmatpush1.msra.mxu0 0.0
      %6228 = vmatprep.subr.mxu0 0.0
      %6229 = vmatpush1.msra.mxu0 0.0
      %6230 = vmatprep.subr.mxu0 0.0
      %6231 = vmatpush1.msra.mxu0 0.0
      %6232 = vmatprep.subr.mxu0 0.0
      %6233 = vmatpush1.msra.mxu0 0.0
      %6234 = vmatprep.subr.mxu0 0.0
      %6235 = vmatpush1.msra.mxu0 0.0
      %6236 = vmatprep.subr.mxu0 0.0
      %6237 = vmatpush1.msra.mxu0 0.0
      %6238 = vmatprep.subr.mxu0 0.0
      %6239 = vmatpush1.msra.mxu0 0.0
      %6240 = vmatprep.subr.mxu0 0.0
      %6241 = vmatpush1.msra.mxu0 0.0
      %6242 = vmatprep.subr.mxu0 0.0
      %6243 = vmatpush1.msra.mxu0 0.0
      %6244 = vmatprep.mubr.f32.mxu0 0.0
      %6245 = vmatmul.mubr.f32.gmra.mrb[0].mxu0 %v6178
      %v6246 = vpop.f32.mrb[0].mxu0
      %v6247 = vadd.f32 %v6175, %v6246
      %v6248 = vpop.f32.mrb[0].mxu0
      %6249 = vdwg.mxu0
      %v6250 = vmax.f32 %v6247, 0.0
      %v6251 = vld [vmem:[%s65] sm:$0xff]
      %v6252 = vld [vmem:[%s65 + $0x8] sm:$0xff]
      %v6253 = vld [vmem:[%s65 + $0x10] sm:$0xff]
      %v6254 = vld [vmem:[%s65 + $0x18] sm:$0xff]
      %v6255 = vld [vmem:[%s65 + $0x20] sm:$0xff]
      %v6256 = vld [vmem:[%s65 + $0x28] sm:$0xff]
      %v6257 = vld [vmem:[%s65 + $0x30] sm:$0xff]
      %v6258 = vld [vmem:[%s65 + $0x38] sm:$0xff]
      %v6259 = vld [vmem:[%s67] sm:$0x1]
      %v6261 = vlaneseq
      %v6262 = vshrl.u32 %v6261, 7
      %v6263 = vsub.s32 0, %v6262
      %v6264 = vrot.slane %v6259, %v6263
      %v6267 = vsel %vm2606, %v6250, 0
      %6269 = vmatprep.subr.mxu0 0.0
      %6270 = vmatpush1.msra.mxu0 %v6251
      %6271 = vmatprep.subr.mxu0 0.0
      %6272 = vmatpush1.msra.mxu0 %v6252
      %6273 = vmatprep.subr.mxu0 0.0
      %6274 = vmatpush1.msra.mxu0 %v6253
      %6275 = vmatprep.subr.mxu0 0.0
      %6276 = vmatpush1.msra.mxu0 %v6254
      %6277 = vmatprep.subr.mxu0 0.0
      %6278 = vmatpush1.msra.mxu0 %v6255
      %6279 = vmatprep.subr.mxu0 0.0
      %6280 = vmatpush1.msra.mxu0 %v6256
      %6281 = vmatprep.subr.mxu0 0.0
      %6282 = vmatpush1.msra.mxu0 %v6257
      %6283 = vmatprep.subr.mxu0 0.0
      %6284 = vmatpush1.msra.mxu0 %v6258
      %6285 = vmatprep.subr.mxu0 0.0
      %6286 = vmatpush1.msra.mxu0 0.0
      %6287 = vmatprep.subr.mxu0 0.0
      %6288 = vmatpush1.msra.mxu0 0.0
      %6289 = vmatprep.subr.mxu0 0.0
      %6290 = vmatpush1.msra.mxu0 0.0
      %6291 = vmatprep.subr.mxu0 0.0
      %6292 = vmatpush1.msra.mxu0 0.0
      %6293 = vmatprep.subr.mxu0 0.0
      %6294 = vmatpush1.msra.mxu0 0.0
      %6295 = vmatprep.subr.mxu0 0.0
      %6296 = vmatpush1.msra.mxu0 0.0
      %6297 = vmatprep.subr.mxu0 0.0
      %6298 = vmatpush1.msra.mxu0 0.0
      %6299 = vmatprep.subr.mxu0 0.0
      %6300 = vmatpush1.msra.mxu0 0.0
      %6301 = vmatprep.subr.mxu0 0.0
      %6302 = vmatpush1.msra.mxu0 0.0
      %6303 = vmatprep.subr.mxu0 0.0
      %6304 = vmatpush1.msra.mxu0 0.0
      %6305 = vmatprep.subr.mxu0 0.0
      %6306 = vmatpush1.msra.mxu0 0.0
      %6307 = vmatprep.subr.mxu0 0.0
      %6308 = vmatpush1.msra.mxu0 0.0
      %6309 = vmatprep.subr.mxu0 0.0
      %6310 = vmatpush1.msra.mxu0 0.0
      %6311 = vmatprep.subr.mxu0 0.0
      %6312 = vmatpush1.msra.mxu0 0.0
      %6313 = vmatprep.subr.mxu0 0.0
      %6314 = vmatpush1.msra.mxu0 0.0
      %6315 = vmatprep.subr.mxu0 0.0
      %6316 = vmatpush1.msra.mxu0 0.0
      %6317 = vmatprep.subr.mxu0 0.0
      %6318 = vmatpush1.msra.mxu0 0.0
      %6319 = vmatprep.subr.mxu0 0.0
      %6320 = vmatpush1.msra.mxu0 0.0
      %6321 = vmatprep.subr.mxu0 0.0
      %6322 = vmatpush1.msra.mxu0 0.0
      %6323 = vmatprep.subr.mxu0 0.0
      %6324 = vmatpush1.msra.mxu0 0.0
      %6325 = vmatprep.subr.mxu0 0.0
      %6326 = vmatpush1.msra.mxu0 0.0
      %6327 = vmatprep.subr.mxu0 0.0
      %6328 = vmatpush1.msra.mxu0 0.0
      %6329 = vmatprep.subr.mxu0 0.0
      %6330 = vmatpush1.msra.mxu0 0.0
      %6331 = vmatprep.subr.mxu0 0.0
      %6332 = vmatpush1.msra.mxu0 0.0
      %6333 = vmatprep.mubr.f32.mxu0 0.0
      %6334 = vmatmul.mubr.f32.gmra.mrb[0].mxu0 %v6267
      %v6335 = vpop.f32.mrb[0].mxu0
      %v6336 = vadd.f32 %v6264, %v6335
      %v6337 = vpop.f32.mrb[0].mxu0
      %6338 = vdwg.mxu0
      %v6339 = vadd.f32 %v6165, %v6336
      %v6340 = vsel %vm1168, %v6339, 0.0
      %6341 = vadd.xlane.f32.xlu0 %v6340
      %v6342 = vpop.xlane.xlu0 %6341
      %v6343 = vmul.f32 %v6342, %v1175
      %v6344 = vsub.f32 %v6339, %v6343
      %v6345 = vmul.f32 %v6344, %v6344
      %v6346 = vsel %vm1168, %v6345, 0.0
      %6347 = vadd.xlane.f32.xlu0 %v6346
      %v6348 = vpop.xlane.xlu0 %6347
      %v6349 = vmul.f32 %v6348, %v1175
      %v6350 = vadd.f32 %v6349, 1e-05
      %v6351 = vrsqrt.pop %v6350
      %v6352 = vmul.f32 %v6344, %v6351
      %v6353 = vlaneseq
      %v6354 = vshrl.u32 %v6353, 7
      %v6355 = vsub.s32 7, %v6354
      %v6356 = vrot.slane %v1143, %v6355
      %v6357 = vmul.f32 %v6352, %v6356
      %v6358 = vlaneseq
      %v6359 = vshrl.u32 %v6358, 7
      %v6360 = vsub.s32 7, %v6359
      %v6361 = vrot.slane %v1144, %v6360
      %v6362 = vadd.f32 %v6357, %v6361
      %v6363 = vld [vmem:[%s69] sm:$0xff]
      %v6364 = vld [vmem:[%s69 + $0x8] sm:$0xff]
      %v6365 = vld [vmem:[%s69 + $0x10] sm:$0xff]
      %v6366 = vld [vmem:[%s69 + $0x18] sm:$0xff]
      %v6367 = vld [vmem:[%s71] sm:$0x1]
      %v6369 = vlaneseq
      %v6370 = vshrl.u32 %v6369, 7
      %v6371 = vsub.s32 0, %v6370
      %v6372 = vrot.slane %v6367, %v6371
      %v6375 = vsel %vm1168, %v6362, 0
      %6377 = vmatprep.subr.mxu0 0.0
      %6378 = vmatpush1.msra.mxu0 %v6363
      %6379 = vmatprep.subr.mxu0 0.0
      %6380 = vmatpush1.msra.mxu0 %v6364
      %6381 = vmatprep.subr.mxu0 0.0
      %6382 = vmatpush1.msra.mxu0 %v6365
      %6383 = vmatprep.subr.mxu0 0.0
      %6384 = vmatpush1.msra.mxu0 %v6366
      %6385 = vmatprep.subr.mxu0 0.0
      %6386 = vmatpush1.msra.mxu0 0.0
      %6387 = vmatprep.subr.mxu0 0.0
      %6388 = vmatpush1.msra.mxu0 0.0
      %6389 = vmatprep.subr.mxu0 0.0
      %6390 = vmatpush1.msra.mxu0 0.0
      %6391 = vmatprep.subr.mxu0 0.0
      %6392 = vmatpush1.msra.mxu0 0.0
      %6393 = vmatprep.subr.mxu0 0.0
      %6394 = vmatpush1.msra.mxu0 0.0
      %6395 = vmatprep.subr.mxu0 0.0
      %6396 = vmatpush1.msra.mxu0 0.0
      %6397 = vmatprep.subr.mxu0 0.0
      %6398 = vmatpush1.msra.mxu0 0.0
      %6399 = vmatprep.subr.mxu0 0.0
      %6400 = vmatpush1.msra.mxu0 0.0
      %6401 = vmatprep.subr.mxu0 0.0
      %6402 = vmatpush1.msra.mxu0 0.0
      %6403 = vmatprep.subr.mxu0 0.0
      %6404 = vmatpush1.msra.mxu0 0.0
      %6405 = vmatprep.subr.mxu0 0.0
      %6406 = vmatpush1.msra.mxu0 0.0
      %6407 = vmatprep.subr.mxu0 0.0
      %6408 = vmatpush1.msra.mxu0 0.0
      %6409 = vmatprep.subr.mxu0 0.0
      %6410 = vmatpush1.msra.mxu0 0.0
      %6411 = vmatprep.subr.mxu0 0.0
      %6412 = vmatpush1.msra.mxu0 0.0
      %6413 = vmatprep.subr.mxu0 0.0
      %6414 = vmatpush1.msra.mxu0 0.0
      %6415 = vmatprep.subr.mxu0 0.0
      %6416 = vmatpush1.msra.mxu0 0.0
      %6417 = vmatprep.subr.mxu0 0.0
      %6418 = vmatpush1.msra.mxu0 0.0
      %6419 = vmatprep.subr.mxu0 0.0
      %6420 = vmatpush1.msra.mxu0 0.0
      %6421 = vmatprep.subr.mxu0 0.0
      %6422 = vmatpush1.msra.mxu0 0.0
      %6423 = vmatprep.subr.mxu0 0.0
      %6424 = vmatpush1.msra.mxu0 0.0
      %6425 = vmatprep.subr.mxu0 0.0
      %6426 = vmatpush1.msra.mxu0 0.0
      %6427 = vmatprep.subr.mxu0 0.0
      %6428 = vmatpush1.msra.mxu0 0.0
      %6429 = vmatprep.subr.mxu0 0.0
      %6430 = vmatpush1.msra.mxu0 0.0
      %6431 = vmatprep.subr.mxu0 0.0
      %6432 = vmatpush1.msra.mxu0 0.0
      %6433 = vmatprep.subr.mxu0 0.0
      %6434 = vmatpush1.msra.mxu0 0.0
      %6435 = vmatprep.subr.mxu0 0.0
      %6436 = vmatpush1.msra.mxu0 0.0
      %6437 = vmatprep.subr.mxu0 0.0
      %6438 = vmatpush1.msra.mxu0 0.0
      %6439 = vmatprep.subr.mxu0 0.0
      %6440 = vmatpush1.msra.mxu0 0.0
      %6441 = vmatprep.mubr.f32.mxu0 0.0
      %6442 = vmatmul.mubr.f32.gmra.mrb[0].mxu0 %v6375
      %v6443 = vpop.f32.mrb[0].mxu0
      %v6444 = vadd.f32 %v6372, %v6443
      %v6445 = vpop.f32.mrb[0].mxu0
      %6446 = vdwg.mxu0
      %v6447 = vld [vmem:[%s1139] sm:$0xff]
      %6448 = vset.pattern.permute.xlu0 0
      %6449 = vperm.xlu0 %6448, %v6447
      %v6450 = vpop.permute.xlu0 %6449
      %vm6451 = vcmp.eq.s32.totalorder %v1152, %v6450
      %v6452 = vsel %vm6451, %v6444, 0.0
      %v6453 = vsel %vm2606, %v6452, 0.0
      %6454 = vadd.xlane.f32.xlu0 %v6453
      %v6455 = vpop.xlane.xlu0 %6454
      %v6456 = vsel %vm2606, %v6444, -inf
      %6457 = vmax.xlane.f32.xlu0 %v6456
      %v6458 = vpop.xlane.xlu0 %6457
      %v6459 = vsub.f32 %v6444, %v6458
      %v6460 = vmul.f32 %v6459, 1.442695
      %v6461 = vpow.pop %v6460
      %v6462 = vsel %vm2606, %v6461, 0.0
      %6463 = vadd.xlane.f32.xlu0 %v6462
      %v6464 = vpop.xlane.xlu0 %6463
      %v6465 = vlog2.pop %v6464
      %v6466 = vmul.f32 %v6465, 0.6931472
      %v6467 = vadd.f32 %v6458, %v6466
      %v6468 = vsub.f32 %v6467, %v6455
      %vm6469 = vcmp.ne.s32.totalorder %v6447, 0
      %v6470 = vsel %vm6469, 1, 0
      %v6471 = vcvt.s32.f32 %v6470
      %v6472 = vmul.f32 %v6468, %v6471
      %vm6473 = vcmask 7168
      %v6474 = vsel %vm6473, %v6472, 0.0
      %6475 = vadd.xlane.f32.xlu0 %v6474
      %v6476 = vpop.xlane.xlu0 %6475
      %v6477 = vrot.slane %v6476, 4
      %v6478 = vadd.f32 %v6476, %v6477
      %v6479 = vrot.slane %v6478, 2
      %v6480 = vadd.f32 %v6478, %v6479
      %v6481 = vrot.slane %v6480, 1
      %v6482 = vadd.f32 %v6480, %v6481
      %s6483 = vtos %v6482
      %vm6484 = vcmp.ge.f32.partialorder %v6455, %v6458
      %v6485 = vsel %vm6484, 1.0, 0.0
      %v6486 = vmul.f32 %v6485, %v6471
      %v6487 = vsel %vm6473, %v6486, 0.0
      %6488 = vadd.xlane.f32.xlu0 %v6487
      %v6489 = vpop.xlane.xlu0 %6488
      %v6490 = vrot.slane %v6489, 4
      %v6491 = vadd.f32 %v6489, %v6490
      %v6492 = vrot.slane %v6491, 2
      %v6493 = vadd.f32 %v6491, %v6492
      %v6494 = vrot.slane %v6493, 1
      %v6495 = vadd.f32 %v6493, %v6494
      %s6496 = vtos %v6495
      %v6497 = vsel %vm6473, %v6471, 0.0
      %6498 = vadd.xlane.f32.xlu0 %v6497
      %v6499 = vpop.xlane.xlu0 %6498
      %v6500 = vrot.slane %v6499, 4
      %v6501 = vadd.f32 %v6499, %v6500
      %v6502 = vrot.slane %v6501, 2
      %v6503 = vadd.f32 %v6501, %v6502
      %v6504 = vrot.slane %v6503, 1
      %v6505 = vadd.f32 %v6503, %v6504
      %s6506 = vtos %v6505
      %vm6507 = vcmp.eq.s32.totalorder %v1152, 0
      %v6508 = vstv %s6483
      %v6509 = vsel %vm6507, %v6508, 0.0
      %vm6510 = vcmp.eq.s32.totalorder %v1152, 1
      %v6511 = vstv %s6496
      %v6512 = vsel %vm6510, %v6511, 0.0
      %v6513 = vadd.f32 %v6509, %v6512
      %vm6514 = vcmp.eq.s32.totalorder %v1152, 2
      %v6515 = vstv %s6506
      %v6516 = vsel %vm6514, %v6515, 0.0
      %v6517 = vadd.f32 %v6513, %v6516
      %6518 = vst [vmem:[%s1142] sm:$0x1] %v6517
      %p6519 = scmp.lt.s32.totalorder %s84, 1
      %s6520 = scalar_select %p6519, %s84, 1
      %s6521 = scalar_lea.vmem %s73, %s6520
      // Predicated region
      $region165: #{pegasus_forward.1} parent=163 // pred_check
        %p6522 = pneg %p878
      $region166: #{pegasus_forward.1} parent=163 // pred_check_branch
        %6524 = sbr.rel (%p6522) target = $region168
      $region167: #{pegasus_forward.1} parent=163 // pred_region
        _
      $region168: #{pegasus_forward.1} parent=163 // pred_fallthru
        _
    $region164: #{pegasus_forward.1} parent=5 // pred_fallthru
      _
    %p6525 = scmp.le.s32.totalorder 2, %s79
    // Predicated region
    $region169: #{pegasus_forward.1} parent=5 // pred_check
      %p6526 = pneg %p6525
    $region170: #{pegasus_forward.1} parent=5 // pred_check_branch
      %6528 = sbr.rel (%p6526) target = $region172
    $region171: #{pegasus_forward.1} parent=5 // pred_region
      %s6529 = ssub.s32 %s79, 2
      // Predicated region
      $region173: #{pegasus_forward.1} parent=171 // pred_check
        %p6530 = pneg %p884
      $region174: #{pegasus_forward.1} parent=171 // pred_check_branch
        %6532 = sbr.rel (%p6530) target = $region176
      $region175: #{pegasus_forward.1} parent=171 // pred_region
        %p6533 = scmp.lt.s32.totalorder %s85, 1
        %s6534 = scalar_select %p6533, %s85, 1
        %s6535 = scalar_lea.vmem %s73, %s6534
      $region176: #{pegasus_forward.1} parent=171 // pred_fallthru
        _
    $region172: #{pegasus_forward.1} parent=5 // pred_fallthru
      _
  $region6: #{pegasus_forward.1} parent=0 // loop_footer
    %s83 = sadd.s32 1, %s79
  $region7: #{pegasus_forward.1} parent=0 // loop_footer_branch
    %78 = sbr.rel target = $region3
  $region8: #{pegasus_forward.1} parent=0 // loop_exit
    _

</llo_original>
